<compile_context>
chip_gen: v7x
topology: tpu7x:2x2x1
jax: 0.10.0
libtpu: 0.0.40
codegen_flags: <defaults>
</compile_context>

<pallas_src>
import jax
import jax.numpy as jnp
from jax.experimental import pallas as pl
from jax.experimental.pallas import tpu as pltpu


# ----------------------------------------------------------------------------
# Fused kernel
# ----------------------------------------------------------------------------
def _deconv_layer_kernel(x1p_ref, x2p_ref, wdec_ref, bdec_ref,
                         w2a_ref, b2a_ref, wcat_ref, bout_ref,
                         out_ref, fmx_ref):
    _, HT, W2, Cout = out_ref.shape
    K1 = x1p_ref.shape[3]            # 4 * C1 (parity-expanded deconv input)
    K2 = x2p_ref.shape[3]            # 9 * C2 (im2col'd conv2a input)
    C2x = fmx_ref.shape[3]           # 2 * Cout (dec || ReLU(conv2a))
    HTp2 = HT + 2
    n_h = pl.num_programs(1)
    h = pl.program_id(1)
    r0 = pl.multiple_of(h * HT, HT)  # row offset into the H-padded inputs

    # ---- front layers for this row tile (+1 halo row each side) -------------
    # ConvTranspose2d(k=2,s=2) == one lane-dense matmul on the parity-expanded
    # input; conv2a(3x3)+BN+ReLU == one matmul on the im2col'd input.
    x1f = x1p_ref[0, pl.ds(r0, HTp2), :, :].reshape(HTp2 * W2, K1)
    dec = jnp.dot(x1f, wdec_ref[...], preferred_element_type=jnp.float32)
    dec_b = (dec + bdec_ref[...]).astype(fmx_ref.dtype).reshape(HTp2, W2, Cout)

    x2f = x2p_ref[0, pl.ds(r0, HTp2), :, :].reshape(HTp2 * W2, K2)
    hm = jnp.dot(x2f, w2a_ref[...], preferred_element_type=jnp.float32)
    hm_b = jnp.maximum(hm + b2a_ref[...], 0.0).astype(fmx_ref.dtype)
    hm_b = hm_b.reshape(HTp2, W2, Cout)

    # ---- write the 3 column-shifted copies into the combined scratch --------
    # copy kx holds F(r0+row-1, j+kx-1): dec in lanes [0,Cout),
    # ReLU(conv2a) in lanes [Cout, 2*Cout).  Shift is paid once here (write
    # side); the 9 MXU lhs reads below are aligned leading-dim slices.
    zcol = jnp.zeros((HTp2, 1, C2x), fmx_ref.dtype)
    # kx = 1 : unshifted
    fmx_ref[1, :, :, 0:Cout] = dec_b
    fmx_ref[1, :, :, Cout:C2x] = hm_b
    # kx = 0 : shifted right by one column, zero left halo column
    fmx_ref[0, :, 1:W2, 0:Cout] = dec_b[:, 0:W2 - 1, :]
    fmx_ref[0, :, 1:W2, Cout:C2x] = hm_b[:, 0:W2 - 1, :]
    fmx_ref[0, :, 0:1, :] = zcol
    # kx = 2 : shifted left by one column, zero right halo column
    fmx_ref[2, :, 0:W2 - 1, 0:Cout] = dec_b[:, 1:W2, :]
    fmx_ref[2, :, 0:W2 - 1, Cout:C2x] = hm_b[:, 1:W2, :]
    fmx_ref[2, :, W2 - 1:W2, :] = zcol

    # zero only the top / bottom halo rows at the image borders (the interior
    # rows were fully overwritten above) -> every step is self contained, the
    # h axis can be "parallel".
    zrow = jnp.zeros((1, W2, C2x), fmx_ref.dtype)

    @pl.when(h == 0)
    def _():
        for kx in range(3):
            fmx_ref[kx, 0:1, :, :] = zrow

    @pl.when(h == n_h - 1)
    def _():
        for kx in range(3):
            fmx_ref[kx, HT + 1:HT + 2, :, :] = zrow

    # ---- heavy 3x3 convs: 9 (or 18) K=2*Cout bf16 MXU dots, f32 accumulate --
    # conv1(dec) + conv2b(hmid) share one accumulator -> add + ReLU fused.
    M = HT * W2
    n_half = 2 if M > 128 else 1     # keep the live f32 accumulator <= 32 vregs
    NH = Cout // n_half
    for jh in range(n_half):
        acc = jnp.zeros((M, NH), jnp.float32)
        for ky in range(3):
            for kx in range(3):
                # leading-dim slice + layout-free reshape (no relayout copy)
                lhs = fmx_ref[kx, ky:ky + HT, :, :].reshape(M, C2x)
                acc = acc + jnp.dot(
                    lhs, wcat_ref[ky, kx, :, jh * NH:(jh + 1) * NH],
                    preferred_element_type=jnp.float32)
        acc = jnp.maximum(acc + bout_ref[:, jh * NH:(jh + 1) * NH], 0.0)
        out_ref[0, :, :, jh * NH:(jh + 1) * NH] = (
            acc.reshape(HT, W2, NH).astype(out_ref.dtype))


# ----------------------------------------------------------------------------
# Tiling helpers (generation dependent, per the perf review)
# ----------------------------------------------------------------------------
def _max_rows_per_tile():
    """MXU streaming-row target: 128 on pre-v6 chips, 256 on v6e/v7x."""
    try:
        kind = jax.devices()[0].device_kind.lower()
    except Exception:
        kind = ""
    if "v6" in kind or "v7" in kind:
        return 256
    return 128


def _pick_row_tile(H2, W2, max_rows):
    """Largest divisor HT of H2 with HT*W2 <= max_rows (falls back to 1 for
    very wide images; the in-kernel output-half split then bounds vregs)."""
    best = 1
    for ht in range(1, H2 + 1):
        if H2 % ht == 0 and ht * W2 <= max_rows:
            best = ht
    return best


# ----------------------------------------------------------------------------
# Wrapper-side parameter folding (BN eval-mode -> conv weights/bias, bf16 cast)
# ----------------------------------------------------------------------------
def fold_params(p):
    Cout = p["w_c1"].shape[-1]
    C1 = p["w_dec"].shape[2]
    C2 = p["w_c2a"].shape[2]
    w_c1 = p["w_c1"] * p["s1"].reshape(1, 1, 1, Cout)
    w_c2b = p["w_c2b"] * p["s2b"].reshape(1, 1, 1, Cout)
    # Concatenate conv1 / conv2b taps along K -> 9 dots of (M,512)x(512,256).
    w_cat = jnp.concatenate([w_c1, w_c2b], axis=2).astype(jnp.bfloat16)
    w_c2a = (p["w_c2a"] * p["s2a"].reshape(1, 1, 1, Cout)
             ).reshape(9 * C2, Cout).astype(jnp.bfloat16)
    b_c2a = (p["b_c2a"].reshape(-1) * p["s2a"].reshape(-1)
             + p["t2a"].reshape(-1)).reshape(1, Cout).astype(jnp.float32)
    b_out = (p["b_c1"].reshape(-1) * p["s1"].reshape(-1) + p["t1"].reshape(-1)
             + p["b_c2b"].reshape(-1) * p["s2b"].reshape(-1)
             + p["t2b"].reshape(-1)).reshape(1, Cout).astype(jnp.float32)
    return dict(
        w_dec=p["w_dec"].reshape(4 * C1, Cout).astype(jnp.bfloat16),
        b_dec=p["b_dec"].reshape(1, Cout).astype(jnp.float32),
        w_c2a=w_c2a, b_c2a=b_c2a,
        w_cat=w_cat, b_out=b_out)


# ----------------------------------------------------------------------------
# Full DeconvLayer forward (NCHW in / NCHW out, like the PyTorch module)
# ----------------------------------------------------------------------------
def deconv_layer_forward(x1_nchw, x2_nchw, fp):
    x1 = jnp.transpose(x1_nchw, (0, 2, 3, 1)).astype(jnp.float32)   # NHWC
    x2 = jnp.transpose(x2_nchw, (0, 2, 3, 1)).astype(jnp.float32)
    N, H1, W1, C1 = x1.shape
    _, H2, W2, C2 = x2.shape
    assert H2 == 2 * H1 and W2 == 2 * W1
    Cout = fp["w_cat"].shape[-1]
    K1, K2 = 4 * C1, 9 * C2

    # Tiny-channel XLA preprocessing (lane-dense, bf16, one zero halo row
    # top+bottom so every row tile reads a static HT+2 window).
    x1up = jnp.repeat(jnp.repeat(x1, 2, axis=1), 2, axis=2)          # (N,H2,W2,C1)
    sel = 2 * (jnp.arange(H2) % 2)[:, None] + (jnp.arange(W2) % 2)[None, :]
    onehot = jax.nn.one_hot(sel, 4, dtype=x1.dtype)                  # (H2,W2,4)
    x1cat = (x1up[:, :, :, None, :] * onehot[None, :, :, :, None]
             ).reshape(N, H2, W2, K1)
    x1cat_p = jnp.pad(x1cat, ((0, 0), (1, 1), (0, 0), (0, 0))
                      ).astype(jnp.bfloat16)                         # (N,H2+2,W2,K1)

    x2pad = jnp.pad(x2, ((0, 0), (1, 1), (1, 1), (0, 0)))
    x2col = jnp.concatenate(
        [x2pad[:, ky:ky + H2, kx:kx + W2, :] for ky in range(3) for kx in range(3)],
        axis=-1)                                                     # (N,H2,W2,9*C2)
    x2col_p = jnp.pad(x2col, ((0, 0), (1, 1), (0, 0), (0, 0))
                      ).astype(jnp.bfloat16)                         # (N,H2+2,W2,K2)

    HT = _pick_row_tile(H2, W2, _max_rows_per_tile())
    n_h = H2 // HT

    out = pl.pallas_call(
        _deconv_layer_kernel,
        out_shape=jax.ShapeDtypeStruct((N, H2, W2, Cout), jnp.float32),
        grid=(N, n_h),
        in_specs=[
            pl.BlockSpec((1, H2 + 2, W2, K1), lambda n, h: (n, 0, 0, 0)),
            pl.BlockSpec((1, H2 + 2, W2, K2), lambda n, h: (n, 0, 0, 0)),
            pl.BlockSpec((K1, Cout), lambda n, h: (0, 0)),
            pl.BlockSpec((1, Cout), lambda n, h: (0, 0)),
            pl.BlockSpec((K2, Cout), lambda n, h: (0, 0)),
            pl.BlockSpec((1, Cout), lambda n, h: (0, 0)),
            pl.BlockSpec((3, 3, 2 * Cout, Cout), lambda n, h: (0, 0, 0, 0)),
            pl.BlockSpec((1, Cout), lambda n, h: (0, 0)),
        ],
        out_specs=pl.BlockSpec((1, HT, W2, Cout), lambda n, h: (n, h, 0, 0)),
        scratch_shapes=[
            # 3 column-shifted copies of (dec || ReLU(conv2a)) for this tile.
            pltpu.VMEM((3, HT + 2, W2, 2 * Cout), jnp.bfloat16),
        ],
        compiler_params=pltpu.CompilerParams(
            # Per-tile front layers make every step independent -> both axes
            # parallel (lets v7x megacore split h when N is small).
            dimension_semantics=("parallel", "parallel"),
            # Fits v5e/v6e (128 MiB) and v7x (64 MiB) alike: per-tile scratch
            # + double-buffered weights stay well under 16 MiB.
            vmem_limit_bytes=32 * 1024 * 1024),
    )(x1cat_p, x2col_p, fp["w_dec"], fp["b_dec"], fp["w_c2a"], fp["b_c2a"],
      fp["w_cat"], fp["b_out"])
    return jnp.transpose(out, (0, 3, 1, 2))    # back to NCHW


# ----------------------------------------------------------------------------
# Pure-JAX reference (f32, uses the unfolded parameters)
# ----------------------------------------------------------------------------
def reference_forward(x1_nchw, x2_nchw, p):
    x1 = jnp.transpose(x1_nchw, (0, 2, 3, 1))
    x2 = jnp.transpose(x2_nchw, (0, 2, 3, 1))
    N, H, W, _ = x1.shape
    dec = jnp.einsum("nhwc,ijcd->nhiwjd", x1, p["w_dec"]).reshape(
        N, 2 * H, 2 * W, -1) + p["b_dec"].reshape(1, 1, 1, -1)

    def conv(x, w, b, s, t, relu):
        o = jax.lax.conv_general_dilated(
            x, w, (1, 1), "SAME",
            dimension_numbers=("NHWC", "HWIO", "NHWC")) + b.reshape(1, 1, 1, -1)
        o = o * s.reshape(1, 1, 1, -1) + t.reshape(1, 1, 1, -1)
        return jnp.maximum(o, 0.0) if relu else o

    o1 = conv(dec, p["w_c1"], p["b_c1"], p["s1"], p["t1"], False)
    hmid = conv(x2, p["w_c2a"], p["b_c2a"], p["s2a"], p["t2a"], True)
    o2 = conv(hmid, p["w_c2b"], p["b_c2b"], p["s2b"], p["t2b"], False)
    return jnp.transpose(jnp.maximum(o1 + o2, 0.0), (0, 3, 1, 2))


# ----------------------------------------------------------------------------
# Deterministic parameter construction
# ----------------------------------------------------------------------------
def fold_bn(gamma, beta, mean, var, eps=1e-5):
    scale = gamma / jnp.sqrt(var + eps)
    shift = beta - mean * scale
    return scale.reshape(1, -1), shift.reshape(1, -1)


def make_params(key, c1, c2, cout=256):
    ks = jax.random.split(key, 20)

    def bn(k, c):
        a, b, c_, d = jax.random.split(k, 4)
        gamma = 1.0 + 0.1 * jax.random.normal(a, (c,), jnp.float32)
        beta = 0.1 * jax.random.normal(b, (c,), jnp.float32)
        mean = 0.1 * jax.random.normal(c_, (c,), jnp.float32)
        var = 1.0 + 0.1 * jax.random.uniform(d, (c,), jnp.float32)
        return fold_bn(gamma, beta, mean, var)

    p = {}
    p["w_dec"] = 0.1 * jax.random.normal(ks[0], (2, 2, c1, cout), jnp.float32)
    p["b_dec"] = 0.1 * jax.random.normal(ks[1], (1, cout), jnp.float32)
    p["w_c1"] = 0.05 * jax.random.normal(ks[2], (3, 3, cout, cout), jnp.float32)
    p["b_c1"] = 0.1 * jax.random.normal(ks[3], (1, cout), jnp.float32)
    p["s1"], p["t1"] = bn(ks[4], cout)
    p["w_c2a"] = 0.1 * jax.random.normal(ks[5], (3, 3, c2, cout), jnp.float32)
    p["b_c2a"] = 0.1 * jax.random.normal(ks[6], (1, cout), jnp.float32)
    p["s2a"], p["t2a"] = bn(ks[7], cout)
    p["w_c2b"] = 0.05 * jax.random.normal(ks[8], (3, 3, cout, cout), jnp.float32)
    p["b_c2b"] = 0.1 * jax.random.normal(ks[9], (1, cout), jnp.float32)
    p["s2b"], p["t2b"] = bn(ks[10], cout)
    return p


if __name__ == "__main__":
    key = jax.random.PRNGKey(0)
    N, C1, C2 = 2, 4, 8
    H1 = W1 = 8           # x1 spatial
    H2 = W2 = 2 * H1      # x2 spatial must equal deconv output spatial

    k_x1, k_x2, k_p = jax.random.split(key, 3)
    x1 = jax.random.normal(k_x1, (N, C1, H1, W1), jnp.float32)   # NCHW
    x2 = jax.random.normal(k_x2, (N, C2, H2, W2), jnp.float32)   # NCHW
    params = make_params(k_p, C1, C2)
    fparams = fold_params(params)

    out = jax.jit(deconv_layer_forward)(x1, x2, fparams)
    out = jax.block_until_ready(out)
    assert out.shape == (N, 256, H2, W2), out.shape

    ref = jax.block_until_ready(reference_forward(x1, x2, params))
    # bf16 MXU path (front layers + two K=512 3x3 convs) -> loosened tolerance.
    assert jnp.allclose(out, ref, rtol=5e-2, atol=5e-2), float(
        jnp.max(jnp.abs(out - ref)))

    print("KERNEL_OK")
</pallas_src>

<mosaic_0001>
module attributes {stable_mosaic.version = 11 : i64} {
  func.func @_deconv_layer_kernel(%arg0: i32, %arg1: i32, %arg2: memref<1x18x16x16xbf16, #tpu.memory_space<vmem>>, %arg3: memref<1x18x16x72xbf16, #tpu.memory_space<vmem>>, %arg4: memref<16x256xbf16, #tpu.memory_space<vmem>>, %arg5: memref<1x256xf32, #tpu.memory_space<vmem>>, %arg6: memref<72x256xbf16, #tpu.memory_space<vmem>>, %arg7: memref<1x256xf32, #tpu.memory_space<vmem>>, %arg8: memref<3x3x512x256xbf16, #tpu.memory_space<vmem>>, %arg9: memref<1x256xf32, #tpu.memory_space<vmem>>, %arg10: memref<1x8x16x256xf32, #tpu.memory_space<vmem>>, %arg11: memref<3x10x16x512xbf16, #tpu.memory_space<vmem>>) attributes {dimension_semantics = [#tpu.dimension_semantics<parallel>, #tpu.dimension_semantics<parallel>], iteration_bounds = array<i64: 2, 2>, scalar_prefetch = 0 : i64, scratch_operands = 1 : i64, tpu.core_type = #tpu.core_type<tc>, window_params = [{transform_indices = @transform_0, window_bounds = array<i64: 1, 18, 16, 16>}, {transform_indices = @transform_1, window_bounds = array<i64: 1, 18, 16, 72>}, {pipeline_mode = #tpu.pipeline_mode<synchronous>, transform_indices = @transform_2, window_bounds = array<i64: 16, 256>}, {pipeline_mode = #tpu.pipeline_mode<synchronous>, transform_indices = @transform_3, window_bounds = array<i64: 1, 256>}, {pipeline_mode = #tpu.pipeline_mode<synchronous>, transform_indices = @transform_4, window_bounds = array<i64: 72, 256>}, {pipeline_mode = #tpu.pipeline_mode<synchronous>, transform_indices = @transform_5, window_bounds = array<i64: 1, 256>}, {pipeline_mode = #tpu.pipeline_mode<synchronous>, transform_indices = @transform_6, window_bounds = array<i64: 3, 3, 512, 256>}, {pipeline_mode = #tpu.pipeline_mode<synchronous>, transform_indices = @transform_7, window_bounds = array<i64: 1, 256>}, {transform_indices = @transform_8, window_bounds = array<i64: 1, 8, 16, 256>}]} {
    %c8_i32 = arith.constant 8 : i32
    %0 = arith.muli %arg1, %c8_i32 : i32
    %1 = tpu.assume_multiple %0, 8 : i32
    %c0 = arith.constant 0 : index
    %2 = arith.index_cast %1 : i32 to index
    %c0_0 = arith.constant 0 : index
    %c0_1 = arith.constant 0 : index
    %3 = vector.load %arg2[%c0, %2, %c0_0, %c0_1] : memref<1x18x16x16xbf16, #tpu.memory_space<vmem>>, vector<1x10x16x16xbf16>
    %4 = vector.shape_cast %3 : vector<1x10x16x16xbf16> to vector<10x16x16xbf16>
    %5 = vector.shape_cast %4 : vector<10x16x16xbf16> to vector<160x16xbf16>
    %c0_2 = arith.constant 0 : index
    %c0_3 = arith.constant 0 : index
    %6 = vector.load %arg4[%c0_2, %c0_3] : memref<16x256xbf16, #tpu.memory_space<vmem>>, vector<16x256xbf16>
    %cst = arith.constant dense<0.000000e+00> : vector<160x256xf32>
    %7 = tpu.matmul %5, %6, %cst {dimension_numbers = #tpu.dot_dimension_numbers<[1], [0], [0], [1], [0, 0, 1, 1], [], []>} : vector<160x16xbf16>, vector<16x256xbf16>, vector<160x256xf32> -> vector<160x256xf32>
    %c0_4 = arith.constant 0 : index
    %c0_5 = arith.constant 0 : index
    %8 = vector.load %arg5[%c0_4, %c0_5] : memref<1x256xf32, #tpu.memory_space<vmem>>, vector<1x256xf32>
    %9 = vector.broadcast %8 : vector<1x256xf32> to vector<160x256xf32>
    %10 = arith.addf %7, %9 : vector<160x256xf32>
    %11 = arith.truncf %10 : vector<160x256xf32> to vector<160x256xbf16>
    %12 = vector.shape_cast %11 : vector<160x256xbf16> to vector<10x16x256xbf16>
    %c0_6 = arith.constant 0 : index
    %13 = arith.index_cast %1 : i32 to index
    %c0_7 = arith.constant 0 : index
    %c0_8 = arith.constant 0 : index
    %14 = vector.load %arg3[%c0_6, %13, %c0_7, %c0_8] : memref<1x18x16x72xbf16, #tpu.memory_space<vmem>>, vector<1x10x16x72xbf16>
    %15 = vector.shape_cast %14 : vector<1x10x16x72xbf16> to vector<10x16x72xbf16>
    %16 = vector.shape_cast %15 : vector<10x16x72xbf16> to vector<160x72xbf16>
    %c0_9 = arith.constant 0 : index
    %c0_10 = arith.constant 0 : index
    %17 = vector.load %arg6[%c0_9, %c0_10] : memref<72x256xbf16, #tpu.memory_space<vmem>>, vector<72x256xbf16>
    %cst_11 = arith.constant dense<0.000000e+00> : vector<160x256xf32>
    %18 = tpu.matmul %16, %17, %cst_11 {dimension_numbers = #tpu.dot_dimension_numbers<[1], [0], [0], [1], [0, 0, 1, 1], [], []>} : vector<160x72xbf16>, vector<72x256xbf16>, vector<160x256xf32> -> vector<160x256xf32>
    %c0_12 = arith.constant 0 : index
    %c0_13 = arith.constant 0 : index
    %19 = vector.load %arg7[%c0_12, %c0_13] : memref<1x256xf32, #tpu.memory_space<vmem>>, vector<1x256xf32>
    %20 = vector.broadcast %19 : vector<1x256xf32> to vector<160x256xf32>
    %21 = arith.addf %18, %20 : vector<160x256xf32>
    %cst_14 = arith.constant 0.000000e+00 : f32
    %22 = vector.broadcast %cst_14 : f32 to vector<160x256xf32>
    %23 = arith.maximumf %21, %22 : vector<160x256xf32>
    %24 = arith.truncf %23 : vector<160x256xf32> to vector<160x256xbf16>
    %25 = vector.shape_cast %24 : vector<160x256xbf16> to vector<10x16x256xbf16>
    %cst_15 = arith.constant 0.000000e+00 : bf16
    %26 = vector.broadcast %cst_15 : bf16 to vector<10x1x512xbf16>
    %c1 = arith.constant 1 : index
    %c0_16 = arith.constant 0 : index
    %c0_17 = arith.constant 0 : index
    %c0_18 = arith.constant 0 : index
    %27 = vector.load %arg11[%c1, %c0_16, %c0_17, %c0_18] : memref<3x10x16x512xbf16, #tpu.memory_space<vmem>>, vector<1x10x16x256xbf16>
    %28 = vector.shape_cast %27 : vector<1x10x16x256xbf16> to vector<10x16x256xbf16>
    %29 = vector.shape_cast %12 : vector<10x16x256xbf16> to vector<1x10x16x256xbf16>
    tpu.vector_store %arg11[%c1, %c0_16, %c0_17, %c0_18], %29 {strides = array<i32>} : memref<3x10x16x512xbf16, #tpu.memory_space<vmem>>, vector<1x10x16x256xbf16>,
    %c1_19 = arith.constant 1 : index
    %c0_20 = arith.constant 0 : index
    %c0_21 = arith.constant 0 : index
    %c256 = arith.constant 256 : index
    %30 = vector.load %arg11[%c1_19, %c0_20, %c0_21, %c256] : memref<3x10x16x512xbf16, #tpu.memory_space<vmem>>, vector<1x10x16x256xbf16>
    %31 = vector.shape_cast %30 : vector<1x10x16x256xbf16> to vector<10x16x256xbf16>
    %32 = vector.shape_cast %25 : vector<10x16x256xbf16> to vector<1x10x16x256xbf16>
    tpu.vector_store %arg11[%c1_19, %c0_20, %c0_21, %c256], %32 {strides = array<i32>} : memref<3x10x16x512xbf16, #tpu.memory_space<vmem>>, vector<1x10x16x256xbf16>,
    %33 = vector.extract_strided_slice %12 {offsets = [0, 0, 0], sizes = [10, 15, 256], strides = [1, 1, 1]} : vector<10x16x256xbf16> to vector<10x15x256xbf16>
    %c0_22 = arith.constant 0 : index
    %c0_23 = arith.constant 0 : index
    %c1_24 = arith.constant 1 : index
    %c0_25 = arith.constant 0 : index
    %34 = vector.load %arg11[%c0_22, %c0_23, %c1_24, %c0_25] : memref<3x10x16x512xbf16, #tpu.memory_space<vmem>>, vector<1x10x15x256xbf16>
    %35 = vector.shape_cast %34 : vector<1x10x15x256xbf16> to vector<10x15x256xbf16>
    %36 = vector.shape_cast %33 : vector<10x15x256xbf16> to vector<1x10x15x256xbf16>
    tpu.vector_store %arg11[%c0_22, %c0_23, %c1_24, %c0_25], %36 {strides = array<i32>} : memref<3x10x16x512xbf16, #tpu.memory_space<vmem>>, vector<1x10x15x256xbf16>,
    %37 = vector.extract_strided_slice %25 {offsets = [0, 0, 0], sizes = [10, 15, 256], strides = [1, 1, 1]} : vector<10x16x256xbf16> to vector<10x15x256xbf16>
    %c0_26 = arith.constant 0 : index
    %c0_27 = arith.constant 0 : index
    %c1_28 = arith.constant 1 : index
    %c256_29 = arith.constant 256 : index
    %38 = vector.load %arg11[%c0_26, %c0_27, %c1_28, %c256_29] : memref<3x10x16x512xbf16, #tpu.memory_space<vmem>>, vector<1x10x15x256xbf16>
    %39 = vector.shape_cast %38 : vector<1x10x15x256xbf16> to vector<10x15x256xbf16>
    %40 = vector.shape_cast %37 : vector<10x15x256xbf16> to vector<1x10x15x256xbf16>
    tpu.vector_store %arg11[%c0_26, %c0_27, %c1_28, %c256_29], %40 {strides = array<i32>} : memref<3x10x16x512xbf16, #tpu.memory_space<vmem>>, vector<1x10x15x256xbf16>,
    %c0_30 = arith.constant 0 : index
    %c0_31 = arith.constant 0 : index
    %c0_32 = arith.constant 0 : index
    %c0_33 = arith.constant 0 : index
    %41 = vector.load %arg11[%c0_30, %c0_31, %c0_32, %c0_33] : memref<3x10x16x512xbf16, #tpu.memory_space<vmem>>, vector<1x10x1x512xbf16>
    %42 = vector.shape_cast %41 : vector<1x10x1x512xbf16> to vector<10x1x512xbf16>
    %43 = vector.shape_cast %26 : vector<10x1x512xbf16> to vector<1x10x1x512xbf16>
    tpu.vector_store %arg11[%c0_30, %c0_31, %c0_32, %c0_33], %43 {strides = array<i32>} : memref<3x10x16x512xbf16, #tpu.memory_space<vmem>>, vector<1x10x1x512xbf16>,
    %44 = vector.extract_strided_slice %12 {offsets = [0, 1, 0], sizes = [10, 15, 256], strides = [1, 1, 1]} : vector<10x16x256xbf16> to vector<10x15x256xbf16>
    %c2 = arith.constant 2 : index
    %c0_34 = arith.constant 0 : index
    %c0_35 = arith.constant 0 : index
    %c0_36 = arith.constant 0 : index
    %45 = vector.load %arg11[%c2, %c0_34, %c0_35, %c0_36] : memref<3x10x16x512xbf16, #tpu.memory_space<vmem>>, vector<1x10x15x256xbf16>
    %46 = vector.shape_cast %45 : vector<1x10x15x256xbf16> to vector<10x15x256xbf16>
    %47 = vector.shape_cast %44 : vector<10x15x256xbf16> to vector<1x10x15x256xbf16>
    tpu.vector_store %arg11[%c2, %c0_34, %c0_35, %c0_36], %47 {strides = array<i32>} : memref<3x10x16x512xbf16, #tpu.memory_space<vmem>>, vector<1x10x15x256xbf16>,
    %48 = vector.extract_strided_slice %25 {offsets = [0, 1, 0], sizes = [10, 15, 256], strides = [1, 1, 1]} : vector<10x16x256xbf16> to vector<10x15x256xbf16>
    %c2_37 = arith.constant 2 : index
    %c0_38 = arith.constant 0 : index
    %c0_39 = arith.constant 0 : index
    %c256_40 = arith.constant 256 : index
    %49 = vector.load %arg11[%c2_37, %c0_38, %c0_39, %c256_40] : memref<3x10x16x512xbf16, #tpu.memory_space<vmem>>, vector<1x10x15x256xbf16>
    %50 = vector.shape_cast %49 : vector<1x10x15x256xbf16> to vector<10x15x256xbf16>
    %51 = vector.shape_cast %48 : vector<10x15x256xbf16> to vector<1x10x15x256xbf16>
    tpu.vector_store %arg11[%c2_37, %c0_38, %c0_39, %c256_40], %51 {strides = array<i32>} : memref<3x10x16x512xbf16, #tpu.memory_space<vmem>>, vector<1x10x15x256xbf16>,
    %c2_41 = arith.constant 2 : index
    %c0_42 = arith.constant 0 : index
    %c15 = arith.constant 15 : index
    %c0_43 = arith.constant 0 : index
    %52 = vector.load %arg11[%c2_41, %c0_42, %c15, %c0_43] : memref<3x10x16x512xbf16, #tpu.memory_space<vmem>>, vector<1x10x1x512xbf16>
    %53 = vector.shape_cast %52 : vector<1x10x1x512xbf16> to vector<10x1x512xbf16>
    %54 = vector.shape_cast %26 : vector<10x1x512xbf16> to vector<1x10x1x512xbf16>
    tpu.vector_store %arg11[%c2_41, %c0_42, %c15, %c0_43], %54 {strides = array<i32>} : memref<3x10x16x512xbf16, #tpu.memory_space<vmem>>, vector<1x10x1x512xbf16>,
    %cst_44 = arith.constant 0.000000e+00 : bf16
    %55 = vector.broadcast %cst_44 : bf16 to vector<1x16x512xbf16>
    %c0_i32 = arith.constant 0 : i32
    %56 = arith.cmpi eq, %arg1, %c0_i32 : i32
    %57 = arith.extui %56 : i1 to i32
    %c0_i32_45 = arith.constant 0 : i32
    %58 = arith.cmpi ne, %57, %c0_i32_45 : i32
    scf.if %58 {
      %c0_136 = arith.constant 0 : index
      %c0_137 = arith.constant 0 : index
      %c0_138 = arith.constant 0 : index
      %c0_139 = arith.constant 0 : index
      %135 = vector.load %arg11[%c0_136, %c0_137, %c0_138, %c0_139] : memref<3x10x16x512xbf16, #tpu.memory_space<vmem>>, vector<1x1x16x512xbf16>
      %136 = vector.shape_cast %135 : vector<1x1x16x512xbf16> to vector<1x16x512xbf16>
      %137 = vector.shape_cast %55 : vector<1x16x512xbf16> to vector<1x1x16x512xbf16>
      tpu.vector_store %arg11[%c0_136, %c0_137, %c0_138, %c0_139], %137 {strides = array<i32>} : memref<3x10x16x512xbf16, #tpu.memory_space<vmem>>, vector<1x1x16x512xbf16>,
      %c1_140 = arith.constant 1 : index
      %c0_141 = arith.constant 0 : index
      %c0_142 = arith.constant 0 : index
      %c0_143 = arith.constant 0 : index
      %138 = vector.load %arg11[%c1_140, %c0_141, %c0_142, %c0_143] : memref<3x10x16x512xbf16, #tpu.memory_space<vmem>>, vector<1x1x16x512xbf16>
      %139 = vector.shape_cast %138 : vector<1x1x16x512xbf16> to vector<1x16x512xbf16>
      %140 = vector.shape_cast %55 : vector<1x16x512xbf16> to vector<1x1x16x512xbf16>
      tpu.vector_store %arg11[%c1_140, %c0_141, %c0_142, %c0_143], %140 {strides = array<i32>} : memref<3x10x16x512xbf16, #tpu.memory_space<vmem>>, vector<1x1x16x512xbf16>,
      %c2_144 = arith.constant 2 : index
      %c0_145 = arith.constant 0 : index
      %c0_146 = arith.constant 0 : index
      %c0_147 = arith.constant 0 : index
      %141 = vector.load %arg11[%c2_144, %c0_145, %c0_146, %c0_147] : memref<3x10x16x512xbf16, #tpu.memory_space<vmem>>, vector<1x1x16x512xbf16>
      %142 = vector.shape_cast %141 : vector<1x1x16x512xbf16> to vector<1x16x512xbf16>
      %143 = vector.shape_cast %55 : vector<1x16x512xbf16> to vector<1x1x16x512xbf16>
      tpu.vector_store %arg11[%c2_144, %c0_145, %c0_146, %c0_147], %143 {strides = array<i32>} : memref<3x10x16x512xbf16, #tpu.memory_space<vmem>>, vector<1x1x16x512xbf16>,
    } else {
    }
    %c1_i32 = arith.constant 1 : i32
    %59 = arith.cmpi eq, %arg1, %c1_i32 : i32
    %60 = arith.extui %59 : i1 to i32
    %c0_i32_46 = arith.constant 0 : i32
    %61 = arith.cmpi ne, %60, %c0_i32_46 : i32
    scf.if %61 {
      %c0_136 = arith.constant 0 : index
      %c9 = arith.constant 9 : index
      %c0_137 = arith.constant 0 : index
      %c0_138 = arith.constant 0 : index
      %135 = vector.load %arg11[%c0_136, %c9, %c0_137, %c0_138] : memref<3x10x16x512xbf16, #tpu.memory_space<vmem>>, vector<1x1x16x512xbf16>
      %136 = vector.shape_cast %135 : vector<1x1x16x512xbf16> to vector<1x16x512xbf16>
      %137 = vector.shape_cast %55 : vector<1x16x512xbf16> to vector<1x1x16x512xbf16>
      tpu.vector_store %arg11[%c0_136, %c9, %c0_137, %c0_138], %137 {strides = array<i32>} : memref<3x10x16x512xbf16, #tpu.memory_space<vmem>>, vector<1x1x16x512xbf16>,
      %c1_139 = arith.constant 1 : index
      %c9_140 = arith.constant 9 : index
      %c0_141 = arith.constant 0 : index
      %c0_142 = arith.constant 0 : index
      %138 = vector.load %arg11[%c1_139, %c9_140, %c0_141, %c0_142] : memref<3x10x16x512xbf16, #tpu.memory_space<vmem>>, vector<1x1x16x512xbf16>
      %139 = vector.shape_cast %138 : vector<1x1x16x512xbf16> to vector<1x16x512xbf16>
      %140 = vector.shape_cast %55 : vector<1x16x512xbf16> to vector<1x1x16x512xbf16>
      tpu.vector_store %arg11[%c1_139, %c9_140, %c0_141, %c0_142], %140 {strides = array<i32>} : memref<3x10x16x512xbf16, #tpu.memory_space<vmem>>, vector<1x1x16x512xbf16>,
      %c2_143 = arith.constant 2 : index
      %c9_144 = arith.constant 9 : index
      %c0_145 = arith.constant 0 : index
      %c0_146 = arith.constant 0 : index
      %141 = vector.load %arg11[%c2_143, %c9_144, %c0_145, %c0_146] : memref<3x10x16x512xbf16, #tpu.memory_space<vmem>>, vector<1x1x16x512xbf16>
      %142 = vector.shape_cast %141 : vector<1x1x16x512xbf16> to vector<1x16x512xbf16>
      %143 = vector.shape_cast %55 : vector<1x16x512xbf16> to vector<1x1x16x512xbf16>
      tpu.vector_store %arg11[%c2_143, %c9_144, %c0_145, %c0_146], %143 {strides = array<i32>} : memref<3x10x16x512xbf16, #tpu.memory_space<vmem>>, vector<1x1x16x512xbf16>,
    } else {
    }
    %cst_47 = arith.constant 0.000000e+00 : f32
    %62 = vector.broadcast %cst_47 : f32 to vector<128x256xf32>
    %c0_48 = arith.constant 0 : index
    %c0_49 = arith.constant 0 : index
    %c0_50 = arith.constant 0 : index
    %c0_51 = arith.constant 0 : index
    %63 = vector.load %arg11[%c0_48, %c0_49, %c0_50, %c0_51] : memref<3x10x16x512xbf16, #tpu.memory_space<vmem>>, vector<1x8x16x512xbf16>
    %64 = vector.shape_cast %63 : vector<1x8x16x512xbf16> to vector<8x16x512xbf16>
    %65 = vector.shape_cast %64 : vector<8x16x512xbf16> to vector<128x512xbf16>
    %c0_52 = arith.constant 0 : index
    %c0_53 = arith.constant 0 : index
    %c0_54 = arith.constant 0 : index
    %c0_55 = arith.constant 0 : index
    %66 = vector.load %arg8[%c0_52, %c0_53, %c0_54, %c0_55] : memref<3x3x512x256xbf16, #tpu.memory_space<vmem>>, vector<1x1x512x256xbf16>
    %67 = vector.shape_cast %66 : vector<1x1x512x256xbf16> to vector<512x256xbf16>
    %cst_56 = arith.constant dense<0.000000e+00> : vector<128x256xf32>
    %68 = tpu.matmul %65, %67, %cst_56 {dimension_numbers = #tpu.dot_dimension_numbers<[1], [0], [0], [1], [0, 0, 1, 1], [], []>} : vector<128x512xbf16>, vector<512x256xbf16>, vector<128x256xf32> -> vector<128x256xf32>
    %69 = arith.addf %62, %68 : vector<128x256xf32>
    %c1_57 = arith.constant 1 : index
    %c0_58 = arith.constant 0 : index
    %c0_59 = arith.constant 0 : index
    %c0_60 = arith.constant 0 : index
    %70 = vector.load %arg11[%c1_57, %c0_58, %c0_59, %c0_60] : memref<3x10x16x512xbf16, #tpu.memory_space<vmem>>, vector<1x8x16x512xbf16>
    %71 = vector.shape_cast %70 : vector<1x8x16x512xbf16> to vector<8x16x512xbf16>
    %72 = vector.shape_cast %71 : vector<8x16x512xbf16> to vector<128x512xbf16>
    %c0_61 = arith.constant 0 : index
    %c1_62 = arith.constant 1 : index
    %c0_63 = arith.constant 0 : index
    %c0_64 = arith.constant 0 : index
    %73 = vector.load %arg8[%c0_61, %c1_62, %c0_63, %c0_64] : memref<3x3x512x256xbf16, #tpu.memory_space<vmem>>, vector<1x1x512x256xbf16>
    %74 = vector.shape_cast %73 : vector<1x1x512x256xbf16> to vector<512x256xbf16>
    %cst_65 = arith.constant dense<0.000000e+00> : vector<128x256xf32>
    %75 = tpu.matmul %72, %74, %cst_65 {dimension_numbers = #tpu.dot_dimension_numbers<[1], [0], [0], [1], [0, 0, 1, 1], [], []>} : vector<128x512xbf16>, vector<512x256xbf16>, vector<128x256xf32> -> vector<128x256xf32>
    %76 = arith.addf %69, %75 : vector<128x256xf32>
    %c2_66 = arith.constant 2 : index
    %c0_67 = arith.constant 0 : index
    %c0_68 = arith.constant 0 : index
    %c0_69 = arith.constant 0 : index
    %77 = vector.load %arg11[%c2_66, %c0_67, %c0_68, %c0_69] : memref<3x10x16x512xbf16, #tpu.memory_space<vmem>>, vector<1x8x16x512xbf16>
    %78 = vector.shape_cast %77 : vector<1x8x16x512xbf16> to vector<8x16x512xbf16>
    %79 = vector.shape_cast %78 : vector<8x16x512xbf16> to vector<128x512xbf16>
    %c0_70 = arith.constant 0 : index
    %c2_71 = arith.constant 2 : index
    %c0_72 = arith.constant 0 : index
    %c0_73 = arith.constant 0 : index
    %80 = vector.load %arg8[%c0_70, %c2_71, %c0_72, %c0_73] : memref<3x3x512x256xbf16, #tpu.memory_space<vmem>>, vector<1x1x512x256xbf16>
    %81 = vector.shape_cast %80 : vector<1x1x512x256xbf16> to vector<512x256xbf16>
    %cst_74 = arith.constant dense<0.000000e+00> : vector<128x256xf32>
    %82 = tpu.matmul %79, %81, %cst_74 {dimension_numbers = #tpu.dot_dimension_numbers<[1], [0], [0], [1], [0, 0, 1, 1], [], []>} : vector<128x512xbf16>, vector<512x256xbf16>, vector<128x256xf32> -> vector<128x256xf32>
    %83 = arith.addf %76, %82 : vector<128x256xf32>
    %c0_75 = arith.constant 0 : index
    %c1_76 = arith.constant 1 : index
    %c0_77 = arith.constant 0 : index
    %c0_78 = arith.constant 0 : index
    %84 = vector.load %arg11[%c0_75, %c1_76, %c0_77, %c0_78] : memref<3x10x16x512xbf16, #tpu.memory_space<vmem>>, vector<1x8x16x512xbf16>
    %85 = vector.shape_cast %84 : vector<1x8x16x512xbf16> to vector<8x16x512xbf16>
    %86 = vector.shape_cast %85 : vector<8x16x512xbf16> to vector<128x512xbf16>
    %c1_79 = arith.constant 1 : index
    %c0_80 = arith.constant 0 : index
    %c0_81 = arith.constant 0 : index
    %c0_82 = arith.constant 0 : index
    %87 = vector.load %arg8[%c1_79, %c0_80, %c0_81, %c0_82] : memref<3x3x512x256xbf16, #tpu.memory_space<vmem>>, vector<1x1x512x256xbf16>
    %88 = vector.shape_cast %87 : vector<1x1x512x256xbf16> to vector<512x256xbf16>
    %cst_83 = arith.constant dense<0.000000e+00> : vector<128x256xf32>
    %89 = tpu.matmul %86, %88, %cst_83 {dimension_numbers = #tpu.dot_dimension_numbers<[1], [0], [0], [1], [0, 0, 1, 1], [], []>} : vector<128x512xbf16>, vector<512x256xbf16>, vector<128x256xf32> -> vector<128x256xf32>
    %90 = arith.addf %83, %89 : vector<128x256xf32>
    %c1_84 = arith.constant 1 : index
    %c1_85 = arith.constant 1 : index
    %c0_86 = arith.constant 0 : index
    %c0_87 = arith.constant 0 : index
    %91 = vector.load %arg11[%c1_84, %c1_85, %c0_86, %c0_87] : memref<3x10x16x512xbf16, #tpu.memory_space<vmem>>, vector<1x8x16x512xbf16>
    %92 = vector.shape_cast %91 : vector<1x8x16x512xbf16> to vector<8x16x512xbf16>
    %93 = vector.shape_cast %92 : vector<8x16x512xbf16> to vector<128x512xbf16>
    %c1_88 = arith.constant 1 : index
    %c1_89 = arith.constant 1 : index
    %c0_90 = arith.constant 0 : index
    %c0_91 = arith.constant 0 : index
    %94 = vector.load %arg8[%c1_88, %c1_89, %c0_90, %c0_91] : memref<3x3x512x256xbf16, #tpu.memory_space<vmem>>, vector<1x1x512x256xbf16>
    %95 = vector.shape_cast %94 : vector<1x1x512x256xbf16> to vector<512x256xbf16>
    %cst_92 = arith.constant dense<0.000000e+00> : vector<128x256xf32>
    %96 = tpu.matmul %93, %95, %cst_92 {dimension_numbers = #tpu.dot_dimension_numbers<[1], [0], [0], [1], [0, 0, 1, 1], [], []>} : vector<128x512xbf16>, vector<512x256xbf16>, vector<128x256xf32> -> vector<128x256xf32>
    %97 = arith.addf %90, %96 : vector<128x256xf32>
    %c2_93 = arith.constant 2 : index
    %c1_94 = arith.constant 1 : index
    %c0_95 = arith.constant 0 : index
    %c0_96 = arith.constant 0 : index
    %98 = vector.load %arg11[%c2_93, %c1_94, %c0_95, %c0_96] : memref<3x10x16x512xbf16, #tpu.memory_space<vmem>>, vector<1x8x16x512xbf16>
    %99 = vector.shape_cast %98 : vector<1x8x16x512xbf16> to vector<8x16x512xbf16>
    %100 = vector.shape_cast %99 : vector<8x16x512xbf16> to vector<128x512xbf16>
    %c1_97 = arith.constant 1 : index
    %c2_98 = arith.constant 2 : index
    %c0_99 = arith.constant 0 : index
    %c0_100 = arith.constant 0 : index
    %101 = vector.load %arg8[%c1_97, %c2_98, %c0_99, %c0_100] : memref<3x3x512x256xbf16, #tpu.memory_space<vmem>>, vector<1x1x512x256xbf16>
    %102 = vector.shape_cast %101 : vector<1x1x512x256xbf16> to vector<512x256xbf16>
    %cst_101 = arith.constant dense<0.000000e+00> : vector<128x256xf32>
    %103 = tpu.matmul %100, %102, %cst_101 {dimension_numbers = #tpu.dot_dimension_numbers<[1], [0], [0], [1], [0, 0, 1, 1], [], []>} : vector<128x512xbf16>, vector<512x256xbf16>, vector<128x256xf32> -> vector<128x256xf32>
    %104 = arith.addf %97, %103 : vector<128x256xf32>
    %c0_102 = arith.constant 0 : index
    %c2_103 = arith.constant 2 : index
    %c0_104 = arith.constant 0 : index
    %c0_105 = arith.constant 0 : index
    %105 = vector.load %arg11[%c0_102, %c2_103, %c0_104, %c0_105] : memref<3x10x16x512xbf16, #tpu.memory_space<vmem>>, vector<1x8x16x512xbf16>
    %106 = vector.shape_cast %105 : vector<1x8x16x512xbf16> to vector<8x16x512xbf16>
    %107 = vector.shape_cast %106 : vector<8x16x512xbf16> to vector<128x512xbf16>
    %c2_106 = arith.constant 2 : index
    %c0_107 = arith.constant 0 : index
    %c0_108 = arith.constant 0 : index
    %c0_109 = arith.constant 0 : index
    %108 = vector.load %arg8[%c2_106, %c0_107, %c0_108, %c0_109] : memref<3x3x512x256xbf16, #tpu.memory_space<vmem>>, vector<1x1x512x256xbf16>
    %109 = vector.shape_cast %108 : vector<1x1x512x256xbf16> to vector<512x256xbf16>
    %cst_110 = arith.constant dense<0.000000e+00> : vector<128x256xf32>
    %110 = tpu.matmul %107, %109, %cst_110 {dimension_numbers = #tpu.dot_dimension_numbers<[1], [0], [0], [1], [0, 0, 1, 1], [], []>} : vector<128x512xbf16>, vector<512x256xbf16>, vector<128x256xf32> -> vector<128x256xf32>
    %111 = arith.addf %104, %110 : vector<128x256xf32>
    %c1_111 = arith.constant 1 : index
    %c2_112 = arith.constant 2 : index
    %c0_113 = arith.constant 0 : index
    %c0_114 = arith.constant 0 : index
    %112 = vector.load %arg11[%c1_111, %c2_112, %c0_113, %c0_114] : memref<3x10x16x512xbf16, #tpu.memory_space<vmem>>, vector<1x8x16x512xbf16>
    %113 = vector.shape_cast %112 : vector<1x8x16x512xbf16> to vector<8x16x512xbf16>
    %114 = vector.shape_cast %113 : vector<8x16x512xbf16> to vector<128x512xbf16>
    %c2_115 = arith.constant 2 : index
    %c1_116 = arith.constant 1 : index
    %c0_117 = arith.constant 0 : index
    %c0_118 = arith.constant 0 : index
    %115 = vector.load %arg8[%c2_115, %c1_116, %c0_117, %c0_118] : memref<3x3x512x256xbf16, #tpu.memory_space<vmem>>, vector<1x1x512x256xbf16>
    %116 = vector.shape_cast %115 : vector<1x1x512x256xbf16> to vector<512x256xbf16>
    %cst_119 = arith.constant dense<0.000000e+00> : vector<128x256xf32>
    %117 = tpu.matmul %114, %116, %cst_119 {dimension_numbers = #tpu.dot_dimension_numbers<[1], [0], [0], [1], [0, 0, 1, 1], [], []>} : vector<128x512xbf16>, vector<512x256xbf16>, vector<128x256xf32> -> vector<128x256xf32>
    %118 = arith.addf %111, %117 : vector<128x256xf32>
    %c2_120 = arith.constant 2 : index
    %c2_121 = arith.constant 2 : index
    %c0_122 = arith.constant 0 : index
    %c0_123 = arith.constant 0 : index
    %119 = vector.load %arg11[%c2_120, %c2_121, %c0_122, %c0_123] : memref<3x10x16x512xbf16, #tpu.memory_space<vmem>>, vector<1x8x16x512xbf16>
    %120 = vector.shape_cast %119 : vector<1x8x16x512xbf16> to vector<8x16x512xbf16>
    %121 = vector.shape_cast %120 : vector<8x16x512xbf16> to vector<128x512xbf16>
    %c2_124 = arith.constant 2 : index
    %c2_125 = arith.constant 2 : index
    %c0_126 = arith.constant 0 : index
    %c0_127 = arith.constant 0 : index
    %122 = vector.load %arg8[%c2_124, %c2_125, %c0_126, %c0_127] : memref<3x3x512x256xbf16, #tpu.memory_space<vmem>>, vector<1x1x512x256xbf16>
    %123 = vector.shape_cast %122 : vector<1x1x512x256xbf16> to vector<512x256xbf16>
    %cst_128 = arith.constant dense<0.000000e+00> : vector<128x256xf32>
    %124 = tpu.matmul %121, %123, %cst_128 {dimension_numbers = #tpu.dot_dimension_numbers<[1], [0], [0], [1], [0, 0, 1, 1], [], []>} : vector<128x512xbf16>, vector<512x256xbf16>, vector<128x256xf32> -> vector<128x256xf32>
    %125 = arith.addf %118, %124 : vector<128x256xf32>
    %c0_129 = arith.constant 0 : index
    %c0_130 = arith.constant 0 : index
    %126 = vector.load %arg9[%c0_129, %c0_130] : memref<1x256xf32, #tpu.memory_space<vmem>>, vector<1x256xf32>
    %127 = vector.broadcast %126 : vector<1x256xf32> to vector<128x256xf32>
    %128 = arith.addf %125, %127 : vector<128x256xf32>
    %cst_131 = arith.constant 0.000000e+00 : f32
    %129 = vector.broadcast %cst_131 : f32 to vector<128x256xf32>
    %130 = arith.maximumf %128, %129 : vector<128x256xf32>
    %131 = vector.shape_cast %130 : vector<128x256xf32> to vector<8x16x256xf32>
    %c0_132 = arith.constant 0 : index
    %c0_133 = arith.constant 0 : index
    %c0_134 = arith.constant 0 : index
    %c0_135 = arith.constant 0 : index
    %132 = vector.load %arg10[%c0_132, %c0_133, %c0_134, %c0_135] : memref<1x8x16x256xf32, #tpu.memory_space<vmem>>, vector<1x8x16x256xf32>
    %133 = vector.shape_cast %132 : vector<1x8x16x256xf32> to vector<8x16x256xf32>
    %134 = vector.shape_cast %131 : vector<8x16x256xf32> to vector<1x8x16x256xf32>
    tpu.vector_store %arg10[%c0_132, %c0_133, %c0_134, %c0_135], %134 {strides = array<i32>} : memref<1x8x16x256xf32, #tpu.memory_space<vmem>>, vector<1x8x16x256xf32>,
    return
  }
  func.func @transform_0(%arg0: i32, %arg1: i32) -> (i32, i32, i32, i32) {
    %c0_i32 = arith.constant 0 : i32
    %c0_i32_0 = arith.constant 0 : i32
    %c0_i32_1 = arith.constant 0 : i32
    %c0_i32_2 = arith.constant 0 : i32
    return %arg0, %c0_i32, %c0_i32_0, %c0_i32_1 : i32, i32, i32, i32
  }
  func.func @transform_1(%arg0: i32, %arg1: i32) -> (i32, i32, i32, i32) {
    %c0_i32 = arith.constant 0 : i32
    %c0_i32_0 = arith.constant 0 : i32
    %c0_i32_1 = arith.constant 0 : i32
    %c0_i32_2 = arith.constant 0 : i32
    return %arg0, %c0_i32, %c0_i32_0, %c0_i32_1 : i32, i32, i32, i32
  }
  func.func @transform_2(%arg0: i32, %arg1: i32) -> (i32, i32) {
    %c0_i32 = arith.constant 0 : i32
    %c0_i32_0 = arith.constant 0 : i32
    %c0_i32_1 = arith.constant 0 : i32
    return %c0_i32, %c0_i32_0 : i32, i32
  }
  func.func @transform_3(%arg0: i32, %arg1: i32) -> (i32, i32) {
    %c0_i32 = arith.constant 0 : i32
    %c0_i32_0 = arith.constant 0 : i32
    %c0_i32_1 = arith.constant 0 : i32
    return %c0_i32, %c0_i32_0 : i32, i32
  }
  func.func @transform_4(%arg0: i32, %arg1: i32) -> (i32, i32) {
    %c0_i32 = arith.constant 0 : i32
    %c0_i32_0 = arith.constant 0 : i32
    %c0_i32_1 = arith.constant 0 : i32
    return %c0_i32, %c0_i32_0 : i32, i32
  }
  func.func @transform_5(%arg0: i32, %arg1: i32) -> (i32, i32) {
    %c0_i32 = arith.constant 0 : i32
    %c0_i32_0 = arith.constant 0 : i32
    %c0_i32_1 = arith.constant 0 : i32
    return %c0_i32, %c0_i32_0 : i32, i32
  }
  func.func @transform_6(%arg0: i32, %arg1: i32) -> (i32, i32, i32, i32) {
    %c0_i32 = arith.constant 0 : i32
    %c0_i32_0 = arith.constant 0 : i32
    %c0_i32_1 = arith.constant 0 : i32
    %c0_i32_2 = arith.constant 0 : i32
    %c0_i32_3 = arith.constant 0 : i32
    return %c0_i32, %c0_i32_0, %c0_i32_1, %c0_i32_2 : i32, i32, i32, i32
  }
  func.func @transform_7(%arg0: i32, %arg1: i32) -> (i32, i32) {
    %c0_i32 = arith.constant 0 : i32
    %c0_i32_0 = arith.constant 0 : i32
    %c0_i32_1 = arith.constant 0 : i32
    return %c0_i32, %c0_i32_0 : i32, i32
  }
  func.func @transform_8(%arg0: i32, %arg1: i32) -> (i32, i32, i32, i32) {
    %c0_i32 = arith.constant 0 : i32
    %c0_i32_0 = arith.constant 0 : i32
    %c0_i32_1 = arith.constant 0 : i32
    return %arg0, %arg1, %c0_i32, %c0_i32_0 : i32, i32, i32, i32
  }
}

</mosaic_0001>

<llo_original>
// kernel: deconv_layer_forward.1
$region0: #{deconv_layer_forward.1}
  #allocation0 [shape = 'u32[]', space=smem, size = 0x4, offset = 0x4, fixed_abs, tag = 'smem constant byte address 0x4 - core index']
  #allocation1 [shape = 'u32[144,128]{1,0:T(1,128)}', space=vmem, size = 0x12000, scoped, tag = 'internal scratch']
  #allocation2 [shape = 'bf16[3,10,16,512]{3,2,1,0:T(16,128)(2,1)}', space=vmem, size = 0x78000, scoped, tag = 'scratch operand']
  %s0 = inlined_call_operand.vmem [shape: bf16[2,18,16,16], index: 0, kind: input, shape index: {}]
  %s1 = inlined_call_operand.vmem [shape: bf16[2,18,16,72], index: 1, kind: input, shape index: {}]
  %s2 = inlined_call_operand.vmem [shape: bf16[16,256], index: 2, kind: input, shape index: {}]
  %s3 = inlined_call_operand.vmem [shape: f32[1,256], index: 3, kind: input, shape index: {}]
  %s4 = inlined_call_operand.vmem [shape: bf16[72,256], index: 4, kind: input, shape index: {}]
  %s5 = inlined_call_operand.vmem [shape: f32[1,256], index: 5, kind: input, shape index: {}]
  %s6 = inlined_call_operand.vmem [shape: bf16[3,3,512,256], index: 6, kind: input, shape index: {}]
  %s7 = inlined_call_operand.vmem [shape: f32[1,256], index: 7, kind: input, shape index: {}]
  %s8 = inlined_call_operand.hbm [shape: f32[2,16,16,256], index: 8, kind: output, shape index: {}]
  %s9 = sld [smem:[#allocation0]]
  $region73: #{deconv_layer_forward.1} parent=0
    _
  %s11 = ssub.s32 1, %s9
  %s12 = scalar_select 0, %s11, %s9
  $region1: #{deconv_layer_forward.1} parent=0
    #allocation3 [shape = 'u8[262144]{0}', space=vmem, size = 0x40000, scoped, tag = 'output window, operand 0']
    #allocation4 [shape = 's32[2]{0}', space=sflag, size = 0x8, scoped, tag = 'scoped memory for deconv_layer_forward.1']
    %13 = vsyncpa [#allocation4], 0
    %s14 = scalar_lea.sflag [#allocation4], 1
    %15 = vsyncpa %s14, 0
    loop: start=0, step=1, limit=6
    $region2: #{deconv_layer_forward.1} parent=1 // loop_pre_header
      _
    $region3: #{deconv_layer_forward.1} parent=1 // loop_header
      %s17 = sphi 0, %s21
      %p18 = scmp.ge.s32.totalorder %s17, 6
      %s24 = sphi 0, %s36
      %s25 = sphi 0, %s32
      %s26 = sphi 0, %s24
      %s27 = sphi 0, %s25
      %s28 = sphi 0, %s26
      %s29 = sphi 0, %s27
      %s39 = sphi 0, %s41
      %s42 = sphi 0, %s39
      %s43 = sphi 0, %s42
      %s59 = sphi 0, %s43
      %s65 = sphi 0, %s67
      %s68 = sphi 0, %s65
      %s69 = sphi 0, %s68
      %s85 = sphi 0, %s69
      %s89 = sphi 0, %s89
      %s91 = sphi 0, %s89
      %s92 = sphi 0, %s91
      %s106 = sphi 0, %s92
      %s110 = sphi 0, %s110
      %s112 = sphi 0, %s110
      %s113 = sphi 0, %s112
      %s127 = sphi 0, %s113
      %s131 = sphi 0, %s131
      %s133 = sphi 0, %s131
      %s134 = sphi 0, %s133
      %s148 = sphi 0, %s134
      %s152 = sphi 0, %s152
      %s154 = sphi 0, %s152
      %s155 = sphi 0, %s154
      %s169 = sphi 0, %s155
      %s173 = sphi 0, %s173
      %s175 = sphi 0, %s173
      %s176 = sphi 0, %s175
      %s190 = sphi 0, %s176
      %s194 = sphi 0, %s194
      %s196 = sphi 0, %s194
      %s197 = sphi 0, %s196
      %s211 = sphi 0, %s197
      %s219 = sphi 0, %s221
      %s222 = sphi 0, %s219
      %s223 = sphi 0, %s222
      %s239 = sphi 0, %s223
    $region4: #{deconv_layer_forward.1} parent=1 // loop_header_branch
      %20 = sbr.rel (%p18) target = $region8
    $region5: #{deconv_layer_forward.1} parent=1 // loop_body
      %s22 = ssub.s32 %s17, 1
      %s23 = ssub.s32 %s17, 2
      %s30 = sadd.s32 1, %s25
      %p31 = scmp.ge.s32.totalorder %s30, 2
      %s32 = scalar_select %p31, 0, %s30
      %s33 = sadd.s32 1, %s24
      %s34 = scalar_select %p31, %s33, %s24
      %p35 = scmp.ge.s32.totalorder %s34, 2
      %s36 = scalar_select %p35, 0, %s34
      %s37 = ssub.s32 %s24, %s36
      %p38 = scmp.eq.s32.totalorder %s37, 0
      %s40 = sadd.s32 %s39, 1
      %s41 = scalar_select %p38, %s39, %s40
      %p44 = pneg %p38
      %p45 = scmp.eq.s32.totalorder %s17, 3
      %p46 = por %p44, %p45
      %p47 = scmp.ne.s32.totalorder %s39, %s42
      %p48 = scmp.eq.s32.totalorder %s17, 0
      %p49 = por %p47, %p48
      %p50 = scmp.ne.s32.totalorder %s39, %s42
      %p51 = scmp.eq.s32.totalorder %s22, 3
      %p52 = por %p50, %p51
      %p53 = scmp.ne.s32.totalorder %s42, %s43
      %p54 = scmp.eq.s32.totalorder %s22, 0
      %p55 = por %p53, %p54
      %p56 = scmp.ne.s32.totalorder %s42, %s43
      %p57 = scmp.eq.s32.totalorder %s23, 3
      %p58 = por %p56, %p57
      %p60 = scmp.ne.s32.totalorder %s43, %s59
      %p61 = scmp.eq.s32.totalorder %s23, 0
      %p62 = por %p60, %p61
      %s63 = ssub.s32 %s24, %s36
      %p64 = scmp.eq.s32.totalorder %s63, 0
      %s66 = sadd.s32 %s65, 1
      %s67 = scalar_select %p64, %s65, %s66
      %p70 = pneg %p64
      %p71 = scmp.eq.s32.totalorder %s17, 3
      %p72 = por %p70, %p71
      %p73 = scmp.ne.s32.totalorder %s65, %s68
      %p74 = scmp.eq.s32.totalorder %s17, 0
      %p75 = por %p73, %p74
      %p76 = scmp.ne.s32.totalorder %s65, %s68
      %p77 = scmp.eq.s32.totalorder %s22, 3
      %p78 = por %p76, %p77
      %p79 = scmp.ne.s32.totalorder %s68, %s69
      %p80 = scmp.eq.s32.totalorder %s22, 0
      %p81 = por %p79, %p80
      %p82 = scmp.ne.s32.totalorder %s68, %s69
      %p83 = scmp.eq.s32.totalorder %s23, 3
      %p84 = por %p82, %p83
      %p86 = scmp.ne.s32.totalorder %s69, %s85
      %p87 = scmp.eq.s32.totalorder %s23, 0
      %p88 = por %p86, %p87
      %s90 = sadd.s32 %s89, 1
      %p93 = scmp.eq.s32.totalorder %s17, 3
      %p94 = scmp.ne.s32.totalorder %s89, %s91
      %p95 = scmp.eq.s32.totalorder %s17, 0
      %p96 = por %p94, %p95
      %p97 = scmp.ne.s32.totalorder %s89, %s91
      %p98 = scmp.eq.s32.totalorder %s22, 3
      %p99 = por %p97, %p98
      %p100 = scmp.ne.s32.totalorder %s91, %s92
      %p101 = scmp.eq.s32.totalorder %s22, 0
      %p102 = por %p100, %p101
      %p103 = scmp.ne.s32.totalorder %s91, %s92
      %p104 = scmp.eq.s32.totalorder %s23, 3
      %p105 = por %p103, %p104
      %p107 = scmp.ne.s32.totalorder %s92, %s106
      %p108 = scmp.eq.s32.totalorder %s23, 0
      %p109 = por %p107, %p108
      %s111 = sadd.s32 %s110, 1
      %p114 = scmp.eq.s32.totalorder %s17, 3
      %p115 = scmp.ne.s32.totalorder %s110, %s112
      %p116 = scmp.eq.s32.totalorder %s17, 0
      %p117 = por %p115, %p116
      %p118 = scmp.ne.s32.totalorder %s110, %s112
      %p119 = scmp.eq.s32.totalorder %s22, 3
      %p120 = por %p118, %p119
      %p121 = scmp.ne.s32.totalorder %s112, %s113
      %p122 = scmp.eq.s32.totalorder %s22, 0
      %p123 = por %p121, %p122
      %p124 = scmp.ne.s32.totalorder %s112, %s113
      %p125 = scmp.eq.s32.totalorder %s23, 3
      %p126 = por %p124, %p125
      %p128 = scmp.ne.s32.totalorder %s113, %s127
      %p129 = scmp.eq.s32.totalorder %s23, 0
      %p130 = por %p128, %p129
      %s132 = sadd.s32 %s131, 1
      %p135 = scmp.eq.s32.totalorder %s17, 3
      %p136 = scmp.ne.s32.totalorder %s131, %s133
      %p137 = scmp.eq.s32.totalorder %s17, 0
      %p138 = por %p136, %p137
      %p139 = scmp.ne.s32.totalorder %s131, %s133
      %p140 = scmp.eq.s32.totalorder %s22, 3
      %p141 = por %p139, %p140
      %p142 = scmp.ne.s32.totalorder %s133, %s134
      %p143 = scmp.eq.s32.totalorder %s22, 0
      %p144 = por %p142, %p143
      %p145 = scmp.ne.s32.totalorder %s133, %s134
      %p146 = scmp.eq.s32.totalorder %s23, 3
      %p147 = por %p145, %p146
      %p149 = scmp.ne.s32.totalorder %s134, %s148
      %p150 = scmp.eq.s32.totalorder %s23, 0
      %p151 = por %p149, %p150
      %s153 = sadd.s32 %s152, 1
      %p156 = scmp.eq.s32.totalorder %s17, 3
      %p157 = scmp.ne.s32.totalorder %s152, %s154
      %p158 = scmp.eq.s32.totalorder %s17, 0
      %p159 = por %p157, %p158
      %p160 = scmp.ne.s32.totalorder %s152, %s154
      %p161 = scmp.eq.s32.totalorder %s22, 3
      %p162 = por %p160, %p161
      %p163 = scmp.ne.s32.totalorder %s154, %s155
      %p164 = scmp.eq.s32.totalorder %s22, 0
      %p165 = por %p163, %p164
      %p166 = scmp.ne.s32.totalorder %s154, %s155
      %p167 = scmp.eq.s32.totalorder %s23, 3
      %p168 = por %p166, %p167
      %p170 = scmp.ne.s32.totalorder %s155, %s169
      %p171 = scmp.eq.s32.totalorder %s23, 0
      %p172 = por %p170, %p171
      %s174 = sadd.s32 %s173, 1
      %p177 = scmp.eq.s32.totalorder %s17, 3
      %p178 = scmp.ne.s32.totalorder %s173, %s175
      %p179 = scmp.eq.s32.totalorder %s17, 0
      %p180 = por %p178, %p179
      %p181 = scmp.ne.s32.totalorder %s173, %s175
      %p182 = scmp.eq.s32.totalorder %s22, 3
      %p183 = por %p181, %p182
      %p184 = scmp.ne.s32.totalorder %s175, %s176
      %p185 = scmp.eq.s32.totalorder %s22, 0
      %p186 = por %p184, %p185
      %p187 = scmp.ne.s32.totalorder %s175, %s176
      %p188 = scmp.eq.s32.totalorder %s23, 3
      %p189 = por %p187, %p188
      %p191 = scmp.ne.s32.totalorder %s176, %s190
      %p192 = scmp.eq.s32.totalorder %s23, 0
      %p193 = por %p191, %p192
      %s195 = sadd.s32 %s194, 1
      %p198 = scmp.eq.s32.totalorder %s17, 3
      %p199 = scmp.ne.s32.totalorder %s194, %s196
      %p200 = scmp.eq.s32.totalorder %s17, 0
      %p201 = por %p199, %p200
      %p202 = scmp.ne.s32.totalorder %s194, %s196
      %p203 = scmp.eq.s32.totalorder %s22, 3
      %p204 = por %p202, %p203
      %p205 = scmp.ne.s32.totalorder %s196, %s197
      %p206 = scmp.eq.s32.totalorder %s22, 0
      %p207 = por %p205, %p206
      %p208 = scmp.ne.s32.totalorder %s196, %s197
      %p209 = scmp.eq.s32.totalorder %s23, 3
      %p210 = por %p208, %p209
      %p212 = scmp.ne.s32.totalorder %s197, %s211
      %p213 = scmp.eq.s32.totalorder %s23, 0
      %p214 = por %p212, %p213
      %s215 = ssub.s32 %s24, %s36
      %s216 = ssub.s32 %s25, %s32
      %s217 = sor.u32 %s215, %s216
      %p218 = scmp.eq.s32.totalorder %s217, 0
      %s220 = sadd.s32 %s219, 1
      %s221 = scalar_select %p218, %s219, %s220
      %p224 = pneg %p218
      %p225 = scmp.eq.s32.totalorder %s17, 3
      %p226 = por %p224, %p225
      %p227 = scmp.ne.s32.totalorder %s219, %s222
      %p228 = scmp.eq.s32.totalorder %s17, 0
      %p229 = por %p227, %p228
      %p230 = scmp.ne.s32.totalorder %s219, %s222
      %p231 = scmp.eq.s32.totalorder %s22, 3
      %p232 = por %p230, %p231
      %p233 = scmp.ne.s32.totalorder %s222, %s223
      %p234 = scmp.eq.s32.totalorder %s22, 0
      %p235 = por %p233, %p234
      %p236 = scmp.ne.s32.totalorder %s222, %s223
      %p237 = scmp.eq.s32.totalorder %s23, 3
      %p238 = por %p236, %p237
      %p240 = scmp.ne.s32.totalorder %s223, %s239
      %p241 = scmp.eq.s32.totalorder %s23, 0
      %p242 = por %p240, %p241
      %p243 = scmp.le.s32.totalorder 1, %s17
      %p244 = scmp.lt.s32.totalorder %s17, 5
      %p245 = pnand %p243, %p244
      %p246 = pneg %p245
      // Predicated region
      $region9: #{deconv_layer_forward.1} parent=5 // pred_check
        _
      $region10: #{deconv_layer_forward.1} parent=5 // pred_check_branch
        %248 = sbr.rel (%p245) target = $region12
      $region11: #{deconv_layer_forward.1} parent=5 // pred_region
        %s249 = ssub.s32 %s17, 1
        // Predicated region
        $region13: #{deconv_layer_forward.1} parent=11 // pred_check
          %p250 = pneg %p102
        $region14: #{deconv_layer_forward.1} parent=11 // pred_check_branch
          %252 = sbr.rel (%p250) target = $region16
        $region15: #{deconv_layer_forward.1} parent=11 // pred_region
          _
        $region16: #{deconv_layer_forward.1} parent=11 // pred_fallthru
          _
        // Predicated region
        $region17: #{deconv_layer_forward.1} parent=11 // pred_check
          %p253 = pneg %p123
        $region18: #{deconv_layer_forward.1} parent=11 // pred_check_branch
          %255 = sbr.rel (%p253) target = $region20
        $region19: #{deconv_layer_forward.1} parent=11 // pred_region
          _
        $region20: #{deconv_layer_forward.1} parent=11 // pred_fallthru
          _
        // Predicated region
        $region21: #{deconv_layer_forward.1} parent=11 // pred_check
          %p256 = pneg %p144
        $region22: #{deconv_layer_forward.1} parent=11 // pred_check_branch
          %258 = sbr.rel (%p256) target = $region24
        $region23: #{deconv_layer_forward.1} parent=11 // pred_region
          _
        $region24: #{deconv_layer_forward.1} parent=11 // pred_fallthru
          _
        // Predicated region
        $region25: #{deconv_layer_forward.1} parent=11 // pred_check
          %p259 = pneg %p165
        $region26: #{deconv_layer_forward.1} parent=11 // pred_check_branch
          %261 = sbr.rel (%p259) target = $region28
        $region27: #{deconv_layer_forward.1} parent=11 // pred_region
          _
        $region28: #{deconv_layer_forward.1} parent=11 // pred_fallthru
          _
        // Predicated region
        $region29: #{deconv_layer_forward.1} parent=11 // pred_check
          %p262 = pneg %p186
        $region30: #{deconv_layer_forward.1} parent=11 // pred_check_branch
          %264 = sbr.rel (%p262) target = $region32
        $region31: #{deconv_layer_forward.1} parent=11 // pred_region
          _
        $region32: #{deconv_layer_forward.1} parent=11 // pred_fallthru
          _
        // Predicated region
        $region33: #{deconv_layer_forward.1} parent=11 // pred_check
          %p265 = pneg %p207
        $region34: #{deconv_layer_forward.1} parent=11 // pred_check_branch
          %267 = sbr.rel (%p265) target = $region36
        $region35: #{deconv_layer_forward.1} parent=11 // pred_region
          _
        $region36: #{deconv_layer_forward.1} parent=11 // pred_fallthru
          _
      $region12: #{deconv_layer_forward.1} parent=5 // pred_fallthru
        _
      %p268 = scmp.lt.s32.totalorder %s17, 4
      // Predicated region
      $region37: #{deconv_layer_forward.1} parent=5 // pred_check
        %p269 = pneg %p268
      $region38: #{deconv_layer_forward.1} parent=5 // pred_check_branch
        %271 = sbr.rel (%p269) target = $region40
      $region39: #{deconv_layer_forward.1} parent=5 // pred_region
        // Predicated region
        $region41: #{deconv_layer_forward.1} parent=39 // pred_check
          %p272 = pneg %p49
        $region42: #{deconv_layer_forward.1} parent=39 // pred_check_branch
          %274 = sbr.rel (%p272) target = $region44
        $region43: #{deconv_layer_forward.1} parent=39 // pred_region
          %p275 = scmp.lt.s32.totalorder %s24, 1
          %s276 = scalar_select %p275, %s24, 1
          %s277 = smul.addr %s276, 36
          %s278 = smul.addr %s277, 4
          %s279 = scalar_lea.vmem %s0, %s278
        $region44: #{deconv_layer_forward.1} parent=39 // pred_fallthru
          _
        // Predicated region
        $region45: #{deconv_layer_forward.1} parent=39 // pred_check
          %p280 = pneg %p75
        $region46: #{deconv_layer_forward.1} parent=39 // pred_check_branch
          %282 = sbr.rel (%p280) target = $region48
        $region47: #{deconv_layer_forward.1} parent=39 // pred_region
          %p283 = scmp.lt.s32.totalorder %s24, 1
          %s284 = scalar_select %p283, %s24, 1
          %s285 = smul.addr %s284, 36
          %s286 = smul.addr %s285, 4
          %s287 = scalar_lea.vmem %s1, %s286
        $region48: #{deconv_layer_forward.1} parent=39 // pred_fallthru
          _
      $region40: #{deconv_layer_forward.1} parent=5 // pred_fallthru
        _
      %p288 = scmp.le.s32.totalorder 1, %s17
      %p289 = scmp.lt.s32.totalorder %s17, 5
      %p290 = pnand %p288, %p289
      %p291 = pneg %p290
      // Predicated region
      $region49: #{deconv_layer_forward.1} parent=5 // pred_check
        _
      $region50: #{deconv_layer_forward.1} parent=5 // pred_check_branch
        %293 = sbr.rel (%p290) target = $region52
      $region51: #{deconv_layer_forward.1} parent=5 // pred_region
        %s294 = ssub.s32 %s17, 1
        %p295 = scmp.lt.s32.totalorder %s26, 1
        %s296 = scalar_select %p295, %s26, 1
        %s297 = smul.addr %s296, 36
        %s298 = smul.addr %s297, 4
        %s299 = scalar_lea.vmem %s0, %s298
        %p300 = pneg %p55
        %p301 = pneg %p52
        %p302 = scmp.lt.s32.totalorder %s26, 1
        %s303 = scalar_select %p302, %s26, 1
        %s304 = smul.addr %s303, 36
        %s305 = smul.addr %s304, 4
        %s306 = scalar_lea.vmem %s1, %s305
        %p307 = pneg %p81
        %p308 = pneg %p78
        %p309 = pneg %p102
        %p310 = pneg %p99
        %p311 = pneg %p123
        %p312 = pneg %p120
        %p313 = pneg %p144
        %p314 = pneg %p141
        %p315 = pneg %p165
        %p316 = pneg %p162
        %p317 = pneg %p186
        %p318 = pneg %p183
        %p319 = pneg %p207
        %p320 = pneg %p204
        %p321 = pneg %p235
        %p322 = pneg %p232
        %s323 = sand.u32 %s222, 1
        %s324 = scalar_lea.sflag [#allocation4], %s323
        %s325 = sand.u32 %s222, 1
        %s326 = smul.addr %s325, 256
        %s327 = scalar_lea.vmem [#allocation3], %s326
        %p328 = scmp.lt.s32.totalorder %s26, 1
        %s329 = scalar_select %p328, %s26, 1
        %s330 = smul.addr %s329, 36
        %s331 = smul.addr %s330, 4
        %s332 = scalar_lea.vmem %s0, %s331
        %p333 = scmp.lt.s32.totalorder %s26, 1
        %s334 = scalar_select %p333, %s26, 1
        %s335 = smul.addr %s334, 36
        %s336 = smul.addr %s335, 4
        %s337 = scalar_lea.vmem %s1, %s336
        %s338 = smul.u32 8, %s27
        %s340 = smul.u32 %s27, 8
        %s341 = smul.u32 %s340, 2
        %s342 = smul.addr %s341, 4
        %s343 = scalar_lea.vmem %s332, %s342
        %v344 = vld [vmem:[%s343] sm:$0xf]
        %v345 = vld [vmem:[%s343 + $0x4] sm:$0xf]
        %v346 = vld [vmem:[%s343 + $0x8] sm:$0xf]
        %v347 = vld [vmem:[%s343 + $0xc] sm:$0xf]
        %v348 = vld [vmem:[%s343 + $0x10] sm:$0xf]
        %v349 = vld [vmem:[%s343 + $0x14] sm:$0xf]
        %v350 = vld [vmem:[%s343 + $0x18] sm:$0xf]
        %v351 = vld [vmem:[%s343 + $0x1c] sm:$0xf]
        %v352 = vld [vmem:[%s343 + $0x20] sm:$0xf]
        %v353 = vld [vmem:[%s343 + $0x24] sm:$0xf]
        %v354 = vld [vmem:[%s343 + $0x28] sm:$0xf]
        %v355 = vld [vmem:[%s343 + $0x2c] sm:$0xf]
        %v356 = vld [vmem:[%s343 + $0x30] sm:$0xf]
        %v357 = vld [vmem:[%s343 + $0x34] sm:$0xf]
        %v358 = vld [vmem:[%s343 + $0x38] sm:$0xf]
        %v359 = vld [vmem:[%s343 + $0x3c] sm:$0xf]
        %v360 = vld [vmem:[%s343 + $0x40] sm:$0xf]
        %v361 = vld [vmem:[%s343 + $0x44] sm:$0xf]
        %v362 = vld [vmem:[%s343 + $0x48] sm:$0xf]
        %v363 = vld [vmem:[%s343 + $0x4c] sm:$0xf]
        %v364 = vld [vmem:[%s2] sm:$0xff]
        %v365 = vld [vmem:[%s2 + $0x8] sm:$0xff]
        %v366 = vld [vmem:[%s3] sm:$0x3]
        %v368 = vlaneseq
        %v369 = vshrl.u32 %v368, 7
        %v370 = vsub.s32 0, %v369
        %v371 = vrot.slane %v366, %v370
        %v372 = vlaneseq
        %v373 = vshrl.u32 %v372, 7
        %v374 = vsub.s32 1, %v373
        %v375 = vrot.slane %v366, %v374
        %v398 = vunpack.c.l.b16 %v344
        %v399 = vunpack.c.l.b16 %v345
        %v400 = vunpack.c.l.b16 %v346
        %v401 = vunpack.c.l.b16 %v347
        %v402 = vunpack.c.l.b16 %v348
        %v403 = vunpack.c.l.b16 %v349
        %v404 = vunpack.c.l.b16 %v350
        %v405 = vunpack.c.l.b16 %v351
        %v406 = vunpack.c.l.b16 %v352
        %v407 = vunpack.c.l.b16 %v353
        %v408 = vunpack.c.l.b16 %v354
        %v409 = vunpack.c.l.b16 %v355
        %v410 = vunpack.c.l.b16 %v356
        %v411 = vunpack.c.l.b16 %v357
        %v412 = vunpack.c.l.b16 %v358
        %v413 = vunpack.c.l.b16 %v359
        %v414 = vunpack.c.l.b16 %v360
        %v415 = vunpack.c.l.b16 %v361
        %v416 = vunpack.c.l.b16 %v362
        %v417 = vunpack.c.l.b16 %v363
        %v418 = vpack.c.b16 %v399, %v398
        %v419 = vpack.c.b16 %v401, %v400
        %v420 = vpack.c.b16 %v403, %v402
        %v421 = vpack.c.b16 %v405, %v404
        %v422 = vpack.c.b16 %v407, %v406
        %v423 = vpack.c.b16 %v409, %v408
        %v424 = vpack.c.b16 %v411, %v410
        %v425 = vpack.c.b16 %v413, %v412
        %v426 = vpack.c.b16 %v415, %v414
        %v427 = vpack.c.b16 %v417, %v416
        %v430 = vunpack.c.l.b16 %v364
        %v431 = vunpack.c.h.b16 %v364
        %v432 = vunpack.c.l.b16 %v365
        %v433 = vunpack.c.h.b16 %v365
        %v434 = vpack.c.b16 %v432, %v430
        %v435 = vpack.c.b16 %v433, %v431
        %vm438 = vcmask 130048
        %v440 = vsel %vm438, %v418, 0
        %v443 = vsel %vm438, %v419, 0
        %v446 = vsel %vm438, %v420, 0
        %v449 = vsel %vm438, %v421, 0
        %v452 = vsel %vm438, %v422, 0
        %v455 = vsel %vm438, %v423, 0
        %v458 = vsel %vm438, %v424, 0
        %v461 = vsel %vm438, %v425, 0
        %v464 = vsel %vm438, %v426, 0
        %v467 = vsel %vm438, %v427, 0
        %469 = vmatprep.subr.bf16.mxu0 %v435
        %470 = vmatpush1.bf16.msra.mxu0 %v434
        %471 = vmatprep.subr.bf16.mxu0 0
        %472 = vmatpush1.bf16.msra.mxu0 0
        %473 = vmatprep.subr.bf16.mxu0 0
        %474 = vmatpush1.bf16.msra.mxu0 0
        %475 = vmatprep.subr.bf16.mxu0 0
        %476 = vmatpush1.bf16.msra.mxu0 0
        %477 = vmatprep.subr.bf16.mxu0 0
        %478 = vmatpush1.bf16.msra.mxu0 0
        %479 = vmatprep.subr.bf16.mxu0 0
        %480 = vmatpush1.bf16.msra.mxu0 0
        %481 = vmatprep.subr.bf16.mxu0 0
        %482 = vmatpush1.bf16.msra.mxu0 0
        %483 = vmatprep.subr.bf16.mxu0 0
        %484 = vmatpush1.bf16.msra.mxu0 0
        %485 = vmatprep.subr.bf16.mxu0 0
        %486 = vmatpush1.bf16.msra.mxu0 0
        %487 = vmatprep.subr.bf16.mxu0 0
        %488 = vmatpush1.bf16.msra.mxu0 0
        %489 = vmatprep.subr.bf16.mxu0 0
        %490 = vmatpush1.bf16.msra.mxu0 0
        %491 = vmatprep.subr.bf16.mxu0 0
        %492 = vmatpush1.bf16.msra.mxu0 0
        %493 = vmatprep.subr.bf16.mxu0 0
        %494 = vmatpush1.bf16.msra.mxu0 0
        %495 = vmatprep.subr.bf16.mxu0 0
        %496 = vmatpush1.bf16.msra.mxu0 0
        %497 = vmatprep.subr.bf16.mxu0 0
        %498 = vmatpush1.bf16.msra.mxu0 0
        %499 = vmatprep.subr.bf16.mxu0 0
        %500 = vmatpush1.bf16.msra.mxu0 0
        %501 = vmatprep.mubr.bf16.mxu0 0
        %502 = vmatmul.mubr.bf16.gmra.mrb[0].mxu0 %v440
        %v503 = vpop.f32.mrb[0].mxu0
        %v504 = vadd.f32 %v371, %v503
        %v505 = vpop.f32.mrb[0].mxu0
        %v506 = vadd.f32 %v375, %v505
        %v507 = vpop.f32.mrb[0].mxu0
        %v508 = vadd.f32 %v371, %v507
        %v509 = vpop.f32.mrb[0].mxu0
        %v510 = vadd.f32 %v375, %v509
        %511 = vmatprep.mubr.bf16.mxu0 0
        %512 = vmatmul.mubr.bf16.gmra.mrb[0].mxu0 %v443
        %v513 = vpop.f32.mrb[0].mxu0
        %v514 = vadd.f32 %v371, %v513
        %v515 = vpop.f32.mrb[0].mxu0
        %v516 = vadd.f32 %v375, %v515
        %v517 = vpop.f32.mrb[0].mxu0
        %v518 = vadd.f32 %v371, %v517
        %v519 = vpop.f32.mrb[0].mxu0
        %v520 = vadd.f32 %v375, %v519
        %521 = vmatprep.mubr.bf16.mxu0 0
        %522 = vmatmul.mubr.bf16.gmra.mrb[0].mxu0 %v446
        %v523 = vpop.f32.mrb[0].mxu0
        %v524 = vadd.f32 %v371, %v523
        %v525 = vpop.f32.mrb[0].mxu0
        %v526 = vadd.f32 %v375, %v525
        %v527 = vpop.f32.mrb[0].mxu0
        %v528 = vadd.f32 %v371, %v527
        %v529 = vpop.f32.mrb[0].mxu0
        %v530 = vadd.f32 %v375, %v529
        %531 = vmatprep.mubr.bf16.mxu0 0
        %532 = vmatmul.mubr.bf16.gmra.mrb[0].mxu0 %v449
        %v533 = vpop.f32.mrb[0].mxu0
        %v534 = vadd.f32 %v371, %v533
        %v535 = vpop.f32.mrb[0].mxu0
        %v536 = vadd.f32 %v375, %v535
        %v537 = vpop.f32.mrb[0].mxu0
        %v538 = vadd.f32 %v371, %v537
        %v539 = vpop.f32.mrb[0].mxu0
        %v540 = vadd.f32 %v375, %v539
        %541 = vmatprep.mubr.bf16.mxu0 0
        %542 = vmatmul.mubr.bf16.gmra.mrb[0].mxu0 %v452
        %v543 = vpop.f32.mrb[0].mxu0
        %v544 = vadd.f32 %v371, %v543
        %v545 = vpop.f32.mrb[0].mxu0
        %v546 = vadd.f32 %v375, %v545
        %v547 = vpop.f32.mrb[0].mxu0
        %v548 = vadd.f32 %v371, %v547
        %v549 = vpop.f32.mrb[0].mxu0
        %v550 = vadd.f32 %v375, %v549
        %551 = vmatprep.mubr.bf16.mxu0 0
        %552 = vmatmul.mubr.bf16.gmra.mrb[0].mxu0 %v455
        %v553 = vpop.f32.mrb[0].mxu0
        %v554 = vadd.f32 %v371, %v553
        %v555 = vpop.f32.mrb[0].mxu0
        %v556 = vadd.f32 %v375, %v555
        %v557 = vpop.f32.mrb[0].mxu0
        %v558 = vadd.f32 %v371, %v557
        %v559 = vpop.f32.mrb[0].mxu0
        %v560 = vadd.f32 %v375, %v559
        %561 = vmatprep.mubr.bf16.mxu0 0
        %562 = vmatmul.mubr.bf16.gmra.mrb[0].mxu0 %v458
        %v563 = vpop.f32.mrb[0].mxu0
        %v564 = vadd.f32 %v371, %v563
        %v565 = vpop.f32.mrb[0].mxu0
        %v566 = vadd.f32 %v375, %v565
        %v567 = vpop.f32.mrb[0].mxu0
        %v568 = vadd.f32 %v371, %v567
        %v569 = vpop.f32.mrb[0].mxu0
        %v570 = vadd.f32 %v375, %v569
        %571 = vmatprep.mubr.bf16.mxu0 0
        %572 = vmatmul.mubr.bf16.gmra.mrb[0].mxu0 %v461
        %v573 = vpop.f32.mrb[0].mxu0
        %v574 = vadd.f32 %v371, %v573
        %v575 = vpop.f32.mrb[0].mxu0
        %v576 = vadd.f32 %v375, %v575
        %v577 = vpop.f32.mrb[0].mxu0
        %v578 = vadd.f32 %v371, %v577
        %v579 = vpop.f32.mrb[0].mxu0
        %v580 = vadd.f32 %v375, %v579
        %581 = vmatprep.mubr.bf16.mxu0 0
        %582 = vmatmul.mubr.bf16.gmra.mrb[0].mxu0 %v464
        %v583 = vpop.f32.mrb[0].mxu0
        %v584 = vadd.f32 %v371, %v583
        %v585 = vpop.f32.mrb[0].mxu0
        %v586 = vadd.f32 %v375, %v585
        %v587 = vpop.f32.mrb[0].mxu0
        %v588 = vadd.f32 %v371, %v587
        %v589 = vpop.f32.mrb[0].mxu0
        %v590 = vadd.f32 %v375, %v589
        %591 = vmatprep.mubr.bf16.mxu0 0
        %592 = vmatmul.mubr.bf16.gmra.mrb[0].mxu0 %v467
        %v593 = vpop.f32.mrb[0].mxu0
        %v594 = vadd.f32 %v371, %v593
        %v595 = vpop.f32.mrb[0].mxu0
        %v596 = vadd.f32 %v375, %v595
        %v597 = vpop.f32.mrb[0].mxu0
        %v598 = vadd.f32 %v371, %v597
        %v599 = vpop.f32.mrb[0].mxu0
        %v600 = vadd.f32 %v375, %v599
        %601 = vdwg.mxu0
        %v602 = vpack.c.bf16 %v508, %v504
        %v603 = vpack.c.bf16 %v510, %v506
        %v604 = vpack.c.bf16 %v518, %v514
        %v605 = vpack.c.bf16 %v520, %v516
        %v606 = vpack.c.bf16 %v528, %v524
        %v607 = vpack.c.bf16 %v530, %v526
        %v608 = vpack.c.bf16 %v538, %v534
        %v609 = vpack.c.bf16 %v540, %v536
        %v610 = vpack.c.bf16 %v548, %v544
        %v611 = vpack.c.bf16 %v550, %v546
        %v612 = vpack.c.bf16 %v558, %v554
        %v613 = vpack.c.bf16 %v560, %v556
        %v614 = vpack.c.bf16 %v568, %v564
        %v615 = vpack.c.bf16 %v570, %v566
        %v616 = vpack.c.bf16 %v578, %v574
        %v617 = vpack.c.bf16 %v580, %v576
        %v618 = vpack.c.bf16 %v588, %v584
        %v619 = vpack.c.bf16 %v590, %v586
        %v620 = vpack.c.bf16 %v598, %v594
        %v621 = vpack.c.bf16 %v600, %v596
        %s622 = smul.addr %s341, 4
        %s623 = scalar_lea.vmem %s337, %s622
        %v624 = vld [vmem:[%s623] sm:$0xf]
        %v625 = vld [vmem:[%s623 + $0x4] sm:$0xf]
        %v626 = vld [vmem:[%s623 + $0x8] sm:$0xf]
        %v627 = vld [vmem:[%s623 + $0xc] sm:$0xf]
        %v628 = vld [vmem:[%s623 + $0x10] sm:$0xf]
        %v629 = vld [vmem:[%s623 + $0x14] sm:$0xf]
        %v630 = vld [vmem:[%s623 + $0x18] sm:$0xf]
        %v631 = vld [vmem:[%s623 + $0x1c] sm:$0xf]
        %v632 = vld [vmem:[%s623 + $0x20] sm:$0xf]
        %v633 = vld [vmem:[%s623 + $0x24] sm:$0xf]
        %v634 = vld [vmem:[%s623 + $0x28] sm:$0xf]
        %v635 = vld [vmem:[%s623 + $0x2c] sm:$0xf]
        %v636 = vld [vmem:[%s623 + $0x30] sm:$0xf]
        %v637 = vld [vmem:[%s623 + $0x34] sm:$0xf]
        %v638 = vld [vmem:[%s623 + $0x38] sm:$0xf]
        %v639 = vld [vmem:[%s623 + $0x3c] sm:$0xf]
        %v640 = vld [vmem:[%s623 + $0x40] sm:$0xf]
        %v641 = vld [vmem:[%s623 + $0x44] sm:$0xf]
        %v642 = vld [vmem:[%s623 + $0x48] sm:$0xf]
        %v643 = vld [vmem:[%s623 + $0x4c] sm:$0xf]
        %v644 = vld [vmem:[%s4] sm:$0xff]
        %v645 = vld [vmem:[%s4 + $0x8] sm:$0xff]
        %v646 = vld [vmem:[%s4 + $0x10] sm:$0xff]
        %v647 = vld [vmem:[%s4 + $0x18] sm:$0xff]
        %v648 = vld [vmem:[%s4 + $0x20] sm:$0xff]
        %v649 = vld [vmem:[%s4 + $0x28] sm:$0xff]
        %v650 = vld [vmem:[%s4 + $0x30] sm:$0xff]
        %v651 = vld [vmem:[%s4 + $0x38] sm:$0xff]
        %v652 = vld [vmem:[%s4 + $0x40] sm:$0xff]
        %v653 = vld [vmem:[%s5] sm:$0x3]
        %v655 = vlaneseq
        %v656 = vshrl.u32 %v655, 7
        %v657 = vsub.s32 0, %v656
        %v658 = vrot.slane %v653, %v657
        %v659 = vlaneseq
        %v660 = vshrl.u32 %v659, 7
        %v661 = vsub.s32 1, %v660
        %v662 = vrot.slane %v653, %v661
        %v685 = vunpack.c.l.b16 %v624
        %v686 = vunpack.c.l.b16 %v625
        %v687 = vunpack.c.l.b16 %v626
        %v688 = vunpack.c.l.b16 %v627
        %v689 = vunpack.c.l.b16 %v628
        %v690 = vunpack.c.l.b16 %v629
        %v691 = vunpack.c.l.b16 %v630
        %v692 = vunpack.c.l.b16 %v631
        %v693 = vunpack.c.l.b16 %v632
        %v694 = vunpack.c.l.b16 %v633
        %v695 = vunpack.c.l.b16 %v634
        %v696 = vunpack.c.l.b16 %v635
        %v697 = vunpack.c.l.b16 %v636
        %v698 = vunpack.c.l.b16 %v637
        %v699 = vunpack.c.l.b16 %v638
        %v700 = vunpack.c.l.b16 %v639
        %v701 = vunpack.c.l.b16 %v640
        %v702 = vunpack.c.l.b16 %v641
        %v703 = vunpack.c.l.b16 %v642
        %v704 = vunpack.c.l.b16 %v643
        %v705 = vpack.c.b16 %v686, %v685
        %v706 = vpack.c.b16 %v688, %v687
        %v707 = vpack.c.b16 %v690, %v689
        %v708 = vpack.c.b16 %v692, %v691
        %v709 = vpack.c.b16 %v694, %v693
        %v710 = vpack.c.b16 %v696, %v695
        %v711 = vpack.c.b16 %v698, %v697
        %v712 = vpack.c.b16 %v700, %v699
        %v713 = vpack.c.b16 %v702, %v701
        %v714 = vpack.c.b16 %v704, %v703
        %v724 = vunpack.c.l.b16 %v644
        %v725 = vunpack.c.h.b16 %v644
        %v726 = vunpack.c.l.b16 %v645
        %v727 = vunpack.c.h.b16 %v645
        %v728 = vunpack.c.l.b16 %v646
        %v729 = vunpack.c.h.b16 %v646
        %v730 = vunpack.c.l.b16 %v647
        %v731 = vunpack.c.h.b16 %v647
        %v732 = vunpack.c.l.b16 %v648
        %v733 = vunpack.c.h.b16 %v648
        %v734 = vunpack.c.l.b16 %v649
        %v735 = vunpack.c.h.b16 %v649
        %v736 = vunpack.c.l.b16 %v650
        %v737 = vunpack.c.h.b16 %v650
        %v738 = vunpack.c.l.b16 %v651
        %v739 = vunpack.c.h.b16 %v651
        %v740 = vunpack.c.l.b16 %v652
        %v741 = vunpack.c.h.b16 %v652
        %v742 = vpack.c.b16 %v726, %v724
        %v743 = vpack.c.b16 %v727, %v725
        %v744 = vpack.c.b16 %v730, %v728
        %v745 = vpack.c.b16 %v731, %v729
        %v746 = vpack.c.b16 %v734, %v732
        %v747 = vpack.c.b16 %v735, %v733
        %v748 = vpack.c.b16 %v738, %v736
        %v749 = vpack.c.b16 %v739, %v737
        %v750 = vpack.c.b16 %v740, %v740
        %v751 = vpack.c.b16 %v741, %v741
        %vm760 = vcmask 588800
        %v762 = vsel %vm760, %v705, 0
        %v765 = vsel %vm760, %v706, 0
        %v768 = vsel %vm760, %v707, 0
        %v771 = vsel %vm760, %v708, 0
        %v774 = vsel %vm760, %v709, 0
        %v777 = vsel %vm760, %v710, 0
        %v780 = vsel %vm760, %v711, 0
        %v783 = vsel %vm760, %v712, 0
        %v786 = vsel %vm760, %v713, 0
        %v789 = vsel %vm760, %v714, 0
        %vm791 = vcmask 1043456
        %v793 = vsel %vm791, %v750, 0
        %v796 = vsel %vm791, %v751, 0
        %798 = vmatprep.subr.bf16.mxu0 %v743
        %799 = vmatpush1.bf16.msra.mxu0 %v742
        %800 = vmatprep.subr.bf16.mxu0 %v745
        %801 = vmatpush1.bf16.msra.mxu0 %v744
        %802 = vmatprep.subr.bf16.mxu0 %v747
        %803 = vmatpush1.bf16.msra.mxu0 %v746
        %804 = vmatprep.subr.bf16.mxu0 %v749
        %805 = vmatpush1.bf16.msra.mxu0 %v748
        %806 = vmatprep.subr.bf16.mxu0 %v796
        %807 = vmatpush1.bf16.msra.mxu0 %v793
        %808 = vmatprep.subr.bf16.mxu0 0
        %809 = vmatpush1.bf16.msra.mxu0 0
        %810 = vmatprep.subr.bf16.mxu0 0
        %811 = vmatpush1.bf16.msra.mxu0 0
        %812 = vmatprep.subr.bf16.mxu0 0
        %813 = vmatpush1.bf16.msra.mxu0 0
        %814 = vmatprep.subr.bf16.mxu0 0
        %815 = vmatpush1.bf16.msra.mxu0 0
        %816 = vmatprep.subr.bf16.mxu0 0
        %817 = vmatpush1.bf16.msra.mxu0 0
        %818 = vmatprep.subr.bf16.mxu0 0
        %819 = vmatpush1.bf16.msra.mxu0 0
        %820 = vmatprep.subr.bf16.mxu0 0
        %821 = vmatpush1.bf16.msra.mxu0 0
        %822 = vmatprep.subr.bf16.mxu0 0
        %823 = vmatpush1.bf16.msra.mxu0 0
        %824 = vmatprep.subr.bf16.mxu0 0
        %825 = vmatpush1.bf16.msra.mxu0 0
        %826 = vmatprep.subr.bf16.mxu0 0
        %827 = vmatpush1.bf16.msra.mxu0 0
        %828 = vmatprep.subr.bf16.mxu0 0
        %829 = vmatpush1.bf16.msra.mxu0 0
        %830 = vmatprep.mubr.bf16.mxu0 0
        %831 = vmatmul.mubr.bf16.gmra.mrb[0].mxu0 %v762
        %v832 = vpop.f32.mrb[0].mxu0
        %v833 = vadd.f32 %v658, %v832
        %v834 = vpop.f32.mrb[0].mxu0
        %v835 = vadd.f32 %v662, %v834
        %v836 = vpop.f32.mrb[0].mxu0
        %v837 = vadd.f32 %v658, %v836
        %v838 = vpop.f32.mrb[0].mxu0
        %v839 = vadd.f32 %v662, %v838
        %840 = vmatprep.mubr.bf16.mxu0 0
        %841 = vmatmul.mubr.bf16.gmra.mrb[0].mxu0 %v765
        %v842 = vpop.f32.mrb[0].mxu0
        %v843 = vadd.f32 %v658, %v842
        %v844 = vpop.f32.mrb[0].mxu0
        %v845 = vadd.f32 %v662, %v844
        %v846 = vpop.f32.mrb[0].mxu0
        %v847 = vadd.f32 %v658, %v846
        %v848 = vpop.f32.mrb[0].mxu0
        %v849 = vadd.f32 %v662, %v848
        %850 = vmatprep.mubr.bf16.mxu0 0
        %851 = vmatmul.mubr.bf16.gmra.mrb[0].mxu0 %v768
        %v852 = vpop.f32.mrb[0].mxu0
        %v853 = vadd.f32 %v658, %v852
        %v854 = vpop.f32.mrb[0].mxu0
        %v855 = vadd.f32 %v662, %v854
        %v856 = vpop.f32.mrb[0].mxu0
        %v857 = vadd.f32 %v658, %v856
        %v858 = vpop.f32.mrb[0].mxu0
        %v859 = vadd.f32 %v662, %v858
        %860 = vmatprep.mubr.bf16.mxu0 0
        %861 = vmatmul.mubr.bf16.gmra.mrb[0].mxu0 %v771
        %v862 = vpop.f32.mrb[0].mxu0
        %v863 = vadd.f32 %v658, %v862
        %v864 = vpop.f32.mrb[0].mxu0
        %v865 = vadd.f32 %v662, %v864
        %v866 = vpop.f32.mrb[0].mxu0
        %v867 = vadd.f32 %v658, %v866
        %v868 = vpop.f32.mrb[0].mxu0
        %v869 = vadd.f32 %v662, %v868
        %870 = vmatprep.mubr.bf16.mxu0 0
        %871 = vmatmul.mubr.bf16.gmra.mrb[0].mxu0 %v774
        %v872 = vpop.f32.mrb[0].mxu0
        %v873 = vadd.f32 %v658, %v872
        %v874 = vpop.f32.mrb[0].mxu0
        %v875 = vadd.f32 %v662, %v874
        %v876 = vpop.f32.mrb[0].mxu0
        %v877 = vadd.f32 %v658, %v876
        %v878 = vpop.f32.mrb[0].mxu0
        %v879 = vadd.f32 %v662, %v878
        %880 = vmatprep.mubr.bf16.mxu0 0
        %881 = vmatmul.mubr.bf16.gmra.mrb[0].mxu0 %v777
        %v882 = vpop.f32.mrb[0].mxu0
        %v883 = vadd.f32 %v658, %v882
        %v884 = vpop.f32.mrb[0].mxu0
        %v885 = vadd.f32 %v662, %v884
        %v886 = vpop.f32.mrb[0].mxu0
        %v887 = vadd.f32 %v658, %v886
        %v888 = vpop.f32.mrb[0].mxu0
        %v889 = vadd.f32 %v662, %v888
        %890 = vmatprep.mubr.bf16.mxu0 0
        %891 = vmatmul.mubr.bf16.gmra.mrb[0].mxu0 %v780
        %v892 = vpop.f32.mrb[0].mxu0
        %v893 = vadd.f32 %v658, %v892
        %v894 = vpop.f32.mrb[0].mxu0
        %v895 = vadd.f32 %v662, %v894
        %v896 = vpop.f32.mrb[0].mxu0
        %v897 = vadd.f32 %v658, %v896
        %v898 = vpop.f32.mrb[0].mxu0
        %v899 = vadd.f32 %v662, %v898
        %900 = vmatprep.mubr.bf16.mxu0 0
        %901 = vmatmul.mubr.bf16.gmra.mrb[0].mxu0 %v783
        %v902 = vpop.f32.mrb[0].mxu0
        %v903 = vadd.f32 %v658, %v902
        %v904 = vpop.f32.mrb[0].mxu0
        %v905 = vadd.f32 %v662, %v904
        %v906 = vpop.f32.mrb[0].mxu0
        %v907 = vadd.f32 %v658, %v906
        %v908 = vpop.f32.mrb[0].mxu0
        %v909 = vadd.f32 %v662, %v908
        %910 = vmatprep.mubr.bf16.mxu0 0
        %911 = vmatmul.mubr.bf16.gmra.mrb[0].mxu0 %v786
        %v912 = vpop.f32.mrb[0].mxu0
        %v913 = vadd.f32 %v658, %v912
        %v914 = vpop.f32.mrb[0].mxu0
        %v915 = vadd.f32 %v662, %v914
        %v916 = vpop.f32.mrb[0].mxu0
        %v917 = vadd.f32 %v658, %v916
        %v918 = vpop.f32.mrb[0].mxu0
        %v919 = vadd.f32 %v662, %v918
        %920 = vmatprep.mubr.bf16.mxu0 0
        %921 = vmatmul.mubr.bf16.gmra.mrb[0].mxu0 %v789
        %v922 = vpop.f32.mrb[0].mxu0
        %v923 = vadd.f32 %v658, %v922
        %v924 = vpop.f32.mrb[0].mxu0
        %v925 = vadd.f32 %v662, %v924
        %v926 = vpop.f32.mrb[0].mxu0
        %v927 = vadd.f32 %v658, %v926
        %v928 = vpop.f32.mrb[0].mxu0
        %v929 = vadd.f32 %v662, %v928
        %930 = vdwg.mxu0
        %v931 = vmax.f32 %v833, 0.0
        %v932 = vmax.f32 %v835, 0.0
        %v933 = vmax.f32 %v837, 0.0
        %v934 = vmax.f32 %v839, 0.0
        %v935 = vmax.f32 %v843, 0.0
        %v936 = vmax.f32 %v845, 0.0
        %v937 = vmax.f32 %v847, 0.0
        %v938 = vmax.f32 %v849, 0.0
        %v939 = vmax.f32 %v853, 0.0
        %v940 = vmax.f32 %v855, 0.0
        %v941 = vmax.f32 %v857, 0.0
        %v942 = vmax.f32 %v859, 0.0
        %v943 = vmax.f32 %v863, 0.0
        %v944 = vmax.f32 %v865, 0.0
        %v945 = vmax.f32 %v867, 0.0
        %v946 = vmax.f32 %v869, 0.0
        %v947 = vmax.f32 %v873, 0.0
        %v948 = vmax.f32 %v875, 0.0
        %v949 = vmax.f32 %v877, 0.0
        %v950 = vmax.f32 %v879, 0.0
        %v951 = vmax.f32 %v883, 0.0
        %v952 = vmax.f32 %v885, 0.0
        %v953 = vmax.f32 %v887, 0.0
        %v954 = vmax.f32 %v889, 0.0
        %v955 = vmax.f32 %v893, 0.0
        %v956 = vmax.f32 %v895, 0.0
        %v957 = vmax.f32 %v897, 0.0
        %v958 = vmax.f32 %v899, 0.0
        %v959 = vmax.f32 %v903, 0.0
        %v960 = vmax.f32 %v905, 0.0
        %v961 = vmax.f32 %v907, 0.0
        %v962 = vmax.f32 %v909, 0.0
        %v963 = vmax.f32 %v913, 0.0
        %v964 = vmax.f32 %v915, 0.0
        %v965 = vmax.f32 %v917, 0.0
        %v966 = vmax.f32 %v919, 0.0
        %v967 = vmax.f32 %v923, 0.0
        %v968 = vmax.f32 %v925, 0.0
        %v969 = vmax.f32 %v927, 0.0
        %v970 = vmax.f32 %v929, 0.0
        %v971 = vpack.c.bf16 %v933, %v931
        %v972 = vpack.c.bf16 %v934, %v932
        %v973 = vpack.c.bf16 %v937, %v935
        %v974 = vpack.c.bf16 %v938, %v936
        %v975 = vpack.c.bf16 %v941, %v939
        %v976 = vpack.c.bf16 %v942, %v940
        %v977 = vpack.c.bf16 %v945, %v943
        %v978 = vpack.c.bf16 %v946, %v944
        %v979 = vpack.c.bf16 %v949, %v947
        %v980 = vpack.c.bf16 %v950, %v948
        %v981 = vpack.c.bf16 %v953, %v951
        %v982 = vpack.c.bf16 %v954, %v952
        %v983 = vpack.c.bf16 %v957, %v955
        %v984 = vpack.c.bf16 %v958, %v956
        %v985 = vpack.c.bf16 %v961, %v959
        %v986 = vpack.c.bf16 %v962, %v960
        %v987 = vpack.c.bf16 %v965, %v963
        %v988 = vpack.c.bf16 %v966, %v964
        %v989 = vpack.c.bf16 %v969, %v967
        %v990 = vpack.c.bf16 %v970, %v968
        %s991 = scalar_lea.vmem [#allocation2], 320
        %992 = vst [vmem:[%s991] sm:$0xff] %v602
        %993 = vst [vmem:[%s991 + $0x8] sm:$0xff] %v603
        %994 = vst [vmem:[%s991 + $0x20] sm:$0xff] %v604
        %995 = vst [vmem:[%s991 + $0x28] sm:$0xff] %v605
        %996 = vst [vmem:[%s991 + $0x40] sm:$0xff] %v606
        %997 = vst [vmem:[%s991 + $0x48] sm:$0xff] %v607
        %998 = vst [vmem:[%s991 + $0x60] sm:$0xff] %v608
        %999 = vst [vmem:[%s991 + $0x68] sm:$0xff] %v609
        %1000 = vst [vmem:[%s991 + $0x80] sm:$0xff] %v610
        %1001 = vst [vmem:[%s991 + $0x88] sm:$0xff] %v611
        %1002 = vst [vmem:[%s991 + $0xa0] sm:$0xff] %v612
        %1003 = vst [vmem:[%s991 + $0xa8] sm:$0xff] %v613
        %1004 = vst [vmem:[%s991 + $0xc0] sm:$0xff] %v614
        %1005 = vst [vmem:[%s991 + $0xc8] sm:$0xff] %v615
        %1006 = vst [vmem:[%s991 + $0xe0] sm:$0xff] %v616
        %1007 = vst [vmem:[%s991 + $0xe8] sm:$0xff] %v617
        %1008 = vst [vmem:[%s991 + $0x100] sm:$0xff] %v618
        %1009 = vst [vmem:[%s991 + $0x108] sm:$0xff] %v619
        %1010 = vst [vmem:[%s991 + $0x120] sm:$0xff] %v620
        %1011 = vst [vmem:[%s991 + $0x128] sm:$0xff] %v621
        %1012 = vst [vmem:[%s991 + $0x10] sm:$0xff] %v971
        %1013 = vst [vmem:[%s991 + $0x18] sm:$0xff] %v972
        %1014 = vst [vmem:[%s991 + $0x30] sm:$0xff] %v973
        %1015 = vst [vmem:[%s991 + $0x38] sm:$0xff] %v974
        %1016 = vst [vmem:[%s991 + $0x50] sm:$0xff] %v975
        %1017 = vst [vmem:[%s991 + $0x58] sm:$0xff] %v976
        %1018 = vst [vmem:[%s991 + $0x70] sm:$0xff] %v977
        %1019 = vst [vmem:[%s991 + $0x78] sm:$0xff] %v978
        %1020 = vst [vmem:[%s991 + $0x90] sm:$0xff] %v979
        %1021 = vst [vmem:[%s991 + $0x98] sm:$0xff] %v980
        %1022 = vst [vmem:[%s991 + $0xb0] sm:$0xff] %v981
        %1023 = vst [vmem:[%s991 + $0xb8] sm:$0xff] %v982
        %1024 = vst [vmem:[%s991 + $0xd0] sm:$0xff] %v983
        %1025 = vst [vmem:[%s991 + $0xd8] sm:$0xff] %v984
        %1026 = vst [vmem:[%s991 + $0xf0] sm:$0xff] %v985
        %1027 = vst [vmem:[%s991 + $0xf8] sm:$0xff] %v986
        %1028 = vst [vmem:[%s991 + $0x110] sm:$0xff] %v987
        %1029 = vst [vmem:[%s991 + $0x118] sm:$0xff] %v988
        %1030 = vst [vmem:[%s991 + $0x130] sm:$0xff] %v989
        %1031 = vst [vmem:[%s991 + $0x138] sm:$0xff] %v990
        %v1033 = vshrl.u32 %v602, 16
        %v1035 = vrot.slane %v1033, 7
        %v1036 = vshll.u32 %v602, 16
        %v1038 = vor.u32 %v1035, %v1036
        %v1040 = vshrl.u32 %v603, 16
        %v1042 = vrot.slane %v1040, 7
        %v1043 = vshll.u32 %v603, 16
        %v1045 = vor.u32 %v1042, %v1043
        %v1047 = vshrl.u32 %v604, 16
        %v1049 = vrot.slane %v1047, 7
        %v1050 = vshll.u32 %v604, 16
        %v1052 = vor.u32 %v1049, %v1050
        %v1054 = vshrl.u32 %v605, 16
        %v1056 = vrot.slane %v1054, 7
        %v1057 = vshll.u32 %v605, 16
        %v1059 = vor.u32 %v1056, %v1057
        %v1061 = vshrl.u32 %v606, 16
        %v1063 = vrot.slane %v1061, 7
        %v1064 = vshll.u32 %v606, 16
        %v1066 = vor.u32 %v1063, %v1064
        %v1068 = vshrl.u32 %v607, 16
        %v1070 = vrot.slane %v1068, 7
        %v1071 = vshll.u32 %v607, 16
        %v1073 = vor.u32 %v1070, %v1071
        %v1075 = vshrl.u32 %v608, 16
        %v1077 = vrot.slane %v1075, 7
        %v1078 = vshll.u32 %v608, 16
        %v1080 = vor.u32 %v1077, %v1078
        %v1082 = vshrl.u32 %v609, 16
        %v1084 = vrot.slane %v1082, 7
        %v1085 = vshll.u32 %v609, 16
        %v1087 = vor.u32 %v1084, %v1085
        %v1089 = vshrl.u32 %v610, 16
        %v1091 = vrot.slane %v1089, 7
        %v1092 = vshll.u32 %v610, 16
        %v1094 = vor.u32 %v1091, %v1092
        %v1096 = vshrl.u32 %v611, 16
        %v1098 = vrot.slane %v1096, 7
        %v1099 = vshll.u32 %v611, 16
        %v1101 = vor.u32 %v1098, %v1099
        %v1103 = vshrl.u32 %v612, 16
        %v1105 = vrot.slane %v1103, 7
        %v1106 = vshll.u32 %v612, 16
        %v1108 = vor.u32 %v1105, %v1106
        %v1110 = vshrl.u32 %v613, 16
        %v1112 = vrot.slane %v1110, 7
        %v1113 = vshll.u32 %v613, 16
        %v1115 = vor.u32 %v1112, %v1113
        %v1117 = vshrl.u32 %v614, 16
        %v1119 = vrot.slane %v1117, 7
        %v1120 = vshll.u32 %v614, 16
        %v1122 = vor.u32 %v1119, %v1120
        %v1124 = vshrl.u32 %v615, 16
        %v1126 = vrot.slane %v1124, 7
        %v1127 = vshll.u32 %v615, 16
        %v1129 = vor.u32 %v1126, %v1127
        %v1131 = vshrl.u32 %v616, 16
        %v1133 = vrot.slane %v1131, 7
        %v1134 = vshll.u32 %v616, 16
        %v1136 = vor.u32 %v1133, %v1134
        %v1138 = vshrl.u32 %v617, 16
        %v1140 = vrot.slane %v1138, 7
        %v1141 = vshll.u32 %v617, 16
        %v1143 = vor.u32 %v1140, %v1141
        %v1145 = vshrl.u32 %v618, 16
        %v1147 = vrot.slane %v1145, 7
        %v1148 = vshll.u32 %v618, 16
        %v1150 = vor.u32 %v1147, %v1148
        %v1152 = vshrl.u32 %v619, 16
        %v1154 = vrot.slane %v1152, 7
        %v1155 = vshll.u32 %v619, 16
        %v1157 = vor.u32 %v1154, %v1155
        %v1159 = vshrl.u32 %v620, 16
        %v1161 = vrot.slane %v1159, 7
        %v1162 = vshll.u32 %v620, 16
        %v1164 = vor.u32 %v1161, %v1162
        %v1166 = vshrl.u32 %v621, 16
        %v1168 = vrot.slane %v1166, 7
        %v1169 = vshll.u32 %v621, 16
        %v1171 = vor.u32 %v1168, %v1169
        %vm1192 = vcmask 1047552
        %vm1193 = vsmask.f32 7938
        %vm1194 = vmand %vm1192, %vm1193
        %v1195 = vld [vmem:[#allocation2] sm:$0xff]
        %v1196 = vsel %vm1194, %v1038, %v1195
        %1197 = vst [vmem:[#allocation2] sm:$0xff] %v1196
        %v1198 = vld [vmem:[#allocation2 + $0x8] sm:$0xff]
        %v1199 = vsel %vm1194, %v1045, %v1198
        %1200 = vst [vmem:[#allocation2 + $0x8] sm:$0xff] %v1199
        %v1201 = vld [vmem:[#allocation2 + $0x20] sm:$0xff]
        %v1202 = vsel %vm1194, %v1052, %v1201
        %1203 = vst [vmem:[#allocation2 + $0x20] sm:$0xff] %v1202
        %v1204 = vld [vmem:[#allocation2 + $0x28] sm:$0xff]
        %v1205 = vsel %vm1194, %v1059, %v1204
        %1206 = vst [vmem:[#allocation2 + $0x28] sm:$0xff] %v1205
        %v1207 = vld [vmem:[#allocation2 + $0x40] sm:$0xff]
        %v1208 = vsel %vm1194, %v1066, %v1207
        %1209 = vst [vmem:[#allocation2 + $0x40] sm:$0xff] %v1208
        %v1210 = vld [vmem:[#allocation2 + $0x48] sm:$0xff]
        %v1211 = vsel %vm1194, %v1073, %v1210
        %1212 = vst [vmem:[#allocation2 + $0x48] sm:$0xff] %v1211
        %v1213 = vld [vmem:[#allocation2 + $0x60] sm:$0xff]
        %v1214 = vsel %vm1194, %v1080, %v1213
        %1215 = vst [vmem:[#allocation2 + $0x60] sm:$0xff] %v1214
        %v1216 = vld [vmem:[#allocation2 + $0x68] sm:$0xff]
        %v1217 = vsel %vm1194, %v1087, %v1216
        %1218 = vst [vmem:[#allocation2 + $0x68] sm:$0xff] %v1217
        %v1219 = vld [vmem:[#allocation2 + $0x80] sm:$0xff]
        %v1220 = vsel %vm1194, %v1094, %v1219
        %1221 = vst [vmem:[#allocation2 + $0x80] sm:$0xff] %v1220
        %v1222 = vld [vmem:[#allocation2 + $0x88] sm:$0xff]
        %v1223 = vsel %vm1194, %v1101, %v1222
        %1224 = vst [vmem:[#allocation2 + $0x88] sm:$0xff] %v1223
        %v1225 = vld [vmem:[#allocation2 + $0xa0] sm:$0xff]
        %v1226 = vsel %vm1194, %v1108, %v1225
        %1227 = vst [vmem:[#allocation2 + $0xa0] sm:$0xff] %v1226
        %v1228 = vld [vmem:[#allocation2 + $0xa8] sm:$0xff]
        %v1229 = vsel %vm1194, %v1115, %v1228
        %1230 = vst [vmem:[#allocation2 + $0xa8] sm:$0xff] %v1229
        %v1231 = vld [vmem:[#allocation2 + $0xc0] sm:$0xff]
        %v1232 = vsel %vm1194, %v1122, %v1231
        %1233 = vst [vmem:[#allocation2 + $0xc0] sm:$0xff] %v1232
        %v1234 = vld [vmem:[#allocation2 + $0xc8] sm:$0xff]
        %v1235 = vsel %vm1194, %v1129, %v1234
        %1236 = vst [vmem:[#allocation2 + $0xc8] sm:$0xff] %v1235
        %v1237 = vld [vmem:[#allocation2 + $0xe0] sm:$0xff]
        %v1238 = vsel %vm1194, %v1136, %v1237
        %1239 = vst [vmem:[#allocation2 + $0xe0] sm:$0xff] %v1238
        %v1240 = vld [vmem:[#allocation2 + $0xe8] sm:$0xff]
        %v1241 = vsel %vm1194, %v1143, %v1240
        %1242 = vst [vmem:[#allocation2 + $0xe8] sm:$0xff] %v1241
        %v1243 = vld [vmem:[#allocation2 + $0x100] sm:$0xff]
        %v1244 = vsel %vm1194, %v1150, %v1243
        %1245 = vst [vmem:[#allocation2 + $0x100] sm:$0xff] %v1244
        %v1246 = vld [vmem:[#allocation2 + $0x108] sm:$0xff]
        %v1247 = vsel %vm1194, %v1157, %v1246
        %1248 = vst [vmem:[#allocation2 + $0x108] sm:$0xff] %v1247
        %v1249 = vld [vmem:[#allocation2 + $0x120] sm:$0xff]
        %v1250 = vsel %vm1194, %v1164, %v1249
        %1251 = vst [vmem:[#allocation2 + $0x120] sm:$0xff] %v1250
        %v1252 = vld [vmem:[#allocation2 + $0x128] sm:$0xff]
        %v1253 = vsel %vm1194, %v1171, %v1252
        %1254 = vst [vmem:[#allocation2 + $0x128] sm:$0xff] %v1253
        %v1256 = vshrl.u32 %v971, 16
        %v1258 = vrot.slane %v1256, 7
        %v1259 = vshll.u32 %v971, 16
        %v1261 = vor.u32 %v1258, %v1259
        %v1263 = vshrl.u32 %v972, 16
        %v1265 = vrot.slane %v1263, 7
        %v1266 = vshll.u32 %v972, 16
        %v1268 = vor.u32 %v1265, %v1266
        %v1270 = vshrl.u32 %v973, 16
        %v1272 = vrot.slane %v1270, 7
        %v1273 = vshll.u32 %v973, 16
        %v1275 = vor.u32 %v1272, %v1273
        %v1277 = vshrl.u32 %v974, 16
        %v1279 = vrot.slane %v1277, 7
        %v1280 = vshll.u32 %v974, 16
        %v1282 = vor.u32 %v1279, %v1280
        %v1284 = vshrl.u32 %v975, 16
        %v1286 = vrot.slane %v1284, 7
        %v1287 = vshll.u32 %v975, 16
        %v1289 = vor.u32 %v1286, %v1287
        %v1291 = vshrl.u32 %v976, 16
        %v1293 = vrot.slane %v1291, 7
        %v1294 = vshll.u32 %v976, 16
        %v1296 = vor.u32 %v1293, %v1294
        %v1298 = vshrl.u32 %v977, 16
        %v1300 = vrot.slane %v1298, 7
        %v1301 = vshll.u32 %v977, 16
        %v1303 = vor.u32 %v1300, %v1301
        %v1305 = vshrl.u32 %v978, 16
        %v1307 = vrot.slane %v1305, 7
        %v1308 = vshll.u32 %v978, 16
        %v1310 = vor.u32 %v1307, %v1308
        %v1312 = vshrl.u32 %v979, 16
        %v1314 = vrot.slane %v1312, 7
        %v1315 = vshll.u32 %v979, 16
        %v1317 = vor.u32 %v1314, %v1315
        %v1319 = vshrl.u32 %v980, 16
        %v1321 = vrot.slane %v1319, 7
        %v1322 = vshll.u32 %v980, 16
        %v1324 = vor.u32 %v1321, %v1322
        %v1326 = vshrl.u32 %v981, 16
        %v1328 = vrot.slane %v1326, 7
        %v1329 = vshll.u32 %v981, 16
        %v1331 = vor.u32 %v1328, %v1329
        %v1333 = vshrl.u32 %v982, 16
        %v1335 = vrot.slane %v1333, 7
        %v1336 = vshll.u32 %v982, 16
        %v1338 = vor.u32 %v1335, %v1336
        %v1340 = vshrl.u32 %v983, 16
        %v1342 = vrot.slane %v1340, 7
        %v1343 = vshll.u32 %v983, 16
        %v1345 = vor.u32 %v1342, %v1343
        %v1347 = vshrl.u32 %v984, 16
        %v1349 = vrot.slane %v1347, 7
        %v1350 = vshll.u32 %v984, 16
        %v1352 = vor.u32 %v1349, %v1350
        %v1354 = vshrl.u32 %v985, 16
        %v1356 = vrot.slane %v1354, 7
        %v1357 = vshll.u32 %v985, 16
        %v1359 = vor.u32 %v1356, %v1357
        %v1361 = vshrl.u32 %v986, 16
        %v1363 = vrot.slane %v1361, 7
        %v1364 = vshll.u32 %v986, 16
        %v1366 = vor.u32 %v1363, %v1364
        %v1368 = vshrl.u32 %v987, 16
        %v1370 = vrot.slane %v1368, 7
        %v1371 = vshll.u32 %v987, 16
        %v1373 = vor.u32 %v1370, %v1371
        %v1375 = vshrl.u32 %v988, 16
        %v1377 = vrot.slane %v1375, 7
        %v1378 = vshll.u32 %v988, 16
        %v1380 = vor.u32 %v1377, %v1378
        %v1382 = vshrl.u32 %v989, 16
        %v1384 = vrot.slane %v1382, 7
        %v1385 = vshll.u32 %v989, 16
        %v1387 = vor.u32 %v1384, %v1385
        %v1389 = vshrl.u32 %v990, 16
        %v1391 = vrot.slane %v1389, 7
        %v1392 = vshll.u32 %v990, 16
        %v1394 = vor.u32 %v1391, %v1392
        %v1415 = vld [vmem:[#allocation2 + $0x10] sm:$0xff]
        %v1416 = vsel %vm1194, %v1261, %v1415
        %1417 = vst [vmem:[#allocation2 + $0x10] sm:$0xff] %v1416
        %v1418 = vld [vmem:[#allocation2 + $0x18] sm:$0xff]
        %v1419 = vsel %vm1194, %v1268, %v1418
        %1420 = vst [vmem:[#allocation2 + $0x18] sm:$0xff] %v1419
        %v1421 = vld [vmem:[#allocation2 + $0x30] sm:$0xff]
        %v1422 = vsel %vm1194, %v1275, %v1421
        %1423 = vst [vmem:[#allocation2 + $0x30] sm:$0xff] %v1422
        %v1424 = vld [vmem:[#allocation2 + $0x38] sm:$0xff]
        %v1425 = vsel %vm1194, %v1282, %v1424
        %1426 = vst [vmem:[#allocation2 + $0x38] sm:$0xff] %v1425
        %v1427 = vld [vmem:[#allocation2 + $0x50] sm:$0xff]
        %v1428 = vsel %vm1194, %v1289, %v1427
        %1429 = vst [vmem:[#allocation2 + $0x50] sm:$0xff] %v1428
        %v1430 = vld [vmem:[#allocation2 + $0x58] sm:$0xff]
        %v1431 = vsel %vm1194, %v1296, %v1430
        %1432 = vst [vmem:[#allocation2 + $0x58] sm:$0xff] %v1431
        %v1433 = vld [vmem:[#allocation2 + $0x70] sm:$0xff]
        %v1434 = vsel %vm1194, %v1303, %v1433
        %1435 = vst [vmem:[#allocation2 + $0x70] sm:$0xff] %v1434
        %v1436 = vld [vmem:[#allocation2 + $0x78] sm:$0xff]
        %v1437 = vsel %vm1194, %v1310, %v1436
        %1438 = vst [vmem:[#allocation2 + $0x78] sm:$0xff] %v1437
        %v1439 = vld [vmem:[#allocation2 + $0x90] sm:$0xff]
        %v1440 = vsel %vm1194, %v1317, %v1439
        %1441 = vst [vmem:[#allocation2 + $0x90] sm:$0xff] %v1440
        %v1442 = vld [vmem:[#allocation2 + $0x98] sm:$0xff]
        %v1443 = vsel %vm1194, %v1324, %v1442
        %1444 = vst [vmem:[#allocation2 + $0x98] sm:$0xff] %v1443
        %v1445 = vld [vmem:[#allocation2 + $0xb0] sm:$0xff]
        %v1446 = vsel %vm1194, %v1331, %v1445
        %1447 = vst [vmem:[#allocation2 + $0xb0] sm:$0xff] %v1446
        %v1448 = vld [vmem:[#allocation2 + $0xb8] sm:$0xff]
        %v1449 = vsel %vm1194, %v1338, %v1448
        %1450 = vst [vmem:[#allocation2 + $0xb8] sm:$0xff] %v1449
        %v1451 = vld [vmem:[#allocation2 + $0xd0] sm:$0xff]
        %v1452 = vsel %vm1194, %v1345, %v1451
        %1453 = vst [vmem:[#allocation2 + $0xd0] sm:$0xff] %v1452
        %v1454 = vld [vmem:[#allocation2 + $0xd8] sm:$0xff]
        %v1455 = vsel %vm1194, %v1352, %v1454
        %1456 = vst [vmem:[#allocation2 + $0xd8] sm:$0xff] %v1455
        %v1457 = vld [vmem:[#allocation2 + $0xf0] sm:$0xff]
        %v1458 = vsel %vm1194, %v1359, %v1457
        %1459 = vst [vmem:[#allocation2 + $0xf0] sm:$0xff] %v1458
        %v1460 = vld [vmem:[#allocation2 + $0xf8] sm:$0xff]
        %v1461 = vsel %vm1194, %v1366, %v1460
        %1462 = vst [vmem:[#allocation2 + $0xf8] sm:$0xff] %v1461
        %v1463 = vld [vmem:[#allocation2 + $0x110] sm:$0xff]
        %v1464 = vsel %vm1194, %v1373, %v1463
        %1465 = vst [vmem:[#allocation2 + $0x110] sm:$0xff] %v1464
        %v1466 = vld [vmem:[#allocation2 + $0x118] sm:$0xff]
        %v1467 = vsel %vm1194, %v1380, %v1466
        %1468 = vst [vmem:[#allocation2 + $0x118] sm:$0xff] %v1467
        %v1469 = vld [vmem:[#allocation2 + $0x130] sm:$0xff]
        %v1470 = vsel %vm1194, %v1387, %v1469
        %1471 = vst [vmem:[#allocation2 + $0x130] sm:$0xff] %v1470
        %v1472 = vld [vmem:[#allocation2 + $0x138] sm:$0xff]
        %v1473 = vsel %vm1194, %v1394, %v1472
        %1474 = vst [vmem:[#allocation2 + $0x138] sm:$0xff] %v1473
        %vm1475 = vcmask 1040384
        %vm1476 = vsmask.f32 256
        %vm1477 = vmand %vm1475, %vm1476
        %v1478 = vld [vmem:[#allocation2] sm:$0x1]
        %v1479 = vsel %vm1477, 0, %v1478
        %1480 = vst [vmem:[#allocation2] sm:$0x1] %v1479
        %v1481 = vld [vmem:[#allocation2 + $0x8] sm:$0x1]
        %v1482 = vsel %vm1477, 0, %v1481
        %1483 = vst [vmem:[#allocation2 + $0x8] sm:$0x1] %v1482
        %v1484 = vld [vmem:[#allocation2 + $0x10] sm:$0x1]
        %v1485 = vsel %vm1477, 0, %v1484
        %1486 = vst [vmem:[#allocation2 + $0x10] sm:$0x1] %v1485
        %v1487 = vld [vmem:[#allocation2 + $0x18] sm:$0x1]
        %v1488 = vsel %vm1477, 0, %v1487
        %1489 = vst [vmem:[#allocation2 + $0x18] sm:$0x1] %v1488
        %v1490 = vld [vmem:[#allocation2 + $0x20] sm:$0x1]
        %v1491 = vsel %vm1477, 0, %v1490
        %1492 = vst [vmem:[#allocation2 + $0x20] sm:$0x1] %v1491
        %v1493 = vld [vmem:[#allocation2 + $0x28] sm:$0x1]
        %v1494 = vsel %vm1477, 0, %v1493
        %1495 = vst [vmem:[#allocation2 + $0x28] sm:$0x1] %v1494
        %v1496 = vld [vmem:[#allocation2 + $0x30] sm:$0x1]
        %v1497 = vsel %vm1477, 0, %v1496
        %1498 = vst [vmem:[#allocation2 + $0x30] sm:$0x1] %v1497
        %v1499 = vld [vmem:[#allocation2 + $0x38] sm:$0x1]
        %v1500 = vsel %vm1477, 0, %v1499
        %1501 = vst [vmem:[#allocation2 + $0x38] sm:$0x1] %v1500
        %v1502 = vld [vmem:[#allocation2 + $0x40] sm:$0x1]
        %v1503 = vsel %vm1477, 0, %v1502
        %1504 = vst [vmem:[#allocation2 + $0x40] sm:$0x1] %v1503
        %v1505 = vld [vmem:[#allocation2 + $0x48] sm:$0x1]
        %v1506 = vsel %vm1477, 0, %v1505
        %1507 = vst [vmem:[#allocation2 + $0x48] sm:$0x1] %v1506
        %v1508 = vld [vmem:[#allocation2 + $0x50] sm:$0x1]
        %v1509 = vsel %vm1477, 0, %v1508
        %1510 = vst [vmem:[#allocation2 + $0x50] sm:$0x1] %v1509
        %v1511 = vld [vmem:[#allocation2 + $0x58] sm:$0x1]
        %v1512 = vsel %vm1477, 0, %v1511
        %1513 = vst [vmem:[#allocation2 + $0x58] sm:$0x1] %v1512
        %v1514 = vld [vmem:[#allocation2 + $0x60] sm:$0x1]
        %v1515 = vsel %vm1477, 0, %v1514
        %1516 = vst [vmem:[#allocation2 + $0x60] sm:$0x1] %v1515
        %v1517 = vld [vmem:[#allocation2 + $0x68] sm:$0x1]
        %v1518 = vsel %vm1477, 0, %v1517
        %1519 = vst [vmem:[#allocation2 + $0x68] sm:$0x1] %v1518
        %v1520 = vld [vmem:[#allocation2 + $0x70] sm:$0x1]
        %v1521 = vsel %vm1477, 0, %v1520
        %1522 = vst [vmem:[#allocation2 + $0x70] sm:$0x1] %v1521
        %v1523 = vld [vmem:[#allocation2 + $0x78] sm:$0x1]
        %v1524 = vsel %vm1477, 0, %v1523
        %1525 = vst [vmem:[#allocation2 + $0x78] sm:$0x1] %v1524
        %v1526 = vld [vmem:[#allocation2 + $0x80] sm:$0x1]
        %v1527 = vsel %vm1477, 0, %v1526
        %1528 = vst [vmem:[#allocation2 + $0x80] sm:$0x1] %v1527
        %v1529 = vld [vmem:[#allocation2 + $0x88] sm:$0x1]
        %v1530 = vsel %vm1477, 0, %v1529
        %1531 = vst [vmem:[#allocation2 + $0x88] sm:$0x1] %v1530
        %v1532 = vld [vmem:[#allocation2 + $0x90] sm:$0x1]
        %v1533 = vsel %vm1477, 0, %v1532
        %1534 = vst [vmem:[#allocation2 + $0x90] sm:$0x1] %v1533
        %v1535 = vld [vmem:[#allocation2 + $0x98] sm:$0x1]
        %v1536 = vsel %vm1477, 0, %v1535
        %1537 = vst [vmem:[#allocation2 + $0x98] sm:$0x1] %v1536
        %v1538 = vld [vmem:[#allocation2 + $0xa0] sm:$0x1]
        %v1539 = vsel %vm1477, 0, %v1538
        %1540 = vst [vmem:[#allocation2 + $0xa0] sm:$0x1] %v1539
        %v1541 = vld [vmem:[#allocation2 + $0xa8] sm:$0x1]
        %v1542 = vsel %vm1477, 0, %v1541
        %1543 = vst [vmem:[#allocation2 + $0xa8] sm:$0x1] %v1542
        %v1544 = vld [vmem:[#allocation2 + $0xb0] sm:$0x1]
        %v1545 = vsel %vm1477, 0, %v1544
        %1546 = vst [vmem:[#allocation2 + $0xb0] sm:$0x1] %v1545
        %v1547 = vld [vmem:[#allocation2 + $0xb8] sm:$0x1]
        %v1548 = vsel %vm1477, 0, %v1547
        %1549 = vst [vmem:[#allocation2 + $0xb8] sm:$0x1] %v1548
        %v1550 = vld [vmem:[#allocation2 + $0xc0] sm:$0x1]
        %v1551 = vsel %vm1477, 0, %v1550
        %1552 = vst [vmem:[#allocation2 + $0xc0] sm:$0x1] %v1551
        %v1553 = vld [vmem:[#allocation2 + $0xc8] sm:$0x1]
        %v1554 = vsel %vm1477, 0, %v1553
        %1555 = vst [vmem:[#allocation2 + $0xc8] sm:$0x1] %v1554
        %v1556 = vld [vmem:[#allocation2 + $0xd0] sm:$0x1]
        %v1557 = vsel %vm1477, 0, %v1556
        %1558 = vst [vmem:[#allocation2 + $0xd0] sm:$0x1] %v1557
        %v1559 = vld [vmem:[#allocation2 + $0xd8] sm:$0x1]
        %v1560 = vsel %vm1477, 0, %v1559
        %1561 = vst [vmem:[#allocation2 + $0xd8] sm:$0x1] %v1560
        %v1562 = vld [vmem:[#allocation2 + $0xe0] sm:$0x1]
        %v1563 = vsel %vm1477, 0, %v1562
        %1564 = vst [vmem:[#allocation2 + $0xe0] sm:$0x1] %v1563
        %v1565 = vld [vmem:[#allocation2 + $0xe8] sm:$0x1]
        %v1566 = vsel %vm1477, 0, %v1565
        %1567 = vst [vmem:[#allocation2 + $0xe8] sm:$0x1] %v1566
        %v1568 = vld [vmem:[#allocation2 + $0xf0] sm:$0x1]
        %v1569 = vsel %vm1477, 0, %v1568
        %1570 = vst [vmem:[#allocation2 + $0xf0] sm:$0x1] %v1569
        %v1571 = vld [vmem:[#allocation2 + $0xf8] sm:$0x1]
        %v1572 = vsel %vm1477, 0, %v1571
        %1573 = vst [vmem:[#allocation2 + $0xf8] sm:$0x1] %v1572
        %v1574 = vld [vmem:[#allocation2 + $0x100] sm:$0x1]
        %v1575 = vsel %vm1477, 0, %v1574
        %1576 = vst [vmem:[#allocation2 + $0x100] sm:$0x1] %v1575
        %v1577 = vld [vmem:[#allocation2 + $0x108] sm:$0x1]
        %v1578 = vsel %vm1477, 0, %v1577
        %1579 = vst [vmem:[#allocation2 + $0x108] sm:$0x1] %v1578
        %v1580 = vld [vmem:[#allocation2 + $0x110] sm:$0x1]
        %v1581 = vsel %vm1477, 0, %v1580
        %1582 = vst [vmem:[#allocation2 + $0x110] sm:$0x1] %v1581
        %v1583 = vld [vmem:[#allocation2 + $0x118] sm:$0x1]
        %v1584 = vsel %vm1477, 0, %v1583
        %1585 = vst [vmem:[#allocation2 + $0x118] sm:$0x1] %v1584
        %v1586 = vld [vmem:[#allocation2 + $0x120] sm:$0x1]
        %v1587 = vsel %vm1477, 0, %v1586
        %1588 = vst [vmem:[#allocation2 + $0x120] sm:$0x1] %v1587
        %v1589 = vld [vmem:[#allocation2 + $0x128] sm:$0x1]
        %v1590 = vsel %vm1477, 0, %v1589
        %1591 = vst [vmem:[#allocation2 + $0x128] sm:$0x1] %v1590
        %v1592 = vld [vmem:[#allocation2 + $0x130] sm:$0x1]
        %v1593 = vsel %vm1477, 0, %v1592
        %1594 = vst [vmem:[#allocation2 + $0x130] sm:$0x1] %v1593
        %v1595 = vld [vmem:[#allocation2 + $0x138] sm:$0x1]
        %v1596 = vsel %vm1477, 0, %v1595
        %1597 = vst [vmem:[#allocation2 + $0x138] sm:$0x1] %v1596
        %v1598 = vrot.slane %v1036, 1
        %v1599 = vor.u32 %v1033, %v1598
        %v1600 = vrot.slane %v1043, 1
        %v1601 = vor.u32 %v1040, %v1600
        %v1602 = vrot.slane %v1050, 1
        %v1603 = vor.u32 %v1047, %v1602
        %v1604 = vrot.slane %v1057, 1
        %v1605 = vor.u32 %v1054, %v1604
        %v1606 = vrot.slane %v1064, 1
        %v1607 = vor.u32 %v1061, %v1606
        %v1608 = vrot.slane %v1071, 1
        %v1609 = vor.u32 %v1068, %v1608
        %v1610 = vrot.slane %v1078, 1
        %v1611 = vor.u32 %v1075, %v1610
        %v1612 = vrot.slane %v1085, 1
        %v1613 = vor.u32 %v1082, %v1612
        %v1614 = vrot.slane %v1092, 1
        %v1615 = vor.u32 %v1089, %v1614
        %v1616 = vrot.slane %v1099, 1
        %v1617 = vor.u32 %v1096, %v1616
        %v1618 = vrot.slane %v1106, 1
        %v1619 = vor.u32 %v1103, %v1618
        %v1620 = vrot.slane %v1113, 1
        %v1621 = vor.u32 %v1110, %v1620
        %v1622 = vrot.slane %v1120, 1
        %v1623 = vor.u32 %v1117, %v1622
        %v1624 = vrot.slane %v1127, 1
        %v1625 = vor.u32 %v1124, %v1624
        %v1626 = vrot.slane %v1134, 1
        %v1627 = vor.u32 %v1131, %v1626
        %v1628 = vrot.slane %v1141, 1
        %v1629 = vor.u32 %v1138, %v1628
        %v1630 = vrot.slane %v1148, 1
        %v1631 = vor.u32 %v1145, %v1630
        %v1632 = vrot.slane %v1155, 1
        %v1633 = vor.u32 %v1152, %v1632
        %v1634 = vrot.slane %v1162, 1
        %v1635 = vor.u32 %v1159, %v1634
        %v1636 = vrot.slane %v1169, 1
        %v1637 = vor.u32 %v1166, %v1636
        %s1658 = scalar_lea.vmem [#allocation2], 640
        %vm1659 = vsmask.f32 7424
        %vm1660 = vmand %vm1192, %vm1659
        %v1661 = vld [vmem:[%s1658] sm:$0xff]
        %v1662 = vsel %vm1660, %v1599, %v1661
        %1663 = vst [vmem:[%s1658] sm:$0xff] %v1662
        %v1664 = vld [vmem:[%s1658 + $0x8] sm:$0xff]
        %v1665 = vsel %vm1660, %v1601, %v1664
        %1666 = vst [vmem:[%s1658 + $0x8] sm:$0xff] %v1665
        %v1667 = vld [vmem:[%s1658 + $0x20] sm:$0xff]
        %v1668 = vsel %vm1660, %v1603, %v1667
        %1669 = vst [vmem:[%s1658 + $0x20] sm:$0xff] %v1668
        %v1670 = vld [vmem:[%s1658 + $0x28] sm:$0xff]
        %v1671 = vsel %vm1660, %v1605, %v1670
        %1672 = vst [vmem:[%s1658 + $0x28] sm:$0xff] %v1671
        %v1673 = vld [vmem:[%s1658 + $0x40] sm:$0xff]
        %v1674 = vsel %vm1660, %v1607, %v1673
        %1675 = vst [vmem:[%s1658 + $0x40] sm:$0xff] %v1674
        %v1676 = vld [vmem:[%s1658 + $0x48] sm:$0xff]
        %v1677 = vsel %vm1660, %v1609, %v1676
        %1678 = vst [vmem:[%s1658 + $0x48] sm:$0xff] %v1677
        %v1679 = vld [vmem:[%s1658 + $0x60] sm:$0xff]
        %v1680 = vsel %vm1660, %v1611, %v1679
        %1681 = vst [vmem:[%s1658 + $0x60] sm:$0xff] %v1680
        %v1682 = vld [vmem:[%s1658 + $0x68] sm:$0xff]
        %v1683 = vsel %vm1660, %v1613, %v1682
        %1684 = vst [vmem:[%s1658 + $0x68] sm:$0xff] %v1683
        %v1685 = vld [vmem:[%s1658 + $0x80] sm:$0xff]
        %v1686 = vsel %vm1660, %v1615, %v1685
        %1687 = vst [vmem:[%s1658 + $0x80] sm:$0xff] %v1686
        %v1688 = vld [vmem:[%s1658 + $0x88] sm:$0xff]
        %v1689 = vsel %vm1660, %v1617, %v1688
        %1690 = vst [vmem:[%s1658 + $0x88] sm:$0xff] %v1689
        %v1691 = vld [vmem:[%s1658 + $0xa0] sm:$0xff]
        %v1692 = vsel %vm1660, %v1619, %v1691
        %1693 = vst [vmem:[%s1658 + $0xa0] sm:$0xff] %v1692
        %v1694 = vld [vmem:[%s1658 + $0xa8] sm:$0xff]
        %v1695 = vsel %vm1660, %v1621, %v1694
        %1696 = vst [vmem:[%s1658 + $0xa8] sm:$0xff] %v1695
        %v1697 = vld [vmem:[%s1658 + $0xc0] sm:$0xff]
        %v1698 = vsel %vm1660, %v1623, %v1697
        %1699 = vst [vmem:[%s1658 + $0xc0] sm:$0xff] %v1698
        %v1700 = vld [vmem:[%s1658 + $0xc8] sm:$0xff]
        %v1701 = vsel %vm1660, %v1625, %v1700
        %1702 = vst [vmem:[%s1658 + $0xc8] sm:$0xff] %v1701
        %v1703 = vld [vmem:[%s1658 + $0xe0] sm:$0xff]
        %v1704 = vsel %vm1660, %v1627, %v1703
        %1705 = vst [vmem:[%s1658 + $0xe0] sm:$0xff] %v1704
        %v1706 = vld [vmem:[%s1658 + $0xe8] sm:$0xff]
        %v1707 = vsel %vm1660, %v1629, %v1706
        %1708 = vst [vmem:[%s1658 + $0xe8] sm:$0xff] %v1707
        %v1709 = vld [vmem:[%s1658 + $0x100] sm:$0xff]
        %v1710 = vsel %vm1660, %v1631, %v1709
        %1711 = vst [vmem:[%s1658 + $0x100] sm:$0xff] %v1710
        %v1712 = vld [vmem:[%s1658 + $0x108] sm:$0xff]
        %v1713 = vsel %vm1660, %v1633, %v1712
        %1714 = vst [vmem:[%s1658 + $0x108] sm:$0xff] %v1713
        %v1715 = vld [vmem:[%s1658 + $0x120] sm:$0xff]
        %v1716 = vsel %vm1660, %v1635, %v1715
        %1717 = vst [vmem:[%s1658 + $0x120] sm:$0xff] %v1716
        %v1718 = vld [vmem:[%s1658 + $0x128] sm:$0xff]
        %v1719 = vsel %vm1660, %v1637, %v1718
        %1720 = vst [vmem:[%s1658 + $0x128] sm:$0xff] %v1719
        %v1721 = vrot.slane %v1259, 1
        %v1722 = vor.u32 %v1256, %v1721
        %v1723 = vrot.slane %v1266, 1
        %v1724 = vor.u32 %v1263, %v1723
        %v1725 = vrot.slane %v1273, 1
        %v1726 = vor.u32 %v1270, %v1725
        %v1727 = vrot.slane %v1280, 1
        %v1728 = vor.u32 %v1277, %v1727
        %v1729 = vrot.slane %v1287, 1
        %v1730 = vor.u32 %v1284, %v1729
        %v1731 = vrot.slane %v1294, 1
        %v1732 = vor.u32 %v1291, %v1731
        %v1733 = vrot.slane %v1301, 1
        %v1734 = vor.u32 %v1298, %v1733
        %v1735 = vrot.slane %v1308, 1
        %v1736 = vor.u32 %v1305, %v1735
        %v1737 = vrot.slane %v1315, 1
        %v1738 = vor.u32 %v1312, %v1737
        %v1739 = vrot.slane %v1322, 1
        %v1740 = vor.u32 %v1319, %v1739
        %v1741 = vrot.slane %v1329, 1
        %v1742 = vor.u32 %v1326, %v1741
        %v1743 = vrot.slane %v1336, 1
        %v1744 = vor.u32 %v1333, %v1743
        %v1745 = vrot.slane %v1343, 1
        %v1746 = vor.u32 %v1340, %v1745
        %v1747 = vrot.slane %v1350, 1
        %v1748 = vor.u32 %v1347, %v1747
        %v1749 = vrot.slane %v1357, 1
        %v1750 = vor.u32 %v1354, %v1749
        %v1751 = vrot.slane %v1364, 1
        %v1752 = vor.u32 %v1361, %v1751
        %v1753 = vrot.slane %v1371, 1
        %v1754 = vor.u32 %v1368, %v1753
        %v1755 = vrot.slane %v1378, 1
        %v1756 = vor.u32 %v1375, %v1755
        %v1757 = vrot.slane %v1385, 1
        %v1758 = vor.u32 %v1382, %v1757
        %v1759 = vrot.slane %v1392, 1
        %v1760 = vor.u32 %v1389, %v1759
        %v1781 = vld [vmem:[%s1658 + $0x10] sm:$0xff]
        %v1782 = vsel %vm1660, %v1722, %v1781
        %1783 = vst [vmem:[%s1658 + $0x10] sm:$0xff] %v1782
        %v1784 = vld [vmem:[%s1658 + $0x18] sm:$0xff]
        %v1785 = vsel %vm1660, %v1724, %v1784
        %1786 = vst [vmem:[%s1658 + $0x18] sm:$0xff] %v1785
        %v1787 = vld [vmem:[%s1658 + $0x30] sm:$0xff]
        %v1788 = vsel %vm1660, %v1726, %v1787
        %1789 = vst [vmem:[%s1658 + $0x30] sm:$0xff] %v1788
        %v1790 = vld [vmem:[%s1658 + $0x38] sm:$0xff]
        %v1791 = vsel %vm1660, %v1728, %v1790
        %1792 = vst [vmem:[%s1658 + $0x38] sm:$0xff] %v1791
        %v1793 = vld [vmem:[%s1658 + $0x50] sm:$0xff]
        %v1794 = vsel %vm1660, %v1730, %v1793
        %1795 = vst [vmem:[%s1658 + $0x50] sm:$0xff] %v1794
        %v1796 = vld [vmem:[%s1658 + $0x58] sm:$0xff]
        %v1797 = vsel %vm1660, %v1732, %v1796
        %1798 = vst [vmem:[%s1658 + $0x58] sm:$0xff] %v1797
        %v1799 = vld [vmem:[%s1658 + $0x70] sm:$0xff]
        %v1800 = vsel %vm1660, %v1734, %v1799
        %1801 = vst [vmem:[%s1658 + $0x70] sm:$0xff] %v1800
        %v1802 = vld [vmem:[%s1658 + $0x78] sm:$0xff]
        %v1803 = vsel %vm1660, %v1736, %v1802
        %1804 = vst [vmem:[%s1658 + $0x78] sm:$0xff] %v1803
        %v1805 = vld [vmem:[%s1658 + $0x90] sm:$0xff]
        %v1806 = vsel %vm1660, %v1738, %v1805
        %1807 = vst [vmem:[%s1658 + $0x90] sm:$0xff] %v1806
        %v1808 = vld [vmem:[%s1658 + $0x98] sm:$0xff]
        %v1809 = vsel %vm1660, %v1740, %v1808
        %1810 = vst [vmem:[%s1658 + $0x98] sm:$0xff] %v1809
        %v1811 = vld [vmem:[%s1658 + $0xb0] sm:$0xff]
        %v1812 = vsel %vm1660, %v1742, %v1811
        %1813 = vst [vmem:[%s1658 + $0xb0] sm:$0xff] %v1812
        %v1814 = vld [vmem:[%s1658 + $0xb8] sm:$0xff]
        %v1815 = vsel %vm1660, %v1744, %v1814
        %1816 = vst [vmem:[%s1658 + $0xb8] sm:$0xff] %v1815
        %v1817 = vld [vmem:[%s1658 + $0xd0] sm:$0xff]
        %v1818 = vsel %vm1660, %v1746, %v1817
        %1819 = vst [vmem:[%s1658 + $0xd0] sm:$0xff] %v1818
        %v1820 = vld [vmem:[%s1658 + $0xd8] sm:$0xff]
        %v1821 = vsel %vm1660, %v1748, %v1820
        %1822 = vst [vmem:[%s1658 + $0xd8] sm:$0xff] %v1821
        %v1823 = vld [vmem:[%s1658 + $0xf0] sm:$0xff]
        %v1824 = vsel %vm1660, %v1750, %v1823
        %1825 = vst [vmem:[%s1658 + $0xf0] sm:$0xff] %v1824
        %v1826 = vld [vmem:[%s1658 + $0xf8] sm:$0xff]
        %v1827 = vsel %vm1660, %v1752, %v1826
        %1828 = vst [vmem:[%s1658 + $0xf8] sm:$0xff] %v1827
        %v1829 = vld [vmem:[%s1658 + $0x110] sm:$0xff]
        %v1830 = vsel %vm1660, %v1754, %v1829
        %1831 = vst [vmem:[%s1658 + $0x110] sm:$0xff] %v1830
        %v1832 = vld [vmem:[%s1658 + $0x118] sm:$0xff]
        %v1833 = vsel %vm1660, %v1756, %v1832
        %1834 = vst [vmem:[%s1658 + $0x118] sm:$0xff] %v1833
        %v1835 = vld [vmem:[%s1658 + $0x130] sm:$0xff]
        %v1836 = vsel %vm1660, %v1758, %v1835
        %1837 = vst [vmem:[%s1658 + $0x130] sm:$0xff] %v1836
        %v1838 = vld [vmem:[%s1658 + $0x138] sm:$0xff]
        %v1839 = vsel %vm1660, %v1760, %v1838
        %1840 = vst [vmem:[%s1658 + $0x138] sm:$0xff] %v1839
        %vm1841 = vcmask 1047559
        %vm1842 = vsmask.f32 7966
        %vm1843 = vmand %vm1841, %vm1842
        %v1844 = vld [vmem:[%s1658] sm:$0x80]
        %v1845 = vsel %vm1843, 0, %v1844
        %1846 = vst [vmem:[%s1658] sm:$0x80] %v1845
        %v1847 = vld [vmem:[%s1658 + $0x8] sm:$0x80]
        %v1848 = vsel %vm1843, 0, %v1847
        %1849 = vst [vmem:[%s1658 + $0x8] sm:$0x80] %v1848
        %v1850 = vld [vmem:[%s1658 + $0x10] sm:$0x80]
        %v1851 = vsel %vm1843, 0, %v1850
        %1852 = vst [vmem:[%s1658 + $0x10] sm:$0x80] %v1851
        %v1853 = vld [vmem:[%s1658 + $0x18] sm:$0x80]
        %v1854 = vsel %vm1843, 0, %v1853
        %1855 = vst [vmem:[%s1658 + $0x18] sm:$0x80] %v1854
        %v1856 = vld [vmem:[%s1658 + $0x20] sm:$0x80]
        %v1857 = vsel %vm1843, 0, %v1856
        %1858 = vst [vmem:[%s1658 + $0x20] sm:$0x80] %v1857
        %v1859 = vld [vmem:[%s1658 + $0x28] sm:$0x80]
        %v1860 = vsel %vm1843, 0, %v1859
        %1861 = vst [vmem:[%s1658 + $0x28] sm:$0x80] %v1860
        %v1862 = vld [vmem:[%s1658 + $0x30] sm:$0x80]
        %v1863 = vsel %vm1843, 0, %v1862
        %1864 = vst [vmem:[%s1658 + $0x30] sm:$0x80] %v1863
        %v1865 = vld [vmem:[%s1658 + $0x38] sm:$0x80]
        %v1866 = vsel %vm1843, 0, %v1865
        %1867 = vst [vmem:[%s1658 + $0x38] sm:$0x80] %v1866
        %v1868 = vld [vmem:[%s1658 + $0x40] sm:$0x80]
        %v1869 = vsel %vm1843, 0, %v1868
        %1870 = vst [vmem:[%s1658 + $0x40] sm:$0x80] %v1869
        %v1871 = vld [vmem:[%s1658 + $0x48] sm:$0x80]
        %v1872 = vsel %vm1843, 0, %v1871
        %1873 = vst [vmem:[%s1658 + $0x48] sm:$0x80] %v1872
        %v1874 = vld [vmem:[%s1658 + $0x50] sm:$0x80]
        %v1875 = vsel %vm1843, 0, %v1874
        %1876 = vst [vmem:[%s1658 + $0x50] sm:$0x80] %v1875
        %v1877 = vld [vmem:[%s1658 + $0x58] sm:$0x80]
        %v1878 = vsel %vm1843, 0, %v1877
        %1879 = vst [vmem:[%s1658 + $0x58] sm:$0x80] %v1878
        %v1880 = vld [vmem:[%s1658 + $0x60] sm:$0x80]
        %v1881 = vsel %vm1843, 0, %v1880
        %1882 = vst [vmem:[%s1658 + $0x60] sm:$0x80] %v1881
        %v1883 = vld [vmem:[%s1658 + $0x68] sm:$0x80]
        %v1884 = vsel %vm1843, 0, %v1883
        %1885 = vst [vmem:[%s1658 + $0x68] sm:$0x80] %v1884
        %v1886 = vld [vmem:[%s1658 + $0x70] sm:$0x80]
        %v1887 = vsel %vm1843, 0, %v1886
        %1888 = vst [vmem:[%s1658 + $0x70] sm:$0x80] %v1887
        %v1889 = vld [vmem:[%s1658 + $0x78] sm:$0x80]
        %v1890 = vsel %vm1843, 0, %v1889
        %1891 = vst [vmem:[%s1658 + $0x78] sm:$0x80] %v1890
        %v1892 = vld [vmem:[%s1658 + $0x80] sm:$0x80]
        %v1893 = vsel %vm1843, 0, %v1892
        %1894 = vst [vmem:[%s1658 + $0x80] sm:$0x80] %v1893
        %v1895 = vld [vmem:[%s1658 + $0x88] sm:$0x80]
        %v1896 = vsel %vm1843, 0, %v1895
        %1897 = vst [vmem:[%s1658 + $0x88] sm:$0x80] %v1896
        %v1898 = vld [vmem:[%s1658 + $0x90] sm:$0x80]
        %v1899 = vsel %vm1843, 0, %v1898
        %1900 = vst [vmem:[%s1658 + $0x90] sm:$0x80] %v1899
        %v1901 = vld [vmem:[%s1658 + $0x98] sm:$0x80]
        %v1902 = vsel %vm1843, 0, %v1901
        %1903 = vst [vmem:[%s1658 + $0x98] sm:$0x80] %v1902
        %v1904 = vld [vmem:[%s1658 + $0xa0] sm:$0x80]
        %v1905 = vsel %vm1843, 0, %v1904
        %1906 = vst [vmem:[%s1658 + $0xa0] sm:$0x80] %v1905
        %v1907 = vld [vmem:[%s1658 + $0xa8] sm:$0x80]
        %v1908 = vsel %vm1843, 0, %v1907
        %1909 = vst [vmem:[%s1658 + $0xa8] sm:$0x80] %v1908
        %v1910 = vld [vmem:[%s1658 + $0xb0] sm:$0x80]
        %v1911 = vsel %vm1843, 0, %v1910
        %1912 = vst [vmem:[%s1658 + $0xb0] sm:$0x80] %v1911
        %v1913 = vld [vmem:[%s1658 + $0xb8] sm:$0x80]
        %v1914 = vsel %vm1843, 0, %v1913
        %1915 = vst [vmem:[%s1658 + $0xb8] sm:$0x80] %v1914
        %v1916 = vld [vmem:[%s1658 + $0xc0] sm:$0x80]
        %v1917 = vsel %vm1843, 0, %v1916
        %1918 = vst [vmem:[%s1658 + $0xc0] sm:$0x80] %v1917
        %v1919 = vld [vmem:[%s1658 + $0xc8] sm:$0x80]
        %v1920 = vsel %vm1843, 0, %v1919
        %1921 = vst [vmem:[%s1658 + $0xc8] sm:$0x80] %v1920
        %v1922 = vld [vmem:[%s1658 + $0xd0] sm:$0x80]
        %v1923 = vsel %vm1843, 0, %v1922
        %1924 = vst [vmem:[%s1658 + $0xd0] sm:$0x80] %v1923
        %v1925 = vld [vmem:[%s1658 + $0xd8] sm:$0x80]
        %v1926 = vsel %vm1843, 0, %v1925
        %1927 = vst [vmem:[%s1658 + $0xd8] sm:$0x80] %v1926
        %v1928 = vld [vmem:[%s1658 + $0xe0] sm:$0x80]
        %v1929 = vsel %vm1843, 0, %v1928
        %1930 = vst [vmem:[%s1658 + $0xe0] sm:$0x80] %v1929
        %v1931 = vld [vmem:[%s1658 + $0xe8] sm:$0x80]
        %v1932 = vsel %vm1843, 0, %v1931
        %1933 = vst [vmem:[%s1658 + $0xe8] sm:$0x80] %v1932
        %v1934 = vld [vmem:[%s1658 + $0xf0] sm:$0x80]
        %v1935 = vsel %vm1843, 0, %v1934
        %1936 = vst [vmem:[%s1658 + $0xf0] sm:$0x80] %v1935
        %v1937 = vld [vmem:[%s1658 + $0xf8] sm:$0x80]
        %v1938 = vsel %vm1843, 0, %v1937
        %1939 = vst [vmem:[%s1658 + $0xf8] sm:$0x80] %v1938
        %v1940 = vld [vmem:[%s1658 + $0x100] sm:$0x80]
        %v1941 = vsel %vm1843, 0, %v1940
        %1942 = vst [vmem:[%s1658 + $0x100] sm:$0x80] %v1941
        %v1943 = vld [vmem:[%s1658 + $0x108] sm:$0x80]
        %v1944 = vsel %vm1843, 0, %v1943
        %1945 = vst [vmem:[%s1658 + $0x108] sm:$0x80] %v1944
        %v1946 = vld [vmem:[%s1658 + $0x110] sm:$0x80]
        %v1947 = vsel %vm1843, 0, %v1946
        %1948 = vst [vmem:[%s1658 + $0x110] sm:$0x80] %v1947
        %v1949 = vld [vmem:[%s1658 + $0x118] sm:$0x80]
        %v1950 = vsel %vm1843, 0, %v1949
        %1951 = vst [vmem:[%s1658 + $0x118] sm:$0x80] %v1950
        %v1952 = vld [vmem:[%s1658 + $0x120] sm:$0x80]
        %v1953 = vsel %vm1843, 0, %v1952
        %1954 = vst [vmem:[%s1658 + $0x120] sm:$0x80] %v1953
        %v1955 = vld [vmem:[%s1658 + $0x128] sm:$0x80]
        %v1956 = vsel %vm1843, 0, %v1955
        %1957 = vst [vmem:[%s1658 + $0x128] sm:$0x80] %v1956
        %v1958 = vld [vmem:[%s1658 + $0x130] sm:$0x80]
        %v1959 = vsel %vm1843, 0, %v1958
        %1960 = vst [vmem:[%s1658 + $0x130] sm:$0x80] %v1959
        %v1961 = vld [vmem:[%s1658 + $0x138] sm:$0x80]
        %v1962 = vsel %vm1843, 0, %v1961
        %1963 = vst [vmem:[%s1658 + $0x138] sm:$0x80] %v1962
        %p1964 = scmp.eq.s32.totalorder %s27, 0
        // Predicated region
        $region53: #{deconv_layer_forward.1} parent=51 // pred_check
          %p1965 = pneg %p1964
        $region54: #{deconv_layer_forward.1} parent=51 // pred_check_branch
          %1967 = sbr.rel (%p1965) target = $region56
        $region55: #{deconv_layer_forward.1} parent=51 // pred_region
          %1968 = vst [vmem:[#allocation2] sm:$0xff] 0
          %1969 = vst [vmem:[#allocation2 + $0x8] sm:$0xff] 0
          %1970 = vst [vmem:[#allocation2 + $0x10] sm:$0xff] 0
          %1971 = vst [vmem:[#allocation2 + $0x18] sm:$0xff] 0
          %1972 = vst [vmem:[%s991] sm:$0xff] 0
          %1973 = vst [vmem:[%s991 + $0x8] sm:$0xff] 0
          %1974 = vst [vmem:[%s991 + $0x10] sm:$0xff] 0
          %1975 = vst [vmem:[%s991 + $0x18] sm:$0xff] 0
          %1976 = vst [vmem:[%s1658] sm:$0xff] 0
          %1977 = vst [vmem:[%s1658 + $0x8] sm:$0xff] 0
          %1978 = vst [vmem:[%s1658 + $0x10] sm:$0xff] 0
          %1979 = vst [vmem:[%s1658 + $0x18] sm:$0xff] 0
        $region56: #{deconv_layer_forward.1} parent=51 // pred_fallthru
          _
        %p1980 = scmp.eq.s32.totalorder %s27, 1
        // Predicated region
        $region57: #{deconv_layer_forward.1} parent=51 // pred_check
          %p1981 = pneg %p1980
        $region58: #{deconv_layer_forward.1} parent=51 // pred_check_branch
          %1983 = sbr.rel (%p1981) target = $region60
        $region59: #{deconv_layer_forward.1} parent=51 // pred_region
          %s1984 = scalar_lea.vmem [#allocation2], 288
          %1985 = vst [vmem:[%s1984] sm:$0xff] 0
          %1986 = vst [vmem:[%s1984 + $0x8] sm:$0xff] 0
          %1987 = vst [vmem:[%s1984 + $0x10] sm:$0xff] 0
          %1988 = vst [vmem:[%s1984 + $0x18] sm:$0xff] 0
          %s1989 = scalar_lea.vmem [#allocation2], 608
          %1990 = vst [vmem:[%s1989] sm:$0xff] 0
          %1991 = vst [vmem:[%s1989 + $0x8] sm:$0xff] 0
          %1992 = vst [vmem:[%s1989 + $0x10] sm:$0xff] 0
          %1993 = vst [vmem:[%s1989 + $0x18] sm:$0xff] 0
          %s1994 = scalar_lea.vmem [#allocation2], 928
          %1995 = vst [vmem:[%s1994] sm:$0xff] 0
          %1996 = vst [vmem:[%s1994 + $0x8] sm:$0xff] 0
          %1997 = vst [vmem:[%s1994 + $0x10] sm:$0xff] 0
          %1998 = vst [vmem:[%s1994 + $0x18] sm:$0xff] 0
        $region60: #{deconv_layer_forward.1} parent=51 // pred_fallthru
          _
        %v1999 = vld [vmem:[#allocation2] sm:$0xff]
        %v2000 = vld [vmem:[#allocation2 + $0x8] sm:$0xff]
        %v2001 = vld [vmem:[#allocation2 + $0x10] sm:$0xff]
        %v2002 = vld [vmem:[#allocation2 + $0x18] sm:$0xff]
        %v2003 = vld [vmem:[#allocation2 + $0x20] sm:$0xff]
        %v2004 = vld [vmem:[#allocation2 + $0x28] sm:$0xff]
        %v2005 = vld [vmem:[#allocation2 + $0x30] sm:$0xff]
        %v2006 = vld [vmem:[#allocation2 + $0x38] sm:$0xff]
        %v2007 = vld [vmem:[#allocation2 + $0x40] sm:$0xff]
        %v2008 = vld [vmem:[#allocation2 + $0x48] sm:$0xff]
        %v2009 = vld [vmem:[#allocation2 + $0x50] sm:$0xff]
        %v2010 = vld [vmem:[#allocation2 + $0x58] sm:$0xff]
        %v2011 = vld [vmem:[#allocation2 + $0x60] sm:$0xff]
        %v2012 = vld [vmem:[#allocation2 + $0x68] sm:$0xff]
        %v2013 = vld [vmem:[#allocation2 + $0x70] sm:$0xff]
        %v2014 = vld [vmem:[#allocation2 + $0x78] sm:$0xff]
        %v2015 = vld [vmem:[#allocation2 + $0x80] sm:$0xff]
        %v2016 = vld [vmem:[#allocation2 + $0x88] sm:$0xff]
        %v2017 = vld [vmem:[#allocation2 + $0x90] sm:$0xff]
        %v2018 = vld [vmem:[#allocation2 + $0x98] sm:$0xff]
        %v2019 = vld [vmem:[#allocation2 + $0xa0] sm:$0xff]
        %v2020 = vld [vmem:[#allocation2 + $0xa8] sm:$0xff]
        %v2021 = vld [vmem:[#allocation2 + $0xb0] sm:$0xff]
        %v2022 = vld [vmem:[#allocation2 + $0xb8] sm:$0xff]
        %v2023 = vld [vmem:[#allocation2 + $0xc0] sm:$0xff]
        %v2024 = vld [vmem:[#allocation2 + $0xc8] sm:$0xff]
        %v2025 = vld [vmem:[#allocation2 + $0xd0] sm:$0xff]
        %v2026 = vld [vmem:[#allocation2 + $0xd8] sm:$0xff]
        %v2027 = vld [vmem:[#allocation2 + $0xe0] sm:$0xff]
        %v2028 = vld [vmem:[#allocation2 + $0xe8] sm:$0xff]
        %v2029 = vld [vmem:[#allocation2 + $0xf0] sm:$0xff]
        %v2030 = vld [vmem:[#allocation2 + $0xf8] sm:$0xff]
        %v2031 = vld [vmem:[%s6] sm:$0xff]
        %v2032 = vld [vmem:[%s6 + $0x8] sm:$0xff]
        %v2033 = vld [vmem:[%s6 + $0x10] sm:$0xff]
        %v2034 = vld [vmem:[%s6 + $0x18] sm:$0xff]
        %v2035 = vld [vmem:[%s6 + $0x20] sm:$0xff]
        %v2036 = vld [vmem:[%s6 + $0x28] sm:$0xff]
        %v2037 = vld [vmem:[%s6 + $0x30] sm:$0xff]
        %v2038 = vld [vmem:[%s6 + $0x38] sm:$0xff]
        %v2039 = vld [vmem:[%s6 + $0x40] sm:$0xff]
        %v2040 = vld [vmem:[%s6 + $0x48] sm:$0xff]
        %v2041 = vld [vmem:[%s6 + $0x50] sm:$0xff]
        %v2042 = vld [vmem:[%s6 + $0x58] sm:$0xff]
        %v2043 = vld [vmem:[%s6 + $0x60] sm:$0xff]
        %v2044 = vld [vmem:[%s6 + $0x68] sm:$0xff]
        %v2045 = vld [vmem:[%s6 + $0x70] sm:$0xff]
        %v2046 = vld [vmem:[%s6 + $0x78] sm:$0xff]
        %v2047 = vld [vmem:[%s6 + $0x80] sm:$0xff]
        %v2048 = vld [vmem:[%s6 + $0x88] sm:$0xff]
        %v2049 = vld [vmem:[%s6 + $0x90] sm:$0xff]
        %v2050 = vld [vmem:[%s6 + $0x98] sm:$0xff]
        %v2051 = vld [vmem:[%s6 + $0xa0] sm:$0xff]
        %v2052 = vld [vmem:[%s6 + $0xa8] sm:$0xff]
        %v2053 = vld [vmem:[%s6 + $0xb0] sm:$0xff]
        %v2054 = vld [vmem:[%s6 + $0xb8] sm:$0xff]
        %v2055 = vld [vmem:[%s6 + $0xc0] sm:$0xff]
        %v2056 = vld [vmem:[%s6 + $0xc8] sm:$0xff]
        %v2057 = vld [vmem:[%s6 + $0xd0] sm:$0xff]
        %v2058 = vld [vmem:[%s6 + $0xd8] sm:$0xff]
        %v2059 = vld [vmem:[%s6 + $0xe0] sm:$0xff]
        %v2060 = vld [vmem:[%s6 + $0xe8] sm:$0xff]
        %v2061 = vld [vmem:[%s6 + $0xf0] sm:$0xff]
        %v2062 = vld [vmem:[%s6 + $0xf8] sm:$0xff]
        %v2063 = vld [vmem:[%s6 + $0x100] sm:$0xff]
        %v2064 = vld [vmem:[%s6 + $0x108] sm:$0xff]
        %v2065 = vld [vmem:[%s6 + $0x110] sm:$0xff]
        %v2066 = vld [vmem:[%s6 + $0x118] sm:$0xff]
        %v2067 = vld [vmem:[%s6 + $0x120] sm:$0xff]
        %v2068 = vld [vmem:[%s6 + $0x128] sm:$0xff]
        %v2069 = vld [vmem:[%s6 + $0x130] sm:$0xff]
        %v2070 = vld [vmem:[%s6 + $0x138] sm:$0xff]
        %v2071 = vld [vmem:[%s6 + $0x140] sm:$0xff]
        %v2072 = vld [vmem:[%s6 + $0x148] sm:$0xff]
        %v2073 = vld [vmem:[%s6 + $0x150] sm:$0xff]
        %v2074 = vld [vmem:[%s6 + $0x158] sm:$0xff]
        %v2075 = vld [vmem:[%s6 + $0x160] sm:$0xff]
        %v2076 = vld [vmem:[%s6 + $0x168] sm:$0xff]
        %v2077 = vld [vmem:[%s6 + $0x170] sm:$0xff]
        %v2078 = vld [vmem:[%s6 + $0x178] sm:$0xff]
        %v2079 = vld [vmem:[%s6 + $0x180] sm:$0xff]
        %v2080 = vld [vmem:[%s6 + $0x188] sm:$0xff]
        %v2081 = vld [vmem:[%s6 + $0x190] sm:$0xff]
        %v2082 = vld [vmem:[%s6 + $0x198] sm:$0xff]
        %v2083 = vld [vmem:[%s6 + $0x1a0] sm:$0xff]
        %v2084 = vld [vmem:[%s6 + $0x1a8] sm:$0xff]
        %v2085 = vld [vmem:[%s6 + $0x1b0] sm:$0xff]
        %v2086 = vld [vmem:[%s6 + $0x1b8] sm:$0xff]
        %v2087 = vld [vmem:[%s6 + $0x1c0] sm:$0xff]
        %v2088 = vld [vmem:[%s6 + $0x1c8] sm:$0xff]
        %v2089 = vld [vmem:[%s6 + $0x1d0] sm:$0xff]
        %v2090 = vld [vmem:[%s6 + $0x1d8] sm:$0xff]
        %v2091 = vld [vmem:[%s6 + $0x1e0] sm:$0xff]
        %v2092 = vld [vmem:[%s6 + $0x1e8] sm:$0xff]
        %v2093 = vld [vmem:[%s6 + $0x1f0] sm:$0xff]
        %v2094 = vld [vmem:[%s6 + $0x1f8] sm:$0xff]
        %v2095 = vld [vmem:[%s991] sm:$0xff]
        %v2096 = vld [vmem:[%s991 + $0x8] sm:$0xff]
        %v2097 = vld [vmem:[%s991 + $0x10] sm:$0xff]
        %v2098 = vld [vmem:[%s991 + $0x18] sm:$0xff]
        %v2099 = vld [vmem:[%s991 + $0x20] sm:$0xff]
        %v2100 = vld [vmem:[%s991 + $0x28] sm:$0xff]
        %v2101 = vld [vmem:[%s991 + $0x30] sm:$0xff]
        %v2102 = vld [vmem:[%s991 + $0x38] sm:$0xff]
        %v2103 = vld [vmem:[%s991 + $0x40] sm:$0xff]
        %v2104 = vld [vmem:[%s991 + $0x48] sm:$0xff]
        %v2105 = vld [vmem:[%s991 + $0x50] sm:$0xff]
        %v2106 = vld [vmem:[%s991 + $0x58] sm:$0xff]
        %v2107 = vld [vmem:[%s991 + $0x60] sm:$0xff]
        %v2108 = vld [vmem:[%s991 + $0x68] sm:$0xff]
        %v2109 = vld [vmem:[%s991 + $0x70] sm:$0xff]
        %v2110 = vld [vmem:[%s991 + $0x78] sm:$0xff]
        %v2111 = vld [vmem:[%s991 + $0x80] sm:$0xff]
        %v2112 = vld [vmem:[%s991 + $0x88] sm:$0xff]
        %v2113 = vld [vmem:[%s991 + $0x90] sm:$0xff]
        %v2114 = vld [vmem:[%s991 + $0x98] sm:$0xff]
        %v2115 = vld [vmem:[%s991 + $0xa0] sm:$0xff]
        %v2116 = vld [vmem:[%s991 + $0xa8] sm:$0xff]
        %v2117 = vld [vmem:[%s991 + $0xb0] sm:$0xff]
        %v2118 = vld [vmem:[%s991 + $0xb8] sm:$0xff]
        %v2119 = vld [vmem:[%s991 + $0xc0] sm:$0xff]
        %v2120 = vld [vmem:[%s991 + $0xc8] sm:$0xff]
        %v2121 = vld [vmem:[%s991 + $0xd0] sm:$0xff]
        %v2122 = vld [vmem:[%s991 + $0xd8] sm:$0xff]
        %v2123 = vld [vmem:[%s991 + $0xe0] sm:$0xff]
        %v2124 = vld [vmem:[%s991 + $0xe8] sm:$0xff]
        %v2125 = vld [vmem:[%s991 + $0xf0] sm:$0xff]
        %v2126 = vld [vmem:[%s991 + $0xf8] sm:$0xff]
        %s2127 = scalar_lea.vmem %s6, 512
        %v2128 = vld [vmem:[%s2127] sm:$0xff]
        %v2129 = vld [vmem:[%s2127 + $0x8] sm:$0xff]
        %v2130 = vld [vmem:[%s2127 + $0x10] sm:$0xff]
        %v2131 = vld [vmem:[%s2127 + $0x18] sm:$0xff]
        %v2132 = vld [vmem:[%s2127 + $0x20] sm:$0xff]
        %v2133 = vld [vmem:[%s2127 + $0x28] sm:$0xff]
        %v2134 = vld [vmem:[%s2127 + $0x30] sm:$0xff]
        %v2135 = vld [vmem:[%s2127 + $0x38] sm:$0xff]
        %v2136 = vld [vmem:[%s2127 + $0x40] sm:$0xff]
        %v2137 = vld [vmem:[%s2127 + $0x48] sm:$0xff]
        %v2138 = vld [vmem:[%s2127 + $0x50] sm:$0xff]
        %v2139 = vld [vmem:[%s2127 + $0x58] sm:$0xff]
        %v2140 = vld [vmem:[%s2127 + $0x60] sm:$0xff]
        %v2141 = vld [vmem:[%s2127 + $0x68] sm:$0xff]
        %v2142 = vld [vmem:[%s2127 + $0x70] sm:$0xff]
        %v2143 = vld [vmem:[%s2127 + $0x78] sm:$0xff]
        %v2144 = vld [vmem:[%s2127 + $0x80] sm:$0xff]
        %v2145 = vld [vmem:[%s2127 + $0x88] sm:$0xff]
        %v2146 = vld [vmem:[%s2127 + $0x90] sm:$0xff]
        %v2147 = vld [vmem:[%s2127 + $0x98] sm:$0xff]
        %v2148 = vld [vmem:[%s2127 + $0xa0] sm:$0xff]
        %v2149 = vld [vmem:[%s2127 + $0xa8] sm:$0xff]
        %v2150 = vld [vmem:[%s2127 + $0xb0] sm:$0xff]
        %v2151 = vld [vmem:[%s2127 + $0xb8] sm:$0xff]
        %v2152 = vld [vmem:[%s2127 + $0xc0] sm:$0xff]
        %v2153 = vld [vmem:[%s2127 + $0xc8] sm:$0xff]
        %v2154 = vld [vmem:[%s2127 + $0xd0] sm:$0xff]
        %v2155 = vld [vmem:[%s2127 + $0xd8] sm:$0xff]
        %v2156 = vld [vmem:[%s2127 + $0xe0] sm:$0xff]
        %v2157 = vld [vmem:[%s2127 + $0xe8] sm:$0xff]
        %v2158 = vld [vmem:[%s2127 + $0xf0] sm:$0xff]
        %v2159 = vld [vmem:[%s2127 + $0xf8] sm:$0xff]
        %v2160 = vld [vmem:[%s2127 + $0x100] sm:$0xff]
        %v2161 = vld [vmem:[%s2127 + $0x108] sm:$0xff]
        %v2162 = vld [vmem:[%s2127 + $0x110] sm:$0xff]
        %v2163 = vld [vmem:[%s2127 + $0x118] sm:$0xff]
        %v2164 = vld [vmem:[%s2127 + $0x120] sm:$0xff]
        %v2165 = vld [vmem:[%s2127 + $0x128] sm:$0xff]
        %v2166 = vld [vmem:[%s2127 + $0x130] sm:$0xff]
        %v2167 = vld [vmem:[%s2127 + $0x138] sm:$0xff]
        %v2168 = vld [vmem:[%s2127 + $0x140] sm:$0xff]
        %v2169 = vld [vmem:[%s2127 + $0x148] sm:$0xff]
        %v2170 = vld [vmem:[%s2127 + $0x150] sm:$0xff]
        %v2171 = vld [vmem:[%s2127 + $0x158] sm:$0xff]
        %v2172 = vld [vmem:[%s2127 + $0x160] sm:$0xff]
        %v2173 = vld [vmem:[%s2127 + $0x168] sm:$0xff]
        %v2174 = vld [vmem:[%s2127 + $0x170] sm:$0xff]
        %v2175 = vld [vmem:[%s2127 + $0x178] sm:$0xff]
        %v2176 = vld [vmem:[%s2127 + $0x180] sm:$0xff]
        %v2177 = vld [vmem:[%s2127 + $0x188] sm:$0xff]
        %v2178 = vld [vmem:[%s2127 + $0x190] sm:$0xff]
        %v2179 = vld [vmem:[%s2127 + $0x198] sm:$0xff]
        %v2180 = vld [vmem:[%s2127 + $0x1a0] sm:$0xff]
        %v2181 = vld [vmem:[%s2127 + $0x1a8] sm:$0xff]
        %v2182 = vld [vmem:[%s2127 + $0x1b0] sm:$0xff]
        %v2183 = vld [vmem:[%s2127 + $0x1b8] sm:$0xff]
        %v2184 = vld [vmem:[%s2127 + $0x1c0] sm:$0xff]
        %v2185 = vld [vmem:[%s2127 + $0x1c8] sm:$0xff]
        %v2186 = vld [vmem:[%s2127 + $0x1d0] sm:$0xff]
        %v2187 = vld [vmem:[%s2127 + $0x1d8] sm:$0xff]
        %v2188 = vld [vmem:[%s2127 + $0x1e0] sm:$0xff]
        %v2189 = vld [vmem:[%s2127 + $0x1e8] sm:$0xff]
        %v2190 = vld [vmem:[%s2127 + $0x1f0] sm:$0xff]
        %v2191 = vld [vmem:[%s2127 + $0x1f8] sm:$0xff]
        %v2256 = vunpack.c.l.b16 %v2128
        %v2257 = vunpack.c.h.b16 %v2128
        %v2258 = vunpack.c.l.b16 %v2129
        %v2259 = vunpack.c.h.b16 %v2129
        %v2260 = vunpack.c.l.b16 %v2130
        %v2261 = vunpack.c.h.b16 %v2130
        %v2262 = vunpack.c.l.b16 %v2131
        %v2263 = vunpack.c.h.b16 %v2131
        %v2264 = vunpack.c.l.b16 %v2132
        %v2265 = vunpack.c.h.b16 %v2132
        %v2266 = vunpack.c.l.b16 %v2133
        %v2267 = vunpack.c.h.b16 %v2133
        %v2268 = vunpack.c.l.b16 %v2134
        %v2269 = vunpack.c.h.b16 %v2134
        %v2270 = vunpack.c.l.b16 %v2135
        %v2271 = vunpack.c.h.b16 %v2135
        %v2272 = vunpack.c.l.b16 %v2136
        %v2273 = vunpack.c.h.b16 %v2136
        %v2274 = vunpack.c.l.b16 %v2137
        %v2275 = vunpack.c.h.b16 %v2137
        %v2276 = vunpack.c.l.b16 %v2138
        %v2277 = vunpack.c.h.b16 %v2138
        %v2278 = vunpack.c.l.b16 %v2139
        %v2279 = vunpack.c.h.b16 %v2139
        %v2280 = vunpack.c.l.b16 %v2140
        %v2281 = vunpack.c.h.b16 %v2140
        %v2282 = vunpack.c.l.b16 %v2141
        %v2283 = vunpack.c.h.b16 %v2141
        %v2284 = vunpack.c.l.b16 %v2142
        %v2285 = vunpack.c.h.b16 %v2142
        %v2286 = vunpack.c.l.b16 %v2143
        %v2287 = vunpack.c.h.b16 %v2143
        %v2288 = vunpack.c.l.b16 %v2144
        %v2289 = vunpack.c.h.b16 %v2144
        %v2290 = vunpack.c.l.b16 %v2145
        %v2291 = vunpack.c.h.b16 %v2145
        %v2292 = vunpack.c.l.b16 %v2146
        %v2293 = vunpack.c.h.b16 %v2146
        %v2294 = vunpack.c.l.b16 %v2147
        %v2295 = vunpack.c.h.b16 %v2147
        %v2296 = vunpack.c.l.b16 %v2148
        %v2297 = vunpack.c.h.b16 %v2148
        %v2298 = vunpack.c.l.b16 %v2149
        %v2299 = vunpack.c.h.b16 %v2149
        %v2300 = vunpack.c.l.b16 %v2150
        %v2301 = vunpack.c.h.b16 %v2150
        %v2302 = vunpack.c.l.b16 %v2151
        %v2303 = vunpack.c.h.b16 %v2151
        %v2304 = vunpack.c.l.b16 %v2152
        %v2305 = vunpack.c.h.b16 %v2152
        %v2306 = vunpack.c.l.b16 %v2153
        %v2307 = vunpack.c.h.b16 %v2153
        %v2308 = vunpack.c.l.b16 %v2154
        %v2309 = vunpack.c.h.b16 %v2154
        %v2310 = vunpack.c.l.b16 %v2155
        %v2311 = vunpack.c.h.b16 %v2155
        %v2312 = vunpack.c.l.b16 %v2156
        %v2313 = vunpack.c.h.b16 %v2156
        %v2314 = vunpack.c.l.b16 %v2157
        %v2315 = vunpack.c.h.b16 %v2157
        %v2316 = vunpack.c.l.b16 %v2158
        %v2317 = vunpack.c.h.b16 %v2158
        %v2318 = vunpack.c.l.b16 %v2159
        %v2319 = vunpack.c.h.b16 %v2159
        %v2320 = vunpack.c.l.b16 %v2160
        %v2321 = vunpack.c.h.b16 %v2160
        %v2322 = vunpack.c.l.b16 %v2161
        %v2323 = vunpack.c.h.b16 %v2161
        %v2324 = vunpack.c.l.b16 %v2162
        %v2325 = vunpack.c.h.b16 %v2162
        %v2326 = vunpack.c.l.b16 %v2163
        %v2327 = vunpack.c.h.b16 %v2163
        %v2328 = vunpack.c.l.b16 %v2164
        %v2329 = vunpack.c.h.b16 %v2164
        %v2330 = vunpack.c.l.b16 %v2165
        %v2331 = vunpack.c.h.b16 %v2165
        %v2332 = vunpack.c.l.b16 %v2166
        %v2333 = vunpack.c.h.b16 %v2166
        %v2334 = vunpack.c.l.b16 %v2167
        %v2335 = vunpack.c.h.b16 %v2167
        %v2336 = vunpack.c.l.b16 %v2168
        %v2337 = vunpack.c.h.b16 %v2168
        %v2338 = vunpack.c.l.b16 %v2169
        %v2339 = vunpack.c.h.b16 %v2169
        %v2340 = vunpack.c.l.b16 %v2170
        %v2341 = vunpack.c.h.b16 %v2170
        %v2342 = vunpack.c.l.b16 %v2171
        %v2343 = vunpack.c.h.b16 %v2171
        %v2344 = vunpack.c.l.b16 %v2172
        %v2345 = vunpack.c.h.b16 %v2172
        %v2346 = vunpack.c.l.b16 %v2173
        %v2347 = vunpack.c.h.b16 %v2173
        %v2348 = vunpack.c.l.b16 %v2174
        %v2349 = vunpack.c.h.b16 %v2174
        %v2350 = vunpack.c.l.b16 %v2175
        %v2351 = vunpack.c.h.b16 %v2175
        %v2352 = vunpack.c.l.b16 %v2176
        %v2353 = vunpack.c.h.b16 %v2176
        %v2354 = vunpack.c.l.b16 %v2177
        %v2355 = vunpack.c.h.b16 %v2177
        %v2356 = vunpack.c.l.b16 %v2178
        %v2357 = vunpack.c.h.b16 %v2178
        %v2358 = vunpack.c.l.b16 %v2179
        %v2359 = vunpack.c.h.b16 %v2179
        %v2360 = vunpack.c.l.b16 %v2180
        %v2361 = vunpack.c.h.b16 %v2180
        %v2362 = vunpack.c.l.b16 %v2181
        %v2363 = vunpack.c.h.b16 %v2181
        %v2364 = vunpack.c.l.b16 %v2182
        %v2365 = vunpack.c.h.b16 %v2182
        %v2366 = vunpack.c.l.b16 %v2183
        %v2367 = vunpack.c.h.b16 %v2183
        %v2368 = vunpack.c.l.b16 %v2184
        %v2369 = vunpack.c.h.b16 %v2184
        %v2370 = vunpack.c.l.b16 %v2185
        %v2371 = vunpack.c.h.b16 %v2185
        %v2372 = vunpack.c.l.b16 %v2186
        %v2373 = vunpack.c.h.b16 %v2186
        %v2374 = vunpack.c.l.b16 %v2187
        %v2375 = vunpack.c.h.b16 %v2187
        %v2376 = vunpack.c.l.b16 %v2188
        %v2377 = vunpack.c.h.b16 %v2188
        %v2378 = vunpack.c.l.b16 %v2189
        %v2379 = vunpack.c.h.b16 %v2189
        %v2380 = vunpack.c.l.b16 %v2190
        %v2381 = vunpack.c.h.b16 %v2190
        %v2382 = vunpack.c.l.b16 %v2191
        %v2383 = vunpack.c.h.b16 %v2191
        %v2384 = vpack.c.b16 %v2258, %v2256
        %v2385 = vpack.c.b16 %v2259, %v2257
        %v2386 = vpack.c.b16 %v2262, %v2260
        %v2387 = vpack.c.b16 %v2263, %v2261
        %v2388 = vpack.c.b16 %v2266, %v2264
        %v2389 = vpack.c.b16 %v2267, %v2265
        %v2390 = vpack.c.b16 %v2270, %v2268
        %v2391 = vpack.c.b16 %v2271, %v2269
        %v2392 = vpack.c.b16 %v2274, %v2272
        %v2393 = vpack.c.b16 %v2275, %v2273
        %v2394 = vpack.c.b16 %v2278, %v2276
        %v2395 = vpack.c.b16 %v2279, %v2277
        %v2396 = vpack.c.b16 %v2282, %v2280
        %v2397 = vpack.c.b16 %v2283, %v2281
        %v2398 = vpack.c.b16 %v2286, %v2284
        %v2399 = vpack.c.b16 %v2287, %v2285
        %v2400 = vpack.c.b16 %v2290, %v2288
        %v2401 = vpack.c.b16 %v2291, %v2289
        %v2402 = vpack.c.b16 %v2294, %v2292
        %v2403 = vpack.c.b16 %v2295, %v2293
        %v2404 = vpack.c.b16 %v2298, %v2296
        %v2405 = vpack.c.b16 %v2299, %v2297
        %v2406 = vpack.c.b16 %v2302, %v2300
        %v2407 = vpack.c.b16 %v2303, %v2301
        %v2408 = vpack.c.b16 %v2306, %v2304
        %v2409 = vpack.c.b16 %v2307, %v2305
        %v2410 = vpack.c.b16 %v2310, %v2308
        %v2411 = vpack.c.b16 %v2311, %v2309
        %v2412 = vpack.c.b16 %v2314, %v2312
        %v2413 = vpack.c.b16 %v2315, %v2313
        %v2414 = vpack.c.b16 %v2318, %v2316
        %v2415 = vpack.c.b16 %v2319, %v2317
        %v2416 = vpack.c.b16 %v2322, %v2320
        %v2417 = vpack.c.b16 %v2323, %v2321
        %v2418 = vpack.c.b16 %v2326, %v2324
        %v2419 = vpack.c.b16 %v2327, %v2325
        %v2420 = vpack.c.b16 %v2330, %v2328
        %v2421 = vpack.c.b16 %v2331, %v2329
        %v2422 = vpack.c.b16 %v2334, %v2332
        %v2423 = vpack.c.b16 %v2335, %v2333
        %v2424 = vpack.c.b16 %v2338, %v2336
        %v2425 = vpack.c.b16 %v2339, %v2337
        %v2426 = vpack.c.b16 %v2342, %v2340
        %v2427 = vpack.c.b16 %v2343, %v2341
        %v2428 = vpack.c.b16 %v2346, %v2344
        %v2429 = vpack.c.b16 %v2347, %v2345
        %v2430 = vpack.c.b16 %v2350, %v2348
        %v2431 = vpack.c.b16 %v2351, %v2349
        %v2432 = vpack.c.b16 %v2354, %v2352
        %v2433 = vpack.c.b16 %v2355, %v2353
        %v2434 = vpack.c.b16 %v2358, %v2356
        %v2435 = vpack.c.b16 %v2359, %v2357
        %v2436 = vpack.c.b16 %v2362, %v2360
        %v2437 = vpack.c.b16 %v2363, %v2361
        %v2438 = vpack.c.b16 %v2366, %v2364
        %v2439 = vpack.c.b16 %v2367, %v2365
        %v2440 = vpack.c.b16 %v2370, %v2368
        %v2441 = vpack.c.b16 %v2371, %v2369
        %v2442 = vpack.c.b16 %v2374, %v2372
        %v2443 = vpack.c.b16 %v2375, %v2373
        %v2444 = vpack.c.b16 %v2378, %v2376
        %v2445 = vpack.c.b16 %v2379, %v2377
        %v2446 = vpack.c.b16 %v2382, %v2380
        %v2447 = vpack.c.b16 %v2383, %v2381
        %2512 = vmatprep.subr.bf16.mxu0 %v2385
        %2513 = vmatpush1.bf16.msra.mxu0 %v2384
        %2514 = vmatprep.subr.bf16.mxu0 %v2387
        %2515 = vmatpush1.bf16.msra.mxu0 %v2386
        %2516 = vmatprep.subr.bf16.mxu0 %v2389
        %2517 = vmatpush1.bf16.msra.mxu0 %v2388
        %2518 = vmatprep.subr.bf16.mxu0 %v2391
        %2519 = vmatpush1.bf16.msra.mxu0 %v2390
        %2520 = vmatprep.subr.bf16.mxu0 %v2393
        %2521 = vmatpush1.bf16.msra.mxu0 %v2392
        %2522 = vmatprep.subr.bf16.mxu0 %v2395
        %2523 = vmatpush1.bf16.msra.mxu0 %v2394
        %2524 = vmatprep.subr.bf16.mxu0 %v2397
        %2525 = vmatpush1.bf16.msra.mxu0 %v2396
        %2526 = vmatprep.subr.bf16.mxu0 %v2399
        %2527 = vmatpush1.bf16.msra.mxu0 %v2398
        %2528 = vmatprep.subr.bf16.mxu0 %v2401
        %2529 = vmatpush1.bf16.msra.mxu0 %v2400
        %2530 = vmatprep.subr.bf16.mxu0 %v2403
        %2531 = vmatpush1.bf16.msra.mxu0 %v2402
        %2532 = vmatprep.subr.bf16.mxu0 %v2405
        %2533 = vmatpush1.bf16.msra.mxu0 %v2404
        %2534 = vmatprep.subr.bf16.mxu0 %v2407
        %2535 = vmatpush1.bf16.msra.mxu0 %v2406
        %2536 = vmatprep.subr.bf16.mxu0 %v2409
        %2537 = vmatpush1.bf16.msra.mxu0 %v2408
        %2538 = vmatprep.subr.bf16.mxu0 %v2411
        %2539 = vmatpush1.bf16.msra.mxu0 %v2410
        %2540 = vmatprep.subr.bf16.mxu0 %v2413
        %2541 = vmatpush1.bf16.msra.mxu0 %v2412
        %2542 = vmatprep.subr.bf16.mxu0 %v2415
        %2543 = vmatpush1.bf16.msra.mxu0 %v2414
        %2544 = vmatprep.mubr.bf16.mxu0 %v2096
        %2545 = vmatmul.mubr.bf16.gmra.mrb[0].mxu0 %v2095
        %v2546 = vpop.f32.mrb[0].mxu0
        %v2547 = vadd.f32 0.0, %v2546
        %v2548 = vpop.f32.mrb[0].mxu0
        %v2549 = vadd.f32 0.0, %v2548
        %v2550 = vpop.f32.mrb[0].mxu0
        %v2551 = vadd.f32 0.0, %v2550
        %v2552 = vpop.f32.mrb[0].mxu0
        %v2553 = vadd.f32 0.0, %v2552
        %2554 = vmatprep.mubr.bf16.mxu0 %v2100
        %2555 = vmatmul.mubr.bf16.gmra.mrb[0].mxu0 %v2099
        %v2556 = vpop.f32.mrb[0].mxu0
        %v2557 = vadd.f32 0.0, %v2556
        %v2558 = vpop.f32.mrb[0].mxu0
        %v2559 = vadd.f32 0.0, %v2558
        %v2560 = vpop.f32.mrb[0].mxu0
        %v2561 = vadd.f32 0.0, %v2560
        %v2562 = vpop.f32.mrb[0].mxu0
        %v2563 = vadd.f32 0.0, %v2562
        %2564 = vmatprep.mubr.bf16.mxu0 %v2104
        %2565 = vmatmul.mubr.bf16.gmra.mrb[0].mxu0 %v2103
        %v2566 = vpop.f32.mrb[0].mxu0
        %v2567 = vadd.f32 0.0, %v2566
        %v2568 = vpop.f32.mrb[0].mxu0
        %v2569 = vadd.f32 0.0, %v2568
        %v2570 = vpop.f32.mrb[0].mxu0
        %v2571 = vadd.f32 0.0, %v2570
        %v2572 = vpop.f32.mrb[0].mxu0
        %v2573 = vadd.f32 0.0, %v2572
        %2574 = vmatprep.mubr.bf16.mxu0 %v2108
        %2575 = vmatmul.mubr.bf16.gmra.mrb[0].mxu0 %v2107
        %v2576 = vpop.f32.mrb[0].mxu0
        %v2577 = vadd.f32 0.0, %v2576
        %v2578 = vpop.f32.mrb[0].mxu0
        %v2579 = vadd.f32 0.0, %v2578
        %v2580 = vpop.f32.mrb[0].mxu0
        %v2581 = vadd.f32 0.0, %v2580
        %v2582 = vpop.f32.mrb[0].mxu0
        %v2583 = vadd.f32 0.0, %v2582
        %2584 = vmatprep.mubr.bf16.mxu0 %v2112
        %2585 = vmatmul.mubr.bf16.gmra.mrb[0].mxu0 %v2111
        %v2586 = vpop.f32.mrb[0].mxu0
        %v2587 = vadd.f32 0.0, %v2586
        %v2588 = vpop.f32.mrb[0].mxu0
        %v2589 = vadd.f32 0.0, %v2588
        %v2590 = vpop.f32.mrb[0].mxu0
        %v2591 = vadd.f32 0.0, %v2590
        %v2592 = vpop.f32.mrb[0].mxu0
        %v2593 = vadd.f32 0.0, %v2592
        %2594 = vmatprep.mubr.bf16.mxu0 %v2116
        %2595 = vmatmul.mubr.bf16.gmra.mrb[0].mxu0 %v2115
        %v2596 = vpop.f32.mrb[0].mxu0
        %v2597 = vadd.f32 0.0, %v2596
        %v2598 = vpop.f32.mrb[0].mxu0
        %v2599 = vadd.f32 0.0, %v2598
        %v2600 = vpop.f32.mrb[0].mxu0
        %v2601 = vadd.f32 0.0, %v2600
        %v2602 = vpop.f32.mrb[0].mxu0
        %v2603 = vadd.f32 0.0, %v2602
        %2604 = vmatprep.mubr.bf16.mxu0 %v2120
        %2605 = vmatmul.mubr.bf16.gmra.mrb[0].mxu0 %v2119
        %v2606 = vpop.f32.mrb[0].mxu0
        %v2607 = vadd.f32 0.0, %v2606
        %v2608 = vpop.f32.mrb[0].mxu0
        %v2609 = vadd.f32 0.0, %v2608
        %v2610 = vpop.f32.mrb[0].mxu0
        %v2611 = vadd.f32 0.0, %v2610
        %v2612 = vpop.f32.mrb[0].mxu0
        %v2613 = vadd.f32 0.0, %v2612
        %2614 = vmatprep.mubr.bf16.mxu0 %v2124
        %2615 = vmatmul.mubr.bf16.gmra.mrb[0].mxu0 %v2123
        %v2616 = vpop.f32.mrb[0].mxu0
        %v2617 = vadd.f32 0.0, %v2616
        %v2618 = vpop.f32.mrb[0].mxu0
        %v2619 = vadd.f32 0.0, %v2618
        %v2620 = vpop.f32.mrb[0].mxu0
        %v2621 = vadd.f32 0.0, %v2620
        %v2622 = vpop.f32.mrb[0].mxu0
        %v2623 = vadd.f32 0.0, %v2622
        %2624 = vdwg.mxu0
        %2625 = vmatprep.subr.bf16.mxu0 %v2417
        %2626 = vmatpush1.bf16.msra.mxu0 %v2416
        %2627 = vmatprep.subr.bf16.mxu0 %v2419
        %2628 = vmatpush1.bf16.msra.mxu0 %v2418
        %2629 = vmatprep.subr.bf16.mxu0 %v2421
        %2630 = vmatpush1.bf16.msra.mxu0 %v2420
        %2631 = vmatprep.subr.bf16.mxu0 %v2423
        %2632 = vmatpush1.bf16.msra.mxu0 %v2422
        %2633 = vmatprep.subr.bf16.mxu0 %v2425
        %2634 = vmatpush1.bf16.msra.mxu0 %v2424
        %2635 = vmatprep.subr.bf16.mxu0 %v2427
        %2636 = vmatpush1.bf16.msra.mxu0 %v2426
        %2637 = vmatprep.subr.bf16.mxu0 %v2429
        %2638 = vmatpush1.bf16.msra.mxu0 %v2428
        %2639 = vmatprep.subr.bf16.mxu0 %v2431
        %2640 = vmatpush1.bf16.msra.mxu0 %v2430
        %2641 = vmatprep.subr.bf16.mxu0 %v2433
        %2642 = vmatpush1.bf16.msra.mxu0 %v2432
        %2643 = vmatprep.subr.bf16.mxu0 %v2435
        %2644 = vmatpush1.bf16.msra.mxu0 %v2434
        %2645 = vmatprep.subr.bf16.mxu0 %v2437
        %2646 = vmatpush1.bf16.msra.mxu0 %v2436
        %2647 = vmatprep.subr.bf16.mxu0 %v2439
        %2648 = vmatpush1.bf16.msra.mxu0 %v2438
        %2649 = vmatprep.subr.bf16.mxu0 %v2441
        %2650 = vmatpush1.bf16.msra.mxu0 %v2440
        %2651 = vmatprep.subr.bf16.mxu0 %v2443
        %2652 = vmatpush1.bf16.msra.mxu0 %v2442
        %2653 = vmatprep.subr.bf16.mxu0 %v2445
        %2654 = vmatpush1.bf16.msra.mxu0 %v2444
        %2655 = vmatprep.subr.bf16.mxu0 %v2447
        %2656 = vmatpush1.bf16.msra.mxu0 %v2446
        %2657 = vmatprep.mubr.bf16.mxu0 %v2098
        %2658 = vmatmul.mubr.bf16.gmra.mrb[0].mxu0 %v2097
        %v2659 = vpop.f32.mrb[0].mxu0
        %v2660 = vadd.f32 %v2547, %v2659
        %v2661 = vpop.f32.mrb[0].mxu0
        %v2662 = vadd.f32 %v2549, %v2661
        %v2663 = vpop.f32.mrb[0].mxu0
        %v2664 = vadd.f32 %v2551, %v2663
        %v2665 = vpop.f32.mrb[0].mxu0
        %v2666 = vadd.f32 %v2553, %v2665
        %2667 = vmatprep.mubr.bf16.mxu0 %v2102
        %2668 = vmatmul.mubr.bf16.gmra.mrb[0].mxu0 %v2101
        %v2669 = vpop.f32.mrb[0].mxu0
        %v2670 = vadd.f32 %v2557, %v2669
        %v2671 = vpop.f32.mrb[0].mxu0
        %v2672 = vadd.f32 %v2559, %v2671
        %v2673 = vpop.f32.mrb[0].mxu0
        %v2674 = vadd.f32 %v2561, %v2673
        %v2675 = vpop.f32.mrb[0].mxu0
        %v2676 = vadd.f32 %v2563, %v2675
        %2677 = vmatprep.mubr.bf16.mxu0 %v2106
        %2678 = vmatmul.mubr.bf16.gmra.mrb[0].mxu0 %v2105
        %v2679 = vpop.f32.mrb[0].mxu0
        %v2680 = vadd.f32 %v2567, %v2679
        %v2681 = vpop.f32.mrb[0].mxu0
        %v2682 = vadd.f32 %v2569, %v2681
        %v2683 = vpop.f32.mrb[0].mxu0
        %v2684 = vadd.f32 %v2571, %v2683
        %v2685 = vpop.f32.mrb[0].mxu0
        %v2686 = vadd.f32 %v2573, %v2685
        %2687 = vmatprep.mubr.bf16.mxu0 %v2110
        %2688 = vmatmul.mubr.bf16.gmra.mrb[0].mxu0 %v2109
        %v2689 = vpop.f32.mrb[0].mxu0
        %v2690 = vadd.f32 %v2577, %v2689
        %v2691 = vpop.f32.mrb[0].mxu0
        %v2692 = vadd.f32 %v2579, %v2691
        %v2693 = vpop.f32.mrb[0].mxu0
        %v2694 = vadd.f32 %v2581, %v2693
        %v2695 = vpop.f32.mrb[0].mxu0
        %v2696 = vadd.f32 %v2583, %v2695
        %2697 = vmatprep.mubr.bf16.mxu0 %v2114
        %2698 = vmatmul.mubr.bf16.gmra.mrb[0].mxu0 %v2113
        %v2699 = vpop.f32.mrb[0].mxu0
        %v2700 = vadd.f32 %v2587, %v2699
        %v2701 = vpop.f32.mrb[0].mxu0
        %v2702 = vadd.f32 %v2589, %v2701
        %v2703 = vpop.f32.mrb[0].mxu0
        %v2704 = vadd.f32 %v2591, %v2703
        %v2705 = vpop.f32.mrb[0].mxu0
        %v2706 = vadd.f32 %v2593, %v2705
        %2707 = vmatprep.mubr.bf16.mxu0 %v2118
        %2708 = vmatmul.mubr.bf16.gmra.mrb[0].mxu0 %v2117
        %v2709 = vpop.f32.mrb[0].mxu0
        %v2710 = vadd.f32 %v2597, %v2709
        %v2711 = vpop.f32.mrb[0].mxu0
        %v2712 = vadd.f32 %v2599, %v2711
        %v2713 = vpop.f32.mrb[0].mxu0
        %v2714 = vadd.f32 %v2601, %v2713
        %v2715 = vpop.f32.mrb[0].mxu0
        %v2716 = vadd.f32 %v2603, %v2715
        %2717 = vmatprep.mubr.bf16.mxu0 %v2122
        %2718 = vmatmul.mubr.bf16.gmra.mrb[0].mxu0 %v2121
        %v2719 = vpop.f32.mrb[0].mxu0
        %v2720 = vadd.f32 %v2607, %v2719
        %v2721 = vpop.f32.mrb[0].mxu0
        %v2722 = vadd.f32 %v2609, %v2721
        %v2723 = vpop.f32.mrb[0].mxu0
        %v2724 = vadd.f32 %v2611, %v2723
        %v2725 = vpop.f32.mrb[0].mxu0
        %v2726 = vadd.f32 %v2613, %v2725
        %2727 = vmatprep.mubr.bf16.mxu0 %v2126
        %2728 = vmatmul.mubr.bf16.gmra.mrb[0].mxu0 %v2125
        %v2729 = vpop.f32.mrb[0].mxu0
        %v2730 = vadd.f32 %v2617, %v2729
        %v2731 = vpop.f32.mrb[0].mxu0
        %v2732 = vadd.f32 %v2619, %v2731
        %v2733 = vpop.f32.mrb[0].mxu0
        %v2734 = vadd.f32 %v2621, %v2733
        %v2735 = vpop.f32.mrb[0].mxu0
        %v2736 = vadd.f32 %v2623, %v2735
        %2737 = vdwg.mxu0
        %v2802 = vunpack.c.l.b16 %v2031
        %v2803 = vunpack.c.h.b16 %v2031
        %v2804 = vunpack.c.l.b16 %v2032
        %v2805 = vunpack.c.h.b16 %v2032
        %v2806 = vunpack.c.l.b16 %v2033
        %v2807 = vunpack.c.h.b16 %v2033
        %v2808 = vunpack.c.l.b16 %v2034
        %v2809 = vunpack.c.h.b16 %v2034
        %v2810 = vunpack.c.l.b16 %v2035
        %v2811 = vunpack.c.h.b16 %v2035
        %v2812 = vunpack.c.l.b16 %v2036
        %v2813 = vunpack.c.h.b16 %v2036
        %v2814 = vunpack.c.l.b16 %v2037
        %v2815 = vunpack.c.h.b16 %v2037
        %v2816 = vunpack.c.l.b16 %v2038
        %v2817 = vunpack.c.h.b16 %v2038
        %v2818 = vunpack.c.l.b16 %v2039
        %v2819 = vunpack.c.h.b16 %v2039
        %v2820 = vunpack.c.l.b16 %v2040
        %v2821 = vunpack.c.h.b16 %v2040
        %v2822 = vunpack.c.l.b16 %v2041
        %v2823 = vunpack.c.h.b16 %v2041
        %v2824 = vunpack.c.l.b16 %v2042
        %v2825 = vunpack.c.h.b16 %v2042
        %v2826 = vunpack.c.l.b16 %v2043
        %v2827 = vunpack.c.h.b16 %v2043
        %v2828 = vunpack.c.l.b16 %v2044
        %v2829 = vunpack.c.h.b16 %v2044
        %v2830 = vunpack.c.l.b16 %v2045
        %v2831 = vunpack.c.h.b16 %v2045
        %v2832 = vunpack.c.l.b16 %v2046
        %v2833 = vunpack.c.h.b16 %v2046
        %v2834 = vunpack.c.l.b16 %v2047
        %v2835 = vunpack.c.h.b16 %v2047
        %v2836 = vunpack.c.l.b16 %v2048
        %v2837 = vunpack.c.h.b16 %v2048
        %v2838 = vunpack.c.l.b16 %v2049
        %v2839 = vunpack.c.h.b16 %v2049
        %v2840 = vunpack.c.l.b16 %v2050
        %v2841 = vunpack.c.h.b16 %v2050
        %v2842 = vunpack.c.l.b16 %v2051
        %v2843 = vunpack.c.h.b16 %v2051
        %v2844 = vunpack.c.l.b16 %v2052
        %v2845 = vunpack.c.h.b16 %v2052
        %v2846 = vunpack.c.l.b16 %v2053
        %v2847 = vunpack.c.h.b16 %v2053
        %v2848 = vunpack.c.l.b16 %v2054
        %v2849 = vunpack.c.h.b16 %v2054
        %v2850 = vunpack.c.l.b16 %v2055
        %v2851 = vunpack.c.h.b16 %v2055
        %v2852 = vunpack.c.l.b16 %v2056
        %v2853 = vunpack.c.h.b16 %v2056
        %v2854 = vunpack.c.l.b16 %v2057
        %v2855 = vunpack.c.h.b16 %v2057
        %v2856 = vunpack.c.l.b16 %v2058
        %v2857 = vunpack.c.h.b16 %v2058
        %v2858 = vunpack.c.l.b16 %v2059
        %v2859 = vunpack.c.h.b16 %v2059
        %v2860 = vunpack.c.l.b16 %v2060
        %v2861 = vunpack.c.h.b16 %v2060
        %v2862 = vunpack.c.l.b16 %v2061
        %v2863 = vunpack.c.h.b16 %v2061
        %v2864 = vunpack.c.l.b16 %v2062
        %v2865 = vunpack.c.h.b16 %v2062
        %v2866 = vunpack.c.l.b16 %v2063
        %v2867 = vunpack.c.h.b16 %v2063
        %v2868 = vunpack.c.l.b16 %v2064
        %v2869 = vunpack.c.h.b16 %v2064
        %v2870 = vunpack.c.l.b16 %v2065
        %v2871 = vunpack.c.h.b16 %v2065
        %v2872 = vunpack.c.l.b16 %v2066
        %v2873 = vunpack.c.h.b16 %v2066
        %v2874 = vunpack.c.l.b16 %v2067
        %v2875 = vunpack.c.h.b16 %v2067
        %v2876 = vunpack.c.l.b16 %v2068
        %v2877 = vunpack.c.h.b16 %v2068
        %v2878 = vunpack.c.l.b16 %v2069
        %v2879 = vunpack.c.h.b16 %v2069
        %v2880 = vunpack.c.l.b16 %v2070
        %v2881 = vunpack.c.h.b16 %v2070
        %v2882 = vunpack.c.l.b16 %v2071
        %v2883 = vunpack.c.h.b16 %v2071
        %v2884 = vunpack.c.l.b16 %v2072
        %v2885 = vunpack.c.h.b16 %v2072
        %v2886 = vunpack.c.l.b16 %v2073
        %v2887 = vunpack.c.h.b16 %v2073
        %v2888 = vunpack.c.l.b16 %v2074
        %v2889 = vunpack.c.h.b16 %v2074
        %v2890 = vunpack.c.l.b16 %v2075
        %v2891 = vunpack.c.h.b16 %v2075
        %v2892 = vunpack.c.l.b16 %v2076
        %v2893 = vunpack.c.h.b16 %v2076
        %v2894 = vunpack.c.l.b16 %v2077
        %v2895 = vunpack.c.h.b16 %v2077
        %v2896 = vunpack.c.l.b16 %v2078
        %v2897 = vunpack.c.h.b16 %v2078
        %v2898 = vunpack.c.l.b16 %v2079
        %v2899 = vunpack.c.h.b16 %v2079
        %v2900 = vunpack.c.l.b16 %v2080
        %v2901 = vunpack.c.h.b16 %v2080
        %v2902 = vunpack.c.l.b16 %v2081
        %v2903 = vunpack.c.h.b16 %v2081
        %v2904 = vunpack.c.l.b16 %v2082
        %v2905 = vunpack.c.h.b16 %v2082
        %v2906 = vunpack.c.l.b16 %v2083
        %v2907 = vunpack.c.h.b16 %v2083
        %v2908 = vunpack.c.l.b16 %v2084
        %v2909 = vunpack.c.h.b16 %v2084
        %v2910 = vunpack.c.l.b16 %v2085
        %v2911 = vunpack.c.h.b16 %v2085
        %v2912 = vunpack.c.l.b16 %v2086
        %v2913 = vunpack.c.h.b16 %v2086
        %v2914 = vunpack.c.l.b16 %v2087
        %v2915 = vunpack.c.h.b16 %v2087
        %v2916 = vunpack.c.l.b16 %v2088
        %v2917 = vunpack.c.h.b16 %v2088
        %v2918 = vunpack.c.l.b16 %v2089
        %v2919 = vunpack.c.h.b16 %v2089
        %v2920 = vunpack.c.l.b16 %v2090
        %v2921 = vunpack.c.h.b16 %v2090
        %v2922 = vunpack.c.l.b16 %v2091
        %v2923 = vunpack.c.h.b16 %v2091
        %v2924 = vunpack.c.l.b16 %v2092
        %v2925 = vunpack.c.h.b16 %v2092
        %v2926 = vunpack.c.l.b16 %v2093
        %v2927 = vunpack.c.h.b16 %v2093
        %v2928 = vunpack.c.l.b16 %v2094
        %v2929 = vunpack.c.h.b16 %v2094
        %v2930 = vpack.c.b16 %v2804, %v2802
        %v2931 = vpack.c.b16 %v2805, %v2803
        %v2932 = vpack.c.b16 %v2808, %v2806
        %v2933 = vpack.c.b16 %v2809, %v2807
        %v2934 = vpack.c.b16 %v2812, %v2810
        %v2935 = vpack.c.b16 %v2813, %v2811
        %v2936 = vpack.c.b16 %v2816, %v2814
        %v2937 = vpack.c.b16 %v2817, %v2815
        %v2938 = vpack.c.b16 %v2820, %v2818
        %v2939 = vpack.c.b16 %v2821, %v2819
        %v2940 = vpack.c.b16 %v2824, %v2822
        %v2941 = vpack.c.b16 %v2825, %v2823
        %v2942 = vpack.c.b16 %v2828, %v2826
        %v2943 = vpack.c.b16 %v2829, %v2827
        %v2944 = vpack.c.b16 %v2832, %v2830
        %v2945 = vpack.c.b16 %v2833, %v2831
        %v2946 = vpack.c.b16 %v2836, %v2834
        %v2947 = vpack.c.b16 %v2837, %v2835
        %v2948 = vpack.c.b16 %v2840, %v2838
        %v2949 = vpack.c.b16 %v2841, %v2839
        %v2950 = vpack.c.b16 %v2844, %v2842
        %v2951 = vpack.c.b16 %v2845, %v2843
        %v2952 = vpack.c.b16 %v2848, %v2846
        %v2953 = vpack.c.b16 %v2849, %v2847
        %v2954 = vpack.c.b16 %v2852, %v2850
        %v2955 = vpack.c.b16 %v2853, %v2851
        %v2956 = vpack.c.b16 %v2856, %v2854
        %v2957 = vpack.c.b16 %v2857, %v2855
        %v2958 = vpack.c.b16 %v2860, %v2858
        %v2959 = vpack.c.b16 %v2861, %v2859
        %v2960 = vpack.c.b16 %v2864, %v2862
        %v2961 = vpack.c.b16 %v2865, %v2863
        %v2962 = vpack.c.b16 %v2868, %v2866
        %v2963 = vpack.c.b16 %v2869, %v2867
        %v2964 = vpack.c.b16 %v2872, %v2870
        %v2965 = vpack.c.b16 %v2873, %v2871
        %v2966 = vpack.c.b16 %v2876, %v2874
        %v2967 = vpack.c.b16 %v2877, %v2875
        %v2968 = vpack.c.b16 %v2880, %v2878
        %v2969 = vpack.c.b16 %v2881, %v2879
        %v2970 = vpack.c.b16 %v2884, %v2882
        %v2971 = vpack.c.b16 %v2885, %v2883
        %v2972 = vpack.c.b16 %v2888, %v2886
        %v2973 = vpack.c.b16 %v2889, %v2887
        %v2974 = vpack.c.b16 %v2892, %v2890
        %v2975 = vpack.c.b16 %v2893, %v2891
        %v2976 = vpack.c.b16 %v2896, %v2894
        %v2977 = vpack.c.b16 %v2897, %v2895
        %v2978 = vpack.c.b16 %v2900, %v2898
        %v2979 = vpack.c.b16 %v2901, %v2899
        %v2980 = vpack.c.b16 %v2904, %v2902
        %v2981 = vpack.c.b16 %v2905, %v2903
        %v2982 = vpack.c.b16 %v2908, %v2906
        %v2983 = vpack.c.b16 %v2909, %v2907
        %v2984 = vpack.c.b16 %v2912, %v2910
        %v2985 = vpack.c.b16 %v2913, %v2911
        %v2986 = vpack.c.b16 %v2916, %v2914
        %v2987 = vpack.c.b16 %v2917, %v2915
        %v2988 = vpack.c.b16 %v2920, %v2918
        %v2989 = vpack.c.b16 %v2921, %v2919
        %v2990 = vpack.c.b16 %v2924, %v2922
        %v2991 = vpack.c.b16 %v2925, %v2923
        %v2992 = vpack.c.b16 %v2928, %v2926
        %v2993 = vpack.c.b16 %v2929, %v2927
        %3058 = vmatprep.subr.bf16.mxu0 %v2931
        %3059 = vmatpush1.bf16.msra.mxu0 %v2930
        %3060 = vmatprep.subr.bf16.mxu0 %v2933
        %3061 = vmatpush1.bf16.msra.mxu0 %v2932
        %3062 = vmatprep.subr.bf16.mxu0 %v2935
        %3063 = vmatpush1.bf16.msra.mxu0 %v2934
        %3064 = vmatprep.subr.bf16.mxu0 %v2937
        %3065 = vmatpush1.bf16.msra.mxu0 %v2936
        %3066 = vmatprep.subr.bf16.mxu0 %v2939
        %3067 = vmatpush1.bf16.msra.mxu0 %v2938
        %3068 = vmatprep.subr.bf16.mxu0 %v2941
        %3069 = vmatpush1.bf16.msra.mxu0 %v2940
        %3070 = vmatprep.subr.bf16.mxu0 %v2943
        %3071 = vmatpush1.bf16.msra.mxu0 %v2942
        %3072 = vmatprep.subr.bf16.mxu0 %v2945
        %3073 = vmatpush1.bf16.msra.mxu0 %v2944
        %3074 = vmatprep.subr.bf16.mxu0 %v2947
        %3075 = vmatpush1.bf16.msra.mxu0 %v2946
        %3076 = vmatprep.subr.bf16.mxu0 %v2949
        %3077 = vmatpush1.bf16.msra.mxu0 %v2948
        %3078 = vmatprep.subr.bf16.mxu0 %v2951
        %3079 = vmatpush1.bf16.msra.mxu0 %v2950
        %3080 = vmatprep.subr.bf16.mxu0 %v2953
        %3081 = vmatpush1.bf16.msra.mxu0 %v2952
        %3082 = vmatprep.subr.bf16.mxu0 %v2955
        %3083 = vmatpush1.bf16.msra.mxu0 %v2954
        %3084 = vmatprep.subr.bf16.mxu0 %v2957
        %3085 = vmatpush1.bf16.msra.mxu0 %v2956
        %3086 = vmatprep.subr.bf16.mxu0 %v2959
        %3087 = vmatpush1.bf16.msra.mxu0 %v2958
        %3088 = vmatprep.subr.bf16.mxu0 %v2961
        %3089 = vmatpush1.bf16.msra.mxu0 %v2960
        %3090 = vmatprep.mubr.bf16.mxu0 %v2000
        %3091 = vmatmul.mubr.bf16.gmra.mrb[0].mxu0 %v1999
        %v3092 = vpop.f32.mrb[0].mxu0
        %v3093 = vadd.f32 %v2660, %v3092
        %v3094 = vpop.f32.mrb[0].mxu0
        %v3095 = vadd.f32 %v2662, %v3094
        %v3096 = vpop.f32.mrb[0].mxu0
        %v3097 = vadd.f32 %v2664, %v3096
        %v3098 = vpop.f32.mrb[0].mxu0
        %v3099 = vadd.f32 %v2666, %v3098
        %3100 = vmatprep.mubr.bf16.mxu0 %v2004
        %3101 = vmatmul.mubr.bf16.gmra.mrb[0].mxu0 %v2003
        %v3102 = vpop.f32.mrb[0].mxu0
        %v3103 = vadd.f32 %v2670, %v3102
        %v3104 = vpop.f32.mrb[0].mxu0
        %v3105 = vadd.f32 %v2672, %v3104
        %v3106 = vpop.f32.mrb[0].mxu0
        %v3107 = vadd.f32 %v2674, %v3106
        %v3108 = vpop.f32.mrb[0].mxu0
        %v3109 = vadd.f32 %v2676, %v3108
        %3110 = vmatprep.mubr.bf16.mxu0 %v2008
        %3111 = vmatmul.mubr.bf16.gmra.mrb[0].mxu0 %v2007
        %v3112 = vpop.f32.mrb[0].mxu0
        %v3113 = vadd.f32 %v2680, %v3112
        %v3114 = vpop.f32.mrb[0].mxu0
        %v3115 = vadd.f32 %v2682, %v3114
        %v3116 = vpop.f32.mrb[0].mxu0
        %v3117 = vadd.f32 %v2684, %v3116
        %v3118 = vpop.f32.mrb[0].mxu0
        %v3119 = vadd.f32 %v2686, %v3118
        %3120 = vmatprep.mubr.bf16.mxu0 %v2012
        %3121 = vmatmul.mubr.bf16.gmra.mrb[0].mxu0 %v2011
        %v3122 = vpop.f32.mrb[0].mxu0
        %v3123 = vadd.f32 %v2690, %v3122
        %v3124 = vpop.f32.mrb[0].mxu0
        %v3125 = vadd.f32 %v2692, %v3124
        %v3126 = vpop.f32.mrb[0].mxu0
        %v3127 = vadd.f32 %v2694, %v3126
        %v3128 = vpop.f32.mrb[0].mxu0
        %v3129 = vadd.f32 %v2696, %v3128
        %3130 = vmatprep.mubr.bf16.mxu0 %v2016
        %3131 = vmatmul.mubr.bf16.gmra.mrb[0].mxu0 %v2015
        %v3132 = vpop.f32.mrb[0].mxu0
        %v3133 = vadd.f32 %v2700, %v3132
        %v3134 = vpop.f32.mrb[0].mxu0
        %v3135 = vadd.f32 %v2702, %v3134
        %v3136 = vpop.f32.mrb[0].mxu0
        %v3137 = vadd.f32 %v2704, %v3136
        %v3138 = vpop.f32.mrb[0].mxu0
        %v3139 = vadd.f32 %v2706, %v3138
        %3140 = vmatprep.mubr.bf16.mxu0 %v2020
        %3141 = vmatmul.mubr.bf16.gmra.mrb[0].mxu0 %v2019
        %v3142 = vpop.f32.mrb[0].mxu0
        %v3143 = vadd.f32 %v2710, %v3142
        %v3144 = vpop.f32.mrb[0].mxu0
        %v3145 = vadd.f32 %v2712, %v3144
        %v3146 = vpop.f32.mrb[0].mxu0
        %v3147 = vadd.f32 %v2714, %v3146
        %v3148 = vpop.f32.mrb[0].mxu0
        %v3149 = vadd.f32 %v2716, %v3148
        %3150 = vmatprep.mubr.bf16.mxu0 %v2024
        %3151 = vmatmul.mubr.bf16.gmra.mrb[0].mxu0 %v2023
        %v3152 = vpop.f32.mrb[0].mxu0
        %v3153 = vadd.f32 %v2720, %v3152
        %v3154 = vpop.f32.mrb[0].mxu0
        %v3155 = vadd.f32 %v2722, %v3154
        %v3156 = vpop.f32.mrb[0].mxu0
        %v3157 = vadd.f32 %v2724, %v3156
        %v3158 = vpop.f32.mrb[0].mxu0
        %v3159 = vadd.f32 %v2726, %v3158
        %3160 = vmatprep.mubr.bf16.mxu0 %v2028
        %3161 = vmatmul.mubr.bf16.gmra.mrb[0].mxu0 %v2027
        %v3162 = vpop.f32.mrb[0].mxu0
        %v3163 = vadd.f32 %v2730, %v3162
        %v3164 = vpop.f32.mrb[0].mxu0
        %v3165 = vadd.f32 %v2732, %v3164
        %v3166 = vpop.f32.mrb[0].mxu0
        %v3167 = vadd.f32 %v2734, %v3166
        %v3168 = vpop.f32.mrb[0].mxu0
        %v3169 = vadd.f32 %v2736, %v3168
        %3170 = vdwg.mxu0
        %3171 = vmatprep.subr.bf16.mxu0 %v2963
        %3172 = vmatpush1.bf16.msra.mxu0 %v2962
        %3173 = vmatprep.subr.bf16.mxu0 %v2965
        %3174 = vmatpush1.bf16.msra.mxu0 %v2964
        %3175 = vmatprep.subr.bf16.mxu0 %v2967
        %3176 = vmatpush1.bf16.msra.mxu0 %v2966
        %3177 = vmatprep.subr.bf16.mxu0 %v2969
        %3178 = vmatpush1.bf16.msra.mxu0 %v2968
        %3179 = vmatprep.subr.bf16.mxu0 %v2971
        %3180 = vmatpush1.bf16.msra.mxu0 %v2970
        %3181 = vmatprep.subr.bf16.mxu0 %v2973
        %3182 = vmatpush1.bf16.msra.mxu0 %v2972
        %3183 = vmatprep.subr.bf16.mxu0 %v2975
        %3184 = vmatpush1.bf16.msra.mxu0 %v2974
        %3185 = vmatprep.subr.bf16.mxu0 %v2977
        %3186 = vmatpush1.bf16.msra.mxu0 %v2976
        %3187 = vmatprep.subr.bf16.mxu0 %v2979
        %3188 = vmatpush1.bf16.msra.mxu0 %v2978
        %3189 = vmatprep.subr.bf16.mxu0 %v2981
        %3190 = vmatpush1.bf16.msra.mxu0 %v2980
        %3191 = vmatprep.subr.bf16.mxu0 %v2983
        %3192 = vmatpush1.bf16.msra.mxu0 %v2982
        %3193 = vmatprep.subr.bf16.mxu0 %v2985
        %3194 = vmatpush1.bf16.msra.mxu0 %v2984
        %3195 = vmatprep.subr.bf16.mxu0 %v2987
        %3196 = vmatpush1.bf16.msra.mxu0 %v2986
        %3197 = vmatprep.subr.bf16.mxu0 %v2989
        %3198 = vmatpush1.bf16.msra.mxu0 %v2988
        %3199 = vmatprep.subr.bf16.mxu0 %v2991
        %3200 = vmatpush1.bf16.msra.mxu0 %v2990
        %3201 = vmatprep.subr.bf16.mxu0 %v2993
        %3202 = vmatpush1.bf16.msra.mxu0 %v2992
        %3203 = vmatprep.mubr.bf16.mxu0 %v2002
        %3204 = vmatmul.mubr.bf16.gmra.mrb[0].mxu0 %v2001
        %v3205 = vpop.f32.mrb[0].mxu0
        %v3206 = vadd.f32 %v3093, %v3205
        %v3207 = vpop.f32.mrb[0].mxu0
        %v3208 = vadd.f32 %v3095, %v3207
        %v3209 = vpop.f32.mrb[0].mxu0
        %v3210 = vadd.f32 %v3097, %v3209
        %v3211 = vpop.f32.mrb[0].mxu0
        %v3212 = vadd.f32 %v3099, %v3211
        %3213 = vmatprep.mubr.bf16.mxu0 %v2006
        %3214 = vmatmul.mubr.bf16.gmra.mrb[0].mxu0 %v2005
        %v3215 = vpop.f32.mrb[0].mxu0
        %v3216 = vadd.f32 %v3103, %v3215
        %v3217 = vpop.f32.mrb[0].mxu0
        %v3218 = vadd.f32 %v3105, %v3217
        %v3219 = vpop.f32.mrb[0].mxu0
        %v3220 = vadd.f32 %v3107, %v3219
        %v3221 = vpop.f32.mrb[0].mxu0
        %v3222 = vadd.f32 %v3109, %v3221
        %3223 = vmatprep.mubr.bf16.mxu0 %v2010
        %3224 = vmatmul.mubr.bf16.gmra.mrb[0].mxu0 %v2009
        %v3225 = vpop.f32.mrb[0].mxu0
        %v3226 = vadd.f32 %v3113, %v3225
        %v3227 = vpop.f32.mrb[0].mxu0
        %v3228 = vadd.f32 %v3115, %v3227
        %v3229 = vpop.f32.mrb[0].mxu0
        %v3230 = vadd.f32 %v3117, %v3229
        %v3231 = vpop.f32.mrb[0].mxu0
        %v3232 = vadd.f32 %v3119, %v3231
        %3233 = vmatprep.mubr.bf16.mxu0 %v2014
        %3234 = vmatmul.mubr.bf16.gmra.mrb[0].mxu0 %v2013
        %v3235 = vpop.f32.mrb[0].mxu0
        %v3236 = vadd.f32 %v3123, %v3235
        %v3237 = vpop.f32.mrb[0].mxu0
        %v3238 = vadd.f32 %v3125, %v3237
        %v3239 = vpop.f32.mrb[0].mxu0
        %v3240 = vadd.f32 %v3127, %v3239
        %v3241 = vpop.f32.mrb[0].mxu0
        %v3242 = vadd.f32 %v3129, %v3241
        %3243 = vmatprep.mubr.bf16.mxu0 %v2018
        %3244 = vmatmul.mubr.bf16.gmra.mrb[0].mxu0 %v2017
        %v3245 = vpop.f32.mrb[0].mxu0
        %v3246 = vadd.f32 %v3133, %v3245
        %v3247 = vpop.f32.mrb[0].mxu0
        %v3248 = vadd.f32 %v3135, %v3247
        %v3249 = vpop.f32.mrb[0].mxu0
        %v3250 = vadd.f32 %v3137, %v3249
        %v3251 = vpop.f32.mrb[0].mxu0
        %v3252 = vadd.f32 %v3139, %v3251
        %3253 = vmatprep.mubr.bf16.mxu0 %v2022
        %3254 = vmatmul.mubr.bf16.gmra.mrb[0].mxu0 %v2021
        %v3255 = vpop.f32.mrb[0].mxu0
        %v3256 = vadd.f32 %v3143, %v3255
        %v3257 = vpop.f32.mrb[0].mxu0
        %v3258 = vadd.f32 %v3145, %v3257
        %v3259 = vpop.f32.mrb[0].mxu0
        %v3260 = vadd.f32 %v3147, %v3259
        %v3261 = vpop.f32.mrb[0].mxu0
        %v3262 = vadd.f32 %v3149, %v3261
        %3263 = vmatprep.mubr.bf16.mxu0 %v2026
        %3264 = vmatmul.mubr.bf16.gmra.mrb[0].mxu0 %v2025
        %v3265 = vpop.f32.mrb[0].mxu0
        %v3266 = vadd.f32 %v3153, %v3265
        %v3267 = vpop.f32.mrb[0].mxu0
        %v3268 = vadd.f32 %v3155, %v3267
        %v3269 = vpop.f32.mrb[0].mxu0
        %v3270 = vadd.f32 %v3157, %v3269
        %v3271 = vpop.f32.mrb[0].mxu0
        %v3272 = vadd.f32 %v3159, %v3271
        %3273 = vmatprep.mubr.bf16.mxu0 %v2030
        %3274 = vmatmul.mubr.bf16.gmra.mrb[0].mxu0 %v2029
        %v3275 = vpop.f32.mrb[0].mxu0
        %v3276 = vadd.f32 %v3163, %v3275
        %v3277 = vpop.f32.mrb[0].mxu0
        %v3278 = vadd.f32 %v3165, %v3277
        %v3279 = vpop.f32.mrb[0].mxu0
        %v3280 = vadd.f32 %v3167, %v3279
        %v3281 = vpop.f32.mrb[0].mxu0
        %v3282 = vadd.f32 %v3169, %v3281
        %3283 = vdwg.mxu0
        %v3284 = vld [vmem:[%s1658] sm:$0xff]
        %v3285 = vld [vmem:[%s1658 + $0x8] sm:$0xff]
        %v3286 = vld [vmem:[%s1658 + $0x10] sm:$0xff]
        %v3287 = vld [vmem:[%s1658 + $0x18] sm:$0xff]
        %v3288 = vld [vmem:[%s1658 + $0x20] sm:$0xff]
        %v3289 = vld [vmem:[%s1658 + $0x28] sm:$0xff]
        %v3290 = vld [vmem:[%s1658 + $0x30] sm:$0xff]
        %v3291 = vld [vmem:[%s1658 + $0x38] sm:$0xff]
        %v3292 = vld [vmem:[%s1658 + $0x40] sm:$0xff]
        %v3293 = vld [vmem:[%s1658 + $0x48] sm:$0xff]
        %v3294 = vld [vmem:[%s1658 + $0x50] sm:$0xff]
        %v3295 = vld [vmem:[%s1658 + $0x58] sm:$0xff]
        %v3296 = vld [vmem:[%s1658 + $0x60] sm:$0xff]
        %v3297 = vld [vmem:[%s1658 + $0x68] sm:$0xff]
        %v3298 = vld [vmem:[%s1658 + $0x70] sm:$0xff]
        %v3299 = vld [vmem:[%s1658 + $0x78] sm:$0xff]
        %v3300 = vld [vmem:[%s1658 + $0x80] sm:$0xff]
        %v3301 = vld [vmem:[%s1658 + $0x88] sm:$0xff]
        %v3302 = vld [vmem:[%s1658 + $0x90] sm:$0xff]
        %v3303 = vld [vmem:[%s1658 + $0x98] sm:$0xff]
        %v3304 = vld [vmem:[%s1658 + $0xa0] sm:$0xff]
        %v3305 = vld [vmem:[%s1658 + $0xa8] sm:$0xff]
        %v3306 = vld [vmem:[%s1658 + $0xb0] sm:$0xff]
        %v3307 = vld [vmem:[%s1658 + $0xb8] sm:$0xff]
        %v3308 = vld [vmem:[%s1658 + $0xc0] sm:$0xff]
        %v3309 = vld [vmem:[%s1658 + $0xc8] sm:$0xff]
        %v3310 = vld [vmem:[%s1658 + $0xd0] sm:$0xff]
        %v3311 = vld [vmem:[%s1658 + $0xd8] sm:$0xff]
        %v3312 = vld [vmem:[%s1658 + $0xe0] sm:$0xff]
        %v3313 = vld [vmem:[%s1658 + $0xe8] sm:$0xff]
        %v3314 = vld [vmem:[%s1658 + $0xf0] sm:$0xff]
        %v3315 = vld [vmem:[%s1658 + $0xf8] sm:$0xff]
        %s3316 = scalar_lea.vmem %s6, 1024
        %v3317 = vld [vmem:[%s3316] sm:$0xff]
        %v3318 = vld [vmem:[%s3316 + $0x8] sm:$0xff]
        %v3319 = vld [vmem:[%s3316 + $0x10] sm:$0xff]
        %v3320 = vld [vmem:[%s3316 + $0x18] sm:$0xff]
        %v3321 = vld [vmem:[%s3316 + $0x20] sm:$0xff]
        %v3322 = vld [vmem:[%s3316 + $0x28] sm:$0xff]
        %v3323 = vld [vmem:[%s3316 + $0x30] sm:$0xff]
        %v3324 = vld [vmem:[%s3316 + $0x38] sm:$0xff]
        %v3325 = vld [vmem:[%s3316 + $0x40] sm:$0xff]
        %v3326 = vld [vmem:[%s3316 + $0x48] sm:$0xff]
        %v3327 = vld [vmem:[%s3316 + $0x50] sm:$0xff]
        %v3328 = vld [vmem:[%s3316 + $0x58] sm:$0xff]
        %v3329 = vld [vmem:[%s3316 + $0x60] sm:$0xff]
        %v3330 = vld [vmem:[%s3316 + $0x68] sm:$0xff]
        %v3331 = vld [vmem:[%s3316 + $0x70] sm:$0xff]
        %v3332 = vld [vmem:[%s3316 + $0x78] sm:$0xff]
        %v3333 = vld [vmem:[%s3316 + $0x80] sm:$0xff]
        %v3334 = vld [vmem:[%s3316 + $0x88] sm:$0xff]
        %v3335 = vld [vmem:[%s3316 + $0x90] sm:$0xff]
        %v3336 = vld [vmem:[%s3316 + $0x98] sm:$0xff]
        %v3337 = vld [vmem:[%s3316 + $0xa0] sm:$0xff]
        %v3338 = vld [vmem:[%s3316 + $0xa8] sm:$0xff]
        %v3339 = vld [vmem:[%s3316 + $0xb0] sm:$0xff]
        %v3340 = vld [vmem:[%s3316 + $0xb8] sm:$0xff]
        %v3341 = vld [vmem:[%s3316 + $0xc0] sm:$0xff]
        %v3342 = vld [vmem:[%s3316 + $0xc8] sm:$0xff]
        %v3343 = vld [vmem:[%s3316 + $0xd0] sm:$0xff]
        %v3344 = vld [vmem:[%s3316 + $0xd8] sm:$0xff]
        %v3345 = vld [vmem:[%s3316 + $0xe0] sm:$0xff]
        %v3346 = vld [vmem:[%s3316 + $0xe8] sm:$0xff]
        %v3347 = vld [vmem:[%s3316 + $0xf0] sm:$0xff]
        %v3348 = vld [vmem:[%s3316 + $0xf8] sm:$0xff]
        %v3349 = vld [vmem:[%s3316 + $0x100] sm:$0xff]
        %v3350 = vld [vmem:[%s3316 + $0x108] sm:$0xff]
        %v3351 = vld [vmem:[%s3316 + $0x110] sm:$0xff]
        %v3352 = vld [vmem:[%s3316 + $0x118] sm:$0xff]
        %v3353 = vld [vmem:[%s3316 + $0x120] sm:$0xff]
        %v3354 = vld [vmem:[%s3316 + $0x128] sm:$0xff]
        %v3355 = vld [vmem:[%s3316 + $0x130] sm:$0xff]
        %v3356 = vld [vmem:[%s3316 + $0x138] sm:$0xff]
        %v3357 = vld [vmem:[%s3316 + $0x140] sm:$0xff]
        %v3358 = vld [vmem:[%s3316 + $0x148] sm:$0xff]
        %v3359 = vld [vmem:[%s3316 + $0x150] sm:$0xff]
        %v3360 = vld [vmem:[%s3316 + $0x158] sm:$0xff]
        %v3361 = vld [vmem:[%s3316 + $0x160] sm:$0xff]
        %v3362 = vld [vmem:[%s3316 + $0x168] sm:$0xff]
        %v3363 = vld [vmem:[%s3316 + $0x170] sm:$0xff]
        %v3364 = vld [vmem:[%s3316 + $0x178] sm:$0xff]
        %v3365 = vld [vmem:[%s3316 + $0x180] sm:$0xff]
        %v3366 = vld [vmem:[%s3316 + $0x188] sm:$0xff]
        %v3367 = vld [vmem:[%s3316 + $0x190] sm:$0xff]
        %v3368 = vld [vmem:[%s3316 + $0x198] sm:$0xff]
        %v3369 = vld [vmem:[%s3316 + $0x1a0] sm:$0xff]
        %v3370 = vld [vmem:[%s3316 + $0x1a8] sm:$0xff]
        %v3371 = vld [vmem:[%s3316 + $0x1b0] sm:$0xff]
        %v3372 = vld [vmem:[%s3316 + $0x1b8] sm:$0xff]
        %v3373 = vld [vmem:[%s3316 + $0x1c0] sm:$0xff]
        %v3374 = vld [vmem:[%s3316 + $0x1c8] sm:$0xff]
        %v3375 = vld [vmem:[%s3316 + $0x1d0] sm:$0xff]
        %v3376 = vld [vmem:[%s3316 + $0x1d8] sm:$0xff]
        %v3377 = vld [vmem:[%s3316 + $0x1e0] sm:$0xff]
        %v3378 = vld [vmem:[%s3316 + $0x1e8] sm:$0xff]
        %v3379 = vld [vmem:[%s3316 + $0x1f0] sm:$0xff]
        %v3380 = vld [vmem:[%s3316 + $0x1f8] sm:$0xff]
        %v3445 = vunpack.c.l.b16 %v3317
        %v3446 = vunpack.c.h.b16 %v3317
        %v3447 = vunpack.c.l.b16 %v3318
        %v3448 = vunpack.c.h.b16 %v3318
        %v3449 = vunpack.c.l.b16 %v3319
        %v3450 = vunpack.c.h.b16 %v3319
        %v3451 = vunpack.c.l.b16 %v3320
        %v3452 = vunpack.c.h.b16 %v3320
        %v3453 = vunpack.c.l.b16 %v3321
        %v3454 = vunpack.c.h.b16 %v3321
        %v3455 = vunpack.c.l.b16 %v3322
        %v3456 = vunpack.c.h.b16 %v3322
        %v3457 = vunpack.c.l.b16 %v3323
        %v3458 = vunpack.c.h.b16 %v3323
        %v3459 = vunpack.c.l.b16 %v3324
        %v3460 = vunpack.c.h.b16 %v3324
        %v3461 = vunpack.c.l.b16 %v3325
        %v3462 = vunpack.c.h.b16 %v3325
        %v3463 = vunpack.c.l.b16 %v3326
        %v3464 = vunpack.c.h.b16 %v3326
        %v3465 = vunpack.c.l.b16 %v3327
        %v3466 = vunpack.c.h.b16 %v3327
        %v3467 = vunpack.c.l.b16 %v3328
        %v3468 = vunpack.c.h.b16 %v3328
        %v3469 = vunpack.c.l.b16 %v3329
        %v3470 = vunpack.c.h.b16 %v3329
        %v3471 = vunpack.c.l.b16 %v3330
        %v3472 = vunpack.c.h.b16 %v3330
        %v3473 = vunpack.c.l.b16 %v3331
        %v3474 = vunpack.c.h.b16 %v3331
        %v3475 = vunpack.c.l.b16 %v3332
        %v3476 = vunpack.c.h.b16 %v3332
        %v3477 = vunpack.c.l.b16 %v3333
        %v3478 = vunpack.c.h.b16 %v3333
        %v3479 = vunpack.c.l.b16 %v3334
        %v3480 = vunpack.c.h.b16 %v3334
        %v3481 = vunpack.c.l.b16 %v3335
        %v3482 = vunpack.c.h.b16 %v3335
        %v3483 = vunpack.c.l.b16 %v3336
        %v3484 = vunpack.c.h.b16 %v3336
        %v3485 = vunpack.c.l.b16 %v3337
        %v3486 = vunpack.c.h.b16 %v3337
        %v3487 = vunpack.c.l.b16 %v3338
        %v3488 = vunpack.c.h.b16 %v3338
        %v3489 = vunpack.c.l.b16 %v3339
        %v3490 = vunpack.c.h.b16 %v3339
        %v3491 = vunpack.c.l.b16 %v3340
        %v3492 = vunpack.c.h.b16 %v3340
        %v3493 = vunpack.c.l.b16 %v3341
        %v3494 = vunpack.c.h.b16 %v3341
        %v3495 = vunpack.c.l.b16 %v3342
        %v3496 = vunpack.c.h.b16 %v3342
        %v3497 = vunpack.c.l.b16 %v3343
        %v3498 = vunpack.c.h.b16 %v3343
        %v3499 = vunpack.c.l.b16 %v3344
        %v3500 = vunpack.c.h.b16 %v3344
        %v3501 = vunpack.c.l.b16 %v3345
        %v3502 = vunpack.c.h.b16 %v3345
        %v3503 = vunpack.c.l.b16 %v3346
        %v3504 = vunpack.c.h.b16 %v3346
        %v3505 = vunpack.c.l.b16 %v3347
        %v3506 = vunpack.c.h.b16 %v3347
        %v3507 = vunpack.c.l.b16 %v3348
        %v3508 = vunpack.c.h.b16 %v3348
        %v3509 = vunpack.c.l.b16 %v3349
        %v3510 = vunpack.c.h.b16 %v3349
        %v3511 = vunpack.c.l.b16 %v3350
        %v3512 = vunpack.c.h.b16 %v3350
        %v3513 = vunpack.c.l.b16 %v3351
        %v3514 = vunpack.c.h.b16 %v3351
        %v3515 = vunpack.c.l.b16 %v3352
        %v3516 = vunpack.c.h.b16 %v3352
        %v3517 = vunpack.c.l.b16 %v3353
        %v3518 = vunpack.c.h.b16 %v3353
        %v3519 = vunpack.c.l.b16 %v3354
        %v3520 = vunpack.c.h.b16 %v3354
        %v3521 = vunpack.c.l.b16 %v3355
        %v3522 = vunpack.c.h.b16 %v3355
        %v3523 = vunpack.c.l.b16 %v3356
        %v3524 = vunpack.c.h.b16 %v3356
        %v3525 = vunpack.c.l.b16 %v3357
        %v3526 = vunpack.c.h.b16 %v3357
        %v3527 = vunpack.c.l.b16 %v3358
        %v3528 = vunpack.c.h.b16 %v3358
        %v3529 = vunpack.c.l.b16 %v3359
        %v3530 = vunpack.c.h.b16 %v3359
        %v3531 = vunpack.c.l.b16 %v3360
        %v3532 = vunpack.c.h.b16 %v3360
        %v3533 = vunpack.c.l.b16 %v3361
        %v3534 = vunpack.c.h.b16 %v3361
        %v3535 = vunpack.c.l.b16 %v3362
        %v3536 = vunpack.c.h.b16 %v3362
        %v3537 = vunpack.c.l.b16 %v3363
        %v3538 = vunpack.c.h.b16 %v3363
        %v3539 = vunpack.c.l.b16 %v3364
        %v3540 = vunpack.c.h.b16 %v3364
        %v3541 = vunpack.c.l.b16 %v3365
        %v3542 = vunpack.c.h.b16 %v3365
        %v3543 = vunpack.c.l.b16 %v3366
        %v3544 = vunpack.c.h.b16 %v3366
        %v3545 = vunpack.c.l.b16 %v3367
        %v3546 = vunpack.c.h.b16 %v3367
        %v3547 = vunpack.c.l.b16 %v3368
        %v3548 = vunpack.c.h.b16 %v3368
        %v3549 = vunpack.c.l.b16 %v3369
        %v3550 = vunpack.c.h.b16 %v3369
        %v3551 = vunpack.c.l.b16 %v3370
        %v3552 = vunpack.c.h.b16 %v3370
        %v3553 = vunpack.c.l.b16 %v3371
        %v3554 = vunpack.c.h.b16 %v3371
        %v3555 = vunpack.c.l.b16 %v3372
        %v3556 = vunpack.c.h.b16 %v3372
        %v3557 = vunpack.c.l.b16 %v3373
        %v3558 = vunpack.c.h.b16 %v3373
        %v3559 = vunpack.c.l.b16 %v3374
        %v3560 = vunpack.c.h.b16 %v3374
        %v3561 = vunpack.c.l.b16 %v3375
        %v3562 = vunpack.c.h.b16 %v3375
        %v3563 = vunpack.c.l.b16 %v3376
        %v3564 = vunpack.c.h.b16 %v3376
        %v3565 = vunpack.c.l.b16 %v3377
        %v3566 = vunpack.c.h.b16 %v3377
        %v3567 = vunpack.c.l.b16 %v3378
        %v3568 = vunpack.c.h.b16 %v3378
        %v3569 = vunpack.c.l.b16 %v3379
        %v3570 = vunpack.c.h.b16 %v3379
        %v3571 = vunpack.c.l.b16 %v3380
        %v3572 = vunpack.c.h.b16 %v3380
        %v3573 = vpack.c.b16 %v3447, %v3445
        %v3574 = vpack.c.b16 %v3448, %v3446
        %v3575 = vpack.c.b16 %v3451, %v3449
        %v3576 = vpack.c.b16 %v3452, %v3450
        %v3577 = vpack.c.b16 %v3455, %v3453
        %v3578 = vpack.c.b16 %v3456, %v3454
        %v3579 = vpack.c.b16 %v3459, %v3457
        %v3580 = vpack.c.b16 %v3460, %v3458
        %v3581 = vpack.c.b16 %v3463, %v3461
        %v3582 = vpack.c.b16 %v3464, %v3462
        %v3583 = vpack.c.b16 %v3467, %v3465
        %v3584 = vpack.c.b16 %v3468, %v3466
        %v3585 = vpack.c.b16 %v3471, %v3469
        %v3586 = vpack.c.b16 %v3472, %v3470
        %v3587 = vpack.c.b16 %v3475, %v3473
        %v3588 = vpack.c.b16 %v3476, %v3474
        %v3589 = vpack.c.b16 %v3479, %v3477
        %v3590 = vpack.c.b16 %v3480, %v3478
        %v3591 = vpack.c.b16 %v3483, %v3481
        %v3592 = vpack.c.b16 %v3484, %v3482
        %v3593 = vpack.c.b16 %v3487, %v3485
        %v3594 = vpack.c.b16 %v3488, %v3486
        %v3595 = vpack.c.b16 %v3491, %v3489
        %v3596 = vpack.c.b16 %v3492, %v3490
        %v3597 = vpack.c.b16 %v3495, %v3493
        %v3598 = vpack.c.b16 %v3496, %v3494
        %v3599 = vpack.c.b16 %v3499, %v3497
        %v3600 = vpack.c.b16 %v3500, %v3498
        %v3601 = vpack.c.b16 %v3503, %v3501
        %v3602 = vpack.c.b16 %v3504, %v3502
        %v3603 = vpack.c.b16 %v3507, %v3505
        %v3604 = vpack.c.b16 %v3508, %v3506
        %v3605 = vpack.c.b16 %v3511, %v3509
        %v3606 = vpack.c.b16 %v3512, %v3510
        %v3607 = vpack.c.b16 %v3515, %v3513
        %v3608 = vpack.c.b16 %v3516, %v3514
        %v3609 = vpack.c.b16 %v3519, %v3517
        %v3610 = vpack.c.b16 %v3520, %v3518
        %v3611 = vpack.c.b16 %v3523, %v3521
        %v3612 = vpack.c.b16 %v3524, %v3522
        %v3613 = vpack.c.b16 %v3527, %v3525
        %v3614 = vpack.c.b16 %v3528, %v3526
        %v3615 = vpack.c.b16 %v3531, %v3529
        %v3616 = vpack.c.b16 %v3532, %v3530
        %v3617 = vpack.c.b16 %v3535, %v3533
        %v3618 = vpack.c.b16 %v3536, %v3534
        %v3619 = vpack.c.b16 %v3539, %v3537
        %v3620 = vpack.c.b16 %v3540, %v3538
        %v3621 = vpack.c.b16 %v3543, %v3541
        %v3622 = vpack.c.b16 %v3544, %v3542
        %v3623 = vpack.c.b16 %v3547, %v3545
        %v3624 = vpack.c.b16 %v3548, %v3546
        %v3625 = vpack.c.b16 %v3551, %v3549
        %v3626 = vpack.c.b16 %v3552, %v3550
        %v3627 = vpack.c.b16 %v3555, %v3553
        %v3628 = vpack.c.b16 %v3556, %v3554
        %v3629 = vpack.c.b16 %v3559, %v3557
        %v3630 = vpack.c.b16 %v3560, %v3558
        %v3631 = vpack.c.b16 %v3563, %v3561
        %v3632 = vpack.c.b16 %v3564, %v3562
        %v3633 = vpack.c.b16 %v3567, %v3565
        %v3634 = vpack.c.b16 %v3568, %v3566
        %v3635 = vpack.c.b16 %v3571, %v3569
        %v3636 = vpack.c.b16 %v3572, %v3570
        %3701 = vmatprep.subr.bf16.mxu0 %v3574
        %3702 = vmatpush1.bf16.msra.mxu0 %v3573
        %3703 = vmatprep.subr.bf16.mxu0 %v3576
        %3704 = vmatpush1.bf16.msra.mxu0 %v3575
        %3705 = vmatprep.subr.bf16.mxu0 %v3578
        %3706 = vmatpush1.bf16.msra.mxu0 %v3577
        %3707 = vmatprep.subr.bf16.mxu0 %v3580
        %3708 = vmatpush1.bf16.msra.mxu0 %v3579
        %3709 = vmatprep.subr.bf16.mxu0 %v3582
        %3710 = vmatpush1.bf16.msra.mxu0 %v3581
        %3711 = vmatprep.subr.bf16.mxu0 %v3584
        %3712 = vmatpush1.bf16.msra.mxu0 %v3583
        %3713 = vmatprep.subr.bf16.mxu0 %v3586
        %3714 = vmatpush1.bf16.msra.mxu0 %v3585
        %3715 = vmatprep.subr.bf16.mxu0 %v3588
        %3716 = vmatpush1.bf16.msra.mxu0 %v3587
        %3717 = vmatprep.subr.bf16.mxu0 %v3590
        %3718 = vmatpush1.bf16.msra.mxu0 %v3589
        %3719 = vmatprep.subr.bf16.mxu0 %v3592
        %3720 = vmatpush1.bf16.msra.mxu0 %v3591
        %3721 = vmatprep.subr.bf16.mxu0 %v3594
        %3722 = vmatpush1.bf16.msra.mxu0 %v3593
        %3723 = vmatprep.subr.bf16.mxu0 %v3596
        %3724 = vmatpush1.bf16.msra.mxu0 %v3595
        %3725 = vmatprep.subr.bf16.mxu0 %v3598
        %3726 = vmatpush1.bf16.msra.mxu0 %v3597
        %3727 = vmatprep.subr.bf16.mxu0 %v3600
        %3728 = vmatpush1.bf16.msra.mxu0 %v3599
        %3729 = vmatprep.subr.bf16.mxu0 %v3602
        %3730 = vmatpush1.bf16.msra.mxu0 %v3601
        %3731 = vmatprep.subr.bf16.mxu0 %v3604
        %3732 = vmatpush1.bf16.msra.mxu0 %v3603
        %3733 = vmatprep.mubr.bf16.mxu0 %v3285
        %3734 = vmatmul.mubr.bf16.gmra.mrb[0].mxu0 %v3284
        %v3735 = vpop.f32.mrb[0].mxu0
        %v3736 = vadd.f32 0.0, %v3735
        %v3737 = vpop.f32.mrb[0].mxu0
        %v3738 = vadd.f32 0.0, %v3737
        %v3739 = vpop.f32.mrb[0].mxu0
        %v3740 = vadd.f32 0.0, %v3739
        %v3741 = vpop.f32.mrb[0].mxu0
        %v3742 = vadd.f32 0.0, %v3741
        %3743 = vmatprep.mubr.bf16.mxu0 %v3289
        %3744 = vmatmul.mubr.bf16.gmra.mrb[0].mxu0 %v3288
        %v3745 = vpop.f32.mrb[0].mxu0
        %v3746 = vadd.f32 0.0, %v3745
        %v3747 = vpop.f32.mrb[0].mxu0
        %v3748 = vadd.f32 0.0, %v3747
        %v3749 = vpop.f32.mrb[0].mxu0
        %v3750 = vadd.f32 0.0, %v3749
        %v3751 = vpop.f32.mrb[0].mxu0
        %v3752 = vadd.f32 0.0, %v3751
        %3753 = vmatprep.mubr.bf16.mxu0 %v3293
        %3754 = vmatmul.mubr.bf16.gmra.mrb[0].mxu0 %v3292
        %v3755 = vpop.f32.mrb[0].mxu0
        %v3756 = vadd.f32 0.0, %v3755
        %v3757 = vpop.f32.mrb[0].mxu0
        %v3758 = vadd.f32 0.0, %v3757
        %v3759 = vpop.f32.mrb[0].mxu0
        %v3760 = vadd.f32 0.0, %v3759
        %v3761 = vpop.f32.mrb[0].mxu0
        %v3762 = vadd.f32 0.0, %v3761
        %3763 = vmatprep.mubr.bf16.mxu0 %v3297
        %3764 = vmatmul.mubr.bf16.gmra.mrb[0].mxu0 %v3296
        %v3765 = vpop.f32.mrb[0].mxu0
        %v3766 = vadd.f32 0.0, %v3765
        %v3767 = vpop.f32.mrb[0].mxu0
        %v3768 = vadd.f32 0.0, %v3767
        %v3769 = vpop.f32.mrb[0].mxu0
        %v3770 = vadd.f32 0.0, %v3769
        %v3771 = vpop.f32.mrb[0].mxu0
        %v3772 = vadd.f32 0.0, %v3771
        %3773 = vmatprep.mubr.bf16.mxu0 %v3301
        %3774 = vmatmul.mubr.bf16.gmra.mrb[0].mxu0 %v3300
        %v3775 = vpop.f32.mrb[0].mxu0
        %v3776 = vadd.f32 0.0, %v3775
        %v3777 = vpop.f32.mrb[0].mxu0
        %v3778 = vadd.f32 0.0, %v3777
        %v3779 = vpop.f32.mrb[0].mxu0
        %v3780 = vadd.f32 0.0, %v3779
        %v3781 = vpop.f32.mrb[0].mxu0
        %v3782 = vadd.f32 0.0, %v3781
        %3783 = vmatprep.mubr.bf16.mxu0 %v3305
        %3784 = vmatmul.mubr.bf16.gmra.mrb[0].mxu0 %v3304
        %v3785 = vpop.f32.mrb[0].mxu0
        %v3786 = vadd.f32 0.0, %v3785
        %v3787 = vpop.f32.mrb[0].mxu0
        %v3788 = vadd.f32 0.0, %v3787
        %v3789 = vpop.f32.mrb[0].mxu0
        %v3790 = vadd.f32 0.0, %v3789
        %v3791 = vpop.f32.mrb[0].mxu0
        %v3792 = vadd.f32 0.0, %v3791
        %3793 = vmatprep.mubr.bf16.mxu0 %v3309
        %3794 = vmatmul.mubr.bf16.gmra.mrb[0].mxu0 %v3308
        %v3795 = vpop.f32.mrb[0].mxu0
        %v3796 = vadd.f32 0.0, %v3795
        %v3797 = vpop.f32.mrb[0].mxu0
        %v3798 = vadd.f32 0.0, %v3797
        %v3799 = vpop.f32.mrb[0].mxu0
        %v3800 = vadd.f32 0.0, %v3799
        %v3801 = vpop.f32.mrb[0].mxu0
        %v3802 = vadd.f32 0.0, %v3801
        %3803 = vmatprep.mubr.bf16.mxu0 %v3313
        %3804 = vmatmul.mubr.bf16.gmra.mrb[0].mxu0 %v3312
        %v3805 = vpop.f32.mrb[0].mxu0
        %v3806 = vadd.f32 0.0, %v3805
        %v3807 = vpop.f32.mrb[0].mxu0
        %v3808 = vadd.f32 0.0, %v3807
        %v3809 = vpop.f32.mrb[0].mxu0
        %v3810 = vadd.f32 0.0, %v3809
        %v3811 = vpop.f32.mrb[0].mxu0
        %v3812 = vadd.f32 0.0, %v3811
        %3813 = vdwg.mxu0
        %3814 = vmatprep.subr.bf16.mxu0 %v3606
        %3815 = vmatpush1.bf16.msra.mxu0 %v3605
        %3816 = vmatprep.subr.bf16.mxu0 %v3608
        %3817 = vmatpush1.bf16.msra.mxu0 %v3607
        %3818 = vmatprep.subr.bf16.mxu0 %v3610
        %3819 = vmatpush1.bf16.msra.mxu0 %v3609
        %3820 = vmatprep.subr.bf16.mxu0 %v3612
        %3821 = vmatpush1.bf16.msra.mxu0 %v3611
        %3822 = vmatprep.subr.bf16.mxu0 %v3614
        %3823 = vmatpush1.bf16.msra.mxu0 %v3613
        %3824 = vmatprep.subr.bf16.mxu0 %v3616
        %3825 = vmatpush1.bf16.msra.mxu0 %v3615
        %3826 = vmatprep.subr.bf16.mxu0 %v3618
        %3827 = vmatpush1.bf16.msra.mxu0 %v3617
        %3828 = vmatprep.subr.bf16.mxu0 %v3620
        %3829 = vmatpush1.bf16.msra.mxu0 %v3619
        %3830 = vmatprep.subr.bf16.mxu0 %v3622
        %3831 = vmatpush1.bf16.msra.mxu0 %v3621
        %3832 = vmatprep.subr.bf16.mxu0 %v3624
        %3833 = vmatpush1.bf16.msra.mxu0 %v3623
        %3834 = vmatprep.subr.bf16.mxu0 %v3626
        %3835 = vmatpush1.bf16.msra.mxu0 %v3625
        %3836 = vmatprep.subr.bf16.mxu0 %v3628
        %3837 = vmatpush1.bf16.msra.mxu0 %v3627
        %3838 = vmatprep.subr.bf16.mxu0 %v3630
        %3839 = vmatpush1.bf16.msra.mxu0 %v3629
        %3840 = vmatprep.subr.bf16.mxu0 %v3632
        %3841 = vmatpush1.bf16.msra.mxu0 %v3631
        %3842 = vmatprep.subr.bf16.mxu0 %v3634
        %3843 = vmatpush1.bf16.msra.mxu0 %v3633
        %3844 = vmatprep.subr.bf16.mxu0 %v3636
        %3845 = vmatpush1.bf16.msra.mxu0 %v3635
        %3846 = vmatprep.mubr.bf16.mxu0 %v3287
        %3847 = vmatmul.mubr.bf16.gmra.mrb[0].mxu0 %v3286
        %v3848 = vpop.f32.mrb[0].mxu0
        %v3849 = vadd.f32 %v3736, %v3848
        %v3850 = vpop.f32.mrb[0].mxu0
        %v3851 = vadd.f32 %v3738, %v3850
        %v3852 = vpop.f32.mrb[0].mxu0
        %v3853 = vadd.f32 %v3740, %v3852
        %v3854 = vpop.f32.mrb[0].mxu0
        %v3855 = vadd.f32 %v3742, %v3854
        %3856 = vmatprep.mubr.bf16.mxu0 %v3291
        %3857 = vmatmul.mubr.bf16.gmra.mrb[0].mxu0 %v3290
        %v3858 = vpop.f32.mrb[0].mxu0
        %v3859 = vadd.f32 %v3746, %v3858
        %v3860 = vpop.f32.mrb[0].mxu0
        %v3861 = vadd.f32 %v3748, %v3860
        %v3862 = vpop.f32.mrb[0].mxu0
        %v3863 = vadd.f32 %v3750, %v3862
        %v3864 = vpop.f32.mrb[0].mxu0
        %v3865 = vadd.f32 %v3752, %v3864
        %3866 = vmatprep.mubr.bf16.mxu0 %v3295
        %3867 = vmatmul.mubr.bf16.gmra.mrb[0].mxu0 %v3294
        %v3868 = vpop.f32.mrb[0].mxu0
        %v3869 = vadd.f32 %v3756, %v3868
        %v3870 = vpop.f32.mrb[0].mxu0
        %v3871 = vadd.f32 %v3758, %v3870
        %v3872 = vpop.f32.mrb[0].mxu0
        %v3873 = vadd.f32 %v3760, %v3872
        %v3874 = vpop.f32.mrb[0].mxu0
        %v3875 = vadd.f32 %v3762, %v3874
        %3876 = vmatprep.mubr.bf16.mxu0 %v3299
        %3877 = vmatmul.mubr.bf16.gmra.mrb[0].mxu0 %v3298
        %v3878 = vpop.f32.mrb[0].mxu0
        %v3879 = vadd.f32 %v3766, %v3878
        %v3880 = vpop.f32.mrb[0].mxu0
        %v3881 = vadd.f32 %v3768, %v3880
        %v3882 = vpop.f32.mrb[0].mxu0
        %v3883 = vadd.f32 %v3770, %v3882
        %v3884 = vpop.f32.mrb[0].mxu0
        %v3885 = vadd.f32 %v3772, %v3884
        %3886 = vmatprep.mubr.bf16.mxu0 %v3303
        %3887 = vmatmul.mubr.bf16.gmra.mrb[0].mxu0 %v3302
        %v3888 = vpop.f32.mrb[0].mxu0
        %v3889 = vadd.f32 %v3776, %v3888
        %v3890 = vpop.f32.mrb[0].mxu0
        %v3891 = vadd.f32 %v3778, %v3890
        %v3892 = vpop.f32.mrb[0].mxu0
        %v3893 = vadd.f32 %v3780, %v3892
        %v3894 = vpop.f32.mrb[0].mxu0
        %v3895 = vadd.f32 %v3782, %v3894
        %3896 = vmatprep.mubr.bf16.mxu0 %v3307
        %3897 = vmatmul.mubr.bf16.gmra.mrb[0].mxu0 %v3306
        %v3898 = vpop.f32.mrb[0].mxu0
        %v3899 = vadd.f32 %v3786, %v3898
        %v3900 = vpop.f32.mrb[0].mxu0
        %v3901 = vadd.f32 %v3788, %v3900
        %v3902 = vpop.f32.mrb[0].mxu0
        %v3903 = vadd.f32 %v3790, %v3902
        %v3904 = vpop.f32.mrb[0].mxu0
        %v3905 = vadd.f32 %v3792, %v3904
        %3906 = vmatprep.mubr.bf16.mxu0 %v3311
        %3907 = vmatmul.mubr.bf16.gmra.mrb[0].mxu0 %v3310
        %v3908 = vpop.f32.mrb[0].mxu0
        %v3909 = vadd.f32 %v3796, %v3908
        %v3910 = vpop.f32.mrb[0].mxu0
        %v3911 = vadd.f32 %v3798, %v3910
        %v3912 = vpop.f32.mrb[0].mxu0
        %v3913 = vadd.f32 %v3800, %v3912
        %v3914 = vpop.f32.mrb[0].mxu0
        %v3915 = vadd.f32 %v3802, %v3914
        %3916 = vmatprep.mubr.bf16.mxu0 %v3315
        %3917 = vmatmul.mubr.bf16.gmra.mrb[0].mxu0 %v3314
        %v3918 = vpop.f32.mrb[0].mxu0
        %v3919 = vadd.f32 %v3806, %v3918
        %v3920 = vpop.f32.mrb[0].mxu0
        %v3921 = vadd.f32 %v3808, %v3920
        %v3922 = vpop.f32.mrb[0].mxu0
        %v3923 = vadd.f32 %v3810, %v3922
        %v3924 = vpop.f32.mrb[0].mxu0
        %v3925 = vadd.f32 %v3812, %v3924
        %3926 = vdwg.mxu0
        %v3927 = vadd.f32 %v3206, %v3849
        %v3928 = vadd.f32 %v3208, %v3851
        %v3929 = vadd.f32 %v3210, %v3853
        %v3930 = vadd.f32 %v3212, %v3855
        %v3931 = vadd.f32 %v3216, %v3859
        %v3932 = vadd.f32 %v3218, %v3861
        %v3933 = vadd.f32 %v3220, %v3863
        %v3934 = vadd.f32 %v3222, %v3865
        %v3935 = vadd.f32 %v3226, %v3869
        %v3936 = vadd.f32 %v3228, %v3871
        %v3937 = vadd.f32 %v3230, %v3873
        %v3938 = vadd.f32 %v3232, %v3875
        %v3939 = vadd.f32 %v3236, %v3879
        %v3940 = vadd.f32 %v3238, %v3881
        %v3941 = vadd.f32 %v3240, %v3883
        %v3942 = vadd.f32 %v3242, %v3885
        %v3943 = vadd.f32 %v3246, %v3889
        %v3944 = vadd.f32 %v3248, %v3891
        %v3945 = vadd.f32 %v3250, %v3893
        %v3946 = vadd.f32 %v3252, %v3895
        %v3947 = vadd.f32 %v3256, %v3899
        %v3948 = vadd.f32 %v3258, %v3901
        %v3949 = vadd.f32 %v3260, %v3903
        %v3950 = vadd.f32 %v3262, %v3905
        %v3951 = vadd.f32 %v3266, %v3909
        %v3952 = vadd.f32 %v3268, %v3911
        %v3953 = vadd.f32 %v3270, %v3913
        %v3954 = vadd.f32 %v3272, %v3915
        %v3955 = vadd.f32 %v3276, %v3919
        %v3956 = vadd.f32 %v3278, %v3921
        %v3957 = vadd.f32 %v3280, %v3923
        %v3958 = vadd.f32 %v3282, %v3925
        %s3959 = scalar_lea.vmem [#allocation2], 32
        %v3960 = vld [vmem:[%s3959] sm:$0xff]
        %v3961 = vld [vmem:[%s3959 + $0x8] sm:$0xff]
        %v3962 = vld [vmem:[%s3959 + $0x10] sm:$0xff]
        %v3963 = vld [vmem:[%s3959 + $0x18] sm:$0xff]
        %v3964 = vld [vmem:[%s3959 + $0x20] sm:$0xff]
        %v3965 = vld [vmem:[%s3959 + $0x28] sm:$0xff]
        %v3966 = vld [vmem:[%s3959 + $0x30] sm:$0xff]
        %v3967 = vld [vmem:[%s3959 + $0x38] sm:$0xff]
        %v3968 = vld [vmem:[%s3959 + $0x40] sm:$0xff]
        %v3969 = vld [vmem:[%s3959 + $0x48] sm:$0xff]
        %v3970 = vld [vmem:[%s3959 + $0x50] sm:$0xff]
        %v3971 = vld [vmem:[%s3959 + $0x58] sm:$0xff]
        %v3972 = vld [vmem:[%s3959 + $0x60] sm:$0xff]
        %v3973 = vld [vmem:[%s3959 + $0x68] sm:$0xff]
        %v3974 = vld [vmem:[%s3959 + $0x70] sm:$0xff]
        %v3975 = vld [vmem:[%s3959 + $0x78] sm:$0xff]
        %v3976 = vld [vmem:[%s3959 + $0x80] sm:$0xff]
        %v3977 = vld [vmem:[%s3959 + $0x88] sm:$0xff]
        %v3978 = vld [vmem:[%s3959 + $0x90] sm:$0xff]
        %v3979 = vld [vmem:[%s3959 + $0x98] sm:$0xff]
        %v3980 = vld [vmem:[%s3959 + $0xa0] sm:$0xff]
        %v3981 = vld [vmem:[%s3959 + $0xa8] sm:$0xff]
        %v3982 = vld [vmem:[%s3959 + $0xb0] sm:$0xff]
        %v3983 = vld [vmem:[%s3959 + $0xb8] sm:$0xff]
        %v3984 = vld [vmem:[%s3959 + $0xc0] sm:$0xff]
        %v3985 = vld [vmem:[%s3959 + $0xc8] sm:$0xff]
        %v3986 = vld [vmem:[%s3959 + $0xd0] sm:$0xff]
        %v3987 = vld [vmem:[%s3959 + $0xd8] sm:$0xff]
        %v3988 = vld [vmem:[%s3959 + $0xe0] sm:$0xff]
        %v3989 = vld [vmem:[%s3959 + $0xe8] sm:$0xff]
        %v3990 = vld [vmem:[%s3959 + $0xf0] sm:$0xff]
        %v3991 = vld [vmem:[%s3959 + $0xf8] sm:$0xff]
        %s3992 = scalar_lea.vmem %s6, 1536
        %v3993 = vld [vmem:[%s3992] sm:$0xff]
        %v3994 = vld [vmem:[%s3992 + $0x8] sm:$0xff]
        %v3995 = vld [vmem:[%s3992 + $0x10] sm:$0xff]
        %v3996 = vld [vmem:[%s3992 + $0x18] sm:$0xff]
        %v3997 = vld [vmem:[%s3992 + $0x20] sm:$0xff]
        %v3998 = vld [vmem:[%s3992 + $0x28] sm:$0xff]
        %v3999 = vld [vmem:[%s3992 + $0x30] sm:$0xff]
        %v4000 = vld [vmem:[%s3992 + $0x38] sm:$0xff]
        %v4001 = vld [vmem:[%s3992 + $0x40] sm:$0xff]
        %v4002 = vld [vmem:[%s3992 + $0x48] sm:$0xff]
        %v4003 = vld [vmem:[%s3992 + $0x50] sm:$0xff]
        %v4004 = vld [vmem:[%s3992 + $0x58] sm:$0xff]
        %v4005 = vld [vmem:[%s3992 + $0x60] sm:$0xff]
        %v4006 = vld [vmem:[%s3992 + $0x68] sm:$0xff]
        %v4007 = vld [vmem:[%s3992 + $0x70] sm:$0xff]
        %v4008 = vld [vmem:[%s3992 + $0x78] sm:$0xff]
        %v4009 = vld [vmem:[%s3992 + $0x80] sm:$0xff]
        %v4010 = vld [vmem:[%s3992 + $0x88] sm:$0xff]
        %v4011 = vld [vmem:[%s3992 + $0x90] sm:$0xff]
        %v4012 = vld [vmem:[%s3992 + $0x98] sm:$0xff]
        %v4013 = vld [vmem:[%s3992 + $0xa0] sm:$0xff]
        %v4014 = vld [vmem:[%s3992 + $0xa8] sm:$0xff]
        %v4015 = vld [vmem:[%s3992 + $0xb0] sm:$0xff]
        %v4016 = vld [vmem:[%s3992 + $0xb8] sm:$0xff]
        %v4017 = vld [vmem:[%s3992 + $0xc0] sm:$0xff]
        %v4018 = vld [vmem:[%s3992 + $0xc8] sm:$0xff]
        %v4019 = vld [vmem:[%s3992 + $0xd0] sm:$0xff]
        %v4020 = vld [vmem:[%s3992 + $0xd8] sm:$0xff]
        %v4021 = vld [vmem:[%s3992 + $0xe0] sm:$0xff]
        %v4022 = vld [vmem:[%s3992 + $0xe8] sm:$0xff]
        %v4023 = vld [vmem:[%s3992 + $0xf0] sm:$0xff]
        %v4024 = vld [vmem:[%s3992 + $0xf8] sm:$0xff]
        %v4025 = vld [vmem:[%s3992 + $0x100] sm:$0xff]
        %v4026 = vld [vmem:[%s3992 + $0x108] sm:$0xff]
        %v4027 = vld [vmem:[%s3992 + $0x110] sm:$0xff]
        %v4028 = vld [vmem:[%s3992 + $0x118] sm:$0xff]
        %v4029 = vld [vmem:[%s3992 + $0x120] sm:$0xff]
        %v4030 = vld [vmem:[%s3992 + $0x128] sm:$0xff]
        %v4031 = vld [vmem:[%s3992 + $0x130] sm:$0xff]
        %v4032 = vld [vmem:[%s3992 + $0x138] sm:$0xff]
        %v4033 = vld [vmem:[%s3992 + $0x140] sm:$0xff]
        %v4034 = vld [vmem:[%s3992 + $0x148] sm:$0xff]
        %v4035 = vld [vmem:[%s3992 + $0x150] sm:$0xff]
        %v4036 = vld [vmem:[%s3992 + $0x158] sm:$0xff]
        %v4037 = vld [vmem:[%s3992 + $0x160] sm:$0xff]
        %v4038 = vld [vmem:[%s3992 + $0x168] sm:$0xff]
        %v4039 = vld [vmem:[%s3992 + $0x170] sm:$0xff]
        %v4040 = vld [vmem:[%s3992 + $0x178] sm:$0xff]
        %v4041 = vld [vmem:[%s3992 + $0x180] sm:$0xff]
        %v4042 = vld [vmem:[%s3992 + $0x188] sm:$0xff]
        %v4043 = vld [vmem:[%s3992 + $0x190] sm:$0xff]
        %v4044 = vld [vmem:[%s3992 + $0x198] sm:$0xff]
        %v4045 = vld [vmem:[%s3992 + $0x1a0] sm:$0xff]
        %v4046 = vld [vmem:[%s3992 + $0x1a8] sm:$0xff]
        %v4047 = vld [vmem:[%s3992 + $0x1b0] sm:$0xff]
        %v4048 = vld [vmem:[%s3992 + $0x1b8] sm:$0xff]
        %v4049 = vld [vmem:[%s3992 + $0x1c0] sm:$0xff]
        %v4050 = vld [vmem:[%s3992 + $0x1c8] sm:$0xff]
        %v4051 = vld [vmem:[%s3992 + $0x1d0] sm:$0xff]
        %v4052 = vld [vmem:[%s3992 + $0x1d8] sm:$0xff]
        %v4053 = vld [vmem:[%s3992 + $0x1e0] sm:$0xff]
        %v4054 = vld [vmem:[%s3992 + $0x1e8] sm:$0xff]
        %v4055 = vld [vmem:[%s3992 + $0x1f0] sm:$0xff]
        %v4056 = vld [vmem:[%s3992 + $0x1f8] sm:$0xff]
        %v4121 = vunpack.c.l.b16 %v3993
        %v4122 = vunpack.c.h.b16 %v3993
        %v4123 = vunpack.c.l.b16 %v3994
        %v4124 = vunpack.c.h.b16 %v3994
        %v4125 = vunpack.c.l.b16 %v3995
        %v4126 = vunpack.c.h.b16 %v3995
        %v4127 = vunpack.c.l.b16 %v3996
        %v4128 = vunpack.c.h.b16 %v3996
        %v4129 = vunpack.c.l.b16 %v3997
        %v4130 = vunpack.c.h.b16 %v3997
        %v4131 = vunpack.c.l.b16 %v3998
        %v4132 = vunpack.c.h.b16 %v3998
        %v4133 = vunpack.c.l.b16 %v3999
        %v4134 = vunpack.c.h.b16 %v3999
        %v4135 = vunpack.c.l.b16 %v4000
        %v4136 = vunpack.c.h.b16 %v4000
        %v4137 = vunpack.c.l.b16 %v4001
        %v4138 = vunpack.c.h.b16 %v4001
        %v4139 = vunpack.c.l.b16 %v4002
        %v4140 = vunpack.c.h.b16 %v4002
        %v4141 = vunpack.c.l.b16 %v4003
        %v4142 = vunpack.c.h.b16 %v4003
        %v4143 = vunpack.c.l.b16 %v4004
        %v4144 = vunpack.c.h.b16 %v4004
        %v4145 = vunpack.c.l.b16 %v4005
        %v4146 = vunpack.c.h.b16 %v4005
        %v4147 = vunpack.c.l.b16 %v4006
        %v4148 = vunpack.c.h.b16 %v4006
        %v4149 = vunpack.c.l.b16 %v4007
        %v4150 = vunpack.c.h.b16 %v4007
        %v4151 = vunpack.c.l.b16 %v4008
        %v4152 = vunpack.c.h.b16 %v4008
        %v4153 = vunpack.c.l.b16 %v4009
        %v4154 = vunpack.c.h.b16 %v4009
        %v4155 = vunpack.c.l.b16 %v4010
        %v4156 = vunpack.c.h.b16 %v4010
        %v4157 = vunpack.c.l.b16 %v4011
        %v4158 = vunpack.c.h.b16 %v4011
        %v4159 = vunpack.c.l.b16 %v4012
        %v4160 = vunpack.c.h.b16 %v4012
        %v4161 = vunpack.c.l.b16 %v4013
        %v4162 = vunpack.c.h.b16 %v4013
        %v4163 = vunpack.c.l.b16 %v4014
        %v4164 = vunpack.c.h.b16 %v4014
        %v4165 = vunpack.c.l.b16 %v4015
        %v4166 = vunpack.c.h.b16 %v4015
        %v4167 = vunpack.c.l.b16 %v4016
        %v4168 = vunpack.c.h.b16 %v4016
        %v4169 = vunpack.c.l.b16 %v4017
        %v4170 = vunpack.c.h.b16 %v4017
        %v4171 = vunpack.c.l.b16 %v4018
        %v4172 = vunpack.c.h.b16 %v4018
        %v4173 = vunpack.c.l.b16 %v4019
        %v4174 = vunpack.c.h.b16 %v4019
        %v4175 = vunpack.c.l.b16 %v4020
        %v4176 = vunpack.c.h.b16 %v4020
        %v4177 = vunpack.c.l.b16 %v4021
        %v4178 = vunpack.c.h.b16 %v4021
        %v4179 = vunpack.c.l.b16 %v4022
        %v4180 = vunpack.c.h.b16 %v4022
        %v4181 = vunpack.c.l.b16 %v4023
        %v4182 = vunpack.c.h.b16 %v4023
        %v4183 = vunpack.c.l.b16 %v4024
        %v4184 = vunpack.c.h.b16 %v4024
        %v4185 = vunpack.c.l.b16 %v4025
        %v4186 = vunpack.c.h.b16 %v4025
        %v4187 = vunpack.c.l.b16 %v4026
        %v4188 = vunpack.c.h.b16 %v4026
        %v4189 = vunpack.c.l.b16 %v4027
        %v4190 = vunpack.c.h.b16 %v4027
        %v4191 = vunpack.c.l.b16 %v4028
        %v4192 = vunpack.c.h.b16 %v4028
        %v4193 = vunpack.c.l.b16 %v4029
        %v4194 = vunpack.c.h.b16 %v4029
        %v4195 = vunpack.c.l.b16 %v4030
        %v4196 = vunpack.c.h.b16 %v4030
        %v4197 = vunpack.c.l.b16 %v4031
        %v4198 = vunpack.c.h.b16 %v4031
        %v4199 = vunpack.c.l.b16 %v4032
        %v4200 = vunpack.c.h.b16 %v4032
        %v4201 = vunpack.c.l.b16 %v4033
        %v4202 = vunpack.c.h.b16 %v4033
        %v4203 = vunpack.c.l.b16 %v4034
        %v4204 = vunpack.c.h.b16 %v4034
        %v4205 = vunpack.c.l.b16 %v4035
        %v4206 = vunpack.c.h.b16 %v4035
        %v4207 = vunpack.c.l.b16 %v4036
        %v4208 = vunpack.c.h.b16 %v4036
        %v4209 = vunpack.c.l.b16 %v4037
        %v4210 = vunpack.c.h.b16 %v4037
        %v4211 = vunpack.c.l.b16 %v4038
        %v4212 = vunpack.c.h.b16 %v4038
        %v4213 = vunpack.c.l.b16 %v4039
        %v4214 = vunpack.c.h.b16 %v4039
        %v4215 = vunpack.c.l.b16 %v4040
        %v4216 = vunpack.c.h.b16 %v4040
        %v4217 = vunpack.c.l.b16 %v4041
        %v4218 = vunpack.c.h.b16 %v4041
        %v4219 = vunpack.c.l.b16 %v4042
        %v4220 = vunpack.c.h.b16 %v4042
        %v4221 = vunpack.c.l.b16 %v4043
        %v4222 = vunpack.c.h.b16 %v4043
        %v4223 = vunpack.c.l.b16 %v4044
        %v4224 = vunpack.c.h.b16 %v4044
        %v4225 = vunpack.c.l.b16 %v4045
        %v4226 = vunpack.c.h.b16 %v4045
        %v4227 = vunpack.c.l.b16 %v4046
        %v4228 = vunpack.c.h.b16 %v4046
        %v4229 = vunpack.c.l.b16 %v4047
        %v4230 = vunpack.c.h.b16 %v4047
        %v4231 = vunpack.c.l.b16 %v4048
        %v4232 = vunpack.c.h.b16 %v4048
        %v4233 = vunpack.c.l.b16 %v4049
        %v4234 = vunpack.c.h.b16 %v4049
        %v4235 = vunpack.c.l.b16 %v4050
        %v4236 = vunpack.c.h.b16 %v4050
        %v4237 = vunpack.c.l.b16 %v4051
        %v4238 = vunpack.c.h.b16 %v4051
        %v4239 = vunpack.c.l.b16 %v4052
        %v4240 = vunpack.c.h.b16 %v4052
        %v4241 = vunpack.c.l.b16 %v4053
        %v4242 = vunpack.c.h.b16 %v4053
        %v4243 = vunpack.c.l.b16 %v4054
        %v4244 = vunpack.c.h.b16 %v4054
        %v4245 = vunpack.c.l.b16 %v4055
        %v4246 = vunpack.c.h.b16 %v4055
        %v4247 = vunpack.c.l.b16 %v4056
        %v4248 = vunpack.c.h.b16 %v4056
        %v4249 = vpack.c.b16 %v4123, %v4121
        %v4250 = vpack.c.b16 %v4124, %v4122
        %v4251 = vpack.c.b16 %v4127, %v4125
        %v4252 = vpack.c.b16 %v4128, %v4126
        %v4253 = vpack.c.b16 %v4131, %v4129
        %v4254 = vpack.c.b16 %v4132, %v4130
        %v4255 = vpack.c.b16 %v4135, %v4133
        %v4256 = vpack.c.b16 %v4136, %v4134
        %v4257 = vpack.c.b16 %v4139, %v4137
        %v4258 = vpack.c.b16 %v4140, %v4138
        %v4259 = vpack.c.b16 %v4143, %v4141
        %v4260 = vpack.c.b16 %v4144, %v4142
        %v4261 = vpack.c.b16 %v4147, %v4145
        %v4262 = vpack.c.b16 %v4148, %v4146
        %v4263 = vpack.c.b16 %v4151, %v4149
        %v4264 = vpack.c.b16 %v4152, %v4150
        %v4265 = vpack.c.b16 %v4155, %v4153
        %v4266 = vpack.c.b16 %v4156, %v4154
        %v4267 = vpack.c.b16 %v4159, %v4157
        %v4268 = vpack.c.b16 %v4160, %v4158
        %v4269 = vpack.c.b16 %v4163, %v4161
        %v4270 = vpack.c.b16 %v4164, %v4162
        %v4271 = vpack.c.b16 %v4167, %v4165
        %v4272 = vpack.c.b16 %v4168, %v4166
        %v4273 = vpack.c.b16 %v4171, %v4169
        %v4274 = vpack.c.b16 %v4172, %v4170
        %v4275 = vpack.c.b16 %v4175, %v4173
        %v4276 = vpack.c.b16 %v4176, %v4174
        %v4277 = vpack.c.b16 %v4179, %v4177
        %v4278 = vpack.c.b16 %v4180, %v4178
        %v4279 = vpack.c.b16 %v4183, %v4181
        %v4280 = vpack.c.b16 %v4184, %v4182
        %v4281 = vpack.c.b16 %v4187, %v4185
        %v4282 = vpack.c.b16 %v4188, %v4186
        %v4283 = vpack.c.b16 %v4191, %v4189
        %v4284 = vpack.c.b16 %v4192, %v4190
        %v4285 = vpack.c.b16 %v4195, %v4193
        %v4286 = vpack.c.b16 %v4196, %v4194
        %v4287 = vpack.c.b16 %v4199, %v4197
        %v4288 = vpack.c.b16 %v4200, %v4198
        %v4289 = vpack.c.b16 %v4203, %v4201
        %v4290 = vpack.c.b16 %v4204, %v4202
        %v4291 = vpack.c.b16 %v4207, %v4205
        %v4292 = vpack.c.b16 %v4208, %v4206
        %v4293 = vpack.c.b16 %v4211, %v4209
        %v4294 = vpack.c.b16 %v4212, %v4210
        %v4295 = vpack.c.b16 %v4215, %v4213
        %v4296 = vpack.c.b16 %v4216, %v4214
        %v4297 = vpack.c.b16 %v4219, %v4217
        %v4298 = vpack.c.b16 %v4220, %v4218
        %v4299 = vpack.c.b16 %v4223, %v4221
        %v4300 = vpack.c.b16 %v4224, %v4222
        %v4301 = vpack.c.b16 %v4227, %v4225
        %v4302 = vpack.c.b16 %v4228, %v4226
        %v4303 = vpack.c.b16 %v4231, %v4229
        %v4304 = vpack.c.b16 %v4232, %v4230
        %v4305 = vpack.c.b16 %v4235, %v4233
        %v4306 = vpack.c.b16 %v4236, %v4234
        %v4307 = vpack.c.b16 %v4239, %v4237
        %v4308 = vpack.c.b16 %v4240, %v4238
        %v4309 = vpack.c.b16 %v4243, %v4241
        %v4310 = vpack.c.b16 %v4244, %v4242
        %v4311 = vpack.c.b16 %v4247, %v4245
        %v4312 = vpack.c.b16 %v4248, %v4246
        %4377 = vmatprep.subr.bf16.mxu0 %v4250
        %4378 = vmatpush1.bf16.msra.mxu0 %v4249
        %4379 = vmatprep.subr.bf16.mxu0 %v4252
        %4380 = vmatpush1.bf16.msra.mxu0 %v4251
        %4381 = vmatprep.subr.bf16.mxu0 %v4254
        %4382 = vmatpush1.bf16.msra.mxu0 %v4253
        %4383 = vmatprep.subr.bf16.mxu0 %v4256
        %4384 = vmatpush1.bf16.msra.mxu0 %v4255
        %4385 = vmatprep.subr.bf16.mxu0 %v4258
        %4386 = vmatpush1.bf16.msra.mxu0 %v4257
        %4387 = vmatprep.subr.bf16.mxu0 %v4260
        %4388 = vmatpush1.bf16.msra.mxu0 %v4259
        %4389 = vmatprep.subr.bf16.mxu0 %v4262
        %4390 = vmatpush1.bf16.msra.mxu0 %v4261
        %4391 = vmatprep.subr.bf16.mxu0 %v4264
        %4392 = vmatpush1.bf16.msra.mxu0 %v4263
        %4393 = vmatprep.subr.bf16.mxu0 %v4266
        %4394 = vmatpush1.bf16.msra.mxu0 %v4265
        %4395 = vmatprep.subr.bf16.mxu0 %v4268
        %4396 = vmatpush1.bf16.msra.mxu0 %v4267
        %4397 = vmatprep.subr.bf16.mxu0 %v4270
        %4398 = vmatpush1.bf16.msra.mxu0 %v4269
        %4399 = vmatprep.subr.bf16.mxu0 %v4272
        %4400 = vmatpush1.bf16.msra.mxu0 %v4271
        %4401 = vmatprep.subr.bf16.mxu0 %v4274
        %4402 = vmatpush1.bf16.msra.mxu0 %v4273
        %4403 = vmatprep.subr.bf16.mxu0 %v4276
        %4404 = vmatpush1.bf16.msra.mxu0 %v4275
        %4405 = vmatprep.subr.bf16.mxu0 %v4278
        %4406 = vmatpush1.bf16.msra.mxu0 %v4277
        %4407 = vmatprep.subr.bf16.mxu0 %v4280
        %4408 = vmatpush1.bf16.msra.mxu0 %v4279
        %4409 = vmatprep.mubr.bf16.mxu0 %v3961
        %4410 = vmatmul.mubr.bf16.gmra.mrb[0].mxu0 %v3960
        %v4411 = vpop.f32.mrb[0].mxu0
        %v4412 = vadd.f32 0.0, %v4411
        %v4413 = vpop.f32.mrb[0].mxu0
        %v4414 = vadd.f32 0.0, %v4413
        %v4415 = vpop.f32.mrb[0].mxu0
        %v4416 = vadd.f32 0.0, %v4415
        %v4417 = vpop.f32.mrb[0].mxu0
        %v4418 = vadd.f32 0.0, %v4417
        %4419 = vmatprep.mubr.bf16.mxu0 %v3965
        %4420 = vmatmul.mubr.bf16.gmra.mrb[0].mxu0 %v3964
        %v4421 = vpop.f32.mrb[0].mxu0
        %v4422 = vadd.f32 0.0, %v4421
        %v4423 = vpop.f32.mrb[0].mxu0
        %v4424 = vadd.f32 0.0, %v4423
        %v4425 = vpop.f32.mrb[0].mxu0
        %v4426 = vadd.f32 0.0, %v4425
        %v4427 = vpop.f32.mrb[0].mxu0
        %v4428 = vadd.f32 0.0, %v4427
        %4429 = vmatprep.mubr.bf16.mxu0 %v3969
        %4430 = vmatmul.mubr.bf16.gmra.mrb[0].mxu0 %v3968
        %v4431 = vpop.f32.mrb[0].mxu0
        %v4432 = vadd.f32 0.0, %v4431
        %v4433 = vpop.f32.mrb[0].mxu0
        %v4434 = vadd.f32 0.0, %v4433
        %v4435 = vpop.f32.mrb[0].mxu0
        %v4436 = vadd.f32 0.0, %v4435
        %v4437 = vpop.f32.mrb[0].mxu0
        %v4438 = vadd.f32 0.0, %v4437
        %4439 = vmatprep.mubr.bf16.mxu0 %v3973
        %4440 = vmatmul.mubr.bf16.gmra.mrb[0].mxu0 %v3972
        %v4441 = vpop.f32.mrb[0].mxu0
        %v4442 = vadd.f32 0.0, %v4441
        %v4443 = vpop.f32.mrb[0].mxu0
        %v4444 = vadd.f32 0.0, %v4443
        %v4445 = vpop.f32.mrb[0].mxu0
        %v4446 = vadd.f32 0.0, %v4445
        %v4447 = vpop.f32.mrb[0].mxu0
        %v4448 = vadd.f32 0.0, %v4447
        %4449 = vmatprep.mubr.bf16.mxu0 %v3977
        %4450 = vmatmul.mubr.bf16.gmra.mrb[0].mxu0 %v3976
        %v4451 = vpop.f32.mrb[0].mxu0
        %v4452 = vadd.f32 0.0, %v4451
        %v4453 = vpop.f32.mrb[0].mxu0
        %v4454 = vadd.f32 0.0, %v4453
        %v4455 = vpop.f32.mrb[0].mxu0
        %v4456 = vadd.f32 0.0, %v4455
        %v4457 = vpop.f32.mrb[0].mxu0
        %v4458 = vadd.f32 0.0, %v4457
        %4459 = vmatprep.mubr.bf16.mxu0 %v3981
        %4460 = vmatmul.mubr.bf16.gmra.mrb[0].mxu0 %v3980
        %v4461 = vpop.f32.mrb[0].mxu0
        %v4462 = vadd.f32 0.0, %v4461
        %v4463 = vpop.f32.mrb[0].mxu0
        %v4464 = vadd.f32 0.0, %v4463
        %v4465 = vpop.f32.mrb[0].mxu0
        %v4466 = vadd.f32 0.0, %v4465
        %v4467 = vpop.f32.mrb[0].mxu0
        %v4468 = vadd.f32 0.0, %v4467
        %4469 = vmatprep.mubr.bf16.mxu0 %v3985
        %4470 = vmatmul.mubr.bf16.gmra.mrb[0].mxu0 %v3984
        %v4471 = vpop.f32.mrb[0].mxu0
        %v4472 = vadd.f32 0.0, %v4471
        %v4473 = vpop.f32.mrb[0].mxu0
        %v4474 = vadd.f32 0.0, %v4473
        %v4475 = vpop.f32.mrb[0].mxu0
        %v4476 = vadd.f32 0.0, %v4475
        %v4477 = vpop.f32.mrb[0].mxu0
        %v4478 = vadd.f32 0.0, %v4477
        %4479 = vmatprep.mubr.bf16.mxu0 %v3989
        %4480 = vmatmul.mubr.bf16.gmra.mrb[0].mxu0 %v3988
        %v4481 = vpop.f32.mrb[0].mxu0
        %v4482 = vadd.f32 0.0, %v4481
        %v4483 = vpop.f32.mrb[0].mxu0
        %v4484 = vadd.f32 0.0, %v4483
        %v4485 = vpop.f32.mrb[0].mxu0
        %v4486 = vadd.f32 0.0, %v4485
        %v4487 = vpop.f32.mrb[0].mxu0
        %v4488 = vadd.f32 0.0, %v4487
        %4489 = vdwg.mxu0
        %4490 = vmatprep.subr.bf16.mxu0 %v4282
        %4491 = vmatpush1.bf16.msra.mxu0 %v4281
        %4492 = vmatprep.subr.bf16.mxu0 %v4284
        %4493 = vmatpush1.bf16.msra.mxu0 %v4283
        %4494 = vmatprep.subr.bf16.mxu0 %v4286
        %4495 = vmatpush1.bf16.msra.mxu0 %v4285
        %4496 = vmatprep.subr.bf16.mxu0 %v4288
        %4497 = vmatpush1.bf16.msra.mxu0 %v4287
        %4498 = vmatprep.subr.bf16.mxu0 %v4290
        %4499 = vmatpush1.bf16.msra.mxu0 %v4289
        %4500 = vmatprep.subr.bf16.mxu0 %v4292
        %4501 = vmatpush1.bf16.msra.mxu0 %v4291
        %4502 = vmatprep.subr.bf16.mxu0 %v4294
        %4503 = vmatpush1.bf16.msra.mxu0 %v4293
        %4504 = vmatprep.subr.bf16.mxu0 %v4296
        %4505 = vmatpush1.bf16.msra.mxu0 %v4295
        %4506 = vmatprep.subr.bf16.mxu0 %v4298
        %4507 = vmatpush1.bf16.msra.mxu0 %v4297
        %4508 = vmatprep.subr.bf16.mxu0 %v4300
        %4509 = vmatpush1.bf16.msra.mxu0 %v4299
        %4510 = vmatprep.subr.bf16.mxu0 %v4302
        %4511 = vmatpush1.bf16.msra.mxu0 %v4301
        %4512 = vmatprep.subr.bf16.mxu0 %v4304
        %4513 = vmatpush1.bf16.msra.mxu0 %v4303
        %4514 = vmatprep.subr.bf16.mxu0 %v4306
        %4515 = vmatpush1.bf16.msra.mxu0 %v4305
        %4516 = vmatprep.subr.bf16.mxu0 %v4308
        %4517 = vmatpush1.bf16.msra.mxu0 %v4307
        %4518 = vmatprep.subr.bf16.mxu0 %v4310
        %4519 = vmatpush1.bf16.msra.mxu0 %v4309
        %4520 = vmatprep.subr.bf16.mxu0 %v4312
        %4521 = vmatpush1.bf16.msra.mxu0 %v4311
        %4522 = vmatprep.mubr.bf16.mxu0 %v3963
        %4523 = vmatmul.mubr.bf16.gmra.mrb[0].mxu0 %v3962
        %v4524 = vpop.f32.mrb[0].mxu0
        %v4525 = vadd.f32 %v4412, %v4524
        %v4526 = vpop.f32.mrb[0].mxu0
        %v4527 = vadd.f32 %v4414, %v4526
        %v4528 = vpop.f32.mrb[0].mxu0
        %v4529 = vadd.f32 %v4416, %v4528
        %v4530 = vpop.f32.mrb[0].mxu0
        %v4531 = vadd.f32 %v4418, %v4530
        %4532 = vmatprep.mubr.bf16.mxu0 %v3967
        %4533 = vmatmul.mubr.bf16.gmra.mrb[0].mxu0 %v3966
        %v4534 = vpop.f32.mrb[0].mxu0
        %v4535 = vadd.f32 %v4422, %v4534
        %v4536 = vpop.f32.mrb[0].mxu0
        %v4537 = vadd.f32 %v4424, %v4536
        %v4538 = vpop.f32.mrb[0].mxu0
        %v4539 = vadd.f32 %v4426, %v4538
        %v4540 = vpop.f32.mrb[0].mxu0
        %v4541 = vadd.f32 %v4428, %v4540
        %4542 = vmatprep.mubr.bf16.mxu0 %v3971
        %4543 = vmatmul.mubr.bf16.gmra.mrb[0].mxu0 %v3970
        %v4544 = vpop.f32.mrb[0].mxu0
        %v4545 = vadd.f32 %v4432, %v4544
        %v4546 = vpop.f32.mrb[0].mxu0
        %v4547 = vadd.f32 %v4434, %v4546
        %v4548 = vpop.f32.mrb[0].mxu0
        %v4549 = vadd.f32 %v4436, %v4548
        %v4550 = vpop.f32.mrb[0].mxu0
        %v4551 = vadd.f32 %v4438, %v4550
        %4552 = vmatprep.mubr.bf16.mxu0 %v3975
        %4553 = vmatmul.mubr.bf16.gmra.mrb[0].mxu0 %v3974
        %v4554 = vpop.f32.mrb[0].mxu0
        %v4555 = vadd.f32 %v4442, %v4554
        %v4556 = vpop.f32.mrb[0].mxu0
        %v4557 = vadd.f32 %v4444, %v4556
        %v4558 = vpop.f32.mrb[0].mxu0
        %v4559 = vadd.f32 %v4446, %v4558
        %v4560 = vpop.f32.mrb[0].mxu0
        %v4561 = vadd.f32 %v4448, %v4560
        %4562 = vmatprep.mubr.bf16.mxu0 %v3979
        %4563 = vmatmul.mubr.bf16.gmra.mrb[0].mxu0 %v3978
        %v4564 = vpop.f32.mrb[0].mxu0
        %v4565 = vadd.f32 %v4452, %v4564
        %v4566 = vpop.f32.mrb[0].mxu0
        %v4567 = vadd.f32 %v4454, %v4566
        %v4568 = vpop.f32.mrb[0].mxu0
        %v4569 = vadd.f32 %v4456, %v4568
        %v4570 = vpop.f32.mrb[0].mxu0
        %v4571 = vadd.f32 %v4458, %v4570
        %4572 = vmatprep.mubr.bf16.mxu0 %v3983
        %4573 = vmatmul.mubr.bf16.gmra.mrb[0].mxu0 %v3982
        %v4574 = vpop.f32.mrb[0].mxu0
        %v4575 = vadd.f32 %v4462, %v4574
        %v4576 = vpop.f32.mrb[0].mxu0
        %v4577 = vadd.f32 %v4464, %v4576
        %v4578 = vpop.f32.mrb[0].mxu0
        %v4579 = vadd.f32 %v4466, %v4578
        %v4580 = vpop.f32.mrb[0].mxu0
        %v4581 = vadd.f32 %v4468, %v4580
        %4582 = vmatprep.mubr.bf16.mxu0 %v3987
        %4583 = vmatmul.mubr.bf16.gmra.mrb[0].mxu0 %v3986
        %v4584 = vpop.f32.mrb[0].mxu0
        %v4585 = vadd.f32 %v4472, %v4584
        %v4586 = vpop.f32.mrb[0].mxu0
        %v4587 = vadd.f32 %v4474, %v4586
        %v4588 = vpop.f32.mrb[0].mxu0
        %v4589 = vadd.f32 %v4476, %v4588
        %v4590 = vpop.f32.mrb[0].mxu0
        %v4591 = vadd.f32 %v4478, %v4590
        %4592 = vmatprep.mubr.bf16.mxu0 %v3991
        %4593 = vmatmul.mubr.bf16.gmra.mrb[0].mxu0 %v3990
        %v4594 = vpop.f32.mrb[0].mxu0
        %v4595 = vadd.f32 %v4482, %v4594
        %v4596 = vpop.f32.mrb[0].mxu0
        %v4597 = vadd.f32 %v4484, %v4596
        %v4598 = vpop.f32.mrb[0].mxu0
        %v4599 = vadd.f32 %v4486, %v4598
        %v4600 = vpop.f32.mrb[0].mxu0
        %v4601 = vadd.f32 %v4488, %v4600
        %4602 = vdwg.mxu0
        %v4603 = vadd.f32 %v3927, %v4525
        %v4604 = vadd.f32 %v3928, %v4527
        %v4605 = vadd.f32 %v3929, %v4529
        %v4606 = vadd.f32 %v3930, %v4531
        %v4607 = vadd.f32 %v3931, %v4535
        %v4608 = vadd.f32 %v3932, %v4537
        %v4609 = vadd.f32 %v3933, %v4539
        %v4610 = vadd.f32 %v3934, %v4541
        %v4611 = vadd.f32 %v3935, %v4545
        %v4612 = vadd.f32 %v3936, %v4547
        %v4613 = vadd.f32 %v3937, %v4549
        %v4614 = vadd.f32 %v3938, %v4551
        %v4615 = vadd.f32 %v3939, %v4555
        %v4616 = vadd.f32 %v3940, %v4557
        %v4617 = vadd.f32 %v3941, %v4559
        %v4618 = vadd.f32 %v3942, %v4561
        %v4619 = vadd.f32 %v3943, %v4565
        %v4620 = vadd.f32 %v3944, %v4567
        %v4621 = vadd.f32 %v3945, %v4569
        %v4622 = vadd.f32 %v3946, %v4571
        %v4623 = vadd.f32 %v3947, %v4575
        %v4624 = vadd.f32 %v3948, %v4577
        %v4625 = vadd.f32 %v3949, %v4579
        %v4626 = vadd.f32 %v3950, %v4581
        %v4627 = vadd.f32 %v3951, %v4585
        %v4628 = vadd.f32 %v3952, %v4587
        %v4629 = vadd.f32 %v3953, %v4589
        %v4630 = vadd.f32 %v3954, %v4591
        %v4631 = vadd.f32 %v3955, %v4595
        %v4632 = vadd.f32 %v3956, %v4597
        %v4633 = vadd.f32 %v3957, %v4599
        %v4634 = vadd.f32 %v3958, %v4601
        %s4635 = scalar_lea.vmem [#allocation2], 352
        %v4636 = vld [vmem:[%s4635] sm:$0xff]
        %v4637 = vld [vmem:[%s4635 + $0x8] sm:$0xff]
        %v4638 = vld [vmem:[%s4635 + $0x10] sm:$0xff]
        %v4639 = vld [vmem:[%s4635 + $0x18] sm:$0xff]
        %v4640 = vld [vmem:[%s4635 + $0x20] sm:$0xff]
        %v4641 = vld [vmem:[%s4635 + $0x28] sm:$0xff]
        %v4642 = vld [vmem:[%s4635 + $0x30] sm:$0xff]
        %v4643 = vld [vmem:[%s4635 + $0x38] sm:$0xff]
        %v4644 = vld [vmem:[%s4635 + $0x40] sm:$0xff]
        %v4645 = vld [vmem:[%s4635 + $0x48] sm:$0xff]
        %v4646 = vld [vmem:[%s4635 + $0x50] sm:$0xff]
        %v4647 = vld [vmem:[%s4635 + $0x58] sm:$0xff]
        %v4648 = vld [vmem:[%s4635 + $0x60] sm:$0xff]
        %v4649 = vld [vmem:[%s4635 + $0x68] sm:$0xff]
        %v4650 = vld [vmem:[%s4635 + $0x70] sm:$0xff]
        %v4651 = vld [vmem:[%s4635 + $0x78] sm:$0xff]
        %v4652 = vld [vmem:[%s4635 + $0x80] sm:$0xff]
        %v4653 = vld [vmem:[%s4635 + $0x88] sm:$0xff]
        %v4654 = vld [vmem:[%s4635 + $0x90] sm:$0xff]
        %v4655 = vld [vmem:[%s4635 + $0x98] sm:$0xff]
        %v4656 = vld [vmem:[%s4635 + $0xa0] sm:$0xff]
        %v4657 = vld [vmem:[%s4635 + $0xa8] sm:$0xff]
        %v4658 = vld [vmem:[%s4635 + $0xb0] sm:$0xff]
        %v4659 = vld [vmem:[%s4635 + $0xb8] sm:$0xff]
        %v4660 = vld [vmem:[%s4635 + $0xc0] sm:$0xff]
        %v4661 = vld [vmem:[%s4635 + $0xc8] sm:$0xff]
        %v4662 = vld [vmem:[%s4635 + $0xd0] sm:$0xff]
        %v4663 = vld [vmem:[%s4635 + $0xd8] sm:$0xff]
        %v4664 = vld [vmem:[%s4635 + $0xe0] sm:$0xff]
        %v4665 = vld [vmem:[%s4635 + $0xe8] sm:$0xff]
        %v4666 = vld [vmem:[%s4635 + $0xf0] sm:$0xff]
        %v4667 = vld [vmem:[%s4635 + $0xf8] sm:$0xff]
        %s4668 = scalar_lea.vmem %s6, 2048
        %v4669 = vld [vmem:[%s4668] sm:$0xff]
        %v4670 = vld [vmem:[%s4668 + $0x8] sm:$0xff]
        %v4671 = vld [vmem:[%s4668 + $0x10] sm:$0xff]
        %v4672 = vld [vmem:[%s4668 + $0x18] sm:$0xff]
        %v4673 = vld [vmem:[%s4668 + $0x20] sm:$0xff]
        %v4674 = vld [vmem:[%s4668 + $0x28] sm:$0xff]
        %v4675 = vld [vmem:[%s4668 + $0x30] sm:$0xff]
        %v4676 = vld [vmem:[%s4668 + $0x38] sm:$0xff]
        %v4677 = vld [vmem:[%s4668 + $0x40] sm:$0xff]
        %v4678 = vld [vmem:[%s4668 + $0x48] sm:$0xff]
        %v4679 = vld [vmem:[%s4668 + $0x50] sm:$0xff]
        %v4680 = vld [vmem:[%s4668 + $0x58] sm:$0xff]
        %v4681 = vld [vmem:[%s4668 + $0x60] sm:$0xff]
        %v4682 = vld [vmem:[%s4668 + $0x68] sm:$0xff]
        %v4683 = vld [vmem:[%s4668 + $0x70] sm:$0xff]
        %v4684 = vld [vmem:[%s4668 + $0x78] sm:$0xff]
        %v4685 = vld [vmem:[%s4668 + $0x80] sm:$0xff]
        %v4686 = vld [vmem:[%s4668 + $0x88] sm:$0xff]
        %v4687 = vld [vmem:[%s4668 + $0x90] sm:$0xff]
        %v4688 = vld [vmem:[%s4668 + $0x98] sm:$0xff]
        %v4689 = vld [vmem:[%s4668 + $0xa0] sm:$0xff]
        %v4690 = vld [vmem:[%s4668 + $0xa8] sm:$0xff]
        %v4691 = vld [vmem:[%s4668 + $0xb0] sm:$0xff]
        %v4692 = vld [vmem:[%s4668 + $0xb8] sm:$0xff]
        %v4693 = vld [vmem:[%s4668 + $0xc0] sm:$0xff]
        %v4694 = vld [vmem:[%s4668 + $0xc8] sm:$0xff]
        %v4695 = vld [vmem:[%s4668 + $0xd0] sm:$0xff]
        %v4696 = vld [vmem:[%s4668 + $0xd8] sm:$0xff]
        %v4697 = vld [vmem:[%s4668 + $0xe0] sm:$0xff]
        %v4698 = vld [vmem:[%s4668 + $0xe8] sm:$0xff]
        %v4699 = vld [vmem:[%s4668 + $0xf0] sm:$0xff]
        %v4700 = vld [vmem:[%s4668 + $0xf8] sm:$0xff]
        %v4701 = vld [vmem:[%s4668 + $0x100] sm:$0xff]
        %v4702 = vld [vmem:[%s4668 + $0x108] sm:$0xff]
        %v4703 = vld [vmem:[%s4668 + $0x110] sm:$0xff]
        %v4704 = vld [vmem:[%s4668 + $0x118] sm:$0xff]
        %v4705 = vld [vmem:[%s4668 + $0x120] sm:$0xff]
        %v4706 = vld [vmem:[%s4668 + $0x128] sm:$0xff]
        %v4707 = vld [vmem:[%s4668 + $0x130] sm:$0xff]
        %v4708 = vld [vmem:[%s4668 + $0x138] sm:$0xff]
        %v4709 = vld [vmem:[%s4668 + $0x140] sm:$0xff]
        %v4710 = vld [vmem:[%s4668 + $0x148] sm:$0xff]
        %v4711 = vld [vmem:[%s4668 + $0x150] sm:$0xff]
        %v4712 = vld [vmem:[%s4668 + $0x158] sm:$0xff]
        %v4713 = vld [vmem:[%s4668 + $0x160] sm:$0xff]
        %v4714 = vld [vmem:[%s4668 + $0x168] sm:$0xff]
        %v4715 = vld [vmem:[%s4668 + $0x170] sm:$0xff]
        %v4716 = vld [vmem:[%s4668 + $0x178] sm:$0xff]
        %v4717 = vld [vmem:[%s4668 + $0x180] sm:$0xff]
        %v4718 = vld [vmem:[%s4668 + $0x188] sm:$0xff]
        %v4719 = vld [vmem:[%s4668 + $0x190] sm:$0xff]
        %v4720 = vld [vmem:[%s4668 + $0x198] sm:$0xff]
        %v4721 = vld [vmem:[%s4668 + $0x1a0] sm:$0xff]
        %v4722 = vld [vmem:[%s4668 + $0x1a8] sm:$0xff]
        %v4723 = vld [vmem:[%s4668 + $0x1b0] sm:$0xff]
        %v4724 = vld [vmem:[%s4668 + $0x1b8] sm:$0xff]
        %v4725 = vld [vmem:[%s4668 + $0x1c0] sm:$0xff]
        %v4726 = vld [vmem:[%s4668 + $0x1c8] sm:$0xff]
        %v4727 = vld [vmem:[%s4668 + $0x1d0] sm:$0xff]
        %v4728 = vld [vmem:[%s4668 + $0x1d8] sm:$0xff]
        %v4729 = vld [vmem:[%s4668 + $0x1e0] sm:$0xff]
        %v4730 = vld [vmem:[%s4668 + $0x1e8] sm:$0xff]
        %v4731 = vld [vmem:[%s4668 + $0x1f0] sm:$0xff]
        %v4732 = vld [vmem:[%s4668 + $0x1f8] sm:$0xff]
        %v4797 = vunpack.c.l.b16 %v4669
        %v4798 = vunpack.c.h.b16 %v4669
        %v4799 = vunpack.c.l.b16 %v4670
        %v4800 = vunpack.c.h.b16 %v4670
        %v4801 = vunpack.c.l.b16 %v4671
        %v4802 = vunpack.c.h.b16 %v4671
        %v4803 = vunpack.c.l.b16 %v4672
        %v4804 = vunpack.c.h.b16 %v4672
        %v4805 = vunpack.c.l.b16 %v4673
        %v4806 = vunpack.c.h.b16 %v4673
        %v4807 = vunpack.c.l.b16 %v4674
        %v4808 = vunpack.c.h.b16 %v4674
        %v4809 = vunpack.c.l.b16 %v4675
        %v4810 = vunpack.c.h.b16 %v4675
        %v4811 = vunpack.c.l.b16 %v4676
        %v4812 = vunpack.c.h.b16 %v4676
        %v4813 = vunpack.c.l.b16 %v4677
        %v4814 = vunpack.c.h.b16 %v4677
        %v4815 = vunpack.c.l.b16 %v4678
        %v4816 = vunpack.c.h.b16 %v4678
        %v4817 = vunpack.c.l.b16 %v4679
        %v4818 = vunpack.c.h.b16 %v4679
        %v4819 = vunpack.c.l.b16 %v4680
        %v4820 = vunpack.c.h.b16 %v4680
        %v4821 = vunpack.c.l.b16 %v4681
        %v4822 = vunpack.c.h.b16 %v4681
        %v4823 = vunpack.c.l.b16 %v4682
        %v4824 = vunpack.c.h.b16 %v4682
        %v4825 = vunpack.c.l.b16 %v4683
        %v4826 = vunpack.c.h.b16 %v4683
        %v4827 = vunpack.c.l.b16 %v4684
        %v4828 = vunpack.c.h.b16 %v4684
        %v4829 = vunpack.c.l.b16 %v4685
        %v4830 = vunpack.c.h.b16 %v4685
        %v4831 = vunpack.c.l.b16 %v4686
        %v4832 = vunpack.c.h.b16 %v4686
        %v4833 = vunpack.c.l.b16 %v4687
        %v4834 = vunpack.c.h.b16 %v4687
        %v4835 = vunpack.c.l.b16 %v4688
        %v4836 = vunpack.c.h.b16 %v4688
        %v4837 = vunpack.c.l.b16 %v4689
        %v4838 = vunpack.c.h.b16 %v4689
        %v4839 = vunpack.c.l.b16 %v4690
        %v4840 = vunpack.c.h.b16 %v4690
        %v4841 = vunpack.c.l.b16 %v4691
        %v4842 = vunpack.c.h.b16 %v4691
        %v4843 = vunpack.c.l.b16 %v4692
        %v4844 = vunpack.c.h.b16 %v4692
        %v4845 = vunpack.c.l.b16 %v4693
        %v4846 = vunpack.c.h.b16 %v4693
        %v4847 = vunpack.c.l.b16 %v4694
        %v4848 = vunpack.c.h.b16 %v4694
        %v4849 = vunpack.c.l.b16 %v4695
        %v4850 = vunpack.c.h.b16 %v4695
        %v4851 = vunpack.c.l.b16 %v4696
        %v4852 = vunpack.c.h.b16 %v4696
        %v4853 = vunpack.c.l.b16 %v4697
        %v4854 = vunpack.c.h.b16 %v4697
        %v4855 = vunpack.c.l.b16 %v4698
        %v4856 = vunpack.c.h.b16 %v4698
        %v4857 = vunpack.c.l.b16 %v4699
        %v4858 = vunpack.c.h.b16 %v4699
        %v4859 = vunpack.c.l.b16 %v4700
        %v4860 = vunpack.c.h.b16 %v4700
        %v4861 = vunpack.c.l.b16 %v4701
        %v4862 = vunpack.c.h.b16 %v4701
        %v4863 = vunpack.c.l.b16 %v4702
        %v4864 = vunpack.c.h.b16 %v4702
        %v4865 = vunpack.c.l.b16 %v4703
        %v4866 = vunpack.c.h.b16 %v4703
        %v4867 = vunpack.c.l.b16 %v4704
        %v4868 = vunpack.c.h.b16 %v4704
        %v4869 = vunpack.c.l.b16 %v4705
        %v4870 = vunpack.c.h.b16 %v4705
        %v4871 = vunpack.c.l.b16 %v4706
        %v4872 = vunpack.c.h.b16 %v4706
        %v4873 = vunpack.c.l.b16 %v4707
        %v4874 = vunpack.c.h.b16 %v4707
        %v4875 = vunpack.c.l.b16 %v4708
        %v4876 = vunpack.c.h.b16 %v4708
        %v4877 = vunpack.c.l.b16 %v4709
        %v4878 = vunpack.c.h.b16 %v4709
        %v4879 = vunpack.c.l.b16 %v4710
        %v4880 = vunpack.c.h.b16 %v4710
        %v4881 = vunpack.c.l.b16 %v4711
        %v4882 = vunpack.c.h.b16 %v4711
        %v4883 = vunpack.c.l.b16 %v4712
        %v4884 = vunpack.c.h.b16 %v4712
        %v4885 = vunpack.c.l.b16 %v4713
        %v4886 = vunpack.c.h.b16 %v4713
        %v4887 = vunpack.c.l.b16 %v4714
        %v4888 = vunpack.c.h.b16 %v4714
        %v4889 = vunpack.c.l.b16 %v4715
        %v4890 = vunpack.c.h.b16 %v4715
        %v4891 = vunpack.c.l.b16 %v4716
        %v4892 = vunpack.c.h.b16 %v4716
        %v4893 = vunpack.c.l.b16 %v4717
        %v4894 = vunpack.c.h.b16 %v4717
        %v4895 = vunpack.c.l.b16 %v4718
        %v4896 = vunpack.c.h.b16 %v4718
        %v4897 = vunpack.c.l.b16 %v4719
        %v4898 = vunpack.c.h.b16 %v4719
        %v4899 = vunpack.c.l.b16 %v4720
        %v4900 = vunpack.c.h.b16 %v4720
        %v4901 = vunpack.c.l.b16 %v4721
        %v4902 = vunpack.c.h.b16 %v4721
        %v4903 = vunpack.c.l.b16 %v4722
        %v4904 = vunpack.c.h.b16 %v4722
        %v4905 = vunpack.c.l.b16 %v4723
        %v4906 = vunpack.c.h.b16 %v4723
        %v4907 = vunpack.c.l.b16 %v4724
        %v4908 = vunpack.c.h.b16 %v4724
        %v4909 = vunpack.c.l.b16 %v4725
        %v4910 = vunpack.c.h.b16 %v4725
        %v4911 = vunpack.c.l.b16 %v4726
        %v4912 = vunpack.c.h.b16 %v4726
        %v4913 = vunpack.c.l.b16 %v4727
        %v4914 = vunpack.c.h.b16 %v4727
        %v4915 = vunpack.c.l.b16 %v4728
        %v4916 = vunpack.c.h.b16 %v4728
        %v4917 = vunpack.c.l.b16 %v4729
        %v4918 = vunpack.c.h.b16 %v4729
        %v4919 = vunpack.c.l.b16 %v4730
        %v4920 = vunpack.c.h.b16 %v4730
        %v4921 = vunpack.c.l.b16 %v4731
        %v4922 = vunpack.c.h.b16 %v4731
        %v4923 = vunpack.c.l.b16 %v4732
        %v4924 = vunpack.c.h.b16 %v4732
        %v4925 = vpack.c.b16 %v4799, %v4797
        %v4926 = vpack.c.b16 %v4800, %v4798
        %v4927 = vpack.c.b16 %v4803, %v4801
        %v4928 = vpack.c.b16 %v4804, %v4802
        %v4929 = vpack.c.b16 %v4807, %v4805
        %v4930 = vpack.c.b16 %v4808, %v4806
        %v4931 = vpack.c.b16 %v4811, %v4809
        %v4932 = vpack.c.b16 %v4812, %v4810
        %v4933 = vpack.c.b16 %v4815, %v4813
        %v4934 = vpack.c.b16 %v4816, %v4814
        %v4935 = vpack.c.b16 %v4819, %v4817
        %v4936 = vpack.c.b16 %v4820, %v4818
        %v4937 = vpack.c.b16 %v4823, %v4821
        %v4938 = vpack.c.b16 %v4824, %v4822
        %v4939 = vpack.c.b16 %v4827, %v4825
        %v4940 = vpack.c.b16 %v4828, %v4826
        %v4941 = vpack.c.b16 %v4831, %v4829
        %v4942 = vpack.c.b16 %v4832, %v4830
        %v4943 = vpack.c.b16 %v4835, %v4833
        %v4944 = vpack.c.b16 %v4836, %v4834
        %v4945 = vpack.c.b16 %v4839, %v4837
        %v4946 = vpack.c.b16 %v4840, %v4838
        %v4947 = vpack.c.b16 %v4843, %v4841
        %v4948 = vpack.c.b16 %v4844, %v4842
        %v4949 = vpack.c.b16 %v4847, %v4845
        %v4950 = vpack.c.b16 %v4848, %v4846
        %v4951 = vpack.c.b16 %v4851, %v4849
        %v4952 = vpack.c.b16 %v4852, %v4850
        %v4953 = vpack.c.b16 %v4855, %v4853
        %v4954 = vpack.c.b16 %v4856, %v4854
        %v4955 = vpack.c.b16 %v4859, %v4857
        %v4956 = vpack.c.b16 %v4860, %v4858
        %v4957 = vpack.c.b16 %v4863, %v4861
        %v4958 = vpack.c.b16 %v4864, %v4862
        %v4959 = vpack.c.b16 %v4867, %v4865
        %v4960 = vpack.c.b16 %v4868, %v4866
        %v4961 = vpack.c.b16 %v4871, %v4869
        %v4962 = vpack.c.b16 %v4872, %v4870
        %v4963 = vpack.c.b16 %v4875, %v4873
        %v4964 = vpack.c.b16 %v4876, %v4874
        %v4965 = vpack.c.b16 %v4879, %v4877
        %v4966 = vpack.c.b16 %v4880, %v4878
        %v4967 = vpack.c.b16 %v4883, %v4881
        %v4968 = vpack.c.b16 %v4884, %v4882
        %v4969 = vpack.c.b16 %v4887, %v4885
        %v4970 = vpack.c.b16 %v4888, %v4886
        %v4971 = vpack.c.b16 %v4891, %v4889
        %v4972 = vpack.c.b16 %v4892, %v4890
        %v4973 = vpack.c.b16 %v4895, %v4893
        %v4974 = vpack.c.b16 %v4896, %v4894
        %v4975 = vpack.c.b16 %v4899, %v4897
        %v4976 = vpack.c.b16 %v4900, %v4898
        %v4977 = vpack.c.b16 %v4903, %v4901
        %v4978 = vpack.c.b16 %v4904, %v4902
        %v4979 = vpack.c.b16 %v4907, %v4905
        %v4980 = vpack.c.b16 %v4908, %v4906
        %v4981 = vpack.c.b16 %v4911, %v4909
        %v4982 = vpack.c.b16 %v4912, %v4910
        %v4983 = vpack.c.b16 %v4915, %v4913
        %v4984 = vpack.c.b16 %v4916, %v4914
        %v4985 = vpack.c.b16 %v4919, %v4917
        %v4986 = vpack.c.b16 %v4920, %v4918
        %v4987 = vpack.c.b16 %v4923, %v4921
        %v4988 = vpack.c.b16 %v4924, %v4922
        %5053 = vmatprep.subr.bf16.mxu0 %v4926
        %5054 = vmatpush1.bf16.msra.mxu0 %v4925
        %5055 = vmatprep.subr.bf16.mxu0 %v4928
        %5056 = vmatpush1.bf16.msra.mxu0 %v4927
        %5057 = vmatprep.subr.bf16.mxu0 %v4930
        %5058 = vmatpush1.bf16.msra.mxu0 %v4929
        %5059 = vmatprep.subr.bf16.mxu0 %v4932
        %5060 = vmatpush1.bf16.msra.mxu0 %v4931
        %5061 = vmatprep.subr.bf16.mxu0 %v4934
        %5062 = vmatpush1.bf16.msra.mxu0 %v4933
        %5063 = vmatprep.subr.bf16.mxu0 %v4936
        %5064 = vmatpush1.bf16.msra.mxu0 %v4935
        %5065 = vmatprep.subr.bf16.mxu0 %v4938
        %5066 = vmatpush1.bf16.msra.mxu0 %v4937
        %5067 = vmatprep.subr.bf16.mxu0 %v4940
        %5068 = vmatpush1.bf16.msra.mxu0 %v4939
        %5069 = vmatprep.subr.bf16.mxu0 %v4942
        %5070 = vmatpush1.bf16.msra.mxu0 %v4941
        %5071 = vmatprep.subr.bf16.mxu0 %v4944
        %5072 = vmatpush1.bf16.msra.mxu0 %v4943
        %5073 = vmatprep.subr.bf16.mxu0 %v4946
        %5074 = vmatpush1.bf16.msra.mxu0 %v4945
        %5075 = vmatprep.subr.bf16.mxu0 %v4948
        %5076 = vmatpush1.bf16.msra.mxu0 %v4947
        %5077 = vmatprep.subr.bf16.mxu0 %v4950
        %5078 = vmatpush1.bf16.msra.mxu0 %v4949
        %5079 = vmatprep.subr.bf16.mxu0 %v4952
        %5080 = vmatpush1.bf16.msra.mxu0 %v4951
        %5081 = vmatprep.subr.bf16.mxu0 %v4954
        %5082 = vmatpush1.bf16.msra.mxu0 %v4953
        %5083 = vmatprep.subr.bf16.mxu0 %v4956
        %5084 = vmatpush1.bf16.msra.mxu0 %v4955
        %5085 = vmatprep.mubr.bf16.mxu0 %v4637
        %5086 = vmatmul.mubr.bf16.gmra.mrb[0].mxu0 %v4636
        %v5087 = vpop.f32.mrb[0].mxu0
        %v5088 = vadd.f32 0.0, %v5087
        %v5089 = vpop.f32.mrb[0].mxu0
        %v5090 = vadd.f32 0.0, %v5089
        %v5091 = vpop.f32.mrb[0].mxu0
        %v5092 = vadd.f32 0.0, %v5091
        %v5093 = vpop.f32.mrb[0].mxu0
        %v5094 = vadd.f32 0.0, %v5093
        %5095 = vmatprep.mubr.bf16.mxu0 %v4641
        %5096 = vmatmul.mubr.bf16.gmra.mrb[0].mxu0 %v4640
        %v5097 = vpop.f32.mrb[0].mxu0
        %v5098 = vadd.f32 0.0, %v5097
        %v5099 = vpop.f32.mrb[0].mxu0
        %v5100 = vadd.f32 0.0, %v5099
        %v5101 = vpop.f32.mrb[0].mxu0
        %v5102 = vadd.f32 0.0, %v5101
        %v5103 = vpop.f32.mrb[0].mxu0
        %v5104 = vadd.f32 0.0, %v5103
        %5105 = vmatprep.mubr.bf16.mxu0 %v4645
        %5106 = vmatmul.mubr.bf16.gmra.mrb[0].mxu0 %v4644
        %v5107 = vpop.f32.mrb[0].mxu0
        %v5108 = vadd.f32 0.0, %v5107
        %v5109 = vpop.f32.mrb[0].mxu0
        %v5110 = vadd.f32 0.0, %v5109
        %v5111 = vpop.f32.mrb[0].mxu0
        %v5112 = vadd.f32 0.0, %v5111
        %v5113 = vpop.f32.mrb[0].mxu0
        %v5114 = vadd.f32 0.0, %v5113
        %5115 = vmatprep.mubr.bf16.mxu0 %v4649
        %5116 = vmatmul.mubr.bf16.gmra.mrb[0].mxu0 %v4648
        %v5117 = vpop.f32.mrb[0].mxu0
        %v5118 = vadd.f32 0.0, %v5117
        %v5119 = vpop.f32.mrb[0].mxu0
        %v5120 = vadd.f32 0.0, %v5119
        %v5121 = vpop.f32.mrb[0].mxu0
        %v5122 = vadd.f32 0.0, %v5121
        %v5123 = vpop.f32.mrb[0].mxu0
        %v5124 = vadd.f32 0.0, %v5123
        %5125 = vmatprep.mubr.bf16.mxu0 %v4653
        %5126 = vmatmul.mubr.bf16.gmra.mrb[0].mxu0 %v4652
        %v5127 = vpop.f32.mrb[0].mxu0
        %v5128 = vadd.f32 0.0, %v5127
        %v5129 = vpop.f32.mrb[0].mxu0
        %v5130 = vadd.f32 0.0, %v5129
        %v5131 = vpop.f32.mrb[0].mxu0
        %v5132 = vadd.f32 0.0, %v5131
        %v5133 = vpop.f32.mrb[0].mxu0
        %v5134 = vadd.f32 0.0, %v5133
        %5135 = vmatprep.mubr.bf16.mxu0 %v4657
        %5136 = vmatmul.mubr.bf16.gmra.mrb[0].mxu0 %v4656
        %v5137 = vpop.f32.mrb[0].mxu0
        %v5138 = vadd.f32 0.0, %v5137
        %v5139 = vpop.f32.mrb[0].mxu0
        %v5140 = vadd.f32 0.0, %v5139
        %v5141 = vpop.f32.mrb[0].mxu0
        %v5142 = vadd.f32 0.0, %v5141
        %v5143 = vpop.f32.mrb[0].mxu0
        %v5144 = vadd.f32 0.0, %v5143
        %5145 = vmatprep.mubr.bf16.mxu0 %v4661
        %5146 = vmatmul.mubr.bf16.gmra.mrb[0].mxu0 %v4660
        %v5147 = vpop.f32.mrb[0].mxu0
        %v5148 = vadd.f32 0.0, %v5147
        %v5149 = vpop.f32.mrb[0].mxu0
        %v5150 = vadd.f32 0.0, %v5149
        %v5151 = vpop.f32.mrb[0].mxu0
        %v5152 = vadd.f32 0.0, %v5151
        %v5153 = vpop.f32.mrb[0].mxu0
        %v5154 = vadd.f32 0.0, %v5153
        %5155 = vmatprep.mubr.bf16.mxu0 %v4665
        %5156 = vmatmul.mubr.bf16.gmra.mrb[0].mxu0 %v4664
        %v5157 = vpop.f32.mrb[0].mxu0
        %v5158 = vadd.f32 0.0, %v5157
        %v5159 = vpop.f32.mrb[0].mxu0
        %v5160 = vadd.f32 0.0, %v5159
        %v5161 = vpop.f32.mrb[0].mxu0
        %v5162 = vadd.f32 0.0, %v5161
        %v5163 = vpop.f32.mrb[0].mxu0
        %v5164 = vadd.f32 0.0, %v5163
        %5165 = vdwg.mxu0
        %5166 = vmatprep.subr.bf16.mxu0 %v4958
        %5167 = vmatpush1.bf16.msra.mxu0 %v4957
        %5168 = vmatprep.subr.bf16.mxu0 %v4960
        %5169 = vmatpush1.bf16.msra.mxu0 %v4959
        %5170 = vmatprep.subr.bf16.mxu0 %v4962
        %5171 = vmatpush1.bf16.msra.mxu0 %v4961
        %5172 = vmatprep.subr.bf16.mxu0 %v4964
        %5173 = vmatpush1.bf16.msra.mxu0 %v4963
        %5174 = vmatprep.subr.bf16.mxu0 %v4966
        %5175 = vmatpush1.bf16.msra.mxu0 %v4965
        %5176 = vmatprep.subr.bf16.mxu0 %v4968
        %5177 = vmatpush1.bf16.msra.mxu0 %v4967
        %5178 = vmatprep.subr.bf16.mxu0 %v4970
        %5179 = vmatpush1.bf16.msra.mxu0 %v4969
        %5180 = vmatprep.subr.bf16.mxu0 %v4972
        %5181 = vmatpush1.bf16.msra.mxu0 %v4971
        %5182 = vmatprep.subr.bf16.mxu0 %v4974
        %5183 = vmatpush1.bf16.msra.mxu0 %v4973
        %5184 = vmatprep.subr.bf16.mxu0 %v4976
        %5185 = vmatpush1.bf16.msra.mxu0 %v4975
        %5186 = vmatprep.subr.bf16.mxu0 %v4978
        %5187 = vmatpush1.bf16.msra.mxu0 %v4977
        %5188 = vmatprep.subr.bf16.mxu0 %v4980
        %5189 = vmatpush1.bf16.msra.mxu0 %v4979
        %5190 = vmatprep.subr.bf16.mxu0 %v4982
        %5191 = vmatpush1.bf16.msra.mxu0 %v4981
        %5192 = vmatprep.subr.bf16.mxu0 %v4984
        %5193 = vmatpush1.bf16.msra.mxu0 %v4983
        %5194 = vmatprep.subr.bf16.mxu0 %v4986
        %5195 = vmatpush1.bf16.msra.mxu0 %v4985
        %5196 = vmatprep.subr.bf16.mxu0 %v4988
        %5197 = vmatpush1.bf16.msra.mxu0 %v4987
        %5198 = vmatprep.mubr.bf16.mxu0 %v4639
        %5199 = vmatmul.mubr.bf16.gmra.mrb[0].mxu0 %v4638
        %v5200 = vpop.f32.mrb[0].mxu0
        %v5201 = vadd.f32 %v5088, %v5200
        %v5202 = vpop.f32.mrb[0].mxu0
        %v5203 = vadd.f32 %v5090, %v5202
        %v5204 = vpop.f32.mrb[0].mxu0
        %v5205 = vadd.f32 %v5092, %v5204
        %v5206 = vpop.f32.mrb[0].mxu0
        %v5207 = vadd.f32 %v5094, %v5206
        %5208 = vmatprep.mubr.bf16.mxu0 %v4643
        %5209 = vmatmul.mubr.bf16.gmra.mrb[0].mxu0 %v4642
        %v5210 = vpop.f32.mrb[0].mxu0
        %v5211 = vadd.f32 %v5098, %v5210
        %v5212 = vpop.f32.mrb[0].mxu0
        %v5213 = vadd.f32 %v5100, %v5212
        %v5214 = vpop.f32.mrb[0].mxu0
        %v5215 = vadd.f32 %v5102, %v5214
        %v5216 = vpop.f32.mrb[0].mxu0
        %v5217 = vadd.f32 %v5104, %v5216
        %5218 = vmatprep.mubr.bf16.mxu0 %v4647
        %5219 = vmatmul.mubr.bf16.gmra.mrb[0].mxu0 %v4646
        %v5220 = vpop.f32.mrb[0].mxu0
        %v5221 = vadd.f32 %v5108, %v5220
        %v5222 = vpop.f32.mrb[0].mxu0
        %v5223 = vadd.f32 %v5110, %v5222
        %v5224 = vpop.f32.mrb[0].mxu0
        %v5225 = vadd.f32 %v5112, %v5224
        %v5226 = vpop.f32.mrb[0].mxu0
        %v5227 = vadd.f32 %v5114, %v5226
        %5228 = vmatprep.mubr.bf16.mxu0 %v4651
        %5229 = vmatmul.mubr.bf16.gmra.mrb[0].mxu0 %v4650
        %v5230 = vpop.f32.mrb[0].mxu0
        %v5231 = vadd.f32 %v5118, %v5230
        %v5232 = vpop.f32.mrb[0].mxu0
        %v5233 = vadd.f32 %v5120, %v5232
        %v5234 = vpop.f32.mrb[0].mxu0
        %v5235 = vadd.f32 %v5122, %v5234
        %v5236 = vpop.f32.mrb[0].mxu0
        %v5237 = vadd.f32 %v5124, %v5236
        %5238 = vmatprep.mubr.bf16.mxu0 %v4655
        %5239 = vmatmul.mubr.bf16.gmra.mrb[0].mxu0 %v4654
        %v5240 = vpop.f32.mrb[0].mxu0
        %v5241 = vadd.f32 %v5128, %v5240
        %v5242 = vpop.f32.mrb[0].mxu0
        %v5243 = vadd.f32 %v5130, %v5242
        %v5244 = vpop.f32.mrb[0].mxu0
        %v5245 = vadd.f32 %v5132, %v5244
        %v5246 = vpop.f32.mrb[0].mxu0
        %v5247 = vadd.f32 %v5134, %v5246
        %5248 = vmatprep.mubr.bf16.mxu0 %v4659
        %5249 = vmatmul.mubr.bf16.gmra.mrb[0].mxu0 %v4658
        %v5250 = vpop.f32.mrb[0].mxu0
        %v5251 = vadd.f32 %v5138, %v5250
        %v5252 = vpop.f32.mrb[0].mxu0
        %v5253 = vadd.f32 %v5140, %v5252
        %v5254 = vpop.f32.mrb[0].mxu0
        %v5255 = vadd.f32 %v5142, %v5254
        %v5256 = vpop.f32.mrb[0].mxu0
        %v5257 = vadd.f32 %v5144, %v5256
        %5258 = vmatprep.mubr.bf16.mxu0 %v4663
        %5259 = vmatmul.mubr.bf16.gmra.mrb[0].mxu0 %v4662
        %v5260 = vpop.f32.mrb[0].mxu0
        %v5261 = vadd.f32 %v5148, %v5260
        %v5262 = vpop.f32.mrb[0].mxu0
        %v5263 = vadd.f32 %v5150, %v5262
        %v5264 = vpop.f32.mrb[0].mxu0
        %v5265 = vadd.f32 %v5152, %v5264
        %v5266 = vpop.f32.mrb[0].mxu0
        %v5267 = vadd.f32 %v5154, %v5266
        %5268 = vmatprep.mubr.bf16.mxu0 %v4667
        %5269 = vmatmul.mubr.bf16.gmra.mrb[0].mxu0 %v4666
        %v5270 = vpop.f32.mrb[0].mxu0
        %v5271 = vadd.f32 %v5158, %v5270
        %v5272 = vpop.f32.mrb[0].mxu0
        %v5273 = vadd.f32 %v5160, %v5272
        %v5274 = vpop.f32.mrb[0].mxu0
        %v5275 = vadd.f32 %v5162, %v5274
        %v5276 = vpop.f32.mrb[0].mxu0
        %v5277 = vadd.f32 %v5164, %v5276
        %5278 = vdwg.mxu0
        %v5279 = vadd.f32 %v4603, %v5201
        %v5280 = vadd.f32 %v4604, %v5203
        %v5281 = vadd.f32 %v4605, %v5205
        %v5282 = vadd.f32 %v4606, %v5207
        %v5283 = vadd.f32 %v4607, %v5211
        %v5284 = vadd.f32 %v4608, %v5213
        %v5285 = vadd.f32 %v4609, %v5215
        %v5286 = vadd.f32 %v4610, %v5217
        %v5287 = vadd.f32 %v4611, %v5221
        %v5288 = vadd.f32 %v4612, %v5223
        %v5289 = vadd.f32 %v4613, %v5225
        %v5290 = vadd.f32 %v4614, %v5227
        %v5291 = vadd.f32 %v4615, %v5231
        %v5292 = vadd.f32 %v4616, %v5233
        %v5293 = vadd.f32 %v4617, %v5235
        %v5294 = vadd.f32 %v4618, %v5237
        %v5295 = vadd.f32 %v4619, %v5241
        %v5296 = vadd.f32 %v4620, %v5243
        %v5297 = vadd.f32 %v4621, %v5245
        %v5298 = vadd.f32 %v4622, %v5247
        %v5299 = vadd.f32 %v4623, %v5251
        %v5300 = vadd.f32 %v4624, %v5253
        %v5301 = vadd.f32 %v4625, %v5255
        %v5302 = vadd.f32 %v4626, %v5257
        %v5303 = vadd.f32 %v4627, %v5261
        %v5304 = vadd.f32 %v4628, %v5263
        %v5305 = vadd.f32 %v4629, %v5265
        %v5306 = vadd.f32 %v4630, %v5267
        %v5307 = vadd.f32 %v4631, %v5271
        %v5308 = vadd.f32 %v4632, %v5273
        %v5309 = vadd.f32 %v4633, %v5275
        %v5310 = vadd.f32 %v4634, %v5277
        %s5311 = scalar_lea.vmem [#allocation2], 672
        %v5312 = vld [vmem:[%s5311] sm:$0xff]
        %v5313 = vld [vmem:[%s5311 + $0x8] sm:$0xff]
        %v5314 = vld [vmem:[%s5311 + $0x10] sm:$0xff]
        %v5315 = vld [vmem:[%s5311 + $0x18] sm:$0xff]
        %v5316 = vld [vmem:[%s5311 + $0x20] sm:$0xff]
        %v5317 = vld [vmem:[%s5311 + $0x28] sm:$0xff]
        %v5318 = vld [vmem:[%s5311 + $0x30] sm:$0xff]
        %v5319 = vld [vmem:[%s5311 + $0x38] sm:$0xff]
        %v5320 = vld [vmem:[%s5311 + $0x40] sm:$0xff]
        %v5321 = vld [vmem:[%s5311 + $0x48] sm:$0xff]
        %v5322 = vld [vmem:[%s5311 + $0x50] sm:$0xff]
        %v5323 = vld [vmem:[%s5311 + $0x58] sm:$0xff]
        %v5324 = vld [vmem:[%s5311 + $0x60] sm:$0xff]
        %v5325 = vld [vmem:[%s5311 + $0x68] sm:$0xff]
        %v5326 = vld [vmem:[%s5311 + $0x70] sm:$0xff]
        %v5327 = vld [vmem:[%s5311 + $0x78] sm:$0xff]
        %v5328 = vld [vmem:[%s5311 + $0x80] sm:$0xff]
        %v5329 = vld [vmem:[%s5311 + $0x88] sm:$0xff]
        %v5330 = vld [vmem:[%s5311 + $0x90] sm:$0xff]
        %v5331 = vld [vmem:[%s5311 + $0x98] sm:$0xff]
        %v5332 = vld [vmem:[%s5311 + $0xa0] sm:$0xff]
        %v5333 = vld [vmem:[%s5311 + $0xa8] sm:$0xff]
        %v5334 = vld [vmem:[%s5311 + $0xb0] sm:$0xff]
        %v5335 = vld [vmem:[%s5311 + $0xb8] sm:$0xff]
        %v5336 = vld [vmem:[%s5311 + $0xc0] sm:$0xff]
        %v5337 = vld [vmem:[%s5311 + $0xc8] sm:$0xff]
        %v5338 = vld [vmem:[%s5311 + $0xd0] sm:$0xff]
        %v5339 = vld [vmem:[%s5311 + $0xd8] sm:$0xff]
        %v5340 = vld [vmem:[%s5311 + $0xe0] sm:$0xff]
        %v5341 = vld [vmem:[%s5311 + $0xe8] sm:$0xff]
        %v5342 = vld [vmem:[%s5311 + $0xf0] sm:$0xff]
        %v5343 = vld [vmem:[%s5311 + $0xf8] sm:$0xff]
        %s5344 = scalar_lea.vmem %s6, 2560
        %v5345 = vld [vmem:[%s5344] sm:$0xff]
        %v5346 = vld [vmem:[%s5344 + $0x8] sm:$0xff]
        %v5347 = vld [vmem:[%s5344 + $0x10] sm:$0xff]
        %v5348 = vld [vmem:[%s5344 + $0x18] sm:$0xff]
        %v5349 = vld [vmem:[%s5344 + $0x20] sm:$0xff]
        %v5350 = vld [vmem:[%s5344 + $0x28] sm:$0xff]
        %v5351 = vld [vmem:[%s5344 + $0x30] sm:$0xff]
        %v5352 = vld [vmem:[%s5344 + $0x38] sm:$0xff]
        %v5353 = vld [vmem:[%s5344 + $0x40] sm:$0xff]
        %v5354 = vld [vmem:[%s5344 + $0x48] sm:$0xff]
        %v5355 = vld [vmem:[%s5344 + $0x50] sm:$0xff]
        %v5356 = vld [vmem:[%s5344 + $0x58] sm:$0xff]
        %v5357 = vld [vmem:[%s5344 + $0x60] sm:$0xff]
        %v5358 = vld [vmem:[%s5344 + $0x68] sm:$0xff]
        %v5359 = vld [vmem:[%s5344 + $0x70] sm:$0xff]
        %v5360 = vld [vmem:[%s5344 + $0x78] sm:$0xff]
        %v5361 = vld [vmem:[%s5344 + $0x80] sm:$0xff]
        %v5362 = vld [vmem:[%s5344 + $0x88] sm:$0xff]
        %v5363 = vld [vmem:[%s5344 + $0x90] sm:$0xff]
        %v5364 = vld [vmem:[%s5344 + $0x98] sm:$0xff]
        %v5365 = vld [vmem:[%s5344 + $0xa0] sm:$0xff]
        %v5366 = vld [vmem:[%s5344 + $0xa8] sm:$0xff]
        %v5367 = vld [vmem:[%s5344 + $0xb0] sm:$0xff]
        %v5368 = vld [vmem:[%s5344 + $0xb8] sm:$0xff]
        %v5369 = vld [vmem:[%s5344 + $0xc0] sm:$0xff]
        %v5370 = vld [vmem:[%s5344 + $0xc8] sm:$0xff]
        %v5371 = vld [vmem:[%s5344 + $0xd0] sm:$0xff]
        %v5372 = vld [vmem:[%s5344 + $0xd8] sm:$0xff]
        %v5373 = vld [vmem:[%s5344 + $0xe0] sm:$0xff]
        %v5374 = vld [vmem:[%s5344 + $0xe8] sm:$0xff]
        %v5375 = vld [vmem:[%s5344 + $0xf0] sm:$0xff]
        %v5376 = vld [vmem:[%s5344 + $0xf8] sm:$0xff]
        %v5377 = vld [vmem:[%s5344 + $0x100] sm:$0xff]
        %v5378 = vld [vmem:[%s5344 + $0x108] sm:$0xff]
        %v5379 = vld [vmem:[%s5344 + $0x110] sm:$0xff]
        %v5380 = vld [vmem:[%s5344 + $0x118] sm:$0xff]
        %v5381 = vld [vmem:[%s5344 + $0x120] sm:$0xff]
        %v5382 = vld [vmem:[%s5344 + $0x128] sm:$0xff]
        %v5383 = vld [vmem:[%s5344 + $0x130] sm:$0xff]
        %v5384 = vld [vmem:[%s5344 + $0x138] sm:$0xff]
        %v5385 = vld [vmem:[%s5344 + $0x140] sm:$0xff]
        %v5386 = vld [vmem:[%s5344 + $0x148] sm:$0xff]
        %v5387 = vld [vmem:[%s5344 + $0x150] sm:$0xff]
        %v5388 = vld [vmem:[%s5344 + $0x158] sm:$0xff]
        %v5389 = vld [vmem:[%s5344 + $0x160] sm:$0xff]
        %v5390 = vld [vmem:[%s5344 + $0x168] sm:$0xff]
        %v5391 = vld [vmem:[%s5344 + $0x170] sm:$0xff]
        %v5392 = vld [vmem:[%s5344 + $0x178] sm:$0xff]
        %v5393 = vld [vmem:[%s5344 + $0x180] sm:$0xff]
        %v5394 = vld [vmem:[%s5344 + $0x188] sm:$0xff]
        %v5395 = vld [vmem:[%s5344 + $0x190] sm:$0xff]
        %v5396 = vld [vmem:[%s5344 + $0x198] sm:$0xff]
        %v5397 = vld [vmem:[%s5344 + $0x1a0] sm:$0xff]
        %v5398 = vld [vmem:[%s5344 + $0x1a8] sm:$0xff]
        %v5399 = vld [vmem:[%s5344 + $0x1b0] sm:$0xff]
        %v5400 = vld [vmem:[%s5344 + $0x1b8] sm:$0xff]
        %v5401 = vld [vmem:[%s5344 + $0x1c0] sm:$0xff]
        %v5402 = vld [vmem:[%s5344 + $0x1c8] sm:$0xff]
        %v5403 = vld [vmem:[%s5344 + $0x1d0] sm:$0xff]
        %v5404 = vld [vmem:[%s5344 + $0x1d8] sm:$0xff]
        %v5405 = vld [vmem:[%s5344 + $0x1e0] sm:$0xff]
        %v5406 = vld [vmem:[%s5344 + $0x1e8] sm:$0xff]
        %v5407 = vld [vmem:[%s5344 + $0x1f0] sm:$0xff]
        %v5408 = vld [vmem:[%s5344 + $0x1f8] sm:$0xff]
        %v5473 = vunpack.c.l.b16 %v5345
        %v5474 = vunpack.c.h.b16 %v5345
        %v5475 = vunpack.c.l.b16 %v5346
        %v5476 = vunpack.c.h.b16 %v5346
        %v5477 = vunpack.c.l.b16 %v5347
        %v5478 = vunpack.c.h.b16 %v5347
        %v5479 = vunpack.c.l.b16 %v5348
        %v5480 = vunpack.c.h.b16 %v5348
        %v5481 = vunpack.c.l.b16 %v5349
        %v5482 = vunpack.c.h.b16 %v5349
        %v5483 = vunpack.c.l.b16 %v5350
        %v5484 = vunpack.c.h.b16 %v5350
        %v5485 = vunpack.c.l.b16 %v5351
        %v5486 = vunpack.c.h.b16 %v5351
        %v5487 = vunpack.c.l.b16 %v5352
        %v5488 = vunpack.c.h.b16 %v5352
        %v5489 = vunpack.c.l.b16 %v5353
        %v5490 = vunpack.c.h.b16 %v5353
        %v5491 = vunpack.c.l.b16 %v5354
        %v5492 = vunpack.c.h.b16 %v5354
        %v5493 = vunpack.c.l.b16 %v5355
        %v5494 = vunpack.c.h.b16 %v5355
        %v5495 = vunpack.c.l.b16 %v5356
        %v5496 = vunpack.c.h.b16 %v5356
        %v5497 = vunpack.c.l.b16 %v5357
        %v5498 = vunpack.c.h.b16 %v5357
        %v5499 = vunpack.c.l.b16 %v5358
        %v5500 = vunpack.c.h.b16 %v5358
        %v5501 = vunpack.c.l.b16 %v5359
        %v5502 = vunpack.c.h.b16 %v5359
        %v5503 = vunpack.c.l.b16 %v5360
        %v5504 = vunpack.c.h.b16 %v5360
        %v5505 = vunpack.c.l.b16 %v5361
        %v5506 = vunpack.c.h.b16 %v5361
        %v5507 = vunpack.c.l.b16 %v5362
        %v5508 = vunpack.c.h.b16 %v5362
        %v5509 = vunpack.c.l.b16 %v5363
        %v5510 = vunpack.c.h.b16 %v5363
        %v5511 = vunpack.c.l.b16 %v5364
        %v5512 = vunpack.c.h.b16 %v5364
        %v5513 = vunpack.c.l.b16 %v5365
        %v5514 = vunpack.c.h.b16 %v5365
        %v5515 = vunpack.c.l.b16 %v5366
        %v5516 = vunpack.c.h.b16 %v5366
        %v5517 = vunpack.c.l.b16 %v5367
        %v5518 = vunpack.c.h.b16 %v5367
        %v5519 = vunpack.c.l.b16 %v5368
        %v5520 = vunpack.c.h.b16 %v5368
        %v5521 = vunpack.c.l.b16 %v5369
        %v5522 = vunpack.c.h.b16 %v5369
        %v5523 = vunpack.c.l.b16 %v5370
        %v5524 = vunpack.c.h.b16 %v5370
        %v5525 = vunpack.c.l.b16 %v5371
        %v5526 = vunpack.c.h.b16 %v5371
        %v5527 = vunpack.c.l.b16 %v5372
        %v5528 = vunpack.c.h.b16 %v5372
        %v5529 = vunpack.c.l.b16 %v5373
        %v5530 = vunpack.c.h.b16 %v5373
        %v5531 = vunpack.c.l.b16 %v5374
        %v5532 = vunpack.c.h.b16 %v5374
        %v5533 = vunpack.c.l.b16 %v5375
        %v5534 = vunpack.c.h.b16 %v5375
        %v5535 = vunpack.c.l.b16 %v5376
        %v5536 = vunpack.c.h.b16 %v5376
        %v5537 = vunpack.c.l.b16 %v5377
        %v5538 = vunpack.c.h.b16 %v5377
        %v5539 = vunpack.c.l.b16 %v5378
        %v5540 = vunpack.c.h.b16 %v5378
        %v5541 = vunpack.c.l.b16 %v5379
        %v5542 = vunpack.c.h.b16 %v5379
        %v5543 = vunpack.c.l.b16 %v5380
        %v5544 = vunpack.c.h.b16 %v5380
        %v5545 = vunpack.c.l.b16 %v5381
        %v5546 = vunpack.c.h.b16 %v5381
        %v5547 = vunpack.c.l.b16 %v5382
        %v5548 = vunpack.c.h.b16 %v5382
        %v5549 = vunpack.c.l.b16 %v5383
        %v5550 = vunpack.c.h.b16 %v5383
        %v5551 = vunpack.c.l.b16 %v5384
        %v5552 = vunpack.c.h.b16 %v5384
        %v5553 = vunpack.c.l.b16 %v5385
        %v5554 = vunpack.c.h.b16 %v5385
        %v5555 = vunpack.c.l.b16 %v5386
        %v5556 = vunpack.c.h.b16 %v5386
        %v5557 = vunpack.c.l.b16 %v5387
        %v5558 = vunpack.c.h.b16 %v5387
        %v5559 = vunpack.c.l.b16 %v5388
        %v5560 = vunpack.c.h.b16 %v5388
        %v5561 = vunpack.c.l.b16 %v5389
        %v5562 = vunpack.c.h.b16 %v5389
        %v5563 = vunpack.c.l.b16 %v5390
        %v5564 = vunpack.c.h.b16 %v5390
        %v5565 = vunpack.c.l.b16 %v5391
        %v5566 = vunpack.c.h.b16 %v5391
        %v5567 = vunpack.c.l.b16 %v5392
        %v5568 = vunpack.c.h.b16 %v5392
        %v5569 = vunpack.c.l.b16 %v5393
        %v5570 = vunpack.c.h.b16 %v5393
        %v5571 = vunpack.c.l.b16 %v5394
        %v5572 = vunpack.c.h.b16 %v5394
        %v5573 = vunpack.c.l.b16 %v5395
        %v5574 = vunpack.c.h.b16 %v5395
        %v5575 = vunpack.c.l.b16 %v5396
        %v5576 = vunpack.c.h.b16 %v5396
        %v5577 = vunpack.c.l.b16 %v5397
        %v5578 = vunpack.c.h.b16 %v5397
        %v5579 = vunpack.c.l.b16 %v5398
        %v5580 = vunpack.c.h.b16 %v5398
        %v5581 = vunpack.c.l.b16 %v5399
        %v5582 = vunpack.c.h.b16 %v5399
        %v5583 = vunpack.c.l.b16 %v5400
        %v5584 = vunpack.c.h.b16 %v5400
        %v5585 = vunpack.c.l.b16 %v5401
        %v5586 = vunpack.c.h.b16 %v5401
        %v5587 = vunpack.c.l.b16 %v5402
        %v5588 = vunpack.c.h.b16 %v5402
        %v5589 = vunpack.c.l.b16 %v5403
        %v5590 = vunpack.c.h.b16 %v5403
        %v5591 = vunpack.c.l.b16 %v5404
        %v5592 = vunpack.c.h.b16 %v5404
        %v5593 = vunpack.c.l.b16 %v5405
        %v5594 = vunpack.c.h.b16 %v5405
        %v5595 = vunpack.c.l.b16 %v5406
        %v5596 = vunpack.c.h.b16 %v5406
        %v5597 = vunpack.c.l.b16 %v5407
        %v5598 = vunpack.c.h.b16 %v5407
        %v5599 = vunpack.c.l.b16 %v5408
        %v5600 = vunpack.c.h.b16 %v5408
        %v5601 = vpack.c.b16 %v5475, %v5473
        %v5602 = vpack.c.b16 %v5476, %v5474
        %v5603 = vpack.c.b16 %v5479, %v5477
        %v5604 = vpack.c.b16 %v5480, %v5478
        %v5605 = vpack.c.b16 %v5483, %v5481
        %v5606 = vpack.c.b16 %v5484, %v5482
        %v5607 = vpack.c.b16 %v5487, %v5485
        %v5608 = vpack.c.b16 %v5488, %v5486
        %v5609 = vpack.c.b16 %v5491, %v5489
        %v5610 = vpack.c.b16 %v5492, %v5490
        %v5611 = vpack.c.b16 %v5495, %v5493
        %v5612 = vpack.c.b16 %v5496, %v5494
        %v5613 = vpack.c.b16 %v5499, %v5497
        %v5614 = vpack.c.b16 %v5500, %v5498
        %v5615 = vpack.c.b16 %v5503, %v5501
        %v5616 = vpack.c.b16 %v5504, %v5502
        %v5617 = vpack.c.b16 %v5507, %v5505
        %v5618 = vpack.c.b16 %v5508, %v5506
        %v5619 = vpack.c.b16 %v5511, %v5509
        %v5620 = vpack.c.b16 %v5512, %v5510
        %v5621 = vpack.c.b16 %v5515, %v5513
        %v5622 = vpack.c.b16 %v5516, %v5514
        %v5623 = vpack.c.b16 %v5519, %v5517
        %v5624 = vpack.c.b16 %v5520, %v5518
        %v5625 = vpack.c.b16 %v5523, %v5521
        %v5626 = vpack.c.b16 %v5524, %v5522
        %v5627 = vpack.c.b16 %v5527, %v5525
        %v5628 = vpack.c.b16 %v5528, %v5526
        %v5629 = vpack.c.b16 %v5531, %v5529
        %v5630 = vpack.c.b16 %v5532, %v5530
        %v5631 = vpack.c.b16 %v5535, %v5533
        %v5632 = vpack.c.b16 %v5536, %v5534
        %v5633 = vpack.c.b16 %v5539, %v5537
        %v5634 = vpack.c.b16 %v5540, %v5538
        %v5635 = vpack.c.b16 %v5543, %v5541
        %v5636 = vpack.c.b16 %v5544, %v5542
        %v5637 = vpack.c.b16 %v5547, %v5545
        %v5638 = vpack.c.b16 %v5548, %v5546
        %v5639 = vpack.c.b16 %v5551, %v5549
        %v5640 = vpack.c.b16 %v5552, %v5550
        %v5641 = vpack.c.b16 %v5555, %v5553
        %v5642 = vpack.c.b16 %v5556, %v5554
        %v5643 = vpack.c.b16 %v5559, %v5557
        %v5644 = vpack.c.b16 %v5560, %v5558
        %v5645 = vpack.c.b16 %v5563, %v5561
        %v5646 = vpack.c.b16 %v5564, %v5562
        %v5647 = vpack.c.b16 %v5567, %v5565
        %v5648 = vpack.c.b16 %v5568, %v5566
        %v5649 = vpack.c.b16 %v5571, %v5569
        %v5650 = vpack.c.b16 %v5572, %v5570
        %v5651 = vpack.c.b16 %v5575, %v5573
        %v5652 = vpack.c.b16 %v5576, %v5574
        %v5653 = vpack.c.b16 %v5579, %v5577
        %v5654 = vpack.c.b16 %v5580, %v5578
        %v5655 = vpack.c.b16 %v5583, %v5581
        %v5656 = vpack.c.b16 %v5584, %v5582
        %v5657 = vpack.c.b16 %v5587, %v5585
        %v5658 = vpack.c.b16 %v5588, %v5586
        %v5659 = vpack.c.b16 %v5591, %v5589
        %v5660 = vpack.c.b16 %v5592, %v5590
        %v5661 = vpack.c.b16 %v5595, %v5593
        %v5662 = vpack.c.b16 %v5596, %v5594
        %v5663 = vpack.c.b16 %v5599, %v5597
        %v5664 = vpack.c.b16 %v5600, %v5598
        %5729 = vmatprep.subr.bf16.mxu0 %v5602
        %5730 = vmatpush1.bf16.msra.mxu0 %v5601
        %5731 = vmatprep.subr.bf16.mxu0 %v5604
        %5732 = vmatpush1.bf16.msra.mxu0 %v5603
        %5733 = vmatprep.subr.bf16.mxu0 %v5606
        %5734 = vmatpush1.bf16.msra.mxu0 %v5605
        %5735 = vmatprep.subr.bf16.mxu0 %v5608
        %5736 = vmatpush1.bf16.msra.mxu0 %v5607
        %5737 = vmatprep.subr.bf16.mxu0 %v5610
        %5738 = vmatpush1.bf16.msra.mxu0 %v5609
        %5739 = vmatprep.subr.bf16.mxu0 %v5612
        %5740 = vmatpush1.bf16.msra.mxu0 %v5611
        %5741 = vmatprep.subr.bf16.mxu0 %v5614
        %5742 = vmatpush1.bf16.msra.mxu0 %v5613
        %5743 = vmatprep.subr.bf16.mxu0 %v5616
        %5744 = vmatpush1.bf16.msra.mxu0 %v5615
        %5745 = vmatprep.subr.bf16.mxu0 %v5618
        %5746 = vmatpush1.bf16.msra.mxu0 %v5617
        %5747 = vmatprep.subr.bf16.mxu0 %v5620
        %5748 = vmatpush1.bf16.msra.mxu0 %v5619
        %5749 = vmatprep.subr.bf16.mxu0 %v5622
        %5750 = vmatpush1.bf16.msra.mxu0 %v5621
        %5751 = vmatprep.subr.bf16.mxu0 %v5624
        %5752 = vmatpush1.bf16.msra.mxu0 %v5623
        %5753 = vmatprep.subr.bf16.mxu0 %v5626
        %5754 = vmatpush1.bf16.msra.mxu0 %v5625
        %5755 = vmatprep.subr.bf16.mxu0 %v5628
        %5756 = vmatpush1.bf16.msra.mxu0 %v5627
        %5757 = vmatprep.subr.bf16.mxu0 %v5630
        %5758 = vmatpush1.bf16.msra.mxu0 %v5629
        %5759 = vmatprep.subr.bf16.mxu0 %v5632
        %5760 = vmatpush1.bf16.msra.mxu0 %v5631
        %5761 = vmatprep.mubr.bf16.mxu0 %v5313
        %5762 = vmatmul.mubr.bf16.gmra.mrb[0].mxu0 %v5312
        %v5763 = vpop.f32.mrb[0].mxu0
        %v5764 = vadd.f32 0.0, %v5763
        %v5765 = vpop.f32.mrb[0].mxu0
        %v5766 = vadd.f32 0.0, %v5765
        %v5767 = vpop.f32.mrb[0].mxu0
        %v5768 = vadd.f32 0.0, %v5767
        %v5769 = vpop.f32.mrb[0].mxu0
        %v5770 = vadd.f32 0.0, %v5769
        %5771 = vmatprep.mubr.bf16.mxu0 %v5317
        %5772 = vmatmul.mubr.bf16.gmra.mrb[0].mxu0 %v5316
        %v5773 = vpop.f32.mrb[0].mxu0
        %v5774 = vadd.f32 0.0, %v5773
        %v5775 = vpop.f32.mrb[0].mxu0
        %v5776 = vadd.f32 0.0, %v5775
        %v5777 = vpop.f32.mrb[0].mxu0
        %v5778 = vadd.f32 0.0, %v5777
        %v5779 = vpop.f32.mrb[0].mxu0
        %v5780 = vadd.f32 0.0, %v5779
        %5781 = vmatprep.mubr.bf16.mxu0 %v5321
        %5782 = vmatmul.mubr.bf16.gmra.mrb[0].mxu0 %v5320
        %v5783 = vpop.f32.mrb[0].mxu0
        %v5784 = vadd.f32 0.0, %v5783
        %v5785 = vpop.f32.mrb[0].mxu0
        %v5786 = vadd.f32 0.0, %v5785
        %v5787 = vpop.f32.mrb[0].mxu0
        %v5788 = vadd.f32 0.0, %v5787
        %v5789 = vpop.f32.mrb[0].mxu0
        %v5790 = vadd.f32 0.0, %v5789
        %5791 = vmatprep.mubr.bf16.mxu0 %v5325
        %5792 = vmatmul.mubr.bf16.gmra.mrb[0].mxu0 %v5324
        %v5793 = vpop.f32.mrb[0].mxu0
        %v5794 = vadd.f32 0.0, %v5793
        %v5795 = vpop.f32.mrb[0].mxu0
        %v5796 = vadd.f32 0.0, %v5795
        %v5797 = vpop.f32.mrb[0].mxu0
        %v5798 = vadd.f32 0.0, %v5797
        %v5799 = vpop.f32.mrb[0].mxu0
        %v5800 = vadd.f32 0.0, %v5799
        %5801 = vmatprep.mubr.bf16.mxu0 %v5329
        %5802 = vmatmul.mubr.bf16.gmra.mrb[0].mxu0 %v5328
        %v5803 = vpop.f32.mrb[0].mxu0
        %v5804 = vadd.f32 0.0, %v5803
        %v5805 = vpop.f32.mrb[0].mxu0
        %v5806 = vadd.f32 0.0, %v5805
        %v5807 = vpop.f32.mrb[0].mxu0
        %v5808 = vadd.f32 0.0, %v5807
        %v5809 = vpop.f32.mrb[0].mxu0
        %v5810 = vadd.f32 0.0, %v5809
        %5811 = vmatprep.mubr.bf16.mxu0 %v5333
        %5812 = vmatmul.mubr.bf16.gmra.mrb[0].mxu0 %v5332
        %v5813 = vpop.f32.mrb[0].mxu0
        %v5814 = vadd.f32 0.0, %v5813
        %v5815 = vpop.f32.mrb[0].mxu0
        %v5816 = vadd.f32 0.0, %v5815
        %v5817 = vpop.f32.mrb[0].mxu0
        %v5818 = vadd.f32 0.0, %v5817
        %v5819 = vpop.f32.mrb[0].mxu0
        %v5820 = vadd.f32 0.0, %v5819
        %5821 = vmatprep.mubr.bf16.mxu0 %v5337
        %5822 = vmatmul.mubr.bf16.gmra.mrb[0].mxu0 %v5336
        %v5823 = vpop.f32.mrb[0].mxu0
        %v5824 = vadd.f32 0.0, %v5823
        %v5825 = vpop.f32.mrb[0].mxu0
        %v5826 = vadd.f32 0.0, %v5825
        %v5827 = vpop.f32.mrb[0].mxu0
        %v5828 = vadd.f32 0.0, %v5827
        %v5829 = vpop.f32.mrb[0].mxu0
        %v5830 = vadd.f32 0.0, %v5829
        %5831 = vmatprep.mubr.bf16.mxu0 %v5341
        %5832 = vmatmul.mubr.bf16.gmra.mrb[0].mxu0 %v5340
        %v5833 = vpop.f32.mrb[0].mxu0
        %v5834 = vadd.f32 0.0, %v5833
        %v5835 = vpop.f32.mrb[0].mxu0
        %v5836 = vadd.f32 0.0, %v5835
        %v5837 = vpop.f32.mrb[0].mxu0
        %v5838 = vadd.f32 0.0, %v5837
        %v5839 = vpop.f32.mrb[0].mxu0
        %v5840 = vadd.f32 0.0, %v5839
        %5841 = vdwg.mxu0
        %5842 = vmatprep.subr.bf16.mxu0 %v5634
        %5843 = vmatpush1.bf16.msra.mxu0 %v5633
        %5844 = vmatprep.subr.bf16.mxu0 %v5636
        %5845 = vmatpush1.bf16.msra.mxu0 %v5635
        %5846 = vmatprep.subr.bf16.mxu0 %v5638
        %5847 = vmatpush1.bf16.msra.mxu0 %v5637
        %5848 = vmatprep.subr.bf16.mxu0 %v5640
        %5849 = vmatpush1.bf16.msra.mxu0 %v5639
        %5850 = vmatprep.subr.bf16.mxu0 %v5642
        %5851 = vmatpush1.bf16.msra.mxu0 %v5641
        %5852 = vmatprep.subr.bf16.mxu0 %v5644
        %5853 = vmatpush1.bf16.msra.mxu0 %v5643
        %5854 = vmatprep.subr.bf16.mxu0 %v5646
        %5855 = vmatpush1.bf16.msra.mxu0 %v5645
        %5856 = vmatprep.subr.bf16.mxu0 %v5648
        %5857 = vmatpush1.bf16.msra.mxu0 %v5647
        %5858 = vmatprep.subr.bf16.mxu0 %v5650
        %5859 = vmatpush1.bf16.msra.mxu0 %v5649
        %5860 = vmatprep.subr.bf16.mxu0 %v5652
        %5861 = vmatpush1.bf16.msra.mxu0 %v5651
        %5862 = vmatprep.subr.bf16.mxu0 %v5654
        %5863 = vmatpush1.bf16.msra.mxu0 %v5653
        %5864 = vmatprep.subr.bf16.mxu0 %v5656
        %5865 = vmatpush1.bf16.msra.mxu0 %v5655
        %5866 = vmatprep.subr.bf16.mxu0 %v5658
        %5867 = vmatpush1.bf16.msra.mxu0 %v5657
        %5868 = vmatprep.subr.bf16.mxu0 %v5660
        %5869 = vmatpush1.bf16.msra.mxu0 %v5659
        %5870 = vmatprep.subr.bf16.mxu0 %v5662
        %5871 = vmatpush1.bf16.msra.mxu0 %v5661
        %5872 = vmatprep.subr.bf16.mxu0 %v5664
        %5873 = vmatpush1.bf16.msra.mxu0 %v5663
        %5874 = vmatprep.mubr.bf16.mxu0 %v5315
        %5875 = vmatmul.mubr.bf16.gmra.mrb[0].mxu0 %v5314
        %v5876 = vpop.f32.mrb[0].mxu0
        %v5877 = vadd.f32 %v5764, %v5876
        %v5878 = vpop.f32.mrb[0].mxu0
        %v5879 = vadd.f32 %v5766, %v5878
        %v5880 = vpop.f32.mrb[0].mxu0
        %v5881 = vadd.f32 %v5768, %v5880
        %v5882 = vpop.f32.mrb[0].mxu0
        %v5883 = vadd.f32 %v5770, %v5882
        %5884 = vmatprep.mubr.bf16.mxu0 %v5319
        %5885 = vmatmul.mubr.bf16.gmra.mrb[0].mxu0 %v5318
        %v5886 = vpop.f32.mrb[0].mxu0
        %v5887 = vadd.f32 %v5774, %v5886
        %v5888 = vpop.f32.mrb[0].mxu0
        %v5889 = vadd.f32 %v5776, %v5888
        %v5890 = vpop.f32.mrb[0].mxu0
        %v5891 = vadd.f32 %v5778, %v5890
        %v5892 = vpop.f32.mrb[0].mxu0
        %v5893 = vadd.f32 %v5780, %v5892
        %5894 = vmatprep.mubr.bf16.mxu0 %v5323
        %5895 = vmatmul.mubr.bf16.gmra.mrb[0].mxu0 %v5322
        %v5896 = vpop.f32.mrb[0].mxu0
        %v5897 = vadd.f32 %v5784, %v5896
        %v5898 = vpop.f32.mrb[0].mxu0
        %v5899 = vadd.f32 %v5786, %v5898
        %v5900 = vpop.f32.mrb[0].mxu0
        %v5901 = vadd.f32 %v5788, %v5900
        %v5902 = vpop.f32.mrb[0].mxu0
        %v5903 = vadd.f32 %v5790, %v5902
        %5904 = vmatprep.mubr.bf16.mxu0 %v5327
        %5905 = vmatmul.mubr.bf16.gmra.mrb[0].mxu0 %v5326
        %v5906 = vpop.f32.mrb[0].mxu0
        %v5907 = vadd.f32 %v5794, %v5906
        %v5908 = vpop.f32.mrb[0].mxu0
        %v5909 = vadd.f32 %v5796, %v5908
        %v5910 = vpop.f32.mrb[0].mxu0
        %v5911 = vadd.f32 %v5798, %v5910
        %v5912 = vpop.f32.mrb[0].mxu0
        %v5913 = vadd.f32 %v5800, %v5912
        %5914 = vmatprep.mubr.bf16.mxu0 %v5331
        %5915 = vmatmul.mubr.bf16.gmra.mrb[0].mxu0 %v5330
        %v5916 = vpop.f32.mrb[0].mxu0
        %v5917 = vadd.f32 %v5804, %v5916
        %v5918 = vpop.f32.mrb[0].mxu0
        %v5919 = vadd.f32 %v5806, %v5918
        %v5920 = vpop.f32.mrb[0].mxu0
        %v5921 = vadd.f32 %v5808, %v5920
        %v5922 = vpop.f32.mrb[0].mxu0
        %v5923 = vadd.f32 %v5810, %v5922
        %5924 = vmatprep.mubr.bf16.mxu0 %v5335
        %5925 = vmatmul.mubr.bf16.gmra.mrb[0].mxu0 %v5334
        %v5926 = vpop.f32.mrb[0].mxu0
        %v5927 = vadd.f32 %v5814, %v5926
        %v5928 = vpop.f32.mrb[0].mxu0
        %v5929 = vadd.f32 %v5816, %v5928
        %v5930 = vpop.f32.mrb[0].mxu0
        %v5931 = vadd.f32 %v5818, %v5930
        %v5932 = vpop.f32.mrb[0].mxu0
        %v5933 = vadd.f32 %v5820, %v5932
        %5934 = vmatprep.mubr.bf16.mxu0 %v5339
        %5935 = vmatmul.mubr.bf16.gmra.mrb[0].mxu0 %v5338
        %v5936 = vpop.f32.mrb[0].mxu0
        %v5937 = vadd.f32 %v5824, %v5936
        %v5938 = vpop.f32.mrb[0].mxu0
        %v5939 = vadd.f32 %v5826, %v5938
        %v5940 = vpop.f32.mrb[0].mxu0
        %v5941 = vadd.f32 %v5828, %v5940
        %v5942 = vpop.f32.mrb[0].mxu0
        %v5943 = vadd.f32 %v5830, %v5942
        %5944 = vmatprep.mubr.bf16.mxu0 %v5343
        %5945 = vmatmul.mubr.bf16.gmra.mrb[0].mxu0 %v5342
        %v5946 = vpop.f32.mrb[0].mxu0
        %v5947 = vadd.f32 %v5834, %v5946
        %v5948 = vpop.f32.mrb[0].mxu0
        %v5949 = vadd.f32 %v5836, %v5948
        %v5950 = vpop.f32.mrb[0].mxu0
        %v5951 = vadd.f32 %v5838, %v5950
        %v5952 = vpop.f32.mrb[0].mxu0
        %v5953 = vadd.f32 %v5840, %v5952
        %5954 = vdwg.mxu0
        %v5955 = vadd.f32 %v5279, %v5877
        %v5956 = vadd.f32 %v5280, %v5879
        %v5957 = vadd.f32 %v5281, %v5881
        %v5958 = vadd.f32 %v5282, %v5883
        %v5959 = vadd.f32 %v5283, %v5887
        %v5960 = vadd.f32 %v5284, %v5889
        %v5961 = vadd.f32 %v5285, %v5891
        %v5962 = vadd.f32 %v5286, %v5893
        %v5963 = vadd.f32 %v5287, %v5897
        %v5964 = vadd.f32 %v5288, %v5899
        %v5965 = vadd.f32 %v5289, %v5901
        %v5966 = vadd.f32 %v5290, %v5903
        %v5967 = vadd.f32 %v5291, %v5907
        %v5968 = vadd.f32 %v5292, %v5909
        %v5969 = vadd.f32 %v5293, %v5911
        %v5970 = vadd.f32 %v5294, %v5913
        %v5971 = vadd.f32 %v5295, %v5917
        %v5972 = vadd.f32 %v5296, %v5919
        %v5973 = vadd.f32 %v5297, %v5921
        %v5974 = vadd.f32 %v5298, %v5923
        %v5975 = vadd.f32 %v5299, %v5927
        %v5976 = vadd.f32 %v5300, %v5929
        %v5977 = vadd.f32 %v5301, %v5931
        %v5978 = vadd.f32 %v5302, %v5933
        %v5979 = vadd.f32 %v5303, %v5937
        %v5980 = vadd.f32 %v5304, %v5939
        %v5981 = vadd.f32 %v5305, %v5941
        %v5982 = vadd.f32 %v5306, %v5943
        %v5983 = vadd.f32 %v5307, %v5947
        %v5984 = vadd.f32 %v5308, %v5949
        %v5985 = vadd.f32 %v5309, %v5951
        %v5986 = vadd.f32 %v5310, %v5953
        %s5987 = scalar_lea.vmem [#allocation2], 64
        %v5988 = vld [vmem:[%s5987] sm:$0xff]
        %v5989 = vld [vmem:[%s5987 + $0x8] sm:$0xff]
        %v5990 = vld [vmem:[%s5987 + $0x10] sm:$0xff]
        %v5991 = vld [vmem:[%s5987 + $0x18] sm:$0xff]
        %v5992 = vld [vmem:[%s5987 + $0x20] sm:$0xff]
        %v5993 = vld [vmem:[%s5987 + $0x28] sm:$0xff]
        %v5994 = vld [vmem:[%s5987 + $0x30] sm:$0xff]
        %v5995 = vld [vmem:[%s5987 + $0x38] sm:$0xff]
        %v5996 = vld [vmem:[%s5987 + $0x40] sm:$0xff]
        %v5997 = vld [vmem:[%s5987 + $0x48] sm:$0xff]
        %v5998 = vld [vmem:[%s5987 + $0x50] sm:$0xff]
        %v5999 = vld [vmem:[%s5987 + $0x58] sm:$0xff]
        %v6000 = vld [vmem:[%s5987 + $0x60] sm:$0xff]
        %v6001 = vld [vmem:[%s5987 + $0x68] sm:$0xff]
        %v6002 = vld [vmem:[%s5987 + $0x70] sm:$0xff]
        %v6003 = vld [vmem:[%s5987 + $0x78] sm:$0xff]
        %v6004 = vld [vmem:[%s5987 + $0x80] sm:$0xff]
        %v6005 = vld [vmem:[%s5987 + $0x88] sm:$0xff]
        %v6006 = vld [vmem:[%s5987 + $0x90] sm:$0xff]
        %v6007 = vld [vmem:[%s5987 + $0x98] sm:$0xff]
        %v6008 = vld [vmem:[%s5987 + $0xa0] sm:$0xff]
        %v6009 = vld [vmem:[%s5987 + $0xa8] sm:$0xff]
        %v6010 = vld [vmem:[%s5987 + $0xb0] sm:$0xff]
        %v6011 = vld [vmem:[%s5987 + $0xb8] sm:$0xff]
        %v6012 = vld [vmem:[%s5987 + $0xc0] sm:$0xff]
        %v6013 = vld [vmem:[%s5987 + $0xc8] sm:$0xff]
        %v6014 = vld [vmem:[%s5987 + $0xd0] sm:$0xff]
        %v6015 = vld [vmem:[%s5987 + $0xd8] sm:$0xff]
        %v6016 = vld [vmem:[%s5987 + $0xe0] sm:$0xff]
        %v6017 = vld [vmem:[%s5987 + $0xe8] sm:$0xff]
        %v6018 = vld [vmem:[%s5987 + $0xf0] sm:$0xff]
        %v6019 = vld [vmem:[%s5987 + $0xf8] sm:$0xff]
        %s6020 = scalar_lea.vmem %s6, 3072
        %v6021 = vld [vmem:[%s6020] sm:$0xff]
        %v6022 = vld [vmem:[%s6020 + $0x8] sm:$0xff]
        %v6023 = vld [vmem:[%s6020 + $0x10] sm:$0xff]
        %v6024 = vld [vmem:[%s6020 + $0x18] sm:$0xff]
        %v6025 = vld [vmem:[%s6020 + $0x20] sm:$0xff]
        %v6026 = vld [vmem:[%s6020 + $0x28] sm:$0xff]
        %v6027 = vld [vmem:[%s6020 + $0x30] sm:$0xff]
        %v6028 = vld [vmem:[%s6020 + $0x38] sm:$0xff]
        %v6029 = vld [vmem:[%s6020 + $0x40] sm:$0xff]
        %v6030 = vld [vmem:[%s6020 + $0x48] sm:$0xff]
        %v6031 = vld [vmem:[%s6020 + $0x50] sm:$0xff]
        %v6032 = vld [vmem:[%s6020 + $0x58] sm:$0xff]
        %v6033 = vld [vmem:[%s6020 + $0x60] sm:$0xff]
        %v6034 = vld [vmem:[%s6020 + $0x68] sm:$0xff]
        %v6035 = vld [vmem:[%s6020 + $0x70] sm:$0xff]
        %v6036 = vld [vmem:[%s6020 + $0x78] sm:$0xff]
        %v6037 = vld [vmem:[%s6020 + $0x80] sm:$0xff]
        %v6038 = vld [vmem:[%s6020 + $0x88] sm:$0xff]
        %v6039 = vld [vmem:[%s6020 + $0x90] sm:$0xff]
        %v6040 = vld [vmem:[%s6020 + $0x98] sm:$0xff]
        %v6041 = vld [vmem:[%s6020 + $0xa0] sm:$0xff]
        %v6042 = vld [vmem:[%s6020 + $0xa8] sm:$0xff]
        %v6043 = vld [vmem:[%s6020 + $0xb0] sm:$0xff]
        %v6044 = vld [vmem:[%s6020 + $0xb8] sm:$0xff]
        %v6045 = vld [vmem:[%s6020 + $0xc0] sm:$0xff]
        %v6046 = vld [vmem:[%s6020 + $0xc8] sm:$0xff]
        %v6047 = vld [vmem:[%s6020 + $0xd0] sm:$0xff]
        %v6048 = vld [vmem:[%s6020 + $0xd8] sm:$0xff]
        %v6049 = vld [vmem:[%s6020 + $0xe0] sm:$0xff]
        %v6050 = vld [vmem:[%s6020 + $0xe8] sm:$0xff]
        %v6051 = vld [vmem:[%s6020 + $0xf0] sm:$0xff]
        %v6052 = vld [vmem:[%s6020 + $0xf8] sm:$0xff]
        %v6053 = vld [vmem:[%s6020 + $0x100] sm:$0xff]
        %v6054 = vld [vmem:[%s6020 + $0x108] sm:$0xff]
        %v6055 = vld [vmem:[%s6020 + $0x110] sm:$0xff]
        %v6056 = vld [vmem:[%s6020 + $0x118] sm:$0xff]
        %v6057 = vld [vmem:[%s6020 + $0x120] sm:$0xff]
        %v6058 = vld [vmem:[%s6020 + $0x128] sm:$0xff]
        %v6059 = vld [vmem:[%s6020 + $0x130] sm:$0xff]
        %v6060 = vld [vmem:[%s6020 + $0x138] sm:$0xff]
        %v6061 = vld [vmem:[%s6020 + $0x140] sm:$0xff]
        %v6062 = vld [vmem:[%s6020 + $0x148] sm:$0xff]
        %v6063 = vld [vmem:[%s6020 + $0x150] sm:$0xff]
        %v6064 = vld [vmem:[%s6020 + $0x158] sm:$0xff]
        %v6065 = vld [vmem:[%s6020 + $0x160] sm:$0xff]
        %v6066 = vld [vmem:[%s6020 + $0x168] sm:$0xff]
        %v6067 = vld [vmem:[%s6020 + $0x170] sm:$0xff]
        %v6068 = vld [vmem:[%s6020 + $0x178] sm:$0xff]
        %v6069 = vld [vmem:[%s6020 + $0x180] sm:$0xff]
        %v6070 = vld [vmem:[%s6020 + $0x188] sm:$0xff]
        %v6071 = vld [vmem:[%s6020 + $0x190] sm:$0xff]
        %v6072 = vld [vmem:[%s6020 + $0x198] sm:$0xff]
        %v6073 = vld [vmem:[%s6020 + $0x1a0] sm:$0xff]
        %v6074 = vld [vmem:[%s6020 + $0x1a8] sm:$0xff]
        %v6075 = vld [vmem:[%s6020 + $0x1b0] sm:$0xff]
        %v6076 = vld [vmem:[%s6020 + $0x1b8] sm:$0xff]
        %v6077 = vld [vmem:[%s6020 + $0x1c0] sm:$0xff]
        %v6078 = vld [vmem:[%s6020 + $0x1c8] sm:$0xff]
        %v6079 = vld [vmem:[%s6020 + $0x1d0] sm:$0xff]
        %v6080 = vld [vmem:[%s6020 + $0x1d8] sm:$0xff]
        %v6081 = vld [vmem:[%s6020 + $0x1e0] sm:$0xff]
        %v6082 = vld [vmem:[%s6020 + $0x1e8] sm:$0xff]
        %v6083 = vld [vmem:[%s6020 + $0x1f0] sm:$0xff]
        %v6084 = vld [vmem:[%s6020 + $0x1f8] sm:$0xff]
        %v6149 = vunpack.c.l.b16 %v6021
        %v6150 = vunpack.c.h.b16 %v6021
        %v6151 = vunpack.c.l.b16 %v6022
        %v6152 = vunpack.c.h.b16 %v6022
        %v6153 = vunpack.c.l.b16 %v6023
        %v6154 = vunpack.c.h.b16 %v6023
        %v6155 = vunpack.c.l.b16 %v6024
        %v6156 = vunpack.c.h.b16 %v6024
        %v6157 = vunpack.c.l.b16 %v6025
        %v6158 = vunpack.c.h.b16 %v6025
        %v6159 = vunpack.c.l.b16 %v6026
        %v6160 = vunpack.c.h.b16 %v6026
        %v6161 = vunpack.c.l.b16 %v6027
        %v6162 = vunpack.c.h.b16 %v6027
        %v6163 = vunpack.c.l.b16 %v6028
        %v6164 = vunpack.c.h.b16 %v6028
        %v6165 = vunpack.c.l.b16 %v6029
        %v6166 = vunpack.c.h.b16 %v6029
        %v6167 = vunpack.c.l.b16 %v6030
        %v6168 = vunpack.c.h.b16 %v6030
        %v6169 = vunpack.c.l.b16 %v6031
        %v6170 = vunpack.c.h.b16 %v6031
        %v6171 = vunpack.c.l.b16 %v6032
        %v6172 = vunpack.c.h.b16 %v6032
        %v6173 = vunpack.c.l.b16 %v6033
        %v6174 = vunpack.c.h.b16 %v6033
        %v6175 = vunpack.c.l.b16 %v6034
        %v6176 = vunpack.c.h.b16 %v6034
        %v6177 = vunpack.c.l.b16 %v6035
        %v6178 = vunpack.c.h.b16 %v6035
        %v6179 = vunpack.c.l.b16 %v6036
        %v6180 = vunpack.c.h.b16 %v6036
        %v6181 = vunpack.c.l.b16 %v6037
        %v6182 = vunpack.c.h.b16 %v6037
        %v6183 = vunpack.c.l.b16 %v6038
        %v6184 = vunpack.c.h.b16 %v6038
        %v6185 = vunpack.c.l.b16 %v6039
        %v6186 = vunpack.c.h.b16 %v6039
        %v6187 = vunpack.c.l.b16 %v6040
        %v6188 = vunpack.c.h.b16 %v6040
        %v6189 = vunpack.c.l.b16 %v6041
        %v6190 = vunpack.c.h.b16 %v6041
        %v6191 = vunpack.c.l.b16 %v6042
        %v6192 = vunpack.c.h.b16 %v6042
        %v6193 = vunpack.c.l.b16 %v6043
        %v6194 = vunpack.c.h.b16 %v6043
        %v6195 = vunpack.c.l.b16 %v6044
        %v6196 = vunpack.c.h.b16 %v6044
        %v6197 = vunpack.c.l.b16 %v6045
        %v6198 = vunpack.c.h.b16 %v6045
        %v6199 = vunpack.c.l.b16 %v6046
        %v6200 = vunpack.c.h.b16 %v6046
        %v6201 = vunpack.c.l.b16 %v6047
        %v6202 = vunpack.c.h.b16 %v6047
        %v6203 = vunpack.c.l.b16 %v6048
        %v6204 = vunpack.c.h.b16 %v6048
        %v6205 = vunpack.c.l.b16 %v6049
        %v6206 = vunpack.c.h.b16 %v6049
        %v6207 = vunpack.c.l.b16 %v6050
        %v6208 = vunpack.c.h.b16 %v6050
        %v6209 = vunpack.c.l.b16 %v6051
        %v6210 = vunpack.c.h.b16 %v6051
        %v6211 = vunpack.c.l.b16 %v6052
        %v6212 = vunpack.c.h.b16 %v6052
        %v6213 = vunpack.c.l.b16 %v6053
        %v6214 = vunpack.c.h.b16 %v6053
        %v6215 = vunpack.c.l.b16 %v6054
        %v6216 = vunpack.c.h.b16 %v6054
        %v6217 = vunpack.c.l.b16 %v6055
        %v6218 = vunpack.c.h.b16 %v6055
        %v6219 = vunpack.c.l.b16 %v6056
        %v6220 = vunpack.c.h.b16 %v6056
        %v6221 = vunpack.c.l.b16 %v6057
        %v6222 = vunpack.c.h.b16 %v6057
        %v6223 = vunpack.c.l.b16 %v6058
        %v6224 = vunpack.c.h.b16 %v6058
        %v6225 = vunpack.c.l.b16 %v6059
        %v6226 = vunpack.c.h.b16 %v6059
        %v6227 = vunpack.c.l.b16 %v6060
        %v6228 = vunpack.c.h.b16 %v6060
        %v6229 = vunpack.c.l.b16 %v6061
        %v6230 = vunpack.c.h.b16 %v6061
        %v6231 = vunpack.c.l.b16 %v6062
        %v6232 = vunpack.c.h.b16 %v6062
        %v6233 = vunpack.c.l.b16 %v6063
        %v6234 = vunpack.c.h.b16 %v6063
        %v6235 = vunpack.c.l.b16 %v6064
        %v6236 = vunpack.c.h.b16 %v6064
        %v6237 = vunpack.c.l.b16 %v6065
        %v6238 = vunpack.c.h.b16 %v6065
        %v6239 = vunpack.c.l.b16 %v6066
        %v6240 = vunpack.c.h.b16 %v6066
        %v6241 = vunpack.c.l.b16 %v6067
        %v6242 = vunpack.c.h.b16 %v6067
        %v6243 = vunpack.c.l.b16 %v6068
        %v6244 = vunpack.c.h.b16 %v6068
        %v6245 = vunpack.c.l.b16 %v6069
        %v6246 = vunpack.c.h.b16 %v6069
        %v6247 = vunpack.c.l.b16 %v6070
        %v6248 = vunpack.c.h.b16 %v6070
        %v6249 = vunpack.c.l.b16 %v6071
        %v6250 = vunpack.c.h.b16 %v6071
        %v6251 = vunpack.c.l.b16 %v6072
        %v6252 = vunpack.c.h.b16 %v6072
        %v6253 = vunpack.c.l.b16 %v6073
        %v6254 = vunpack.c.h.b16 %v6073
        %v6255 = vunpack.c.l.b16 %v6074
        %v6256 = vunpack.c.h.b16 %v6074
        %v6257 = vunpack.c.l.b16 %v6075
        %v6258 = vunpack.c.h.b16 %v6075
        %v6259 = vunpack.c.l.b16 %v6076
        %v6260 = vunpack.c.h.b16 %v6076
        %v6261 = vunpack.c.l.b16 %v6077
        %v6262 = vunpack.c.h.b16 %v6077
        %v6263 = vunpack.c.l.b16 %v6078
        %v6264 = vunpack.c.h.b16 %v6078
        %v6265 = vunpack.c.l.b16 %v6079
        %v6266 = vunpack.c.h.b16 %v6079
        %v6267 = vunpack.c.l.b16 %v6080
        %v6268 = vunpack.c.h.b16 %v6080
        %v6269 = vunpack.c.l.b16 %v6081
        %v6270 = vunpack.c.h.b16 %v6081
        %v6271 = vunpack.c.l.b16 %v6082
        %v6272 = vunpack.c.h.b16 %v6082
        %v6273 = vunpack.c.l.b16 %v6083
        %v6274 = vunpack.c.h.b16 %v6083
        %v6275 = vunpack.c.l.b16 %v6084
        %v6276 = vunpack.c.h.b16 %v6084
        %v6277 = vpack.c.b16 %v6151, %v6149
        %v6278 = vpack.c.b16 %v6152, %v6150
        %v6279 = vpack.c.b16 %v6155, %v6153
        %v6280 = vpack.c.b16 %v6156, %v6154
        %v6281 = vpack.c.b16 %v6159, %v6157
        %v6282 = vpack.c.b16 %v6160, %v6158
        %v6283 = vpack.c.b16 %v6163, %v6161
        %v6284 = vpack.c.b16 %v6164, %v6162
        %v6285 = vpack.c.b16 %v6167, %v6165
        %v6286 = vpack.c.b16 %v6168, %v6166
        %v6287 = vpack.c.b16 %v6171, %v6169
        %v6288 = vpack.c.b16 %v6172, %v6170
        %v6289 = vpack.c.b16 %v6175, %v6173
        %v6290 = vpack.c.b16 %v6176, %v6174
        %v6291 = vpack.c.b16 %v6179, %v6177
        %v6292 = vpack.c.b16 %v6180, %v6178
        %v6293 = vpack.c.b16 %v6183, %v6181
        %v6294 = vpack.c.b16 %v6184, %v6182
        %v6295 = vpack.c.b16 %v6187, %v6185
        %v6296 = vpack.c.b16 %v6188, %v6186
        %v6297 = vpack.c.b16 %v6191, %v6189
        %v6298 = vpack.c.b16 %v6192, %v6190
        %v6299 = vpack.c.b16 %v6195, %v6193
        %v6300 = vpack.c.b16 %v6196, %v6194
        %v6301 = vpack.c.b16 %v6199, %v6197
        %v6302 = vpack.c.b16 %v6200, %v6198
        %v6303 = vpack.c.b16 %v6203, %v6201
        %v6304 = vpack.c.b16 %v6204, %v6202
        %v6305 = vpack.c.b16 %v6207, %v6205
        %v6306 = vpack.c.b16 %v6208, %v6206
        %v6307 = vpack.c.b16 %v6211, %v6209
        %v6308 = vpack.c.b16 %v6212, %v6210
        %v6309 = vpack.c.b16 %v6215, %v6213
        %v6310 = vpack.c.b16 %v6216, %v6214
        %v6311 = vpack.c.b16 %v6219, %v6217
        %v6312 = vpack.c.b16 %v6220, %v6218
        %v6313 = vpack.c.b16 %v6223, %v6221
        %v6314 = vpack.c.b16 %v6224, %v6222
        %v6315 = vpack.c.b16 %v6227, %v6225
        %v6316 = vpack.c.b16 %v6228, %v6226
        %v6317 = vpack.c.b16 %v6231, %v6229
        %v6318 = vpack.c.b16 %v6232, %v6230
        %v6319 = vpack.c.b16 %v6235, %v6233
        %v6320 = vpack.c.b16 %v6236, %v6234
        %v6321 = vpack.c.b16 %v6239, %v6237
        %v6322 = vpack.c.b16 %v6240, %v6238
        %v6323 = vpack.c.b16 %v6243, %v6241
        %v6324 = vpack.c.b16 %v6244, %v6242
        %v6325 = vpack.c.b16 %v6247, %v6245
        %v6326 = vpack.c.b16 %v6248, %v6246
        %v6327 = vpack.c.b16 %v6251, %v6249
        %v6328 = vpack.c.b16 %v6252, %v6250
        %v6329 = vpack.c.b16 %v6255, %v6253
        %v6330 = vpack.c.b16 %v6256, %v6254
        %v6331 = vpack.c.b16 %v6259, %v6257
        %v6332 = vpack.c.b16 %v6260, %v6258
        %v6333 = vpack.c.b16 %v6263, %v6261
        %v6334 = vpack.c.b16 %v6264, %v6262
        %v6335 = vpack.c.b16 %v6267, %v6265
        %v6336 = vpack.c.b16 %v6268, %v6266
        %v6337 = vpack.c.b16 %v6271, %v6269
        %v6338 = vpack.c.b16 %v6272, %v6270
        %v6339 = vpack.c.b16 %v6275, %v6273
        %v6340 = vpack.c.b16 %v6276, %v6274
        %6405 = vmatprep.subr.bf16.mxu0 %v6278
        %6406 = vmatpush1.bf16.msra.mxu0 %v6277
        %6407 = vmatprep.subr.bf16.mxu0 %v6280
        %6408 = vmatpush1.bf16.msra.mxu0 %v6279
        %6409 = vmatprep.subr.bf16.mxu0 %v6282
        %6410 = vmatpush1.bf16.msra.mxu0 %v6281
        %6411 = vmatprep.subr.bf16.mxu0 %v6284
        %6412 = vmatpush1.bf16.msra.mxu0 %v6283
        %6413 = vmatprep.subr.bf16.mxu0 %v6286
        %6414 = vmatpush1.bf16.msra.mxu0 %v6285
        %6415 = vmatprep.subr.bf16.mxu0 %v6288
        %6416 = vmatpush1.bf16.msra.mxu0 %v6287
        %6417 = vmatprep.subr.bf16.mxu0 %v6290
        %6418 = vmatpush1.bf16.msra.mxu0 %v6289
        %6419 = vmatprep.subr.bf16.mxu0 %v6292
        %6420 = vmatpush1.bf16.msra.mxu0 %v6291
        %6421 = vmatprep.subr.bf16.mxu0 %v6294
        %6422 = vmatpush1.bf16.msra.mxu0 %v6293
        %6423 = vmatprep.subr.bf16.mxu0 %v6296
        %6424 = vmatpush1.bf16.msra.mxu0 %v6295
        %6425 = vmatprep.subr.bf16.mxu0 %v6298
        %6426 = vmatpush1.bf16.msra.mxu0 %v6297
        %6427 = vmatprep.subr.bf16.mxu0 %v6300
        %6428 = vmatpush1.bf16.msra.mxu0 %v6299
        %6429 = vmatprep.subr.bf16.mxu0 %v6302
        %6430 = vmatpush1.bf16.msra.mxu0 %v6301
        %6431 = vmatprep.subr.bf16.mxu0 %v6304
        %6432 = vmatpush1.bf16.msra.mxu0 %v6303
        %6433 = vmatprep.subr.bf16.mxu0 %v6306
        %6434 = vmatpush1.bf16.msra.mxu0 %v6305
        %6435 = vmatprep.subr.bf16.mxu0 %v6308
        %6436 = vmatpush1.bf16.msra.mxu0 %v6307
        %6437 = vmatprep.mubr.bf16.mxu0 %v5989
        %6438 = vmatmul.mubr.bf16.gmra.mrb[0].mxu0 %v5988
        %v6439 = vpop.f32.mrb[0].mxu0
        %v6440 = vadd.f32 0.0, %v6439
        %v6441 = vpop.f32.mrb[0].mxu0
        %v6442 = vadd.f32 0.0, %v6441
        %v6443 = vpop.f32.mrb[0].mxu0
        %v6444 = vadd.f32 0.0, %v6443
        %v6445 = vpop.f32.mrb[0].mxu0
        %v6446 = vadd.f32 0.0, %v6445
        %6447 = vmatprep.mubr.bf16.mxu0 %v5993
        %6448 = vmatmul.mubr.bf16.gmra.mrb[0].mxu0 %v5992
        %v6449 = vpop.f32.mrb[0].mxu0
        %v6450 = vadd.f32 0.0, %v6449
        %v6451 = vpop.f32.mrb[0].mxu0
        %v6452 = vadd.f32 0.0, %v6451
        %v6453 = vpop.f32.mrb[0].mxu0
        %v6454 = vadd.f32 0.0, %v6453
        %v6455 = vpop.f32.mrb[0].mxu0
        %v6456 = vadd.f32 0.0, %v6455
        %6457 = vmatprep.mubr.bf16.mxu0 %v5997
        %6458 = vmatmul.mubr.bf16.gmra.mrb[0].mxu0 %v5996
        %v6459 = vpop.f32.mrb[0].mxu0
        %v6460 = vadd.f32 0.0, %v6459
        %v6461 = vpop.f32.mrb[0].mxu0
        %v6462 = vadd.f32 0.0, %v6461
        %v6463 = vpop.f32.mrb[0].mxu0
        %v6464 = vadd.f32 0.0, %v6463
        %v6465 = vpop.f32.mrb[0].mxu0
        %v6466 = vadd.f32 0.0, %v6465
        %6467 = vmatprep.mubr.bf16.mxu0 %v6001
        %6468 = vmatmul.mubr.bf16.gmra.mrb[0].mxu0 %v6000
        %v6469 = vpop.f32.mrb[0].mxu0
        %v6470 = vadd.f32 0.0, %v6469
        %v6471 = vpop.f32.mrb[0].mxu0
        %v6472 = vadd.f32 0.0, %v6471
        %v6473 = vpop.f32.mrb[0].mxu0
        %v6474 = vadd.f32 0.0, %v6473
        %v6475 = vpop.f32.mrb[0].mxu0
        %v6476 = vadd.f32 0.0, %v6475
        %6477 = vmatprep.mubr.bf16.mxu0 %v6005
        %6478 = vmatmul.mubr.bf16.gmra.mrb[0].mxu0 %v6004
        %v6479 = vpop.f32.mrb[0].mxu0
        %v6480 = vadd.f32 0.0, %v6479
        %v6481 = vpop.f32.mrb[0].mxu0
        %v6482 = vadd.f32 0.0, %v6481
        %v6483 = vpop.f32.mrb[0].mxu0
        %v6484 = vadd.f32 0.0, %v6483
        %v6485 = vpop.f32.mrb[0].mxu0
        %v6486 = vadd.f32 0.0, %v6485
        %6487 = vmatprep.mubr.bf16.mxu0 %v6009
        %6488 = vmatmul.mubr.bf16.gmra.mrb[0].mxu0 %v6008
        %v6489 = vpop.f32.mrb[0].mxu0
        %v6490 = vadd.f32 0.0, %v6489
        %v6491 = vpop.f32.mrb[0].mxu0
        %v6492 = vadd.f32 0.0, %v6491
        %v6493 = vpop.f32.mrb[0].mxu0
        %v6494 = vadd.f32 0.0, %v6493
        %v6495 = vpop.f32.mrb[0].mxu0
        %v6496 = vadd.f32 0.0, %v6495
        %6497 = vmatprep.mubr.bf16.mxu0 %v6013
        %6498 = vmatmul.mubr.bf16.gmra.mrb[0].mxu0 %v6012
        %v6499 = vpop.f32.mrb[0].mxu0
        %v6500 = vadd.f32 0.0, %v6499
        %v6501 = vpop.f32.mrb[0].mxu0
        %v6502 = vadd.f32 0.0, %v6501
        %v6503 = vpop.f32.mrb[0].mxu0
        %v6504 = vadd.f32 0.0, %v6503
        %v6505 = vpop.f32.mrb[0].mxu0
        %v6506 = vadd.f32 0.0, %v6505
        %6507 = vmatprep.mubr.bf16.mxu0 %v6017
        %6508 = vmatmul.mubr.bf16.gmra.mrb[0].mxu0 %v6016
        %v6509 = vpop.f32.mrb[0].mxu0
        %v6510 = vadd.f32 0.0, %v6509
        %v6511 = vpop.f32.mrb[0].mxu0
        %v6512 = vadd.f32 0.0, %v6511
        %v6513 = vpop.f32.mrb[0].mxu0
        %v6514 = vadd.f32 0.0, %v6513
        %v6515 = vpop.f32.mrb[0].mxu0
        %v6516 = vadd.f32 0.0, %v6515
        %6517 = vdwg.mxu0
        %6518 = vmatprep.subr.bf16.mxu0 %v6310
        %6519 = vmatpush1.bf16.msra.mxu0 %v6309
        %6520 = vmatprep.subr.bf16.mxu0 %v6312
        %6521 = vmatpush1.bf16.msra.mxu0 %v6311
        %6522 = vmatprep.subr.bf16.mxu0 %v6314
        %6523 = vmatpush1.bf16.msra.mxu0 %v6313
        %6524 = vmatprep.subr.bf16.mxu0 %v6316
        %6525 = vmatpush1.bf16.msra.mxu0 %v6315
        %6526 = vmatprep.subr.bf16.mxu0 %v6318
        %6527 = vmatpush1.bf16.msra.mxu0 %v6317
        %6528 = vmatprep.subr.bf16.mxu0 %v6320
        %6529 = vmatpush1.bf16.msra.mxu0 %v6319
        %6530 = vmatprep.subr.bf16.mxu0 %v6322
        %6531 = vmatpush1.bf16.msra.mxu0 %v6321
        %6532 = vmatprep.subr.bf16.mxu0 %v6324
        %6533 = vmatpush1.bf16.msra.mxu0 %v6323
        %6534 = vmatprep.subr.bf16.mxu0 %v6326
        %6535 = vmatpush1.bf16.msra.mxu0 %v6325
        %6536 = vmatprep.subr.bf16.mxu0 %v6328
        %6537 = vmatpush1.bf16.msra.mxu0 %v6327
        %6538 = vmatprep.subr.bf16.mxu0 %v6330
        %6539 = vmatpush1.bf16.msra.mxu0 %v6329
        %6540 = vmatprep.subr.bf16.mxu0 %v6332
        %6541 = vmatpush1.bf16.msra.mxu0 %v6331
        %6542 = vmatprep.subr.bf16.mxu0 %v6334
        %6543 = vmatpush1.bf16.msra.mxu0 %v6333
        %6544 = vmatprep.subr.bf16.mxu0 %v6336
        %6545 = vmatpush1.bf16.msra.mxu0 %v6335
        %6546 = vmatprep.subr.bf16.mxu0 %v6338
        %6547 = vmatpush1.bf16.msra.mxu0 %v6337
        %6548 = vmatprep.subr.bf16.mxu0 %v6340
        %6549 = vmatpush1.bf16.msra.mxu0 %v6339
        %6550 = vmatprep.mubr.bf16.mxu0 %v5991
        %6551 = vmatmul.mubr.bf16.gmra.mrb[0].mxu0 %v5990
        %v6552 = vpop.f32.mrb[0].mxu0
        %v6553 = vadd.f32 %v6440, %v6552
        %v6554 = vpop.f32.mrb[0].mxu0
        %v6555 = vadd.f32 %v6442, %v6554
        %v6556 = vpop.f32.mrb[0].mxu0
        %v6557 = vadd.f32 %v6444, %v6556
        %v6558 = vpop.f32.mrb[0].mxu0
        %v6559 = vadd.f32 %v6446, %v6558
        %6560 = vmatprep.mubr.bf16.mxu0 %v5995
        %6561 = vmatmul.mubr.bf16.gmra.mrb[0].mxu0 %v5994
        %v6562 = vpop.f32.mrb[0].mxu0
        %v6563 = vadd.f32 %v6450, %v6562
        %v6564 = vpop.f32.mrb[0].mxu0
        %v6565 = vadd.f32 %v6452, %v6564
        %v6566 = vpop.f32.mrb[0].mxu0
        %v6567 = vadd.f32 %v6454, %v6566
        %v6568 = vpop.f32.mrb[0].mxu0
        %v6569 = vadd.f32 %v6456, %v6568
        %6570 = vmatprep.mubr.bf16.mxu0 %v5999
        %6571 = vmatmul.mubr.bf16.gmra.mrb[0].mxu0 %v5998
        %v6572 = vpop.f32.mrb[0].mxu0
        %v6573 = vadd.f32 %v6460, %v6572
        %v6574 = vpop.f32.mrb[0].mxu0
        %v6575 = vadd.f32 %v6462, %v6574
        %v6576 = vpop.f32.mrb[0].mxu0
        %v6577 = vadd.f32 %v6464, %v6576
        %v6578 = vpop.f32.mrb[0].mxu0
        %v6579 = vadd.f32 %v6466, %v6578
        %6580 = vmatprep.mubr.bf16.mxu0 %v6003
        %6581 = vmatmul.mubr.bf16.gmra.mrb[0].mxu0 %v6002
        %v6582 = vpop.f32.mrb[0].mxu0
        %v6583 = vadd.f32 %v6470, %v6582
        %v6584 = vpop.f32.mrb[0].mxu0
        %v6585 = vadd.f32 %v6472, %v6584
        %v6586 = vpop.f32.mrb[0].mxu0
        %v6587 = vadd.f32 %v6474, %v6586
        %v6588 = vpop.f32.mrb[0].mxu0
        %v6589 = vadd.f32 %v6476, %v6588
        %6590 = vmatprep.mubr.bf16.mxu0 %v6007
        %6591 = vmatmul.mubr.bf16.gmra.mrb[0].mxu0 %v6006
        %v6592 = vpop.f32.mrb[0].mxu0
        %v6593 = vadd.f32 %v6480, %v6592
        %v6594 = vpop.f32.mrb[0].mxu0
        %v6595 = vadd.f32 %v6482, %v6594
        %v6596 = vpop.f32.mrb[0].mxu0
        %v6597 = vadd.f32 %v6484, %v6596
        %v6598 = vpop.f32.mrb[0].mxu0
        %v6599 = vadd.f32 %v6486, %v6598
        %6600 = vmatprep.mubr.bf16.mxu0 %v6011
        %6601 = vmatmul.mubr.bf16.gmra.mrb[0].mxu0 %v6010
        %v6602 = vpop.f32.mrb[0].mxu0
        %v6603 = vadd.f32 %v6490, %v6602
        %v6604 = vpop.f32.mrb[0].mxu0
        %v6605 = vadd.f32 %v6492, %v6604
        %v6606 = vpop.f32.mrb[0].mxu0
        %v6607 = vadd.f32 %v6494, %v6606
        %v6608 = vpop.f32.mrb[0].mxu0
        %v6609 = vadd.f32 %v6496, %v6608
        %6610 = vmatprep.mubr.bf16.mxu0 %v6015
        %6611 = vmatmul.mubr.bf16.gmra.mrb[0].mxu0 %v6014
        %v6612 = vpop.f32.mrb[0].mxu0
        %v6613 = vadd.f32 %v6500, %v6612
        %v6614 = vpop.f32.mrb[0].mxu0
        %v6615 = vadd.f32 %v6502, %v6614
        %v6616 = vpop.f32.mrb[0].mxu0
        %v6617 = vadd.f32 %v6504, %v6616
        %v6618 = vpop.f32.mrb[0].mxu0
        %v6619 = vadd.f32 %v6506, %v6618
        %6620 = vmatprep.mubr.bf16.mxu0 %v6019
        %6621 = vmatmul.mubr.bf16.gmra.mrb[0].mxu0 %v6018
        %v6622 = vpop.f32.mrb[0].mxu0
        %v6623 = vadd.f32 %v6510, %v6622
        %v6624 = vpop.f32.mrb[0].mxu0
        %v6625 = vadd.f32 %v6512, %v6624
        %v6626 = vpop.f32.mrb[0].mxu0
        %v6627 = vadd.f32 %v6514, %v6626
        %v6628 = vpop.f32.mrb[0].mxu0
        %v6629 = vadd.f32 %v6516, %v6628
        %6630 = vdwg.mxu0
        %v6631 = vadd.f32 %v5955, %v6553
        %v6632 = vadd.f32 %v5956, %v6555
        %v6633 = vadd.f32 %v5957, %v6557
        %v6634 = vadd.f32 %v5958, %v6559
        %v6635 = vadd.f32 %v5959, %v6563
        %v6636 = vadd.f32 %v5960, %v6565
        %v6637 = vadd.f32 %v5961, %v6567
        %v6638 = vadd.f32 %v5962, %v6569
        %v6639 = vadd.f32 %v5963, %v6573
        %v6640 = vadd.f32 %v5964, %v6575
        %v6641 = vadd.f32 %v5965, %v6577
        %v6642 = vadd.f32 %v5966, %v6579
        %v6643 = vadd.f32 %v5967, %v6583
        %v6644 = vadd.f32 %v5968, %v6585
        %v6645 = vadd.f32 %v5969, %v6587
        %v6646 = vadd.f32 %v5970, %v6589
        %v6647 = vadd.f32 %v5971, %v6593
        %v6648 = vadd.f32 %v5972, %v6595
        %v6649 = vadd.f32 %v5973, %v6597
        %v6650 = vadd.f32 %v5974, %v6599
        %v6651 = vadd.f32 %v5975, %v6603
        %v6652 = vadd.f32 %v5976, %v6605
        %v6653 = vadd.f32 %v5977, %v6607
        %v6654 = vadd.f32 %v5978, %v6609
        %v6655 = vadd.f32 %v5979, %v6613
        %v6656 = vadd.f32 %v5980, %v6615
        %v6657 = vadd.f32 %v5981, %v6617
        %v6658 = vadd.f32 %v5982, %v6619
        %v6659 = vadd.f32 %v5983, %v6623
        %v6660 = vadd.f32 %v5984, %v6625
        %v6661 = vadd.f32 %v5985, %v6627
        %v6662 = vadd.f32 %v5986, %v6629
        %s6663 = scalar_lea.vmem [#allocation2], 384
        %v6664 = vld [vmem:[%s6663] sm:$0xff]
        %v6665 = vld [vmem:[%s6663 + $0x8] sm:$0xff]
        %v6666 = vld [vmem:[%s6663 + $0x10] sm:$0xff]
        %v6667 = vld [vmem:[%s6663 + $0x18] sm:$0xff]
        %v6668 = vld [vmem:[%s6663 + $0x20] sm:$0xff]
        %v6669 = vld [vmem:[%s6663 + $0x28] sm:$0xff]
        %v6670 = vld [vmem:[%s6663 + $0x30] sm:$0xff]
        %v6671 = vld [vmem:[%s6663 + $0x38] sm:$0xff]
        %v6672 = vld [vmem:[%s6663 + $0x40] sm:$0xff]
        %v6673 = vld [vmem:[%s6663 + $0x48] sm:$0xff]
        %v6674 = vld [vmem:[%s6663 + $0x50] sm:$0xff]
        %v6675 = vld [vmem:[%s6663 + $0x58] sm:$0xff]
        %v6676 = vld [vmem:[%s6663 + $0x60] sm:$0xff]
        %v6677 = vld [vmem:[%s6663 + $0x68] sm:$0xff]
        %v6678 = vld [vmem:[%s6663 + $0x70] sm:$0xff]
        %v6679 = vld [vmem:[%s6663 + $0x78] sm:$0xff]
        %v6680 = vld [vmem:[%s6663 + $0x80] sm:$0xff]
        %v6681 = vld [vmem:[%s6663 + $0x88] sm:$0xff]
        %v6682 = vld [vmem:[%s6663 + $0x90] sm:$0xff]
        %v6683 = vld [vmem:[%s6663 + $0x98] sm:$0xff]
        %v6684 = vld [vmem:[%s6663 + $0xa0] sm:$0xff]
        %v6685 = vld [vmem:[%s6663 + $0xa8] sm:$0xff]
        %v6686 = vld [vmem:[%s6663 + $0xb0] sm:$0xff]
        %v6687 = vld [vmem:[%s6663 + $0xb8] sm:$0xff]
        %v6688 = vld [vmem:[%s6663 + $0xc0] sm:$0xff]
        %v6689 = vld [vmem:[%s6663 + $0xc8] sm:$0xff]
        %v6690 = vld [vmem:[%s6663 + $0xd0] sm:$0xff]
        %v6691 = vld [vmem:[%s6663 + $0xd8] sm:$0xff]
        %v6692 = vld [vmem:[%s6663 + $0xe0] sm:$0xff]
        %v6693 = vld [vmem:[%s6663 + $0xe8] sm:$0xff]
        %v6694 = vld [vmem:[%s6663 + $0xf0] sm:$0xff]
        %v6695 = vld [vmem:[%s6663 + $0xf8] sm:$0xff]
        %s6696 = scalar_lea.vmem %s6, 3584
        %v6697 = vld [vmem:[%s6696] sm:$0xff]
        %v6698 = vld [vmem:[%s6696 + $0x8] sm:$0xff]
        %v6699 = vld [vmem:[%s6696 + $0x10] sm:$0xff]
        %v6700 = vld [vmem:[%s6696 + $0x18] sm:$0xff]
        %v6701 = vld [vmem:[%s6696 + $0x20] sm:$0xff]
        %v6702 = vld [vmem:[%s6696 + $0x28] sm:$0xff]
        %v6703 = vld [vmem:[%s6696 + $0x30] sm:$0xff]
        %v6704 = vld [vmem:[%s6696 + $0x38] sm:$0xff]
        %v6705 = vld [vmem:[%s6696 + $0x40] sm:$0xff]
        %v6706 = vld [vmem:[%s6696 + $0x48] sm:$0xff]
        %v6707 = vld [vmem:[%s6696 + $0x50] sm:$0xff]
        %v6708 = vld [vmem:[%s6696 + $0x58] sm:$0xff]
        %v6709 = vld [vmem:[%s6696 + $0x60] sm:$0xff]
        %v6710 = vld [vmem:[%s6696 + $0x68] sm:$0xff]
        %v6711 = vld [vmem:[%s6696 + $0x70] sm:$0xff]
        %v6712 = vld [vmem:[%s6696 + $0x78] sm:$0xff]
        %v6713 = vld [vmem:[%s6696 + $0x80] sm:$0xff]
        %v6714 = vld [vmem:[%s6696 + $0x88] sm:$0xff]
        %v6715 = vld [vmem:[%s6696 + $0x90] sm:$0xff]
        %v6716 = vld [vmem:[%s6696 + $0x98] sm:$0xff]
        %v6717 = vld [vmem:[%s6696 + $0xa0] sm:$0xff]
        %v6718 = vld [vmem:[%s6696 + $0xa8] sm:$0xff]
        %v6719 = vld [vmem:[%s6696 + $0xb0] sm:$0xff]
        %v6720 = vld [vmem:[%s6696 + $0xb8] sm:$0xff]
        %v6721 = vld [vmem:[%s6696 + $0xc0] sm:$0xff]
        %v6722 = vld [vmem:[%s6696 + $0xc8] sm:$0xff]
        %v6723 = vld [vmem:[%s6696 + $0xd0] sm:$0xff]
        %v6724 = vld [vmem:[%s6696 + $0xd8] sm:$0xff]
        %v6725 = vld [vmem:[%s6696 + $0xe0] sm:$0xff]
        %v6726 = vld [vmem:[%s6696 + $0xe8] sm:$0xff]
        %v6727 = vld [vmem:[%s6696 + $0xf0] sm:$0xff]
        %v6728 = vld [vmem:[%s6696 + $0xf8] sm:$0xff]
        %v6729 = vld [vmem:[%s6696 + $0x100] sm:$0xff]
        %v6730 = vld [vmem:[%s6696 + $0x108] sm:$0xff]
        %v6731 = vld [vmem:[%s6696 + $0x110] sm:$0xff]
        %v6732 = vld [vmem:[%s6696 + $0x118] sm:$0xff]
        %v6733 = vld [vmem:[%s6696 + $0x120] sm:$0xff]
        %v6734 = vld [vmem:[%s6696 + $0x128] sm:$0xff]
        %v6735 = vld [vmem:[%s6696 + $0x130] sm:$0xff]
        %v6736 = vld [vmem:[%s6696 + $0x138] sm:$0xff]
        %v6737 = vld [vmem:[%s6696 + $0x140] sm:$0xff]
        %v6738 = vld [vmem:[%s6696 + $0x148] sm:$0xff]
        %v6739 = vld [vmem:[%s6696 + $0x150] sm:$0xff]
        %v6740 = vld [vmem:[%s6696 + $0x158] sm:$0xff]
        %v6741 = vld [vmem:[%s6696 + $0x160] sm:$0xff]
        %v6742 = vld [vmem:[%s6696 + $0x168] sm:$0xff]
        %v6743 = vld [vmem:[%s6696 + $0x170] sm:$0xff]
        %v6744 = vld [vmem:[%s6696 + $0x178] sm:$0xff]
        %v6745 = vld [vmem:[%s6696 + $0x180] sm:$0xff]
        %v6746 = vld [vmem:[%s6696 + $0x188] sm:$0xff]
        %v6747 = vld [vmem:[%s6696 + $0x190] sm:$0xff]
        %v6748 = vld [vmem:[%s6696 + $0x198] sm:$0xff]
        %v6749 = vld [vmem:[%s6696 + $0x1a0] sm:$0xff]
        %v6750 = vld [vmem:[%s6696 + $0x1a8] sm:$0xff]
        %v6751 = vld [vmem:[%s6696 + $0x1b0] sm:$0xff]
        %v6752 = vld [vmem:[%s6696 + $0x1b8] sm:$0xff]
        %v6753 = vld [vmem:[%s6696 + $0x1c0] sm:$0xff]
        %v6754 = vld [vmem:[%s6696 + $0x1c8] sm:$0xff]
        %v6755 = vld [vmem:[%s6696 + $0x1d0] sm:$0xff]
        %v6756 = vld [vmem:[%s6696 + $0x1d8] sm:$0xff]
        %v6757 = vld [vmem:[%s6696 + $0x1e0] sm:$0xff]
        %v6758 = vld [vmem:[%s6696 + $0x1e8] sm:$0xff]
        %v6759 = vld [vmem:[%s6696 + $0x1f0] sm:$0xff]
        %v6760 = vld [vmem:[%s6696 + $0x1f8] sm:$0xff]
        %v6825 = vunpack.c.l.b16 %v6697
        %v6826 = vunpack.c.h.b16 %v6697
        %v6827 = vunpack.c.l.b16 %v6698
        %v6828 = vunpack.c.h.b16 %v6698
        %v6829 = vunpack.c.l.b16 %v6699
        %v6830 = vunpack.c.h.b16 %v6699
        %v6831 = vunpack.c.l.b16 %v6700
        %v6832 = vunpack.c.h.b16 %v6700
        %v6833 = vunpack.c.l.b16 %v6701
        %v6834 = vunpack.c.h.b16 %v6701
        %v6835 = vunpack.c.l.b16 %v6702
        %v6836 = vunpack.c.h.b16 %v6702
        %v6837 = vunpack.c.l.b16 %v6703
        %v6838 = vunpack.c.h.b16 %v6703
        %v6839 = vunpack.c.l.b16 %v6704
        %v6840 = vunpack.c.h.b16 %v6704
        %v6841 = vunpack.c.l.b16 %v6705
        %v6842 = vunpack.c.h.b16 %v6705
        %v6843 = vunpack.c.l.b16 %v6706
        %v6844 = vunpack.c.h.b16 %v6706
        %v6845 = vunpack.c.l.b16 %v6707
        %v6846 = vunpack.c.h.b16 %v6707
        %v6847 = vunpack.c.l.b16 %v6708
        %v6848 = vunpack.c.h.b16 %v6708
        %v6849 = vunpack.c.l.b16 %v6709
        %v6850 = vunpack.c.h.b16 %v6709
        %v6851 = vunpack.c.l.b16 %v6710
        %v6852 = vunpack.c.h.b16 %v6710
        %v6853 = vunpack.c.l.b16 %v6711
        %v6854 = vunpack.c.h.b16 %v6711
        %v6855 = vunpack.c.l.b16 %v6712
        %v6856 = vunpack.c.h.b16 %v6712
        %v6857 = vunpack.c.l.b16 %v6713
        %v6858 = vunpack.c.h.b16 %v6713
        %v6859 = vunpack.c.l.b16 %v6714
        %v6860 = vunpack.c.h.b16 %v6714
        %v6861 = vunpack.c.l.b16 %v6715
        %v6862 = vunpack.c.h.b16 %v6715
        %v6863 = vunpack.c.l.b16 %v6716
        %v6864 = vunpack.c.h.b16 %v6716
        %v6865 = vunpack.c.l.b16 %v6717
        %v6866 = vunpack.c.h.b16 %v6717
        %v6867 = vunpack.c.l.b16 %v6718
        %v6868 = vunpack.c.h.b16 %v6718
        %v6869 = vunpack.c.l.b16 %v6719
        %v6870 = vunpack.c.h.b16 %v6719
        %v6871 = vunpack.c.l.b16 %v6720
        %v6872 = vunpack.c.h.b16 %v6720
        %v6873 = vunpack.c.l.b16 %v6721
        %v6874 = vunpack.c.h.b16 %v6721
        %v6875 = vunpack.c.l.b16 %v6722
        %v6876 = vunpack.c.h.b16 %v6722
        %v6877 = vunpack.c.l.b16 %v6723
        %v6878 = vunpack.c.h.b16 %v6723
        %v6879 = vunpack.c.l.b16 %v6724
        %v6880 = vunpack.c.h.b16 %v6724
        %v6881 = vunpack.c.l.b16 %v6725
        %v6882 = vunpack.c.h.b16 %v6725
        %v6883 = vunpack.c.l.b16 %v6726
        %v6884 = vunpack.c.h.b16 %v6726
        %v6885 = vunpack.c.l.b16 %v6727
        %v6886 = vunpack.c.h.b16 %v6727
        %v6887 = vunpack.c.l.b16 %v6728
        %v6888 = vunpack.c.h.b16 %v6728
        %v6889 = vunpack.c.l.b16 %v6729
        %v6890 = vunpack.c.h.b16 %v6729
        %v6891 = vunpack.c.l.b16 %v6730
        %v6892 = vunpack.c.h.b16 %v6730
        %v6893 = vunpack.c.l.b16 %v6731
        %v6894 = vunpack.c.h.b16 %v6731
        %v6895 = vunpack.c.l.b16 %v6732
        %v6896 = vunpack.c.h.b16 %v6732
        %v6897 = vunpack.c.l.b16 %v6733
        %v6898 = vunpack.c.h.b16 %v6733
        %v6899 = vunpack.c.l.b16 %v6734
        %v6900 = vunpack.c.h.b16 %v6734
        %v6901 = vunpack.c.l.b16 %v6735
        %v6902 = vunpack.c.h.b16 %v6735
        %v6903 = vunpack.c.l.b16 %v6736
        %v6904 = vunpack.c.h.b16 %v6736
        %v6905 = vunpack.c.l.b16 %v6737
        %v6906 = vunpack.c.h.b16 %v6737
        %v6907 = vunpack.c.l.b16 %v6738
        %v6908 = vunpack.c.h.b16 %v6738
        %v6909 = vunpack.c.l.b16 %v6739
        %v6910 = vunpack.c.h.b16 %v6739
        %v6911 = vunpack.c.l.b16 %v6740
        %v6912 = vunpack.c.h.b16 %v6740
        %v6913 = vunpack.c.l.b16 %v6741
        %v6914 = vunpack.c.h.b16 %v6741
        %v6915 = vunpack.c.l.b16 %v6742
        %v6916 = vunpack.c.h.b16 %v6742
        %v6917 = vunpack.c.l.b16 %v6743
        %v6918 = vunpack.c.h.b16 %v6743
        %v6919 = vunpack.c.l.b16 %v6744
        %v6920 = vunpack.c.h.b16 %v6744
        %v6921 = vunpack.c.l.b16 %v6745
        %v6922 = vunpack.c.h.b16 %v6745
        %v6923 = vunpack.c.l.b16 %v6746
        %v6924 = vunpack.c.h.b16 %v6746
        %v6925 = vunpack.c.l.b16 %v6747
        %v6926 = vunpack.c.h.b16 %v6747
        %v6927 = vunpack.c.l.b16 %v6748
        %v6928 = vunpack.c.h.b16 %v6748
        %v6929 = vunpack.c.l.b16 %v6749
        %v6930 = vunpack.c.h.b16 %v6749
        %v6931 = vunpack.c.l.b16 %v6750
        %v6932 = vunpack.c.h.b16 %v6750
        %v6933 = vunpack.c.l.b16 %v6751
        %v6934 = vunpack.c.h.b16 %v6751
        %v6935 = vunpack.c.l.b16 %v6752
        %v6936 = vunpack.c.h.b16 %v6752
        %v6937 = vunpack.c.l.b16 %v6753
        %v6938 = vunpack.c.h.b16 %v6753
        %v6939 = vunpack.c.l.b16 %v6754
        %v6940 = vunpack.c.h.b16 %v6754
        %v6941 = vunpack.c.l.b16 %v6755
        %v6942 = vunpack.c.h.b16 %v6755
        %v6943 = vunpack.c.l.b16 %v6756
        %v6944 = vunpack.c.h.b16 %v6756
        %v6945 = vunpack.c.l.b16 %v6757
        %v6946 = vunpack.c.h.b16 %v6757
        %v6947 = vunpack.c.l.b16 %v6758
        %v6948 = vunpack.c.h.b16 %v6758
        %v6949 = vunpack.c.l.b16 %v6759
        %v6950 = vunpack.c.h.b16 %v6759
        %v6951 = vunpack.c.l.b16 %v6760
        %v6952 = vunpack.c.h.b16 %v6760
        %v6953 = vpack.c.b16 %v6827, %v6825
        %v6954 = vpack.c.b16 %v6828, %v6826
        %v6955 = vpack.c.b16 %v6831, %v6829
        %v6956 = vpack.c.b16 %v6832, %v6830
        %v6957 = vpack.c.b16 %v6835, %v6833
        %v6958 = vpack.c.b16 %v6836, %v6834
        %v6959 = vpack.c.b16 %v6839, %v6837
        %v6960 = vpack.c.b16 %v6840, %v6838
        %v6961 = vpack.c.b16 %v6843, %v6841
        %v6962 = vpack.c.b16 %v6844, %v6842
        %v6963 = vpack.c.b16 %v6847, %v6845
        %v6964 = vpack.c.b16 %v6848, %v6846
        %v6965 = vpack.c.b16 %v6851, %v6849
        %v6966 = vpack.c.b16 %v6852, %v6850
        %v6967 = vpack.c.b16 %v6855, %v6853
        %v6968 = vpack.c.b16 %v6856, %v6854
        %v6969 = vpack.c.b16 %v6859, %v6857
        %v6970 = vpack.c.b16 %v6860, %v6858
        %v6971 = vpack.c.b16 %v6863, %v6861
        %v6972 = vpack.c.b16 %v6864, %v6862
        %v6973 = vpack.c.b16 %v6867, %v6865
        %v6974 = vpack.c.b16 %v6868, %v6866
        %v6975 = vpack.c.b16 %v6871, %v6869
        %v6976 = vpack.c.b16 %v6872, %v6870
        %v6977 = vpack.c.b16 %v6875, %v6873
        %v6978 = vpack.c.b16 %v6876, %v6874
        %v6979 = vpack.c.b16 %v6879, %v6877
        %v6980 = vpack.c.b16 %v6880, %v6878
        %v6981 = vpack.c.b16 %v6883, %v6881
        %v6982 = vpack.c.b16 %v6884, %v6882
        %v6983 = vpack.c.b16 %v6887, %v6885
        %v6984 = vpack.c.b16 %v6888, %v6886
        %v6985 = vpack.c.b16 %v6891, %v6889
        %v6986 = vpack.c.b16 %v6892, %v6890
        %v6987 = vpack.c.b16 %v6895, %v6893
        %v6988 = vpack.c.b16 %v6896, %v6894
        %v6989 = vpack.c.b16 %v6899, %v6897
        %v6990 = vpack.c.b16 %v6900, %v6898
        %v6991 = vpack.c.b16 %v6903, %v6901
        %v6992 = vpack.c.b16 %v6904, %v6902
        %v6993 = vpack.c.b16 %v6907, %v6905
        %v6994 = vpack.c.b16 %v6908, %v6906
        %v6995 = vpack.c.b16 %v6911, %v6909
        %v6996 = vpack.c.b16 %v6912, %v6910
        %v6997 = vpack.c.b16 %v6915, %v6913
        %v6998 = vpack.c.b16 %v6916, %v6914
        %v6999 = vpack.c.b16 %v6919, %v6917
        %v7000 = vpack.c.b16 %v6920, %v6918
        %v7001 = vpack.c.b16 %v6923, %v6921
        %v7002 = vpack.c.b16 %v6924, %v6922
        %v7003 = vpack.c.b16 %v6927, %v6925
        %v7004 = vpack.c.b16 %v6928, %v6926
        %v7005 = vpack.c.b16 %v6931, %v6929
        %v7006 = vpack.c.b16 %v6932, %v6930
        %v7007 = vpack.c.b16 %v6935, %v6933
        %v7008 = vpack.c.b16 %v6936, %v6934
        %v7009 = vpack.c.b16 %v6939, %v6937
        %v7010 = vpack.c.b16 %v6940, %v6938
        %v7011 = vpack.c.b16 %v6943, %v6941
        %v7012 = vpack.c.b16 %v6944, %v6942
        %v7013 = vpack.c.b16 %v6947, %v6945
        %v7014 = vpack.c.b16 %v6948, %v6946
        %v7015 = vpack.c.b16 %v6951, %v6949
        %v7016 = vpack.c.b16 %v6952, %v6950
        %7081 = vmatprep.subr.bf16.mxu0 %v6954
        %7082 = vmatpush1.bf16.msra.mxu0 %v6953
        %7083 = vmatprep.subr.bf16.mxu0 %v6956
        %7084 = vmatpush1.bf16.msra.mxu0 %v6955
        %7085 = vmatprep.subr.bf16.mxu0 %v6958
        %7086 = vmatpush1.bf16.msra.mxu0 %v6957
        %7087 = vmatprep.subr.bf16.mxu0 %v6960
        %7088 = vmatpush1.bf16.msra.mxu0 %v6959
        %7089 = vmatprep.subr.bf16.mxu0 %v6962
        %7090 = vmatpush1.bf16.msra.mxu0 %v6961
        %7091 = vmatprep.subr.bf16.mxu0 %v6964
        %7092 = vmatpush1.bf16.msra.mxu0 %v6963
        %7093 = vmatprep.subr.bf16.mxu0 %v6966
        %7094 = vmatpush1.bf16.msra.mxu0 %v6965
        %7095 = vmatprep.subr.bf16.mxu0 %v6968
        %7096 = vmatpush1.bf16.msra.mxu0 %v6967
        %7097 = vmatprep.subr.bf16.mxu0 %v6970
        %7098 = vmatpush1.bf16.msra.mxu0 %v6969
        %7099 = vmatprep.subr.bf16.mxu0 %v6972
        %7100 = vmatpush1.bf16.msra.mxu0 %v6971
        %7101 = vmatprep.subr.bf16.mxu0 %v6974
        %7102 = vmatpush1.bf16.msra.mxu0 %v6973
        %7103 = vmatprep.subr.bf16.mxu0 %v6976
        %7104 = vmatpush1.bf16.msra.mxu0 %v6975
        %7105 = vmatprep.subr.bf16.mxu0 %v6978
        %7106 = vmatpush1.bf16.msra.mxu0 %v6977
        %7107 = vmatprep.subr.bf16.mxu0 %v6980
        %7108 = vmatpush1.bf16.msra.mxu0 %v6979
        %7109 = vmatprep.subr.bf16.mxu0 %v6982
        %7110 = vmatpush1.bf16.msra.mxu0 %v6981
        %7111 = vmatprep.subr.bf16.mxu0 %v6984
        %7112 = vmatpush1.bf16.msra.mxu0 %v6983
        %7113 = vmatprep.mubr.bf16.mxu0 %v6665
        %7114 = vmatmul.mubr.bf16.gmra.mrb[0].mxu0 %v6664
        %v7115 = vpop.f32.mrb[0].mxu0
        %v7116 = vadd.f32 0.0, %v7115
        %v7117 = vpop.f32.mrb[0].mxu0
        %v7118 = vadd.f32 0.0, %v7117
        %v7119 = vpop.f32.mrb[0].mxu0
        %v7120 = vadd.f32 0.0, %v7119
        %v7121 = vpop.f32.mrb[0].mxu0
        %v7122 = vadd.f32 0.0, %v7121
        %7123 = vmatprep.mubr.bf16.mxu0 %v6669
        %7124 = vmatmul.mubr.bf16.gmra.mrb[0].mxu0 %v6668
        %v7125 = vpop.f32.mrb[0].mxu0
        %v7126 = vadd.f32 0.0, %v7125
        %v7127 = vpop.f32.mrb[0].mxu0
        %v7128 = vadd.f32 0.0, %v7127
        %v7129 = vpop.f32.mrb[0].mxu0
        %v7130 = vadd.f32 0.0, %v7129
        %v7131 = vpop.f32.mrb[0].mxu0
        %v7132 = vadd.f32 0.0, %v7131
        %7133 = vmatprep.mubr.bf16.mxu0 %v6673
        %7134 = vmatmul.mubr.bf16.gmra.mrb[0].mxu0 %v6672
        %v7135 = vpop.f32.mrb[0].mxu0
        %v7136 = vadd.f32 0.0, %v7135
        %v7137 = vpop.f32.mrb[0].mxu0
        %v7138 = vadd.f32 0.0, %v7137
        %v7139 = vpop.f32.mrb[0].mxu0
        %v7140 = vadd.f32 0.0, %v7139
        %v7141 = vpop.f32.mrb[0].mxu0
        %v7142 = vadd.f32 0.0, %v7141
        %7143 = vmatprep.mubr.bf16.mxu0 %v6677
        %7144 = vmatmul.mubr.bf16.gmra.mrb[0].mxu0 %v6676
        %v7145 = vpop.f32.mrb[0].mxu0
        %v7146 = vadd.f32 0.0, %v7145
        %v7147 = vpop.f32.mrb[0].mxu0
        %v7148 = vadd.f32 0.0, %v7147
        %v7149 = vpop.f32.mrb[0].mxu0
        %v7150 = vadd.f32 0.0, %v7149
        %v7151 = vpop.f32.mrb[0].mxu0
        %v7152 = vadd.f32 0.0, %v7151
        %7153 = vmatprep.mubr.bf16.mxu0 %v6681
        %7154 = vmatmul.mubr.bf16.gmra.mrb[0].mxu0 %v6680
        %v7155 = vpop.f32.mrb[0].mxu0
        %v7156 = vadd.f32 0.0, %v7155
        %v7157 = vpop.f32.mrb[0].mxu0
        %v7158 = vadd.f32 0.0, %v7157
        %v7159 = vpop.f32.mrb[0].mxu0
        %v7160 = vadd.f32 0.0, %v7159
        %v7161 = vpop.f32.mrb[0].mxu0
        %v7162 = vadd.f32 0.0, %v7161
        %7163 = vmatprep.mubr.bf16.mxu0 %v6685
        %7164 = vmatmul.mubr.bf16.gmra.mrb[0].mxu0 %v6684
        %v7165 = vpop.f32.mrb[0].mxu0
        %v7166 = vadd.f32 0.0, %v7165
        %v7167 = vpop.f32.mrb[0].mxu0
        %v7168 = vadd.f32 0.0, %v7167
        %v7169 = vpop.f32.mrb[0].mxu0
        %v7170 = vadd.f32 0.0, %v7169
        %v7171 = vpop.f32.mrb[0].mxu0
        %v7172 = vadd.f32 0.0, %v7171
        %7173 = vmatprep.mubr.bf16.mxu0 %v6689
        %7174 = vmatmul.mubr.bf16.gmra.mrb[0].mxu0 %v6688
        %v7175 = vpop.f32.mrb[0].mxu0
        %v7176 = vadd.f32 0.0, %v7175
        %v7177 = vpop.f32.mrb[0].mxu0
        %v7178 = vadd.f32 0.0, %v7177
        %v7179 = vpop.f32.mrb[0].mxu0
        %v7180 = vadd.f32 0.0, %v7179
        %v7181 = vpop.f32.mrb[0].mxu0
        %v7182 = vadd.f32 0.0, %v7181
        %7183 = vmatprep.mubr.bf16.mxu0 %v6693
        %7184 = vmatmul.mubr.bf16.gmra.mrb[0].mxu0 %v6692
        %v7185 = vpop.f32.mrb[0].mxu0
        %v7186 = vadd.f32 0.0, %v7185
        %v7187 = vpop.f32.mrb[0].mxu0
        %v7188 = vadd.f32 0.0, %v7187
        %v7189 = vpop.f32.mrb[0].mxu0
        %v7190 = vadd.f32 0.0, %v7189
        %v7191 = vpop.f32.mrb[0].mxu0
        %v7192 = vadd.f32 0.0, %v7191
        %7193 = vdwg.mxu0
        %7194 = vmatprep.subr.bf16.mxu0 %v6986
        %7195 = vmatpush1.bf16.msra.mxu0 %v6985
        %7196 = vmatprep.subr.bf16.mxu0 %v6988
        %7197 = vmatpush1.bf16.msra.mxu0 %v6987
        %7198 = vmatprep.subr.bf16.mxu0 %v6990
        %7199 = vmatpush1.bf16.msra.mxu0 %v6989
        %7200 = vmatprep.subr.bf16.mxu0 %v6992
        %7201 = vmatpush1.bf16.msra.mxu0 %v6991
        %7202 = vmatprep.subr.bf16.mxu0 %v6994
        %7203 = vmatpush1.bf16.msra.mxu0 %v6993
        %7204 = vmatprep.subr.bf16.mxu0 %v6996
        %7205 = vmatpush1.bf16.msra.mxu0 %v6995
        %7206 = vmatprep.subr.bf16.mxu0 %v6998
        %7207 = vmatpush1.bf16.msra.mxu0 %v6997
        %7208 = vmatprep.subr.bf16.mxu0 %v7000
        %7209 = vmatpush1.bf16.msra.mxu0 %v6999
        %7210 = vmatprep.subr.bf16.mxu0 %v7002
        %7211 = vmatpush1.bf16.msra.mxu0 %v7001
        %7212 = vmatprep.subr.bf16.mxu0 %v7004
        %7213 = vmatpush1.bf16.msra.mxu0 %v7003
        %7214 = vmatprep.subr.bf16.mxu0 %v7006
        %7215 = vmatpush1.bf16.msra.mxu0 %v7005
        %7216 = vmatprep.subr.bf16.mxu0 %v7008
        %7217 = vmatpush1.bf16.msra.mxu0 %v7007
        %7218 = vmatprep.subr.bf16.mxu0 %v7010
        %7219 = vmatpush1.bf16.msra.mxu0 %v7009
        %7220 = vmatprep.subr.bf16.mxu0 %v7012
        %7221 = vmatpush1.bf16.msra.mxu0 %v7011
        %7222 = vmatprep.subr.bf16.mxu0 %v7014
        %7223 = vmatpush1.bf16.msra.mxu0 %v7013
        %7224 = vmatprep.subr.bf16.mxu0 %v7016
        %7225 = vmatpush1.bf16.msra.mxu0 %v7015
        %7226 = vmatprep.mubr.bf16.mxu0 %v6667
        %7227 = vmatmul.mubr.bf16.gmra.mrb[0].mxu0 %v6666
        %v7228 = vpop.f32.mrb[0].mxu0
        %v7229 = vadd.f32 %v7116, %v7228
        %v7230 = vpop.f32.mrb[0].mxu0
        %v7231 = vadd.f32 %v7118, %v7230
        %v7232 = vpop.f32.mrb[0].mxu0
        %v7233 = vadd.f32 %v7120, %v7232
        %v7234 = vpop.f32.mrb[0].mxu0
        %v7235 = vadd.f32 %v7122, %v7234
        %7236 = vmatprep.mubr.bf16.mxu0 %v6671
        %7237 = vmatmul.mubr.bf16.gmra.mrb[0].mxu0 %v6670
        %v7238 = vpop.f32.mrb[0].mxu0
        %v7239 = vadd.f32 %v7126, %v7238
        %v7240 = vpop.f32.mrb[0].mxu0
        %v7241 = vadd.f32 %v7128, %v7240
        %v7242 = vpop.f32.mrb[0].mxu0
        %v7243 = vadd.f32 %v7130, %v7242
        %v7244 = vpop.f32.mrb[0].mxu0
        %v7245 = vadd.f32 %v7132, %v7244
        %7246 = vmatprep.mubr.bf16.mxu0 %v6675
        %7247 = vmatmul.mubr.bf16.gmra.mrb[0].mxu0 %v6674
        %v7248 = vpop.f32.mrb[0].mxu0
        %v7249 = vadd.f32 %v7136, %v7248
        %v7250 = vpop.f32.mrb[0].mxu0
        %v7251 = vadd.f32 %v7138, %v7250
        %v7252 = vpop.f32.mrb[0].mxu0
        %v7253 = vadd.f32 %v7140, %v7252
        %v7254 = vpop.f32.mrb[0].mxu0
        %v7255 = vadd.f32 %v7142, %v7254
        %7256 = vmatprep.mubr.bf16.mxu0 %v6679
        %7257 = vmatmul.mubr.bf16.gmra.mrb[0].mxu0 %v6678
        %v7258 = vpop.f32.mrb[0].mxu0
        %v7259 = vadd.f32 %v7146, %v7258
        %v7260 = vpop.f32.mrb[0].mxu0
        %v7261 = vadd.f32 %v7148, %v7260
        %v7262 = vpop.f32.mrb[0].mxu0
        %v7263 = vadd.f32 %v7150, %v7262
        %v7264 = vpop.f32.mrb[0].mxu0
        %v7265 = vadd.f32 %v7152, %v7264
        %7266 = vmatprep.mubr.bf16.mxu0 %v6683
        %7267 = vmatmul.mubr.bf16.gmra.mrb[0].mxu0 %v6682
        %v7268 = vpop.f32.mrb[0].mxu0
        %v7269 = vadd.f32 %v7156, %v7268
        %v7270 = vpop.f32.mrb[0].mxu0
        %v7271 = vadd.f32 %v7158, %v7270
        %v7272 = vpop.f32.mrb[0].mxu0
        %v7273 = vadd.f32 %v7160, %v7272
        %v7274 = vpop.f32.mrb[0].mxu0
        %v7275 = vadd.f32 %v7162, %v7274
        %7276 = vmatprep.mubr.bf16.mxu0 %v6687
        %7277 = vmatmul.mubr.bf16.gmra.mrb[0].mxu0 %v6686
        %v7278 = vpop.f32.mrb[0].mxu0
        %v7279 = vadd.f32 %v7166, %v7278
        %v7280 = vpop.f32.mrb[0].mxu0
        %v7281 = vadd.f32 %v7168, %v7280
        %v7282 = vpop.f32.mrb[0].mxu0
        %v7283 = vadd.f32 %v7170, %v7282
        %v7284 = vpop.f32.mrb[0].mxu0
        %v7285 = vadd.f32 %v7172, %v7284
        %7286 = vmatprep.mubr.bf16.mxu0 %v6691
        %7287 = vmatmul.mubr.bf16.gmra.mrb[0].mxu0 %v6690
        %v7288 = vpop.f32.mrb[0].mxu0
        %v7289 = vadd.f32 %v7176, %v7288
        %v7290 = vpop.f32.mrb[0].mxu0
        %v7291 = vadd.f32 %v7178, %v7290
        %v7292 = vpop.f32.mrb[0].mxu0
        %v7293 = vadd.f32 %v7180, %v7292
        %v7294 = vpop.f32.mrb[0].mxu0
        %v7295 = vadd.f32 %v7182, %v7294
        %7296 = vmatprep.mubr.bf16.mxu0 %v6695
        %7297 = vmatmul.mubr.bf16.gmra.mrb[0].mxu0 %v6694
        %v7298 = vpop.f32.mrb[0].mxu0
        %v7299 = vadd.f32 %v7186, %v7298
        %v7300 = vpop.f32.mrb[0].mxu0
        %v7301 = vadd.f32 %v7188, %v7300
        %v7302 = vpop.f32.mrb[0].mxu0
        %v7303 = vadd.f32 %v7190, %v7302
        %v7304 = vpop.f32.mrb[0].mxu0
        %v7305 = vadd.f32 %v7192, %v7304
        %7306 = vdwg.mxu0
        %v7307 = vadd.f32 %v6631, %v7229
        %v7308 = vadd.f32 %v6632, %v7231
        %v7309 = vadd.f32 %v6633, %v7233
        %v7310 = vadd.f32 %v6634, %v7235
        %v7311 = vadd.f32 %v6635, %v7239
        %v7312 = vadd.f32 %v6636, %v7241
        %v7313 = vadd.f32 %v6637, %v7243
        %v7314 = vadd.f32 %v6638, %v7245
        %v7315 = vadd.f32 %v6639, %v7249
        %v7316 = vadd.f32 %v6640, %v7251
        %v7317 = vadd.f32 %v6641, %v7253
        %v7318 = vadd.f32 %v6642, %v7255
        %v7319 = vadd.f32 %v6643, %v7259
        %v7320 = vadd.f32 %v6644, %v7261
        %v7321 = vadd.f32 %v6645, %v7263
        %v7322 = vadd.f32 %v6646, %v7265
        %v7323 = vadd.f32 %v6647, %v7269
        %v7324 = vadd.f32 %v6648, %v7271
        %v7325 = vadd.f32 %v6649, %v7273
        %v7326 = vadd.f32 %v6650, %v7275
        %v7327 = vadd.f32 %v6651, %v7279
        %v7328 = vadd.f32 %v6652, %v7281
        %v7329 = vadd.f32 %v6653, %v7283
        %v7330 = vadd.f32 %v6654, %v7285
        %v7331 = vadd.f32 %v6655, %v7289
        %v7332 = vadd.f32 %v6656, %v7291
        %v7333 = vadd.f32 %v6657, %v7293
        %v7334 = vadd.f32 %v6658, %v7295
        %v7335 = vadd.f32 %v6659, %v7299
        %v7336 = vadd.f32 %v6660, %v7301
        %v7337 = vadd.f32 %v6661, %v7303
        %v7338 = vadd.f32 %v6662, %v7305
        %s7339 = scalar_lea.vmem [#allocation2], 704
        %v7340 = vld [vmem:[%s7339] sm:$0xff]
        %v7341 = vld [vmem:[%s7339 + $0x8] sm:$0xff]
        %v7342 = vld [vmem:[%s7339 + $0x10] sm:$0xff]
        %v7343 = vld [vmem:[%s7339 + $0x18] sm:$0xff]
        %v7344 = vld [vmem:[%s7339 + $0x20] sm:$0xff]
        %v7345 = vld [vmem:[%s7339 + $0x28] sm:$0xff]
        %v7346 = vld [vmem:[%s7339 + $0x30] sm:$0xff]
        %v7347 = vld [vmem:[%s7339 + $0x38] sm:$0xff]
        %v7348 = vld [vmem:[%s7339 + $0x40] sm:$0xff]
        %v7349 = vld [vmem:[%s7339 + $0x48] sm:$0xff]
        %v7350 = vld [vmem:[%s7339 + $0x50] sm:$0xff]
        %v7351 = vld [vmem:[%s7339 + $0x58] sm:$0xff]
        %v7352 = vld [vmem:[%s7339 + $0x60] sm:$0xff]
        %v7353 = vld [vmem:[%s7339 + $0x68] sm:$0xff]
        %v7354 = vld [vmem:[%s7339 + $0x70] sm:$0xff]
        %v7355 = vld [vmem:[%s7339 + $0x78] sm:$0xff]
        %v7356 = vld [vmem:[%s7339 + $0x80] sm:$0xff]
        %v7357 = vld [vmem:[%s7339 + $0x88] sm:$0xff]
        %v7358 = vld [vmem:[%s7339 + $0x90] sm:$0xff]
        %v7359 = vld [vmem:[%s7339 + $0x98] sm:$0xff]
        %v7360 = vld [vmem:[%s7339 + $0xa0] sm:$0xff]
        %v7361 = vld [vmem:[%s7339 + $0xa8] sm:$0xff]
        %v7362 = vld [vmem:[%s7339 + $0xb0] sm:$0xff]
        %v7363 = vld [vmem:[%s7339 + $0xb8] sm:$0xff]
        %v7364 = vld [vmem:[%s7339 + $0xc0] sm:$0xff]
        %v7365 = vld [vmem:[%s7339 + $0xc8] sm:$0xff]
        %v7366 = vld [vmem:[%s7339 + $0xd0] sm:$0xff]
        %v7367 = vld [vmem:[%s7339 + $0xd8] sm:$0xff]
        %v7368 = vld [vmem:[%s7339 + $0xe0] sm:$0xff]
        %v7369 = vld [vmem:[%s7339 + $0xe8] sm:$0xff]
        %v7370 = vld [vmem:[%s7339 + $0xf0] sm:$0xff]
        %v7371 = vld [vmem:[%s7339 + $0xf8] sm:$0xff]
        %s7372 = scalar_lea.vmem %s6, 4096
        %v7373 = vld [vmem:[%s7372] sm:$0xff]
        %v7374 = vld [vmem:[%s7372 + $0x8] sm:$0xff]
        %v7375 = vld [vmem:[%s7372 + $0x10] sm:$0xff]
        %v7376 = vld [vmem:[%s7372 + $0x18] sm:$0xff]
        %v7377 = vld [vmem:[%s7372 + $0x20] sm:$0xff]
        %v7378 = vld [vmem:[%s7372 + $0x28] sm:$0xff]
        %v7379 = vld [vmem:[%s7372 + $0x30] sm:$0xff]
        %v7380 = vld [vmem:[%s7372 + $0x38] sm:$0xff]
        %v7381 = vld [vmem:[%s7372 + $0x40] sm:$0xff]
        %v7382 = vld [vmem:[%s7372 + $0x48] sm:$0xff]
        %v7383 = vld [vmem:[%s7372 + $0x50] sm:$0xff]
        %v7384 = vld [vmem:[%s7372 + $0x58] sm:$0xff]
        %v7385 = vld [vmem:[%s7372 + $0x60] sm:$0xff]
        %v7386 = vld [vmem:[%s7372 + $0x68] sm:$0xff]
        %v7387 = vld [vmem:[%s7372 + $0x70] sm:$0xff]
        %v7388 = vld [vmem:[%s7372 + $0x78] sm:$0xff]
        %v7389 = vld [vmem:[%s7372 + $0x80] sm:$0xff]
        %v7390 = vld [vmem:[%s7372 + $0x88] sm:$0xff]
        %v7391 = vld [vmem:[%s7372 + $0x90] sm:$0xff]
        %v7392 = vld [vmem:[%s7372 + $0x98] sm:$0xff]
        %v7393 = vld [vmem:[%s7372 + $0xa0] sm:$0xff]
        %v7394 = vld [vmem:[%s7372 + $0xa8] sm:$0xff]
        %v7395 = vld [vmem:[%s7372 + $0xb0] sm:$0xff]
        %v7396 = vld [vmem:[%s7372 + $0xb8] sm:$0xff]
        %v7397 = vld [vmem:[%s7372 + $0xc0] sm:$0xff]
        %v7398 = vld [vmem:[%s7372 + $0xc8] sm:$0xff]
        %v7399 = vld [vmem:[%s7372 + $0xd0] sm:$0xff]
        %v7400 = vld [vmem:[%s7372 + $0xd8] sm:$0xff]
        %v7401 = vld [vmem:[%s7372 + $0xe0] sm:$0xff]
        %v7402 = vld [vmem:[%s7372 + $0xe8] sm:$0xff]
        %v7403 = vld [vmem:[%s7372 + $0xf0] sm:$0xff]
        %v7404 = vld [vmem:[%s7372 + $0xf8] sm:$0xff]
        %v7405 = vld [vmem:[%s7372 + $0x100] sm:$0xff]
        %v7406 = vld [vmem:[%s7372 + $0x108] sm:$0xff]
        %v7407 = vld [vmem:[%s7372 + $0x110] sm:$0xff]
        %v7408 = vld [vmem:[%s7372 + $0x118] sm:$0xff]
        %v7409 = vld [vmem:[%s7372 + $0x120] sm:$0xff]
        %v7410 = vld [vmem:[%s7372 + $0x128] sm:$0xff]
        %v7411 = vld [vmem:[%s7372 + $0x130] sm:$0xff]
        %v7412 = vld [vmem:[%s7372 + $0x138] sm:$0xff]
        %v7413 = vld [vmem:[%s7372 + $0x140] sm:$0xff]
        %v7414 = vld [vmem:[%s7372 + $0x148] sm:$0xff]
        %v7415 = vld [vmem:[%s7372 + $0x150] sm:$0xff]
        %v7416 = vld [vmem:[%s7372 + $0x158] sm:$0xff]
        %v7417 = vld [vmem:[%s7372 + $0x160] sm:$0xff]
        %v7418 = vld [vmem:[%s7372 + $0x168] sm:$0xff]
        %v7419 = vld [vmem:[%s7372 + $0x170] sm:$0xff]
        %v7420 = vld [vmem:[%s7372 + $0x178] sm:$0xff]
        %v7421 = vld [vmem:[%s7372 + $0x180] sm:$0xff]
        %v7422 = vld [vmem:[%s7372 + $0x188] sm:$0xff]
        %v7423 = vld [vmem:[%s7372 + $0x190] sm:$0xff]
        %v7424 = vld [vmem:[%s7372 + $0x198] sm:$0xff]
        %v7425 = vld [vmem:[%s7372 + $0x1a0] sm:$0xff]
        %v7426 = vld [vmem:[%s7372 + $0x1a8] sm:$0xff]
        %v7427 = vld [vmem:[%s7372 + $0x1b0] sm:$0xff]
        %v7428 = vld [vmem:[%s7372 + $0x1b8] sm:$0xff]
        %v7429 = vld [vmem:[%s7372 + $0x1c0] sm:$0xff]
        %v7430 = vld [vmem:[%s7372 + $0x1c8] sm:$0xff]
        %v7431 = vld [vmem:[%s7372 + $0x1d0] sm:$0xff]
        %v7432 = vld [vmem:[%s7372 + $0x1d8] sm:$0xff]
        %v7433 = vld [vmem:[%s7372 + $0x1e0] sm:$0xff]
        %v7434 = vld [vmem:[%s7372 + $0x1e8] sm:$0xff]
        %v7435 = vld [vmem:[%s7372 + $0x1f0] sm:$0xff]
        %v7436 = vld [vmem:[%s7372 + $0x1f8] sm:$0xff]
        %v7501 = vunpack.c.l.b16 %v7373
        %v7502 = vunpack.c.h.b16 %v7373
        %v7503 = vunpack.c.l.b16 %v7374
        %v7504 = vunpack.c.h.b16 %v7374
        %v7505 = vunpack.c.l.b16 %v7375
        %v7506 = vunpack.c.h.b16 %v7375
        %v7507 = vunpack.c.l.b16 %v7376
        %v7508 = vunpack.c.h.b16 %v7376
        %v7509 = vunpack.c.l.b16 %v7377
        %v7510 = vunpack.c.h.b16 %v7377
        %v7511 = vunpack.c.l.b16 %v7378
        %v7512 = vunpack.c.h.b16 %v7378
        %v7513 = vunpack.c.l.b16 %v7379
        %v7514 = vunpack.c.h.b16 %v7379
        %v7515 = vunpack.c.l.b16 %v7380
        %v7516 = vunpack.c.h.b16 %v7380
        %v7517 = vunpack.c.l.b16 %v7381
        %v7518 = vunpack.c.h.b16 %v7381
        %v7519 = vunpack.c.l.b16 %v7382
        %v7520 = vunpack.c.h.b16 %v7382
        %v7521 = vunpack.c.l.b16 %v7383
        %v7522 = vunpack.c.h.b16 %v7383
        %v7523 = vunpack.c.l.b16 %v7384
        %v7524 = vunpack.c.h.b16 %v7384
        %v7525 = vunpack.c.l.b16 %v7385
        %v7526 = vunpack.c.h.b16 %v7385
        %v7527 = vunpack.c.l.b16 %v7386
        %v7528 = vunpack.c.h.b16 %v7386
        %v7529 = vunpack.c.l.b16 %v7387
        %v7530 = vunpack.c.h.b16 %v7387
        %v7531 = vunpack.c.l.b16 %v7388
        %v7532 = vunpack.c.h.b16 %v7388
        %v7533 = vunpack.c.l.b16 %v7389
        %v7534 = vunpack.c.h.b16 %v7389
        %v7535 = vunpack.c.l.b16 %v7390
        %v7536 = vunpack.c.h.b16 %v7390
        %v7537 = vunpack.c.l.b16 %v7391
        %v7538 = vunpack.c.h.b16 %v7391
        %v7539 = vunpack.c.l.b16 %v7392
        %v7540 = vunpack.c.h.b16 %v7392
        %v7541 = vunpack.c.l.b16 %v7393
        %v7542 = vunpack.c.h.b16 %v7393
        %v7543 = vunpack.c.l.b16 %v7394
        %v7544 = vunpack.c.h.b16 %v7394
        %v7545 = vunpack.c.l.b16 %v7395
        %v7546 = vunpack.c.h.b16 %v7395
        %v7547 = vunpack.c.l.b16 %v7396
        %v7548 = vunpack.c.h.b16 %v7396
        %v7549 = vunpack.c.l.b16 %v7397
        %v7550 = vunpack.c.h.b16 %v7397
        %v7551 = vunpack.c.l.b16 %v7398
        %v7552 = vunpack.c.h.b16 %v7398
        %v7553 = vunpack.c.l.b16 %v7399
        %v7554 = vunpack.c.h.b16 %v7399
        %v7555 = vunpack.c.l.b16 %v7400
        %v7556 = vunpack.c.h.b16 %v7400
        %v7557 = vunpack.c.l.b16 %v7401
        %v7558 = vunpack.c.h.b16 %v7401
        %v7559 = vunpack.c.l.b16 %v7402
        %v7560 = vunpack.c.h.b16 %v7402
        %v7561 = vunpack.c.l.b16 %v7403
        %v7562 = vunpack.c.h.b16 %v7403
        %v7563 = vunpack.c.l.b16 %v7404
        %v7564 = vunpack.c.h.b16 %v7404
        %v7565 = vunpack.c.l.b16 %v7405
        %v7566 = vunpack.c.h.b16 %v7405
        %v7567 = vunpack.c.l.b16 %v7406
        %v7568 = vunpack.c.h.b16 %v7406
        %v7569 = vunpack.c.l.b16 %v7407
        %v7570 = vunpack.c.h.b16 %v7407
        %v7571 = vunpack.c.l.b16 %v7408
        %v7572 = vunpack.c.h.b16 %v7408
        %v7573 = vunpack.c.l.b16 %v7409
        %v7574 = vunpack.c.h.b16 %v7409
        %v7575 = vunpack.c.l.b16 %v7410
        %v7576 = vunpack.c.h.b16 %v7410
        %v7577 = vunpack.c.l.b16 %v7411
        %v7578 = vunpack.c.h.b16 %v7411
        %v7579 = vunpack.c.l.b16 %v7412
        %v7580 = vunpack.c.h.b16 %v7412
        %v7581 = vunpack.c.l.b16 %v7413
        %v7582 = vunpack.c.h.b16 %v7413
        %v7583 = vunpack.c.l.b16 %v7414
        %v7584 = vunpack.c.h.b16 %v7414
        %v7585 = vunpack.c.l.b16 %v7415
        %v7586 = vunpack.c.h.b16 %v7415
        %v7587 = vunpack.c.l.b16 %v7416
        %v7588 = vunpack.c.h.b16 %v7416
        %v7589 = vunpack.c.l.b16 %v7417
        %v7590 = vunpack.c.h.b16 %v7417
        %v7591 = vunpack.c.l.b16 %v7418
        %v7592 = vunpack.c.h.b16 %v7418
        %v7593 = vunpack.c.l.b16 %v7419
        %v7594 = vunpack.c.h.b16 %v7419
        %v7595 = vunpack.c.l.b16 %v7420
        %v7596 = vunpack.c.h.b16 %v7420
        %v7597 = vunpack.c.l.b16 %v7421
        %v7598 = vunpack.c.h.b16 %v7421
        %v7599 = vunpack.c.l.b16 %v7422
        %v7600 = vunpack.c.h.b16 %v7422
        %v7601 = vunpack.c.l.b16 %v7423
        %v7602 = vunpack.c.h.b16 %v7423
        %v7603 = vunpack.c.l.b16 %v7424
        %v7604 = vunpack.c.h.b16 %v7424
        %v7605 = vunpack.c.l.b16 %v7425
        %v7606 = vunpack.c.h.b16 %v7425
        %v7607 = vunpack.c.l.b16 %v7426
        %v7608 = vunpack.c.h.b16 %v7426
        %v7609 = vunpack.c.l.b16 %v7427
        %v7610 = vunpack.c.h.b16 %v7427
        %v7611 = vunpack.c.l.b16 %v7428
        %v7612 = vunpack.c.h.b16 %v7428
        %v7613 = vunpack.c.l.b16 %v7429
        %v7614 = vunpack.c.h.b16 %v7429
        %v7615 = vunpack.c.l.b16 %v7430
        %v7616 = vunpack.c.h.b16 %v7430
        %v7617 = vunpack.c.l.b16 %v7431
        %v7618 = vunpack.c.h.b16 %v7431
        %v7619 = vunpack.c.l.b16 %v7432
        %v7620 = vunpack.c.h.b16 %v7432
        %v7621 = vunpack.c.l.b16 %v7433
        %v7622 = vunpack.c.h.b16 %v7433
        %v7623 = vunpack.c.l.b16 %v7434
        %v7624 = vunpack.c.h.b16 %v7434
        %v7625 = vunpack.c.l.b16 %v7435
        %v7626 = vunpack.c.h.b16 %v7435
        %v7627 = vunpack.c.l.b16 %v7436
        %v7628 = vunpack.c.h.b16 %v7436
        %v7629 = vpack.c.b16 %v7503, %v7501
        %v7630 = vpack.c.b16 %v7504, %v7502
        %v7631 = vpack.c.b16 %v7507, %v7505
        %v7632 = vpack.c.b16 %v7508, %v7506
        %v7633 = vpack.c.b16 %v7511, %v7509
        %v7634 = vpack.c.b16 %v7512, %v7510
        %v7635 = vpack.c.b16 %v7515, %v7513
        %v7636 = vpack.c.b16 %v7516, %v7514
        %v7637 = vpack.c.b16 %v7519, %v7517
        %v7638 = vpack.c.b16 %v7520, %v7518
        %v7639 = vpack.c.b16 %v7523, %v7521
        %v7640 = vpack.c.b16 %v7524, %v7522
        %v7641 = vpack.c.b16 %v7527, %v7525
        %v7642 = vpack.c.b16 %v7528, %v7526
        %v7643 = vpack.c.b16 %v7531, %v7529
        %v7644 = vpack.c.b16 %v7532, %v7530
        %v7645 = vpack.c.b16 %v7535, %v7533
        %v7646 = vpack.c.b16 %v7536, %v7534
        %v7647 = vpack.c.b16 %v7539, %v7537
        %v7648 = vpack.c.b16 %v7540, %v7538
        %v7649 = vpack.c.b16 %v7543, %v7541
        %v7650 = vpack.c.b16 %v7544, %v7542
        %v7651 = vpack.c.b16 %v7547, %v7545
        %v7652 = vpack.c.b16 %v7548, %v7546
        %v7653 = vpack.c.b16 %v7551, %v7549
        %v7654 = vpack.c.b16 %v7552, %v7550
        %v7655 = vpack.c.b16 %v7555, %v7553
        %v7656 = vpack.c.b16 %v7556, %v7554
        %v7657 = vpack.c.b16 %v7559, %v7557
        %v7658 = vpack.c.b16 %v7560, %v7558
        %v7659 = vpack.c.b16 %v7563, %v7561
        %v7660 = vpack.c.b16 %v7564, %v7562
        %v7661 = vpack.c.b16 %v7567, %v7565
        %v7662 = vpack.c.b16 %v7568, %v7566
        %v7663 = vpack.c.b16 %v7571, %v7569
        %v7664 = vpack.c.b16 %v7572, %v7570
        %v7665 = vpack.c.b16 %v7575, %v7573
        %v7666 = vpack.c.b16 %v7576, %v7574
        %v7667 = vpack.c.b16 %v7579, %v7577
        %v7668 = vpack.c.b16 %v7580, %v7578
        %v7669 = vpack.c.b16 %v7583, %v7581
        %v7670 = vpack.c.b16 %v7584, %v7582
        %v7671 = vpack.c.b16 %v7587, %v7585
        %v7672 = vpack.c.b16 %v7588, %v7586
        %v7673 = vpack.c.b16 %v7591, %v7589
        %v7674 = vpack.c.b16 %v7592, %v7590
        %v7675 = vpack.c.b16 %v7595, %v7593
        %v7676 = vpack.c.b16 %v7596, %v7594
        %v7677 = vpack.c.b16 %v7599, %v7597
        %v7678 = vpack.c.b16 %v7600, %v7598
        %v7679 = vpack.c.b16 %v7603, %v7601
        %v7680 = vpack.c.b16 %v7604, %v7602
        %v7681 = vpack.c.b16 %v7607, %v7605
        %v7682 = vpack.c.b16 %v7608, %v7606
        %v7683 = vpack.c.b16 %v7611, %v7609
        %v7684 = vpack.c.b16 %v7612, %v7610
        %v7685 = vpack.c.b16 %v7615, %v7613
        %v7686 = vpack.c.b16 %v7616, %v7614
        %v7687 = vpack.c.b16 %v7619, %v7617
        %v7688 = vpack.c.b16 %v7620, %v7618
        %v7689 = vpack.c.b16 %v7623, %v7621
        %v7690 = vpack.c.b16 %v7624, %v7622
        %v7691 = vpack.c.b16 %v7627, %v7625
        %v7692 = vpack.c.b16 %v7628, %v7626
        %7757 = vmatprep.subr.bf16.mxu0 %v7630
        %7758 = vmatpush1.bf16.msra.mxu0 %v7629
        %7759 = vmatprep.subr.bf16.mxu0 %v7632
        %7760 = vmatpush1.bf16.msra.mxu0 %v7631
        %7761 = vmatprep.subr.bf16.mxu0 %v7634
        %7762 = vmatpush1.bf16.msra.mxu0 %v7633
        %7763 = vmatprep.subr.bf16.mxu0 %v7636
        %7764 = vmatpush1.bf16.msra.mxu0 %v7635
        %7765 = vmatprep.subr.bf16.mxu0 %v7638
        %7766 = vmatpush1.bf16.msra.mxu0 %v7637
        %7767 = vmatprep.subr.bf16.mxu0 %v7640
        %7768 = vmatpush1.bf16.msra.mxu0 %v7639
        %7769 = vmatprep.subr.bf16.mxu0 %v7642
        %7770 = vmatpush1.bf16.msra.mxu0 %v7641
        %7771 = vmatprep.subr.bf16.mxu0 %v7644
        %7772 = vmatpush1.bf16.msra.mxu0 %v7643
        %7773 = vmatprep.subr.bf16.mxu0 %v7646
        %7774 = vmatpush1.bf16.msra.mxu0 %v7645
        %7775 = vmatprep.subr.bf16.mxu0 %v7648
        %7776 = vmatpush1.bf16.msra.mxu0 %v7647
        %7777 = vmatprep.subr.bf16.mxu0 %v7650
        %7778 = vmatpush1.bf16.msra.mxu0 %v7649
        %7779 = vmatprep.subr.bf16.mxu0 %v7652
        %7780 = vmatpush1.bf16.msra.mxu0 %v7651
        %7781 = vmatprep.subr.bf16.mxu0 %v7654
        %7782 = vmatpush1.bf16.msra.mxu0 %v7653
        %7783 = vmatprep.subr.bf16.mxu0 %v7656
        %7784 = vmatpush1.bf16.msra.mxu0 %v7655
        %7785 = vmatprep.subr.bf16.mxu0 %v7658
        %7786 = vmatpush1.bf16.msra.mxu0 %v7657
        %7787 = vmatprep.subr.bf16.mxu0 %v7660
        %7788 = vmatpush1.bf16.msra.mxu0 %v7659
        %7789 = vmatprep.mubr.bf16.mxu0 %v7341
        %7790 = vmatmul.mubr.bf16.gmra.mrb[0].mxu0 %v7340
        %v7791 = vpop.f32.mrb[0].mxu0
        %v7792 = vadd.f32 0.0, %v7791
        %v7793 = vpop.f32.mrb[0].mxu0
        %v7794 = vadd.f32 0.0, %v7793
        %v7795 = vpop.f32.mrb[0].mxu0
        %v7796 = vadd.f32 0.0, %v7795
        %v7797 = vpop.f32.mrb[0].mxu0
        %v7798 = vadd.f32 0.0, %v7797
        %7799 = vmatprep.mubr.bf16.mxu0 %v7345
        %7800 = vmatmul.mubr.bf16.gmra.mrb[0].mxu0 %v7344
        %v7801 = vpop.f32.mrb[0].mxu0
        %v7802 = vadd.f32 0.0, %v7801
        %v7803 = vpop.f32.mrb[0].mxu0
        %v7804 = vadd.f32 0.0, %v7803
        %v7805 = vpop.f32.mrb[0].mxu0
        %v7806 = vadd.f32 0.0, %v7805
        %v7807 = vpop.f32.mrb[0].mxu0
        %v7808 = vadd.f32 0.0, %v7807
        %7809 = vmatprep.mubr.bf16.mxu0 %v7349
        %7810 = vmatmul.mubr.bf16.gmra.mrb[0].mxu0 %v7348
        %v7811 = vpop.f32.mrb[0].mxu0
        %v7812 = vadd.f32 0.0, %v7811
        %v7813 = vpop.f32.mrb[0].mxu0
        %v7814 = vadd.f32 0.0, %v7813
        %v7815 = vpop.f32.mrb[0].mxu0
        %v7816 = vadd.f32 0.0, %v7815
        %v7817 = vpop.f32.mrb[0].mxu0
        %v7818 = vadd.f32 0.0, %v7817
        %7819 = vmatprep.mubr.bf16.mxu0 %v7353
        %7820 = vmatmul.mubr.bf16.gmra.mrb[0].mxu0 %v7352
        %v7821 = vpop.f32.mrb[0].mxu0
        %v7822 = vadd.f32 0.0, %v7821
        %v7823 = vpop.f32.mrb[0].mxu0
        %v7824 = vadd.f32 0.0, %v7823
        %v7825 = vpop.f32.mrb[0].mxu0
        %v7826 = vadd.f32 0.0, %v7825
        %v7827 = vpop.f32.mrb[0].mxu0
        %v7828 = vadd.f32 0.0, %v7827
        %7829 = vmatprep.mubr.bf16.mxu0 %v7357
        %7830 = vmatmul.mubr.bf16.gmra.mrb[0].mxu0 %v7356
        %v7831 = vpop.f32.mrb[0].mxu0
        %v7832 = vadd.f32 0.0, %v7831
        %v7833 = vpop.f32.mrb[0].mxu0
        %v7834 = vadd.f32 0.0, %v7833
        %v7835 = vpop.f32.mrb[0].mxu0
        %v7836 = vadd.f32 0.0, %v7835
        %v7837 = vpop.f32.mrb[0].mxu0
        %v7838 = vadd.f32 0.0, %v7837
        %7839 = vmatprep.mubr.bf16.mxu0 %v7361
        %7840 = vmatmul.mubr.bf16.gmra.mrb[0].mxu0 %v7360
        %v7841 = vpop.f32.mrb[0].mxu0
        %v7842 = vadd.f32 0.0, %v7841
        %v7843 = vpop.f32.mrb[0].mxu0
        %v7844 = vadd.f32 0.0, %v7843
        %v7845 = vpop.f32.mrb[0].mxu0
        %v7846 = vadd.f32 0.0, %v7845
        %v7847 = vpop.f32.mrb[0].mxu0
        %v7848 = vadd.f32 0.0, %v7847
        %7849 = vmatprep.mubr.bf16.mxu0 %v7365
        %7850 = vmatmul.mubr.bf16.gmra.mrb[0].mxu0 %v7364
        %v7851 = vpop.f32.mrb[0].mxu0
        %v7852 = vadd.f32 0.0, %v7851
        %v7853 = vpop.f32.mrb[0].mxu0
        %v7854 = vadd.f32 0.0, %v7853
        %v7855 = vpop.f32.mrb[0].mxu0
        %v7856 = vadd.f32 0.0, %v7855
        %v7857 = vpop.f32.mrb[0].mxu0
        %v7858 = vadd.f32 0.0, %v7857
        %7859 = vmatprep.mubr.bf16.mxu0 %v7369
        %7860 = vmatmul.mubr.bf16.gmra.mrb[0].mxu0 %v7368
        %v7861 = vpop.f32.mrb[0].mxu0
        %v7862 = vadd.f32 0.0, %v7861
        %v7863 = vpop.f32.mrb[0].mxu0
        %v7864 = vadd.f32 0.0, %v7863
        %v7865 = vpop.f32.mrb[0].mxu0
        %v7866 = vadd.f32 0.0, %v7865
        %v7867 = vpop.f32.mrb[0].mxu0
        %v7868 = vadd.f32 0.0, %v7867
        %7869 = vdwg.mxu0
        %7870 = vmatprep.subr.bf16.mxu0 %v7662
        %7871 = vmatpush1.bf16.msra.mxu0 %v7661
        %7872 = vmatprep.subr.bf16.mxu0 %v7664
        %7873 = vmatpush1.bf16.msra.mxu0 %v7663
        %7874 = vmatprep.subr.bf16.mxu0 %v7666
        %7875 = vmatpush1.bf16.msra.mxu0 %v7665
        %7876 = vmatprep.subr.bf16.mxu0 %v7668
        %7877 = vmatpush1.bf16.msra.mxu0 %v7667
        %7878 = vmatprep.subr.bf16.mxu0 %v7670
        %7879 = vmatpush1.bf16.msra.mxu0 %v7669
        %7880 = vmatprep.subr.bf16.mxu0 %v7672
        %7881 = vmatpush1.bf16.msra.mxu0 %v7671
        %7882 = vmatprep.subr.bf16.mxu0 %v7674
        %7883 = vmatpush1.bf16.msra.mxu0 %v7673
        %7884 = vmatprep.subr.bf16.mxu0 %v7676
        %7885 = vmatpush1.bf16.msra.mxu0 %v7675
        %7886 = vmatprep.subr.bf16.mxu0 %v7678
        %7887 = vmatpush1.bf16.msra.mxu0 %v7677
        %7888 = vmatprep.subr.bf16.mxu0 %v7680
        %7889 = vmatpush1.bf16.msra.mxu0 %v7679
        %7890 = vmatprep.subr.bf16.mxu0 %v7682
        %7891 = vmatpush1.bf16.msra.mxu0 %v7681
        %7892 = vmatprep.subr.bf16.mxu0 %v7684
        %7893 = vmatpush1.bf16.msra.mxu0 %v7683
        %7894 = vmatprep.subr.bf16.mxu0 %v7686
        %7895 = vmatpush1.bf16.msra.mxu0 %v7685
        %7896 = vmatprep.subr.bf16.mxu0 %v7688
        %7897 = vmatpush1.bf16.msra.mxu0 %v7687
        %7898 = vmatprep.subr.bf16.mxu0 %v7690
        %7899 = vmatpush1.bf16.msra.mxu0 %v7689
        %7900 = vmatprep.subr.bf16.mxu0 %v7692
        %7901 = vmatpush1.bf16.msra.mxu0 %v7691
        %7902 = vmatprep.mubr.bf16.mxu0 %v7343
        %7903 = vmatmul.mubr.bf16.gmra.mrb[0].mxu0 %v7342
        %v7904 = vpop.f32.mrb[0].mxu0
        %v7905 = vadd.f32 %v7792, %v7904
        %v7906 = vpop.f32.mrb[0].mxu0
        %v7907 = vadd.f32 %v7794, %v7906
        %v7908 = vpop.f32.mrb[0].mxu0
        %v7909 = vadd.f32 %v7796, %v7908
        %v7910 = vpop.f32.mrb[0].mxu0
        %v7911 = vadd.f32 %v7798, %v7910
        %7912 = vmatprep.mubr.bf16.mxu0 %v7347
        %7913 = vmatmul.mubr.bf16.gmra.mrb[0].mxu0 %v7346
        %v7914 = vpop.f32.mrb[0].mxu0
        %v7915 = vadd.f32 %v7802, %v7914
        %v7916 = vpop.f32.mrb[0].mxu0
        %v7917 = vadd.f32 %v7804, %v7916
        %v7918 = vpop.f32.mrb[0].mxu0
        %v7919 = vadd.f32 %v7806, %v7918
        %v7920 = vpop.f32.mrb[0].mxu0
        %v7921 = vadd.f32 %v7808, %v7920
        %7922 = vmatprep.mubr.bf16.mxu0 %v7351
        %7923 = vmatmul.mubr.bf16.gmra.mrb[0].mxu0 %v7350
        %v7924 = vpop.f32.mrb[0].mxu0
        %v7925 = vadd.f32 %v7812, %v7924
        %v7926 = vpop.f32.mrb[0].mxu0
        %v7927 = vadd.f32 %v7814, %v7926
        %v7928 = vpop.f32.mrb[0].mxu0
        %v7929 = vadd.f32 %v7816, %v7928
        %v7930 = vpop.f32.mrb[0].mxu0
        %v7931 = vadd.f32 %v7818, %v7930
        %7932 = vmatprep.mubr.bf16.mxu0 %v7355
        %7933 = vmatmul.mubr.bf16.gmra.mrb[0].mxu0 %v7354
        %v7934 = vpop.f32.mrb[0].mxu0
        %v7935 = vadd.f32 %v7822, %v7934
        %v7936 = vpop.f32.mrb[0].mxu0
        %v7937 = vadd.f32 %v7824, %v7936
        %v7938 = vpop.f32.mrb[0].mxu0
        %v7939 = vadd.f32 %v7826, %v7938
        %v7940 = vpop.f32.mrb[0].mxu0
        %v7941 = vadd.f32 %v7828, %v7940
        %7942 = vmatprep.mubr.bf16.mxu0 %v7359
        %7943 = vmatmul.mubr.bf16.gmra.mrb[0].mxu0 %v7358
        %v7944 = vpop.f32.mrb[0].mxu0
        %v7945 = vadd.f32 %v7832, %v7944
        %v7946 = vpop.f32.mrb[0].mxu0
        %v7947 = vadd.f32 %v7834, %v7946
        %v7948 = vpop.f32.mrb[0].mxu0
        %v7949 = vadd.f32 %v7836, %v7948
        %v7950 = vpop.f32.mrb[0].mxu0
        %v7951 = vadd.f32 %v7838, %v7950
        %7952 = vmatprep.mubr.bf16.mxu0 %v7363
        %7953 = vmatmul.mubr.bf16.gmra.mrb[0].mxu0 %v7362
        %v7954 = vpop.f32.mrb[0].mxu0
        %v7955 = vadd.f32 %v7842, %v7954
        %v7956 = vpop.f32.mrb[0].mxu0
        %v7957 = vadd.f32 %v7844, %v7956
        %v7958 = vpop.f32.mrb[0].mxu0
        %v7959 = vadd.f32 %v7846, %v7958
        %v7960 = vpop.f32.mrb[0].mxu0
        %v7961 = vadd.f32 %v7848, %v7960
        %7962 = vmatprep.mubr.bf16.mxu0 %v7367
        %7963 = vmatmul.mubr.bf16.gmra.mrb[0].mxu0 %v7366
        %v7964 = vpop.f32.mrb[0].mxu0
        %v7965 = vadd.f32 %v7852, %v7964
        %v7966 = vpop.f32.mrb[0].mxu0
        %v7967 = vadd.f32 %v7854, %v7966
        %v7968 = vpop.f32.mrb[0].mxu0
        %v7969 = vadd.f32 %v7856, %v7968
        %v7970 = vpop.f32.mrb[0].mxu0
        %v7971 = vadd.f32 %v7858, %v7970
        %7972 = vmatprep.mubr.bf16.mxu0 %v7371
        %7973 = vmatmul.mubr.bf16.gmra.mrb[0].mxu0 %v7370
        %v7974 = vpop.f32.mrb[0].mxu0
        %v7975 = vadd.f32 %v7862, %v7974
        %v7976 = vpop.f32.mrb[0].mxu0
        %v7977 = vadd.f32 %v7864, %v7976
        %v7978 = vpop.f32.mrb[0].mxu0
        %v7979 = vadd.f32 %v7866, %v7978
        %v7980 = vpop.f32.mrb[0].mxu0
        %v7981 = vadd.f32 %v7868, %v7980
        %7982 = vdwg.mxu0
        %v7983 = vadd.f32 %v7307, %v7905
        %v7984 = vadd.f32 %v7308, %v7907
        %v7985 = vadd.f32 %v7309, %v7909
        %v7986 = vadd.f32 %v7310, %v7911
        %v7987 = vadd.f32 %v7311, %v7915
        %v7988 = vadd.f32 %v7312, %v7917
        %v7989 = vadd.f32 %v7313, %v7919
        %v7990 = vadd.f32 %v7314, %v7921
        %v7991 = vadd.f32 %v7315, %v7925
        %v7992 = vadd.f32 %v7316, %v7927
        %v7993 = vadd.f32 %v7317, %v7929
        %v7994 = vadd.f32 %v7318, %v7931
        %v7995 = vadd.f32 %v7319, %v7935
        %v7996 = vadd.f32 %v7320, %v7937
        %v7997 = vadd.f32 %v7321, %v7939
        %v7998 = vadd.f32 %v7322, %v7941
        %v7999 = vadd.f32 %v7323, %v7945
        %v8000 = vadd.f32 %v7324, %v7947
        %v8001 = vadd.f32 %v7325, %v7949
        %v8002 = vadd.f32 %v7326, %v7951
        %v8003 = vadd.f32 %v7327, %v7955
        %v8004 = vadd.f32 %v7328, %v7957
        %v8005 = vadd.f32 %v7329, %v7959
        %v8006 = vadd.f32 %v7330, %v7961
        %v8007 = vadd.f32 %v7331, %v7965
        %v8008 = vadd.f32 %v7332, %v7967
        %v8009 = vadd.f32 %v7333, %v7969
        %v8010 = vadd.f32 %v7334, %v7971
        %v8011 = vadd.f32 %v7335, %v7975
        %v8012 = vadd.f32 %v7336, %v7977
        %v8013 = vadd.f32 %v7337, %v7979
        %v8014 = vadd.f32 %v7338, %v7981
        %v8015 = vld [vmem:[%s7] sm:$0x3]
        %v8017 = vlaneseq
        %v8018 = vshrl.u32 %v8017, 7
        %v8019 = vsub.s32 0, %v8018
        %v8020 = vrot.slane %v8015, %v8019
        %v8021 = vlaneseq
        %v8022 = vshrl.u32 %v8021, 7
        %v8023 = vsub.s32 1, %v8022
        %v8024 = vrot.slane %v8015, %v8023
        %v8027 = vadd.f32 %v7983, %v8020
        %v8028 = vadd.f32 %v7984, %v8024
        %v8029 = vadd.f32 %v7985, %v8020
        %v8030 = vadd.f32 %v7986, %v8024
        %v8031 = vadd.f32 %v7987, %v8020
        %v8032 = vadd.f32 %v7988, %v8024
        %v8033 = vadd.f32 %v7989, %v8020
        %v8034 = vadd.f32 %v7990, %v8024
        %v8035 = vadd.f32 %v7991, %v8020
        %v8036 = vadd.f32 %v7992, %v8024
        %v8037 = vadd.f32 %v7993, %v8020
        %v8038 = vadd.f32 %v7994, %v8024
        %v8039 = vadd.f32 %v7995, %v8020
        %v8040 = vadd.f32 %v7996, %v8024
        %v8041 = vadd.f32 %v7997, %v8020
        %v8042 = vadd.f32 %v7998, %v8024
        %v8043 = vadd.f32 %v7999, %v8020
        %v8044 = vadd.f32 %v8000, %v8024
        %v8045 = vadd.f32 %v8001, %v8020
        %v8046 = vadd.f32 %v8002, %v8024
        %v8047 = vadd.f32 %v8003, %v8020
        %v8048 = vadd.f32 %v8004, %v8024
        %v8049 = vadd.f32 %v8005, %v8020
        %v8050 = vadd.f32 %v8006, %v8024
        %v8051 = vadd.f32 %v8007, %v8020
        %v8052 = vadd.f32 %v8008, %v8024
        %v8053 = vadd.f32 %v8009, %v8020
        %v8054 = vadd.f32 %v8010, %v8024
        %v8055 = vadd.f32 %v8011, %v8020
        %v8056 = vadd.f32 %v8012, %v8024
        %v8057 = vadd.f32 %v8013, %v8020
        %v8058 = vadd.f32 %v8014, %v8024
        %v8059 = vmax.f32 %v8027, 0.0
        %v8060 = vmax.f32 %v8028, 0.0
        %v8061 = vmax.f32 %v8029, 0.0
        %v8062 = vmax.f32 %v8030, 0.0
        %v8063 = vmax.f32 %v8031, 0.0
        %v8064 = vmax.f32 %v8032, 0.0
        %v8065 = vmax.f32 %v8033, 0.0
        %v8066 = vmax.f32 %v8034, 0.0
        %v8067 = vmax.f32 %v8035, 0.0
        %v8068 = vmax.f32 %v8036, 0.0
        %v8069 = vmax.f32 %v8037, 0.0
        %v8070 = vmax.f32 %v8038, 0.0
        %v8071 = vmax.f32 %v8039, 0.0
        %v8072 = vmax.f32 %v8040, 0.0
        %v8073 = vmax.f32 %v8041, 0.0
        %v8074 = vmax.f32 %v8042, 0.0
        %v8075 = vmax.f32 %v8043, 0.0
        %v8076 = vmax.f32 %v8044, 0.0
        %v8077 = vmax.f32 %v8045, 0.0
        %v8078 = vmax.f32 %v8046, 0.0
        %v8079 = vmax.f32 %v8047, 0.0
        %v8080 = vmax.f32 %v8048, 0.0
        %v8081 = vmax.f32 %v8049, 0.0
        %v8082 = vmax.f32 %v8050, 0.0
        %v8083 = vmax.f32 %v8051, 0.0
        %v8084 = vmax.f32 %v8052, 0.0
        %v8085 = vmax.f32 %v8053, 0.0
        %v8086 = vmax.f32 %v8054, 0.0
        %v8087 = vmax.f32 %v8055, 0.0
        %v8088 = vmax.f32 %v8056, 0.0
        %v8089 = vmax.f32 %v8057, 0.0
        %v8090 = vmax.f32 %v8058, 0.0
        %8091 = vst [vmem:[%s327] sm:$0xff] %v8059
        %8092 = vst [vmem:[%s327 + $0x8] sm:$0xff] %v8060
        %8093 = vst [vmem:[%s327 + $0x10] sm:$0xff] %v8061
        %8094 = vst [vmem:[%s327 + $0x18] sm:$0xff] %v8062
        %8095 = vst [vmem:[%s327 + $0x20] sm:$0xff] %v8063
        %8096 = vst [vmem:[%s327 + $0x28] sm:$0xff] %v8064
        %8097 = vst [vmem:[%s327 + $0x30] sm:$0xff] %v8065
        %8098 = vst [vmem:[%s327 + $0x38] sm:$0xff] %v8066
        %8099 = vst [vmem:[%s327 + $0x40] sm:$0xff] %v8067
        %8100 = vst [vmem:[%s327 + $0x48] sm:$0xff] %v8068
        %8101 = vst [vmem:[%s327 + $0x50] sm:$0xff] %v8069
        %8102 = vst [vmem:[%s327 + $0x58] sm:$0xff] %v8070
        %8103 = vst [vmem:[%s327 + $0x60] sm:$0xff] %v8071
        %8104 = vst [vmem:[%s327 + $0x68] sm:$0xff] %v8072
        %8105 = vst [vmem:[%s327 + $0x70] sm:$0xff] %v8073
        %8106 = vst [vmem:[%s327 + $0x78] sm:$0xff] %v8074
        %8107 = vst [vmem:[%s327 + $0x80] sm:$0xff] %v8075
        %8108 = vst [vmem:[%s327 + $0x88] sm:$0xff] %v8076
        %8109 = vst [vmem:[%s327 + $0x90] sm:$0xff] %v8077
        %8110 = vst [vmem:[%s327 + $0x98] sm:$0xff] %v8078
        %8111 = vst [vmem:[%s327 + $0xa0] sm:$0xff] %v8079
        %8112 = vst [vmem:[%s327 + $0xa8] sm:$0xff] %v8080
        %8113 = vst [vmem:[%s327 + $0xb0] sm:$0xff] %v8081
        %8114 = vst [vmem:[%s327 + $0xb8] sm:$0xff] %v8082
        %8115 = vst [vmem:[%s327 + $0xc0] sm:$0xff] %v8083
        %8116 = vst [vmem:[%s327 + $0xc8] sm:$0xff] %v8084
        %8117 = vst [vmem:[%s327 + $0xd0] sm:$0xff] %v8085
        %8118 = vst [vmem:[%s327 + $0xd8] sm:$0xff] %v8086
        %8119 = vst [vmem:[%s327 + $0xe0] sm:$0xff] %v8087
        %8120 = vst [vmem:[%s327 + $0xe8] sm:$0xff] %v8088
        %8121 = vst [vmem:[%s327 + $0xf0] sm:$0xff] %v8089
        %8122 = vst [vmem:[%s327 + $0xf8] sm:$0xff] %v8090
        %s8123 = sand.u32 %s222, 1
        %s8124 = scalar_lea.sflag [#allocation4], %s8123
        %s8125 = sand.u32 %s222, 1
        %s8126 = smul.addr %s8125, 256
        %s8127 = scalar_lea.vmem [#allocation3], %s8126
        // Predicated region
        $region61: #{deconv_layer_forward.1} parent=51 // pred_check
          %p8128 = pneg %p232
        $region62: #{deconv_layer_forward.1} parent=51 // pred_check_branch
          %8130 = sbr.rel (%p8128) target = $region64
        $region63: #{deconv_layer_forward.1} parent=51 // pred_region
          %s8131 = smul.u32 8, %s27
          %s8133 = ssub.s32 4096, 4096
          %8134 = vsyncadd %s8124, %s8133
          %s8135 = smul.addr %s8131, 4
          %s8136 = smul.addr %s26, 64
          %s8137 = sadd.s32 %s8135, %s8136
          %s8138 = smul.addr %s8137, 128
          %s8139 = scalar_lea.hbm %s8, %s8138
          %s8140 = sshll.u32 %s8127, 4
          %s8141 = int_to_ptr.vmem [resolvable:$true] %s8140
          %8146 = dma.vmem_to_hbm [thread:$0]  %s8141, 4096, %s8139, %s8124, 256, 256, 16
        $region64: #{deconv_layer_forward.1} parent=51 // pred_fallthru
          _
      $region52: #{deconv_layer_forward.1} parent=5 // pred_fallthru
        _
      %p8147 = scmp.le.s32.totalorder 2, %s17
      // Predicated region
      $region65: #{deconv_layer_forward.1} parent=5 // pred_check
        %p8148 = pneg %p8147
      $region66: #{deconv_layer_forward.1} parent=5 // pred_check_branch
        %8150 = sbr.rel (%p8148) target = $region68
      $region67: #{deconv_layer_forward.1} parent=5 // pred_region
        %s8151 = ssub.s32 %s17, 2
        // Predicated region
        $region69: #{deconv_layer_forward.1} parent=67 // pred_check
          %p8152 = pneg %p238
        $region70: #{deconv_layer_forward.1} parent=67 // pred_check_branch
          %8154 = sbr.rel (%p8152) target = $region72
        $region71: #{deconv_layer_forward.1} parent=67 // pred_region
          %s8155 = sand.u32 %s223, 1
          %s8156 = scalar_lea.sflag [#allocation4], %s8155
          %s8157 = sand.u32 %s223, 1
          %s8158 = smul.addr %s8157, 256
          %s8159 = scalar_lea.vmem [#allocation3], %s8158
          %8160 = dma.done %s8156, 4096
        $region72: #{deconv_layer_forward.1} parent=67 // pred_fallthru
          _
      $region68: #{deconv_layer_forward.1} parent=5 // pred_fallthru
        _
    $region6: #{deconv_layer_forward.1} parent=1 // loop_footer
      %s21 = sadd.s32 1, %s17
    $region7: #{deconv_layer_forward.1} parent=1 // loop_footer_branch
      %16 = sbr.rel target = $region3
    $region8: #{deconv_layer_forward.1} parent=1 // loop_exit
      _
    %8161 = vsyncpa [#allocation4], 1
    %s8162 = scalar_lea.sflag [#allocation4], 1
    %8163 = vsyncpa %s8162, 1

</llo_original>
